<compile_context>
chip_gen: v6e
topology: v6e:2x2x1
jax: 0.10.0
libtpu: 0.0.40
codegen_flags: <defaults>
</compile_context>

<pallas_src>
import functools

import jax
import jax.numpy as jnp
from jax.experimental import pallas as pl
from jax.experimental.pallas import tpu as pltpu

NUM_ANCHORS = 3
NUM_CLASSES = 80
HEAD_BLOCK = 128                       # lanes per anchor block (lane-aligned)
HEAD = NUM_ANCHORS * HEAD_BLOCK        # 384-wide, lane-dense head
LEAKY_SLOPE = 0.1
KH = KW = 3


# --------------------------- in-kernel helpers -------------------------------

def _leaky(x):
    return jnp.where(x > 0, x, LEAKY_SLOPE * x)


def _max_head_conf(y):
    """MaxProbExtractor(cls_id=0, num_cls=80) on one YOLO head output.

    y: (rows, 3*128) float32 in anchor-block layout; per 128-lane block:
       lanes 0..79  class logits (class 0 at lane 0)
       lane  80     objectness logit
       lanes 81..84 box logits (unused by the extractor)
       lanes 85..127 zero padding
    Returns (1, 1) float32: max over anchors and positions of
    sigmoid(obj) * softmax(cls)[class 0].
    """
    rows = y.shape[0]
    best = jnp.zeros((rows, 1), jnp.float32)
    for a in range(NUM_ANCHORS):
        blk = y[:, a * HEAD_BLOCK:(a + 1) * HEAD_BLOCK]     # lane-aligned slice
        cls = blk[:, 0:NUM_CLASSES]                         # (rows, 80)
        obj = blk[:, NUM_CLASSES:NUM_CLASSES + 1]           # (rows, 1)
        m = jnp.max(cls, axis=1, keepdims=True)
        e = jnp.exp(cls - m)
        den = jnp.sum(e, axis=1, keepdims=True)
        cls0 = e[:, 0:1] / den                              # exact softmax[0]
        obj_sig = 1.0 / (1.0 + jnp.exp(-obj))
        best = jnp.maximum(best, obj_sig * cls0)
    return jnp.max(best, axis=0, keepdims=True)             # (1, 1)


# --------------------------- fused Pallas kernel ------------------------------

def _darknet_maxprob_kernel(img_ref, w1_ref, b1_ref, wh1_ref, bh1_ref,
                            w2_ref, b2_ref, wh2_ref, bh2_ref, conf_ref):
    """One image per grid step: conv1+head1, conv2+head2, max-prob, all fused."""
    f32, bf16 = jnp.float32, jnp.bfloat16
    Hp, Wp, _CIN = img_ref.shape            # zero-padded image (H+2, W+2, CIN)
    H, W = Hp - 2, Wp - 2
    H2, W2 = H // 2, W // 2
    C1 = w1_ref.shape[1]
    C2 = w2_ref.shape[1]

    # ---- scale 1: 3x3 stride-1 conv (CIN -> C1) + leaky, as one im2col matmul
    img = img_ref[...]                      # (H+2, W+2, CIN) bf16
    taps1 = []
    for i in range(KH):
        for j in range(KW):
            t = img[i:i + H, j:j + W, :]                    # plain static slice
            taps1.append(t.reshape(H * W, _CIN))
    col1 = jnp.concatenate(taps1, axis=-1)                  # (H*W, 9*CIN)
    acc1 = jnp.dot(col1, w1_ref[...], preferred_element_type=f32)
    act1 = _leaky(acc1 + b1_ref[...]).astype(bf16)          # (H*W, C1)

    # ---- scale-1 YOLO head (C1 -> 3*128) + MaxProbExtractor ------------------
    y1 = jnp.dot(act1, wh1_ref[...], preferred_element_type=f32) + bh1_ref[...]
    c1 = _max_head_conf(y1)                                 # (1, 1)

    # ---- zero-pad the scale-1 activation for the stride-2 conv ---------------
    a1 = act1.reshape(H, W, C1)
    zr = jnp.zeros((1, W, C1), bf16)
    zc = jnp.zeros((H + 2, 1, C1), bf16)
    x1p = jnp.concatenate([zr, a1, zr], axis=0)             # (H+2, W,   C1)
    x1p = jnp.concatenate([zc, x1p, zc], axis=1)            # (H+2, W+2, C1)

    # parity planes: planes[pi][pj][r, s, :] == x1p[2r+pi, 2s+pj, :]
    x1pr = x1p.reshape(H2 + 1, 2, W + 2, C1)
    rows_par = [x1pr[:, 0], x1pr[:, 1]]                     # (H2+1, W+2, C1)
    planes = []
    for pi in range(2):
        xr = rows_par[pi].reshape(H2 + 1, W2 + 1, 2, C1)
        planes.append([xr[:, :, 0, :], xr[:, :, 1, :]])     # (H2+1, W2+1, C1)

    # ---- scale 2: 3x3 stride-2 conv (C1 -> C2) + leaky, one im2col matmul ----
    taps2 = []
    for i in range(KH):
        for j in range(KW):
            p = planes[i % 2][j % 2]
            t = p[i // 2:i // 2 + H2, j // 2:j // 2 + W2, :]   # (H2, W2, C1)
            taps2.append(t.reshape(H2 * W2, C1))
    col2 = jnp.concatenate(taps2, axis=-1)                  # (H2*W2, 9*C1)
    acc2 = jnp.dot(col2, w2_ref[...], preferred_element_type=f32)
    act2 = _leaky(acc2 + b2_ref[...]).astype(bf16)          # (H2*W2, C2)

    # ---- scale-2 YOLO head + MaxProbExtractor --------------------------------
    y2 = jnp.dot(act2, wh2_ref[...], preferred_element_type=f32) + bh2_ref[...]
    c2 = _max_head_conf(y2)                                 # (1, 1)

    # torch.cat(confidences).max(dim=0): max over scales per image
    conf_ref[...] = jnp.maximum(c1, c2)


# --------------------------- wrapper ------------------------------------------

def darknet_max_conf(p_img_nchw, params):
    """Fused tiny-darknet forward + MaxProbExtractor. Returns (B,) max conf."""
    B, CIN, H, W = p_img_nchw.shape
    assert H % 2 == 0 and W % 2 == 0
    C1 = params["b1"].shape[1]
    C2 = params["b2"].shape[1]

    x = jnp.transpose(p_img_nchw, (0, 2, 3, 1))             # NHWC, channels on lanes
    x = jnp.pad(x, ((0, 0), (1, 1), (1, 1), (0, 0)))        # zero-pad rows AND cols
    x = x.astype(jnp.bfloat16)

    conf = pl.pallas_call(
        _darknet_maxprob_kernel,
        out_shape=jax.ShapeDtypeStruct((B, 1, 1), jnp.float32),
        grid=(B,),
        in_specs=[
            pl.BlockSpec((None, H + 2, W + 2, CIN), lambda b: (b, 0, 0, 0)),
            pl.BlockSpec((KH * KW * CIN, C1), lambda b: (0, 0)),
            pl.BlockSpec((1, C1), lambda b: (0, 0)),
            pl.BlockSpec((C1, HEAD), lambda b: (0, 0)),
            pl.BlockSpec((1, HEAD), lambda b: (0, 0)),
            pl.BlockSpec((KH * KW * C1, C2), lambda b: (0, 0)),
            pl.BlockSpec((1, C2), lambda b: (0, 0)),
            pl.BlockSpec((C2, HEAD), lambda b: (0, 0)),
            pl.BlockSpec((1, HEAD), lambda b: (0, 0)),
        ],
        out_specs=pl.BlockSpec((None, 1, 1), lambda b: (b, 0, 0)),
        compiler_params=pltpu.CompilerParams(
            dimension_semantics=("parallel",)),
    )(x, params["w1"], params["b1"], params["wh1"], params["bh1"],
      params["w2"], params["b2"], params["wh2"], params["bh2"])
    return conf[:, 0, 0]                                    # (B,)


# --------------------------- tiny "darknet" params -----------------------------

def init_params(key):
    cin, c1, c2 = 3, 32, 64
    ks = jax.random.split(key, 8)

    def winit(k, fan_in, shape):
        return jax.random.normal(k, shape, jnp.float32) / jnp.sqrt(
            jnp.float32(fan_in))

    def head(kw, kb, c_in):
        # Anchor-block layout: per anchor 128 lanes =
        #   [80 class logits | obj | 4 box | 43 zero pad]  (255 real channels total)
        real = NUM_CLASSES + 5
        w = jnp.zeros((c_in, NUM_ANCHORS, HEAD_BLOCK), jnp.float32)
        b = jnp.zeros((1, NUM_ANCHORS, HEAD_BLOCK), jnp.float32)
        w = w.at[:, :, :real].set(winit(kw, c_in, (c_in, NUM_ANCHORS, real)))
        b = b.at[:, :, :real].set(
            0.01 * jax.random.normal(kb, (1, NUM_ANCHORS, real), jnp.float32))
        return (w.reshape(c_in, HEAD).astype(jnp.bfloat16),
                b.reshape(1, HEAD))

    wh1, bh1 = head(ks[2], ks[3], c1)
    wh2, bh2 = head(ks[6], ks[7], c2)

    return {
        # conv weights pre-reshaped for im2col: taps (i,j) row-major, channel minor
        "w1": winit(ks[0], KH * KW * cin, (KH * KW * cin, c1)).astype(jnp.bfloat16),
        "b1": 0.01 * jax.random.normal(ks[1], (1, c1), jnp.float32),
        "wh1": wh1, "bh1": bh1,
        "w2": winit(ks[4], KH * KW * c1, (KH * KW * c1, c2)).astype(jnp.bfloat16),
        "b2": 0.01 * jax.random.normal(ks[5], (1, c2), jnp.float32),
        "wh2": wh2, "bh2": bh2,
    }


# --------------------------- yolo.forward --------------------------------------

def yolo_forward(img_batch, lab_batch, p_img_batch, params, feature_loss=None):
    del lab_batch  # only consumed by ROI / feature losses (skipped below)
    if feature_loss is not None:
        # TODO(synk): fda_loss / cos_loss / norm_loss and roi_feature are not
        # implemented; forward() only needs them when feature_loss is set.
        raise NotImplementedError("feature losses not implemented")

    # With feature_loss=None the no_grad forward on img_batch is unused — skip it.
    del img_batch

    conf = darknet_max_conf(p_img_batch, params)            # (B,) max over scales
    det_loss = jnp.mean(conf)
    feature_loss_val = jnp.float32(0.0)                     # default -> 0
    return feature_loss_val, det_loss


# --------------------------- main ----------------------------------------------

if __name__ == "__main__":
    key = jax.random.PRNGKey(0)
    k1, k2, k3, kp = jax.random.split(key, 4)

    B, C, H, W = 2, 3, 16, 16
    img_batch = jax.random.uniform(k1, (B, C, H, W), jnp.float32)
    p_img_batch = jax.random.uniform(k2, (B, C, H, W), jnp.float32)
    lab_batch = jax.random.uniform(k3, (B, 14, 5), jnp.float32)

    params = init_params(kp)

    fwd = jax.jit(functools.partial(yolo_forward, params=params))
    feature_loss, det_loss = fwd(img_batch, lab_batch, p_img_batch)
    jax.block_until_ready((feature_loss, det_loss))
    print("KERNEL_OK")
</pallas_src>

<mosaic_0001>
module attributes {stable_mosaic.version = 11 : i64} {
  func.func @_darknet_maxprob_kernel(%arg0: i32, %arg1: memref<1x18x18x3xbf16, #tpu.memory_space<vmem>>, %arg2: memref<27x32xbf16, #tpu.memory_space<vmem>>, %arg3: memref<1x32xf32, #tpu.memory_space<vmem>>, %arg4: memref<32x384xbf16, #tpu.memory_space<vmem>>, %arg5: memref<1x384xf32, #tpu.memory_space<vmem>>, %arg6: memref<288x64xbf16, #tpu.memory_space<vmem>>, %arg7: memref<1x64xf32, #tpu.memory_space<vmem>>, %arg8: memref<64x384xbf16, #tpu.memory_space<vmem>>, %arg9: memref<1x384xf32, #tpu.memory_space<vmem>>, %arg10: memref<1x1x1xf32, #tpu.memory_space<vmem>>) attributes {dimension_semantics = [#tpu.dimension_semantics<parallel>], iteration_bounds = array<i64: 2>, scalar_prefetch = 0 : i64, scratch_operands = 0 : i64, tpu.core_type = #tpu.core_type<tc>, window_params = [{transform_indices = @transform_0, window_bounds = array<i64: 1, 18, 18, 3>}, {pipeline_mode = #tpu.pipeline_mode<synchronous>, transform_indices = @transform_1, window_bounds = array<i64: 27, 32>}, {pipeline_mode = #tpu.pipeline_mode<synchronous>, transform_indices = @transform_2, window_bounds = array<i64: 1, 32>}, {pipeline_mode = #tpu.pipeline_mode<synchronous>, transform_indices = @transform_3, window_bounds = array<i64: 32, 384>}, {pipeline_mode = #tpu.pipeline_mode<synchronous>, transform_indices = @transform_4, window_bounds = array<i64: 1, 384>}, {pipeline_mode = #tpu.pipeline_mode<synchronous>, transform_indices = @transform_5, window_bounds = array<i64: 288, 64>}, {pipeline_mode = #tpu.pipeline_mode<synchronous>, transform_indices = @transform_6, window_bounds = array<i64: 1, 64>}, {pipeline_mode = #tpu.pipeline_mode<synchronous>, transform_indices = @transform_7, window_bounds = array<i64: 64, 384>}, {pipeline_mode = #tpu.pipeline_mode<synchronous>, transform_indices = @transform_8, window_bounds = array<i64: 1, 384>}, {transform_indices = @transform_9, window_bounds = array<i64: 1, 1, 1>}]} {
    %c0 = arith.constant 0 : index
    %c0_0 = arith.constant 0 : index
    %c0_1 = arith.constant 0 : index
    %c0_2 = arith.constant 0 : index
    %0 = vector.load %arg1[%c0, %c0_0, %c0_1, %c0_2] : memref<1x18x18x3xbf16, #tpu.memory_space<vmem>>, vector<1x18x18x3xbf16>
    %1 = vector.shape_cast %0 : vector<1x18x18x3xbf16> to vector<18x18x3xbf16>
    %2 = vector.extract_strided_slice %1 {offsets = [0, 0, 0], sizes = [16, 16, 3], strides = [1, 1, 1]} : vector<18x18x3xbf16> to vector<16x16x3xbf16>
    %3 = vector.shape_cast %2 : vector<16x16x3xbf16> to vector<256x3xbf16>
    %4 = vector.extract_strided_slice %1 {offsets = [0, 1, 0], sizes = [16, 16, 3], strides = [1, 1, 1]} : vector<18x18x3xbf16> to vector<16x16x3xbf16>
    %5 = vector.shape_cast %4 : vector<16x16x3xbf16> to vector<256x3xbf16>
    %6 = vector.extract_strided_slice %1 {offsets = [0, 2, 0], sizes = [16, 16, 3], strides = [1, 1, 1]} : vector<18x18x3xbf16> to vector<16x16x3xbf16>
    %7 = vector.shape_cast %6 : vector<16x16x3xbf16> to vector<256x3xbf16>
    %8 = vector.extract_strided_slice %1 {offsets = [1, 0, 0], sizes = [16, 16, 3], strides = [1, 1, 1]} : vector<18x18x3xbf16> to vector<16x16x3xbf16>
    %9 = vector.shape_cast %8 : vector<16x16x3xbf16> to vector<256x3xbf16>
    %10 = vector.extract_strided_slice %1 {offsets = [1, 1, 0], sizes = [16, 16, 3], strides = [1, 1, 1]} : vector<18x18x3xbf16> to vector<16x16x3xbf16>
    %11 = vector.shape_cast %10 : vector<16x16x3xbf16> to vector<256x3xbf16>
    %12 = vector.extract_strided_slice %1 {offsets = [1, 2, 0], sizes = [16, 16, 3], strides = [1, 1, 1]} : vector<18x18x3xbf16> to vector<16x16x3xbf16>
    %13 = vector.shape_cast %12 : vector<16x16x3xbf16> to vector<256x3xbf16>
    %14 = vector.extract_strided_slice %1 {offsets = [2, 0, 0], sizes = [16, 16, 3], strides = [1, 1, 1]} : vector<18x18x3xbf16> to vector<16x16x3xbf16>
    %15 = vector.shape_cast %14 : vector<16x16x3xbf16> to vector<256x3xbf16>
    %16 = vector.extract_strided_slice %1 {offsets = [2, 1, 0], sizes = [16, 16, 3], strides = [1, 1, 1]} : vector<18x18x3xbf16> to vector<16x16x3xbf16>
    %17 = vector.shape_cast %16 : vector<16x16x3xbf16> to vector<256x3xbf16>
    %18 = vector.extract_strided_slice %1 {offsets = [2, 2, 0], sizes = [16, 16, 3], strides = [1, 1, 1]} : vector<18x18x3xbf16> to vector<16x16x3xbf16>
    %19 = vector.shape_cast %18 : vector<16x16x3xbf16> to vector<256x3xbf16>
    %20 = tpu.concatenate %3, %5, %7, %9, %11, %13, %15, %17, %19 in 1 : vector<256x3xbf16>, vector<256x3xbf16>, vector<256x3xbf16>, vector<256x3xbf16>, vector<256x3xbf16>, vector<256x3xbf16>, vector<256x3xbf16>, vector<256x3xbf16>, vector<256x3xbf16> -> vector<256x27xbf16>
    %c0_3 = arith.constant 0 : index
    %c0_4 = arith.constant 0 : index
    %21 = vector.load %arg2[%c0_3, %c0_4] : memref<27x32xbf16, #tpu.memory_space<vmem>>, vector<27x32xbf16>
    %cst = arith.constant dense<0.000000e+00> : vector<256x32xf32>
    %22 = tpu.matmul %20, %21, %cst {dimension_numbers = #tpu.dot_dimension_numbers<[1], [0], [0], [1], [0, 0, 1, 1], [], []>} : vector<256x27xbf16>, vector<27x32xbf16>, vector<256x32xf32> -> vector<256x32xf32>
    %c0_5 = arith.constant 0 : index
    %c0_6 = arith.constant 0 : index
    %23 = vector.load %arg3[%c0_5, %c0_6] : memref<1x32xf32, #tpu.memory_space<vmem>>, vector<1x32xf32>
    %24 = vector.broadcast %23 : vector<1x32xf32> to vector<256x32xf32>
    %25 = arith.addf %22, %24 : vector<256x32xf32>
    %cst_7 = arith.constant 0.000000e+00 : f32
    %26 = vector.broadcast %cst_7 : f32 to vector<256x32xf32>
    %27 = arith.cmpf ogt, %25, %26 : vector<256x32xf32>
    %cst_8 = arith.constant 1.000000e-01 : f32
    %28 = vector.broadcast %cst_8 : f32 to vector<256x32xf32>
    %29 = arith.mulf %28, %25 : vector<256x32xf32>
    %30 = arith.select %27, %25, %29 : vector<256x32xi1>, vector<256x32xf32>
    %31 = arith.truncf %30 : vector<256x32xf32> to vector<256x32xbf16>
    %c0_9 = arith.constant 0 : index
    %c0_10 = arith.constant 0 : index
    %32 = vector.load %arg4[%c0_9, %c0_10] : memref<32x384xbf16, #tpu.memory_space<vmem>>, vector<32x384xbf16>
    %cst_11 = arith.constant dense<0.000000e+00> : vector<256x384xf32>
    %33 = tpu.matmul %31, %32, %cst_11 {dimension_numbers = #tpu.dot_dimension_numbers<[1], [0], [0], [1], [0, 0, 1, 1], [], []>} : vector<256x32xbf16>, vector<32x384xbf16>, vector<256x384xf32> -> vector<256x384xf32>
    %c0_12 = arith.constant 0 : index
    %c0_13 = arith.constant 0 : index
    %34 = vector.load %arg5[%c0_12, %c0_13] : memref<1x384xf32, #tpu.memory_space<vmem>>, vector<1x384xf32>
    %35 = vector.broadcast %34 : vector<1x384xf32> to vector<256x384xf32>
    %36 = arith.addf %33, %35 : vector<256x384xf32>
    %cst_14 = arith.constant 0.000000e+00 : f32
    %37 = vector.broadcast %cst_14 : f32 to vector<256x1xf32>
    %38 = vector.extract_strided_slice %36 {offsets = [0, 0], sizes = [256, 128], strides = [1, 1]} : vector<256x384xf32> to vector<256x128xf32>
    %39 = vector.extract_strided_slice %38 {offsets = [0, 0], sizes = [256, 80], strides = [1, 1]} : vector<256x128xf32> to vector<256x80xf32>
    %40 = vector.extract_strided_slice %38 {offsets = [0, 80], sizes = [256, 1], strides = [1, 1]} : vector<256x128xf32> to vector<256x1xf32>
    %cst_15 = arith.constant dense<0xFF800000> : vector<256xf32>
    %41 = vector.multi_reduction <maximumf>, %39, %cst_15 [1] : vector<256x80xf32> to vector<256xf32>
    %42 = vector.shape_cast %41 : vector<256xf32> to vector<256x1xf32>
    %43 = vector.broadcast %42 : vector<256x1xf32> to vector<256x80xf32>
    %44 = arith.subf %39, %43 : vector<256x80xf32>
    %45 = math.exp %44 : vector<256x80xf32>
    %cst_16 = arith.constant dense<0.000000e+00> : vector<256xf32>
    %46 = vector.multi_reduction <add>, %45, %cst_16 [1] : vector<256x80xf32> to vector<256xf32>
    %47 = vector.shape_cast %46 : vector<256xf32> to vector<256x1xf32>
    %48 = vector.extract_strided_slice %45 {offsets = [0, 0], sizes = [256, 1], strides = [1, 1]} : vector<256x80xf32> to vector<256x1xf32>
    %49 = arith.divf %48, %47 : vector<256x1xf32>
    %cst_17 = arith.constant 0.000000e+00 : f32
    %50 = vector.broadcast %cst_17 : f32 to vector<256x1xf32>
    %51 = arith.subf %50, %40 : vector<256x1xf32>
    %52 = math.exp %51 : vector<256x1xf32>
    %cst_18 = arith.constant 1.000000e+00 : f32
    %53 = vector.broadcast %cst_18 : f32 to vector<256x1xf32>
    %54 = arith.addf %53, %52 : vector<256x1xf32>
    %cst_19 = arith.constant 1.000000e+00 : f32
    %55 = vector.broadcast %cst_19 : f32 to vector<256x1xf32>
    %56 = arith.divf %55, %54 : vector<256x1xf32>
    %57 = arith.mulf %56, %49 : vector<256x1xf32>
    %58 = arith.maximumf %37, %57 : vector<256x1xf32>
    %59 = vector.extract_strided_slice %36 {offsets = [0, 128], sizes = [256, 128], strides = [1, 1]} : vector<256x384xf32> to vector<256x128xf32>
    %60 = vector.extract_strided_slice %59 {offsets = [0, 0], sizes = [256, 80], strides = [1, 1]} : vector<256x128xf32> to vector<256x80xf32>
    %61 = vector.extract_strided_slice %59 {offsets = [0, 80], sizes = [256, 1], strides = [1, 1]} : vector<256x128xf32> to vector<256x1xf32>
    %cst_20 = arith.constant dense<0xFF800000> : vector<256xf32>
    %62 = vector.multi_reduction <maximumf>, %60, %cst_20 [1] : vector<256x80xf32> to vector<256xf32>
    %63 = vector.shape_cast %62 : vector<256xf32> to vector<256x1xf32>
    %64 = vector.broadcast %63 : vector<256x1xf32> to vector<256x80xf32>
    %65 = arith.subf %60, %64 : vector<256x80xf32>
    %66 = math.exp %65 : vector<256x80xf32>
    %cst_21 = arith.constant dense<0.000000e+00> : vector<256xf32>
    %67 = vector.multi_reduction <add>, %66, %cst_21 [1] : vector<256x80xf32> to vector<256xf32>
    %68 = vector.shape_cast %67 : vector<256xf32> to vector<256x1xf32>
    %69 = vector.extract_strided_slice %66 {offsets = [0, 0], sizes = [256, 1], strides = [1, 1]} : vector<256x80xf32> to vector<256x1xf32>
    %70 = arith.divf %69, %68 : vector<256x1xf32>
    %cst_22 = arith.constant 0.000000e+00 : f32
    %71 = vector.broadcast %cst_22 : f32 to vector<256x1xf32>
    %72 = arith.subf %71, %61 : vector<256x1xf32>
    %73 = math.exp %72 : vector<256x1xf32>
    %cst_23 = arith.constant 1.000000e+00 : f32
    %74 = vector.broadcast %cst_23 : f32 to vector<256x1xf32>
    %75 = arith.addf %74, %73 : vector<256x1xf32>
    %cst_24 = arith.constant 1.000000e+00 : f32
    %76 = vector.broadcast %cst_24 : f32 to vector<256x1xf32>
    %77 = arith.divf %76, %75 : vector<256x1xf32>
    %78 = arith.mulf %77, %70 : vector<256x1xf32>
    %79 = arith.maximumf %58, %78 : vector<256x1xf32>
    %80 = vector.extract_strided_slice %36 {offsets = [0, 256], sizes = [256, 128], strides = [1, 1]} : vector<256x384xf32> to vector<256x128xf32>
    %81 = vector.extract_strided_slice %80 {offsets = [0, 0], sizes = [256, 80], strides = [1, 1]} : vector<256x128xf32> to vector<256x80xf32>
    %82 = vector.extract_strided_slice %80 {offsets = [0, 80], sizes = [256, 1], strides = [1, 1]} : vector<256x128xf32> to vector<256x1xf32>
    %cst_25 = arith.constant dense<0xFF800000> : vector<256xf32>
    %83 = vector.multi_reduction <maximumf>, %81, %cst_25 [1] : vector<256x80xf32> to vector<256xf32>
    %84 = vector.shape_cast %83 : vector<256xf32> to vector<256x1xf32>
    %85 = vector.broadcast %84 : vector<256x1xf32> to vector<256x80xf32>
    %86 = arith.subf %81, %85 : vector<256x80xf32>
    %87 = math.exp %86 : vector<256x80xf32>
    %cst_26 = arith.constant dense<0.000000e+00> : vector<256xf32>
    %88 = vector.multi_reduction <add>, %87, %cst_26 [1] : vector<256x80xf32> to vector<256xf32>
    %89 = vector.shape_cast %88 : vector<256xf32> to vector<256x1xf32>
    %90 = vector.extract_strided_slice %87 {offsets = [0, 0], sizes = [256, 1], strides = [1, 1]} : vector<256x80xf32> to vector<256x1xf32>
    %91 = arith.divf %90, %89 : vector<256x1xf32>
    %cst_27 = arith.constant 0.000000e+00 : f32
    %92 = vector.broadcast %cst_27 : f32 to vector<256x1xf32>
    %93 = arith.subf %92, %82 : vector<256x1xf32>
    %94 = math.exp %93 : vector<256x1xf32>
    %cst_28 = arith.constant 1.000000e+00 : f32
    %95 = vector.broadcast %cst_28 : f32 to vector<256x1xf32>
    %96 = arith.addf %95, %94 : vector<256x1xf32>
    %cst_29 = arith.constant 1.000000e+00 : f32
    %97 = vector.broadcast %cst_29 : f32 to vector<256x1xf32>
    %98 = arith.divf %97, %96 : vector<256x1xf32>
    %99 = arith.mulf %98, %91 : vector<256x1xf32>
    %100 = arith.maximumf %79, %99 : vector<256x1xf32>
    %cst_30 = arith.constant dense<0xFF800000> : vector<1xf32>
    %101 = vector.multi_reduction <maximumf>, %100, %cst_30 [0] : vector<256x1xf32> to vector<1xf32>
    %102 = vector.shape_cast %101 : vector<1xf32> to vector<1x1xf32>
    %103 = vector.shape_cast %31 : vector<256x32xbf16> to vector<16x16x32xbf16>
    %cst_31 = arith.constant 0.000000e+00 : bf16
    %104 = vector.broadcast %cst_31 : bf16 to vector<1x16x32xbf16>
    %cst_32 = arith.constant 0.000000e+00 : bf16
    %105 = vector.broadcast %cst_32 : bf16 to vector<18x1x32xbf16>
    %106 = tpu.concatenate %104, %103, %104 in 0 : vector<1x16x32xbf16>, vector<16x16x32xbf16>, vector<1x16x32xbf16> -> vector<18x16x32xbf16>
    %107 = tpu.concatenate %105, %106, %105 in 1 : vector<18x1x32xbf16>, vector<18x16x32xbf16>, vector<18x1x32xbf16> -> vector<18x18x32xbf16>
    %108 = vector.shape_cast %107 : vector<18x18x32xbf16> to vector<9x2x18x32xbf16>
    %109 = vector.extract_strided_slice %108 {offsets = [0, 0, 0, 0], sizes = [9, 1, 18, 32], strides = [1, 1, 1, 1]} : vector<9x2x18x32xbf16> to vector<9x1x18x32xbf16>
    %110 = vector.shape_cast %109 : vector<9x1x18x32xbf16> to vector<9x18x32xbf16>
    %111 = vector.extract_strided_slice %108 {offsets = [0, 1, 0, 0], sizes = [9, 1, 18, 32], strides = [1, 1, 1, 1]} : vector<9x2x18x32xbf16> to vector<9x1x18x32xbf16>
    %112 = vector.shape_cast %111 : vector<9x1x18x32xbf16> to vector<9x18x32xbf16>
    %113 = vector.shape_cast %110 : vector<9x18x32xbf16> to vector<9x9x2x32xbf16>
    %114 = vector.extract_strided_slice %113 {offsets = [0, 0, 0, 0], sizes = [9, 9, 1, 32], strides = [1, 1, 1, 1]} : vector<9x9x2x32xbf16> to vector<9x9x1x32xbf16>
    %115 = vector.shape_cast %114 : vector<9x9x1x32xbf16> to vector<9x9x32xbf16>
    %116 = vector.extract_strided_slice %113 {offsets = [0, 0, 1, 0], sizes = [9, 9, 1, 32], strides = [1, 1, 1, 1]} : vector<9x9x2x32xbf16> to vector<9x9x1x32xbf16>
    %117 = vector.shape_cast %116 : vector<9x9x1x32xbf16> to vector<9x9x32xbf16>
    %118 = vector.shape_cast %112 : vector<9x18x32xbf16> to vector<9x9x2x32xbf16>
    %119 = vector.extract_strided_slice %118 {offsets = [0, 0, 0, 0], sizes = [9, 9, 1, 32], strides = [1, 1, 1, 1]} : vector<9x9x2x32xbf16> to vector<9x9x1x32xbf16>
    %120 = vector.shape_cast %119 : vector<9x9x1x32xbf16> to vector<9x9x32xbf16>
    %121 = vector.extract_strided_slice %118 {offsets = [0, 0, 1, 0], sizes = [9, 9, 1, 32], strides = [1, 1, 1, 1]} : vector<9x9x2x32xbf16> to vector<9x9x1x32xbf16>
    %122 = vector.shape_cast %121 : vector<9x9x1x32xbf16> to vector<9x9x32xbf16>
    %123 = vector.extract_strided_slice %115 {offsets = [0, 0, 0], sizes = [8, 8, 32], strides = [1, 1, 1]} : vector<9x9x32xbf16> to vector<8x8x32xbf16>
    %124 = vector.shape_cast %123 : vector<8x8x32xbf16> to vector<64x32xbf16>
    %125 = vector.extract_strided_slice %117 {offsets = [0, 0, 0], sizes = [8, 8, 32], strides = [1, 1, 1]} : vector<9x9x32xbf16> to vector<8x8x32xbf16>
    %126 = vector.shape_cast %125 : vector<8x8x32xbf16> to vector<64x32xbf16>
    %127 = vector.extract_strided_slice %115 {offsets = [0, 1, 0], sizes = [8, 8, 32], strides = [1, 1, 1]} : vector<9x9x32xbf16> to vector<8x8x32xbf16>
    %128 = vector.shape_cast %127 : vector<8x8x32xbf16> to vector<64x32xbf16>
    %129 = vector.extract_strided_slice %120 {offsets = [0, 0, 0], sizes = [8, 8, 32], strides = [1, 1, 1]} : vector<9x9x32xbf16> to vector<8x8x32xbf16>
    %130 = vector.shape_cast %129 : vector<8x8x32xbf16> to vector<64x32xbf16>
    %131 = vector.extract_strided_slice %122 {offsets = [0, 0, 0], sizes = [8, 8, 32], strides = [1, 1, 1]} : vector<9x9x32xbf16> to vector<8x8x32xbf16>
    %132 = vector.shape_cast %131 : vector<8x8x32xbf16> to vector<64x32xbf16>
    %133 = vector.extract_strided_slice %120 {offsets = [0, 1, 0], sizes = [8, 8, 32], strides = [1, 1, 1]} : vector<9x9x32xbf16> to vector<8x8x32xbf16>
    %134 = vector.shape_cast %133 : vector<8x8x32xbf16> to vector<64x32xbf16>
    %135 = vector.extract_strided_slice %115 {offsets = [1, 0, 0], sizes = [8, 8, 32], strides = [1, 1, 1]} : vector<9x9x32xbf16> to vector<8x8x32xbf16>
    %136 = vector.shape_cast %135 : vector<8x8x32xbf16> to vector<64x32xbf16>
    %137 = vector.extract_strided_slice %117 {offsets = [1, 0, 0], sizes = [8, 8, 32], strides = [1, 1, 1]} : vector<9x9x32xbf16> to vector<8x8x32xbf16>
    %138 = vector.shape_cast %137 : vector<8x8x32xbf16> to vector<64x32xbf16>
    %139 = vector.extract_strided_slice %115 {offsets = [1, 1, 0], sizes = [8, 8, 32], strides = [1, 1, 1]} : vector<9x9x32xbf16> to vector<8x8x32xbf16>
    %140 = vector.shape_cast %139 : vector<8x8x32xbf16> to vector<64x32xbf16>
    %141 = tpu.concatenate %124, %126, %128, %130, %132, %134, %136, %138, %140 in 1 : vector<64x32xbf16>, vector<64x32xbf16>, vector<64x32xbf16>, vector<64x32xbf16>, vector<64x32xbf16>, vector<64x32xbf16>, vector<64x32xbf16>, vector<64x32xbf16>, vector<64x32xbf16> -> vector<64x288xbf16>
    %c0_33 = arith.constant 0 : index
    %c0_34 = arith.constant 0 : index
    %142 = vector.load %arg6[%c0_33, %c0_34] : memref<288x64xbf16, #tpu.memory_space<vmem>>, vector<288x64xbf16>
    %cst_35 = arith.constant dense<0.000000e+00> : vector<64x64xf32>
    %143 = tpu.matmul %141, %142, %cst_35 {dimension_numbers = #tpu.dot_dimension_numbers<[1], [0], [0], [1], [0, 0, 1, 1], [], []>} : vector<64x288xbf16>, vector<288x64xbf16>, vector<64x64xf32> -> vector<64x64xf32>
    %c0_36 = arith.constant 0 : index
    %c0_37 = arith.constant 0 : index
    %144 = vector.load %arg7[%c0_36, %c0_37] : memref<1x64xf32, #tpu.memory_space<vmem>>, vector<1x64xf32>
    %145 = vector.broadcast %144 : vector<1x64xf32> to vector<64x64xf32>
    %146 = arith.addf %143, %145 : vector<64x64xf32>
    %cst_38 = arith.constant 0.000000e+00 : f32
    %147 = vector.broadcast %cst_38 : f32 to vector<64x64xf32>
    %148 = arith.cmpf ogt, %146, %147 : vector<64x64xf32>
    %cst_39 = arith.constant 1.000000e-01 : f32
    %149 = vector.broadcast %cst_39 : f32 to vector<64x64xf32>
    %150 = arith.mulf %149, %146 : vector<64x64xf32>
    %151 = arith.select %148, %146, %150 : vector<64x64xi1>, vector<64x64xf32>
    %152 = arith.truncf %151 : vector<64x64xf32> to vector<64x64xbf16>
    %c0_40 = arith.constant 0 : index
    %c0_41 = arith.constant 0 : index
    %153 = vector.load %arg8[%c0_40, %c0_41] : memref<64x384xbf16, #tpu.memory_space<vmem>>, vector<64x384xbf16>
    %cst_42 = arith.constant dense<0.000000e+00> : vector<64x384xf32>
    %154 = tpu.matmul %152, %153, %cst_42 {dimension_numbers = #tpu.dot_dimension_numbers<[1], [0], [0], [1], [0, 0, 1, 1], [], []>} : vector<64x64xbf16>, vector<64x384xbf16>, vector<64x384xf32> -> vector<64x384xf32>
    %c0_43 = arith.constant 0 : index
    %c0_44 = arith.constant 0 : index
    %155 = vector.load %arg9[%c0_43, %c0_44] : memref<1x384xf32, #tpu.memory_space<vmem>>, vector<1x384xf32>
    %156 = vector.broadcast %155 : vector<1x384xf32> to vector<64x384xf32>
    %157 = arith.addf %154, %156 : vector<64x384xf32>
    %cst_45 = arith.constant 0.000000e+00 : f32
    %158 = vector.broadcast %cst_45 : f32 to vector<64x1xf32>
    %159 = vector.extract_strided_slice %157 {offsets = [0, 0], sizes = [64, 128], strides = [1, 1]} : vector<64x384xf32> to vector<64x128xf32>
    %160 = vector.extract_strided_slice %159 {offsets = [0, 0], sizes = [64, 80], strides = [1, 1]} : vector<64x128xf32> to vector<64x80xf32>
    %161 = vector.extract_strided_slice %159 {offsets = [0, 80], sizes = [64, 1], strides = [1, 1]} : vector<64x128xf32> to vector<64x1xf32>
    %cst_46 = arith.constant dense<0xFF800000> : vector<64xf32>
    %162 = vector.multi_reduction <maximumf>, %160, %cst_46 [1] : vector<64x80xf32> to vector<64xf32>
    %163 = vector.shape_cast %162 : vector<64xf32> to vector<64x1xf32>
    %164 = vector.broadcast %163 : vector<64x1xf32> to vector<64x80xf32>
    %165 = arith.subf %160, %164 : vector<64x80xf32>
    %166 = math.exp %165 : vector<64x80xf32>
    %cst_47 = arith.constant dense<0.000000e+00> : vector<64xf32>
    %167 = vector.multi_reduction <add>, %166, %cst_47 [1] : vector<64x80xf32> to vector<64xf32>
    %168 = vector.shape_cast %167 : vector<64xf32> to vector<64x1xf32>
    %169 = vector.extract_strided_slice %166 {offsets = [0, 0], sizes = [64, 1], strides = [1, 1]} : vector<64x80xf32> to vector<64x1xf32>
    %170 = arith.divf %169, %168 : vector<64x1xf32>
    %cst_48 = arith.constant 0.000000e+00 : f32
    %171 = vector.broadcast %cst_48 : f32 to vector<64x1xf32>
    %172 = arith.subf %171, %161 : vector<64x1xf32>
    %173 = math.exp %172 : vector<64x1xf32>
    %cst_49 = arith.constant 1.000000e+00 : f32
    %174 = vector.broadcast %cst_49 : f32 to vector<64x1xf32>
    %175 = arith.addf %174, %173 : vector<64x1xf32>
    %cst_50 = arith.constant 1.000000e+00 : f32
    %176 = vector.broadcast %cst_50 : f32 to vector<64x1xf32>
    %177 = arith.divf %176, %175 : vector<64x1xf32>
    %178 = arith.mulf %177, %170 : vector<64x1xf32>
    %179 = arith.maximumf %158, %178 : vector<64x1xf32>
    %180 = vector.extract_strided_slice %157 {offsets = [0, 128], sizes = [64, 128], strides = [1, 1]} : vector<64x384xf32> to vector<64x128xf32>
    %181 = vector.extract_strided_slice %180 {offsets = [0, 0], sizes = [64, 80], strides = [1, 1]} : vector<64x128xf32> to vector<64x80xf32>
    %182 = vector.extract_strided_slice %180 {offsets = [0, 80], sizes = [64, 1], strides = [1, 1]} : vector<64x128xf32> to vector<64x1xf32>
    %cst_51 = arith.constant dense<0xFF800000> : vector<64xf32>
    %183 = vector.multi_reduction <maximumf>, %181, %cst_51 [1] : vector<64x80xf32> to vector<64xf32>
    %184 = vector.shape_cast %183 : vector<64xf32> to vector<64x1xf32>
    %185 = vector.broadcast %184 : vector<64x1xf32> to vector<64x80xf32>
    %186 = arith.subf %181, %185 : vector<64x80xf32>
    %187 = math.exp %186 : vector<64x80xf32>
    %cst_52 = arith.constant dense<0.000000e+00> : vector<64xf32>
    %188 = vector.multi_reduction <add>, %187, %cst_52 [1] : vector<64x80xf32> to vector<64xf32>
    %189 = vector.shape_cast %188 : vector<64xf32> to vector<64x1xf32>
    %190 = vector.extract_strided_slice %187 {offsets = [0, 0], sizes = [64, 1], strides = [1, 1]} : vector<64x80xf32> to vector<64x1xf32>
    %191 = arith.divf %190, %189 : vector<64x1xf32>
    %cst_53 = arith.constant 0.000000e+00 : f32
    %192 = vector.broadcast %cst_53 : f32 to vector<64x1xf32>
    %193 = arith.subf %192, %182 : vector<64x1xf32>
    %194 = math.exp %193 : vector<64x1xf32>
    %cst_54 = arith.constant 1.000000e+00 : f32
    %195 = vector.broadcast %cst_54 : f32 to vector<64x1xf32>
    %196 = arith.addf %195, %194 : vector<64x1xf32>
    %cst_55 = arith.constant 1.000000e+00 : f32
    %197 = vector.broadcast %cst_55 : f32 to vector<64x1xf32>
    %198 = arith.divf %197, %196 : vector<64x1xf32>
    %199 = arith.mulf %198, %191 : vector<64x1xf32>
    %200 = arith.maximumf %179, %199 : vector<64x1xf32>
    %201 = vector.extract_strided_slice %157 {offsets = [0, 256], sizes = [64, 128], strides = [1, 1]} : vector<64x384xf32> to vector<64x128xf32>
    %202 = vector.extract_strided_slice %201 {offsets = [0, 0], sizes = [64, 80], strides = [1, 1]} : vector<64x128xf32> to vector<64x80xf32>
    %203 = vector.extract_strided_slice %201 {offsets = [0, 80], sizes = [64, 1], strides = [1, 1]} : vector<64x128xf32> to vector<64x1xf32>
    %cst_56 = arith.constant dense<0xFF800000> : vector<64xf32>
    %204 = vector.multi_reduction <maximumf>, %202, %cst_56 [1] : vector<64x80xf32> to vector<64xf32>
    %205 = vector.shape_cast %204 : vector<64xf32> to vector<64x1xf32>
    %206 = vector.broadcast %205 : vector<64x1xf32> to vector<64x80xf32>
    %207 = arith.subf %202, %206 : vector<64x80xf32>
    %208 = math.exp %207 : vector<64x80xf32>
    %cst_57 = arith.constant dense<0.000000e+00> : vector<64xf32>
    %209 = vector.multi_reduction <add>, %208, %cst_57 [1] : vector<64x80xf32> to vector<64xf32>
    %210 = vector.shape_cast %209 : vector<64xf32> to vector<64x1xf32>
    %211 = vector.extract_strided_slice %208 {offsets = [0, 0], sizes = [64, 1], strides = [1, 1]} : vector<64x80xf32> to vector<64x1xf32>
    %212 = arith.divf %211, %210 : vector<64x1xf32>
    %cst_58 = arith.constant 0.000000e+00 : f32
    %213 = vector.broadcast %cst_58 : f32 to vector<64x1xf32>
    %214 = arith.subf %213, %203 : vector<64x1xf32>
    %215 = math.exp %214 : vector<64x1xf32>
    %cst_59 = arith.constant 1.000000e+00 : f32
    %216 = vector.broadcast %cst_59 : f32 to vector<64x1xf32>
    %217 = arith.addf %216, %215 : vector<64x1xf32>
    %cst_60 = arith.constant 1.000000e+00 : f32
    %218 = vector.broadcast %cst_60 : f32 to vector<64x1xf32>
    %219 = arith.divf %218, %217 : vector<64x1xf32>
    %220 = arith.mulf %219, %212 : vector<64x1xf32>
    %221 = arith.maximumf %200, %220 : vector<64x1xf32>
    %cst_61 = arith.constant dense<0xFF800000> : vector<1xf32>
    %222 = vector.multi_reduction <maximumf>, %221, %cst_61 [0] : vector<64x1xf32> to vector<1xf32>
    %223 = vector.shape_cast %222 : vector<1xf32> to vector<1x1xf32>
    %224 = arith.maximumf %102, %223 : vector<1x1xf32>
    %c0_62 = arith.constant 0 : index
    %c0_63 = arith.constant 0 : index
    %c0_64 = arith.constant 0 : index
    %225 = vector.load %arg10[%c0_62, %c0_63, %c0_64] : memref<1x1x1xf32, #tpu.memory_space<vmem>>, vector<1x1x1xf32>
    %226 = vector.shape_cast %225 : vector<1x1x1xf32> to vector<1x1xf32>
    %227 = vector.shape_cast %224 : vector<1x1xf32> to vector<1x1x1xf32>
    tpu.vector_store %arg10[%c0_62, %c0_63, %c0_64], %227 {strides = array<i32>} : memref<1x1x1xf32, #tpu.memory_space<vmem>>, vector<1x1x1xf32>,
    return
  }
  func.func @transform_0(%arg0: i32) -> (i32, i32, i32, i32) {
    %c0_i32 = arith.constant 0 : i32
    %c0_i32_0 = arith.constant 0 : i32
    %c0_i32_1 = arith.constant 0 : i32
    %c0_i32_2 = arith.constant 0 : i32
    return %arg0, %c0_i32, %c0_i32_0, %c0_i32_1 : i32, i32, i32, i32
  }
  func.func @transform_1(%arg0: i32) -> (i32, i32) {
    %c0_i32 = arith.constant 0 : i32
    %c0_i32_0 = arith.constant 0 : i32
    %c0_i32_1 = arith.constant 0 : i32
    return %c0_i32, %c0_i32_0 : i32, i32
  }
  func.func @transform_2(%arg0: i32) -> (i32, i32) {
    %c0_i32 = arith.constant 0 : i32
    %c0_i32_0 = arith.constant 0 : i32
    %c0_i32_1 = arith.constant 0 : i32
    return %c0_i32, %c0_i32_0 : i32, i32
  }
  func.func @transform_3(%arg0: i32) -> (i32, i32) {
    %c0_i32 = arith.constant 0 : i32
    %c0_i32_0 = arith.constant 0 : i32
    %c0_i32_1 = arith.constant 0 : i32
    return %c0_i32, %c0_i32_0 : i32, i32
  }
  func.func @transform_4(%arg0: i32) -> (i32, i32) {
    %c0_i32 = arith.constant 0 : i32
    %c0_i32_0 = arith.constant 0 : i32
    %c0_i32_1 = arith.constant 0 : i32
    return %c0_i32, %c0_i32_0 : i32, i32
  }
  func.func @transform_5(%arg0: i32) -> (i32, i32) {
    %c0_i32 = arith.constant 0 : i32
    %c0_i32_0 = arith.constant 0 : i32
    %c0_i32_1 = arith.constant 0 : i32
    return %c0_i32, %c0_i32_0 : i32, i32
  }
  func.func @transform_6(%arg0: i32) -> (i32, i32) {
    %c0_i32 = arith.constant 0 : i32
    %c0_i32_0 = arith.constant 0 : i32
    %c0_i32_1 = arith.constant 0 : i32
    return %c0_i32, %c0_i32_0 : i32, i32
  }
  func.func @transform_7(%arg0: i32) -> (i32, i32) {
    %c0_i32 = arith.constant 0 : i32
    %c0_i32_0 = arith.constant 0 : i32
    %c0_i32_1 = arith.constant 0 : i32
    return %c0_i32, %c0_i32_0 : i32, i32
  }
  func.func @transform_8(%arg0: i32) -> (i32, i32) {
    %c0_i32 = arith.constant 0 : i32
    %c0_i32_0 = arith.constant 0 : i32
    %c0_i32_1 = arith.constant 0 : i32
    return %c0_i32, %c0_i32_0 : i32, i32
  }
  func.func @transform_9(%arg0: i32) -> (i32, i32, i32) {
    %c0_i32 = arith.constant 0 : i32
    %c0_i32_0 = arith.constant 0 : i32
    %c0_i32_1 = arith.constant 0 : i32
    return %arg0, %c0_i32, %c0_i32_0 : i32, i32, i32
  }
}

</mosaic_0001>

<llo_original>
// kernel: yolo_forward.1
$region0: #{yolo_forward.1}
  #allocation0 [shape = 'u32[]', space=smem, size = 0x4, offset = 0x4, fixed_abs, tag = 'smem constant byte address 0x4 - core index']
  #allocation1 [shape = 'u32[144,128]{1,0:T(1,128)}', space=vmem, size = 0x12000, scoped, tag = 'internal scratch']
  %s0 = inlined_call_operand.vmem [shape: bf16[2,18,18,3], index: 0, kind: input, shape index: {}]
  %s1 = inlined_call_operand.vmem [shape: bf16[27,32], index: 1, kind: input, shape index: {}]
  %s2 = inlined_call_operand.vmem [shape: f32[1,32], index: 2, kind: input, shape index: {}]
  %s3 = inlined_call_operand.vmem [shape: bf16[32,384], index: 3, kind: input, shape index: {}]
  %s4 = inlined_call_operand.vmem [shape: f32[1,384], index: 4, kind: input, shape index: {}]
  %s5 = inlined_call_operand.vmem [shape: bf16[288,64], index: 5, kind: input, shape index: {}]
  %s6 = inlined_call_operand.vmem [shape: f32[1,64], index: 6, kind: input, shape index: {}]
  %s7 = inlined_call_operand.vmem [shape: bf16[64,384], index: 7, kind: input, shape index: {}]
  %s8 = inlined_call_operand.vmem [shape: f32[1,384], index: 8, kind: input, shape index: {}]
  %s9 = inlined_call_operand.vmem [shape: f32[2,1,1], index: 9, kind: output, shape index: {}]
  %s10 = sld [smem:[#allocation0]]
  $region69: #{yolo_forward.1} parent=0
    _
  %s12 = ssub.s32 1, %s10
  %s13 = scalar_select 0, %s12, %s10
  loop: start=0, step=1, limit=4
  $region2: #{yolo_forward.1} parent=0 // loop_pre_header
    _
  $region3: #{yolo_forward.1} parent=0 // loop_header
    %s15 = sphi 0, %s19
    %p16 = scmp.ge.s32.totalorder %s15, 4
    %s25 = sphi 0, %s27
    %s28 = sphi 0, %s25
    %s29 = sphi 0, %s28
    %s45 = sphi 0, %s29
    %s49 = sphi 0, %s49
    %s51 = sphi 0, %s49
    %s52 = sphi 0, %s51
    %s66 = sphi 0, %s52
    %s70 = sphi 0, %s70
    %s72 = sphi 0, %s70
    %s73 = sphi 0, %s72
    %s87 = sphi 0, %s73
    %s91 = sphi 0, %s91
    %s93 = sphi 0, %s91
    %s94 = sphi 0, %s93
    %s108 = sphi 0, %s94
    %s112 = sphi 0, %s112
    %s114 = sphi 0, %s112
    %s115 = sphi 0, %s114
    %s129 = sphi 0, %s115
    %s133 = sphi 0, %s133
    %s135 = sphi 0, %s133
    %s136 = sphi 0, %s135
    %s150 = sphi 0, %s136
    %s154 = sphi 0, %s154
    %s156 = sphi 0, %s154
    %s157 = sphi 0, %s156
    %s171 = sphi 0, %s157
    %s175 = sphi 0, %s175
    %s177 = sphi 0, %s175
    %s178 = sphi 0, %s177
    %s192 = sphi 0, %s178
    %s196 = sphi 0, %s196
    %s198 = sphi 0, %s196
    %s199 = sphi 0, %s198
    %s213 = sphi 0, %s199
    %s219 = sphi 0, %s221
    %s222 = sphi 0, %s219
    %s223 = sphi 0, %s222
    %s239 = sphi 0, %s223
  $region4: #{yolo_forward.1} parent=0 // loop_header_branch
    %18 = sbr.rel (%p16) target = $region8
  $region5: #{yolo_forward.1} parent=0 // loop_body
    %s20 = ssub.s32 %s15, 1
    %s21 = ssub.s32 %s15, 2
    %s22 = sadd.s32 %s15, 1
    %s23 = ssub.s32 %s15, %s22
    %p24 = scmp.eq.s32.totalorder %s23, 0
    %s26 = sadd.s32 %s25, 1
    %s27 = scalar_select %p24, %s25, %s26
    %p30 = pneg %p24
    %p31 = scmp.eq.s32.totalorder %s15, 1
    %p32 = por %p30, %p31
    %p33 = scmp.ne.s32.totalorder %s25, %s28
    %p34 = scmp.eq.s32.totalorder %s15, 0
    %p35 = por %p33, %p34
    %p36 = scmp.ne.s32.totalorder %s25, %s28
    %p37 = scmp.eq.s32.totalorder %s20, 1
    %p38 = por %p36, %p37
    %p39 = scmp.ne.s32.totalorder %s28, %s29
    %p40 = scmp.eq.s32.totalorder %s20, 0
    %p41 = por %p39, %p40
    %p42 = scmp.ne.s32.totalorder %s28, %s29
    %p43 = scmp.eq.s32.totalorder %s21, 1
    %p44 = por %p42, %p43
    %p46 = scmp.ne.s32.totalorder %s29, %s45
    %p47 = scmp.eq.s32.totalorder %s21, 0
    %p48 = por %p46, %p47
    %s50 = sadd.s32 %s49, 1
    %p53 = scmp.eq.s32.totalorder %s15, 1
    %p54 = scmp.ne.s32.totalorder %s49, %s51
    %p55 = scmp.eq.s32.totalorder %s15, 0
    %p56 = por %p54, %p55
    %p57 = scmp.ne.s32.totalorder %s49, %s51
    %p58 = scmp.eq.s32.totalorder %s20, 1
    %p59 = por %p57, %p58
    %p60 = scmp.ne.s32.totalorder %s51, %s52
    %p61 = scmp.eq.s32.totalorder %s20, 0
    %p62 = por %p60, %p61
    %p63 = scmp.ne.s32.totalorder %s51, %s52
    %p64 = scmp.eq.s32.totalorder %s21, 1
    %p65 = por %p63, %p64
    %p67 = scmp.ne.s32.totalorder %s52, %s66
    %p68 = scmp.eq.s32.totalorder %s21, 0
    %p69 = por %p67, %p68
    %s71 = sadd.s32 %s70, 1
    %p74 = scmp.eq.s32.totalorder %s15, 1
    %p75 = scmp.ne.s32.totalorder %s70, %s72
    %p76 = scmp.eq.s32.totalorder %s15, 0
    %p77 = por %p75, %p76
    %p78 = scmp.ne.s32.totalorder %s70, %s72
    %p79 = scmp.eq.s32.totalorder %s20, 1
    %p80 = por %p78, %p79
    %p81 = scmp.ne.s32.totalorder %s72, %s73
    %p82 = scmp.eq.s32.totalorder %s20, 0
    %p83 = por %p81, %p82
    %p84 = scmp.ne.s32.totalorder %s72, %s73
    %p85 = scmp.eq.s32.totalorder %s21, 1
    %p86 = por %p84, %p85
    %p88 = scmp.ne.s32.totalorder %s73, %s87
    %p89 = scmp.eq.s32.totalorder %s21, 0
    %p90 = por %p88, %p89
    %s92 = sadd.s32 %s91, 1
    %p95 = scmp.eq.s32.totalorder %s15, 1
    %p96 = scmp.ne.s32.totalorder %s91, %s93
    %p97 = scmp.eq.s32.totalorder %s15, 0
    %p98 = por %p96, %p97
    %p99 = scmp.ne.s32.totalorder %s91, %s93
    %p100 = scmp.eq.s32.totalorder %s20, 1
    %p101 = por %p99, %p100
    %p102 = scmp.ne.s32.totalorder %s93, %s94
    %p103 = scmp.eq.s32.totalorder %s20, 0
    %p104 = por %p102, %p103
    %p105 = scmp.ne.s32.totalorder %s93, %s94
    %p106 = scmp.eq.s32.totalorder %s21, 1
    %p107 = por %p105, %p106
    %p109 = scmp.ne.s32.totalorder %s94, %s108
    %p110 = scmp.eq.s32.totalorder %s21, 0
    %p111 = por %p109, %p110
    %s113 = sadd.s32 %s112, 1
    %p116 = scmp.eq.s32.totalorder %s15, 1
    %p117 = scmp.ne.s32.totalorder %s112, %s114
    %p118 = scmp.eq.s32.totalorder %s15, 0
    %p119 = por %p117, %p118
    %p120 = scmp.ne.s32.totalorder %s112, %s114
    %p121 = scmp.eq.s32.totalorder %s20, 1
    %p122 = por %p120, %p121
    %p123 = scmp.ne.s32.totalorder %s114, %s115
    %p124 = scmp.eq.s32.totalorder %s20, 0
    %p125 = por %p123, %p124
    %p126 = scmp.ne.s32.totalorder %s114, %s115
    %p127 = scmp.eq.s32.totalorder %s21, 1
    %p128 = por %p126, %p127
    %p130 = scmp.ne.s32.totalorder %s115, %s129
    %p131 = scmp.eq.s32.totalorder %s21, 0
    %p132 = por %p130, %p131
    %s134 = sadd.s32 %s133, 1
    %p137 = scmp.eq.s32.totalorder %s15, 1
    %p138 = scmp.ne.s32.totalorder %s133, %s135
    %p139 = scmp.eq.s32.totalorder %s15, 0
    %p140 = por %p138, %p139
    %p141 = scmp.ne.s32.totalorder %s133, %s135
    %p142 = scmp.eq.s32.totalorder %s20, 1
    %p143 = por %p141, %p142
    %p144 = scmp.ne.s32.totalorder %s135, %s136
    %p145 = scmp.eq.s32.totalorder %s20, 0
    %p146 = por %p144, %p145
    %p147 = scmp.ne.s32.totalorder %s135, %s136
    %p148 = scmp.eq.s32.totalorder %s21, 1
    %p149 = por %p147, %p148
    %p151 = scmp.ne.s32.totalorder %s136, %s150
    %p152 = scmp.eq.s32.totalorder %s21, 0
    %p153 = por %p151, %p152
    %s155 = sadd.s32 %s154, 1
    %p158 = scmp.eq.s32.totalorder %s15, 1
    %p159 = scmp.ne.s32.totalorder %s154, %s156
    %p160 = scmp.eq.s32.totalorder %s15, 0
    %p161 = por %p159, %p160
    %p162 = scmp.ne.s32.totalorder %s154, %s156
    %p163 = scmp.eq.s32.totalorder %s20, 1
    %p164 = por %p162, %p163
    %p165 = scmp.ne.s32.totalorder %s156, %s157
    %p166 = scmp.eq.s32.totalorder %s20, 0
    %p167 = por %p165, %p166
    %p168 = scmp.ne.s32.totalorder %s156, %s157
    %p169 = scmp.eq.s32.totalorder %s21, 1
    %p170 = por %p168, %p169
    %p172 = scmp.ne.s32.totalorder %s157, %s171
    %p173 = scmp.eq.s32.totalorder %s21, 0
    %p174 = por %p172, %p173
    %s176 = sadd.s32 %s175, 1
    %p179 = scmp.eq.s32.totalorder %s15, 1
    %p180 = scmp.ne.s32.totalorder %s175, %s177
    %p181 = scmp.eq.s32.totalorder %s15, 0
    %p182 = por %p180, %p181
    %p183 = scmp.ne.s32.totalorder %s175, %s177
    %p184 = scmp.eq.s32.totalorder %s20, 1
    %p185 = por %p183, %p184
    %p186 = scmp.ne.s32.totalorder %s177, %s178
    %p187 = scmp.eq.s32.totalorder %s20, 0
    %p188 = por %p186, %p187
    %p189 = scmp.ne.s32.totalorder %s177, %s178
    %p190 = scmp.eq.s32.totalorder %s21, 1
    %p191 = por %p189, %p190
    %p193 = scmp.ne.s32.totalorder %s178, %s192
    %p194 = scmp.eq.s32.totalorder %s21, 0
    %p195 = por %p193, %p194
    %s197 = sadd.s32 %s196, 1
    %p200 = scmp.eq.s32.totalorder %s15, 1
    %p201 = scmp.ne.s32.totalorder %s196, %s198
    %p202 = scmp.eq.s32.totalorder %s15, 0
    %p203 = por %p201, %p202
    %p204 = scmp.ne.s32.totalorder %s196, %s198
    %p205 = scmp.eq.s32.totalorder %s20, 1
    %p206 = por %p204, %p205
    %p207 = scmp.ne.s32.totalorder %s198, %s199
    %p208 = scmp.eq.s32.totalorder %s20, 0
    %p209 = por %p207, %p208
    %p210 = scmp.ne.s32.totalorder %s198, %s199
    %p211 = scmp.eq.s32.totalorder %s21, 1
    %p212 = por %p210, %p211
    %p214 = scmp.ne.s32.totalorder %s199, %s213
    %p215 = scmp.eq.s32.totalorder %s21, 0
    %p216 = por %p214, %p215
    %s217 = ssub.s32 %s15, %s22
    %p218 = scmp.eq.s32.totalorder %s217, 0
    %s220 = sadd.s32 %s219, 1
    %s221 = scalar_select %p218, %s219, %s220
    %p224 = pneg %p218
    %p225 = scmp.eq.s32.totalorder %s15, 1
    %p226 = por %p224, %p225
    %p227 = scmp.ne.s32.totalorder %s219, %s222
    %p228 = scmp.eq.s32.totalorder %s15, 0
    %p229 = por %p227, %p228
    %p230 = scmp.ne.s32.totalorder %s219, %s222
    %p231 = scmp.eq.s32.totalorder %s20, 1
    %p232 = por %p230, %p231
    %p233 = scmp.ne.s32.totalorder %s222, %s223
    %p234 = scmp.eq.s32.totalorder %s20, 0
    %p235 = por %p233, %p234
    %p236 = scmp.ne.s32.totalorder %s222, %s223
    %p237 = scmp.eq.s32.totalorder %s21, 1
    %p238 = por %p236, %p237
    %p240 = scmp.ne.s32.totalorder %s223, %s239
    %p241 = scmp.eq.s32.totalorder %s21, 0
    %p242 = por %p240, %p241
    %p243 = scmp.le.s32.totalorder 1, %s15
    %p244 = scmp.lt.s32.totalorder %s15, 3
    %p245 = pnand %p243, %p244
    %p246 = pneg %p245
    // Predicated region
    $region9: #{yolo_forward.1} parent=5 // pred_check
      _
    $region10: #{yolo_forward.1} parent=5 // pred_check_branch
      %248 = sbr.rel (%p245) target = $region12
    $region11: #{yolo_forward.1} parent=5 // pred_region
      %s249 = ssub.s32 %s15, 1
      // Predicated region
      $region13: #{yolo_forward.1} parent=11 // pred_check
        %p250 = pneg %p62
      $region14: #{yolo_forward.1} parent=11 // pred_check_branch
        %252 = sbr.rel (%p250) target = $region16
      $region15: #{yolo_forward.1} parent=11 // pred_region
        _
      $region16: #{yolo_forward.1} parent=11 // pred_fallthru
        _
      // Predicated region
      $region17: #{yolo_forward.1} parent=11 // pred_check
        %p253 = pneg %p83
      $region18: #{yolo_forward.1} parent=11 // pred_check_branch
        %255 = sbr.rel (%p253) target = $region20
      $region19: #{yolo_forward.1} parent=11 // pred_region
        _
      $region20: #{yolo_forward.1} parent=11 // pred_fallthru
        _
      // Predicated region
      $region21: #{yolo_forward.1} parent=11 // pred_check
        %p256 = pneg %p104
      $region22: #{yolo_forward.1} parent=11 // pred_check_branch
        %258 = sbr.rel (%p256) target = $region24
      $region23: #{yolo_forward.1} parent=11 // pred_region
        _
      $region24: #{yolo_forward.1} parent=11 // pred_fallthru
        _
      // Predicated region
      $region25: #{yolo_forward.1} parent=11 // pred_check
        %p259 = pneg %p125
      $region26: #{yolo_forward.1} parent=11 // pred_check_branch
        %261 = sbr.rel (%p259) target = $region28
      $region27: #{yolo_forward.1} parent=11 // pred_region
        _
      $region28: #{yolo_forward.1} parent=11 // pred_fallthru
        _
      // Predicated region
      $region29: #{yolo_forward.1} parent=11 // pred_check
        %p262 = pneg %p146
      $region30: #{yolo_forward.1} parent=11 // pred_check_branch
        %264 = sbr.rel (%p262) target = $region32
      $region31: #{yolo_forward.1} parent=11 // pred_region
        _
      $region32: #{yolo_forward.1} parent=11 // pred_fallthru
        _
      // Predicated region
      $region33: #{yolo_forward.1} parent=11 // pred_check
        %p265 = pneg %p167
      $region34: #{yolo_forward.1} parent=11 // pred_check_branch
        %267 = sbr.rel (%p265) target = $region36
      $region35: #{yolo_forward.1} parent=11 // pred_region
        _
      $region36: #{yolo_forward.1} parent=11 // pred_fallthru
        _
      // Predicated region
      $region37: #{yolo_forward.1} parent=11 // pred_check
        %p268 = pneg %p188
      $region38: #{yolo_forward.1} parent=11 // pred_check_branch
        %270 = sbr.rel (%p268) target = $region40
      $region39: #{yolo_forward.1} parent=11 // pred_region
        _
      $region40: #{yolo_forward.1} parent=11 // pred_fallthru
        _
      // Predicated region
      $region41: #{yolo_forward.1} parent=11 // pred_check
        %p271 = pneg %p209
      $region42: #{yolo_forward.1} parent=11 // pred_check_branch
        %273 = sbr.rel (%p271) target = $region44
      $region43: #{yolo_forward.1} parent=11 // pred_region
        _
      $region44: #{yolo_forward.1} parent=11 // pred_fallthru
        _
    $region12: #{yolo_forward.1} parent=5 // pred_fallthru
      _
    %p274 = scmp.lt.s32.totalorder %s15, 2
    // Predicated region
    $region45: #{yolo_forward.1} parent=5 // pred_check
      %p275 = pneg %p274
    $region46: #{yolo_forward.1} parent=5 // pred_check_branch
      %277 = sbr.rel (%p275) target = $region48
    $region47: #{yolo_forward.1} parent=5 // pred_region
      // Predicated region
      $region49: #{yolo_forward.1} parent=47 // pred_check
        %p278 = pneg %p35
      $region50: #{yolo_forward.1} parent=47 // pred_check_branch
        %280 = sbr.rel (%p278) target = $region52
      $region51: #{yolo_forward.1} parent=47 // pred_region
        %p281 = scmp.lt.s32.totalorder %s15, 1
        %s282 = scalar_select %p281, %s15, 1
        %s283 = smul.addr %s282, 54
        %s284 = smul.addr %s283, 4
        %s285 = scalar_lea.vmem %s0, %s284
      $region52: #{yolo_forward.1} parent=47 // pred_fallthru
        _
    $region48: #{yolo_forward.1} parent=5 // pred_fallthru
      _
    %p286 = scmp.le.s32.totalorder 1, %s15
    %p287 = scmp.lt.s32.totalorder %s15, 3
    %p288 = pnand %p286, %p287
    %p289 = pneg %p288
    // Predicated region
    $region53: #{yolo_forward.1} parent=5 // pred_check
      _
    $region54: #{yolo_forward.1} parent=5 // pred_check_branch
      %291 = sbr.rel (%p288) target = $region56
    $region55: #{yolo_forward.1} parent=5 // pred_region
      %s292 = ssub.s32 %s15, 1
      %p293 = scmp.lt.s32.totalorder %s20, 1
      %s294 = scalar_select %p293, %s20, 1
      %s295 = smul.addr %s294, 54
      %s296 = smul.addr %s295, 4
      %s297 = scalar_lea.vmem %s0, %s296
      %p298 = pneg %p41
      %p299 = pneg %p38
      %p300 = pneg %p62
      %p301 = pneg %p59
      %p302 = pneg %p83
      %p303 = pneg %p80
      %p304 = pneg %p104
      %p305 = pneg %p101
      %p306 = pneg %p125
      %p307 = pneg %p122
      %p308 = pneg %p146
      %p309 = pneg %p143
      %p310 = pneg %p167
      %p311 = pneg %p164
      %p312 = pneg %p188
      %p313 = pneg %p185
      %p314 = pneg %p209
      %p315 = pneg %p206
      %p316 = pneg %p235
      %p317 = pneg %p232
      %p318 = scmp.lt.s32.totalorder %s20, 1
      %s319 = scalar_select %p318, %s20, 1
      %s320 = scalar_lea.vmem %s9, %s319
      %p321 = scmp.lt.s32.totalorder %s20, 1
      %s322 = scalar_select %p321, %s20, 1
      %s323 = smul.addr %s322, 54
      %s324 = smul.addr %s323, 4
      %s325 = scalar_lea.vmem %s0, %s324
      %p326 = scmp.lt.s32.totalorder %s20, 1
      %s327 = scalar_select %p326, %s20, 1
      %s328 = scalar_lea.vmem %s9, %s327
      %v330 = vld [vmem:[%s325] sm:$0xf]
      %v331 = vld [vmem:[%s325 + $0x4] sm:$0xf]
      %v332 = vld [vmem:[%s325 + $0x8] sm:$0x1]
      %v333 = vld [vmem:[%s325 + $0xc] sm:$0xf]
      %v334 = vld [vmem:[%s325 + $0x10] sm:$0xf]
      %v335 = vld [vmem:[%s325 + $0x14] sm:$0x1]
      %v336 = vld [vmem:[%s325 + $0x18] sm:$0xf]
      %v337 = vld [vmem:[%s325 + $0x1c] sm:$0xf]
      %v338 = vld [vmem:[%s325 + $0x20] sm:$0x1]
      %v339 = vld [vmem:[%s325 + $0x24] sm:$0xf]
      %v340 = vld [vmem:[%s325 + $0x28] sm:$0xf]
      %v341 = vld [vmem:[%s325 + $0x2c] sm:$0x1]
      %v342 = vld [vmem:[%s325 + $0x30] sm:$0xf]
      %v343 = vld [vmem:[%s325 + $0x34] sm:$0xf]
      %v344 = vld [vmem:[%s325 + $0x38] sm:$0x1]
      %v345 = vld [vmem:[%s325 + $0x3c] sm:$0xf]
      %v346 = vld [vmem:[%s325 + $0x40] sm:$0xf]
      %v347 = vld [vmem:[%s325 + $0x44] sm:$0x1]
      %v348 = vld [vmem:[%s325 + $0x48] sm:$0xf]
      %v349 = vld [vmem:[%s325 + $0x4c] sm:$0xf]
      %v350 = vld [vmem:[%s325 + $0x50] sm:$0x1]
      %v351 = vld [vmem:[%s325 + $0x54] sm:$0xf]
      %v352 = vld [vmem:[%s325 + $0x58] sm:$0xf]
      %v353 = vld [vmem:[%s325 + $0x5c] sm:$0x1]
      %v354 = vld [vmem:[%s325 + $0x60] sm:$0xf]
      %v355 = vld [vmem:[%s325 + $0x64] sm:$0xf]
      %v356 = vld [vmem:[%s325 + $0x68] sm:$0x1]
      %v357 = vld [vmem:[%s325 + $0x6c] sm:$0xf]
      %v358 = vld [vmem:[%s325 + $0x70] sm:$0xf]
      %v359 = vld [vmem:[%s325 + $0x74] sm:$0x1]
      %v360 = vld [vmem:[%s325 + $0x78] sm:$0xf]
      %v361 = vld [vmem:[%s325 + $0x7c] sm:$0xf]
      %v362 = vld [vmem:[%s325 + $0x80] sm:$0x1]
      %v363 = vld [vmem:[%s325 + $0x84] sm:$0xf]
      %v364 = vld [vmem:[%s325 + $0x88] sm:$0xf]
      %v365 = vld [vmem:[%s325 + $0x8c] sm:$0x1]
      %v366 = vld [vmem:[%s325 + $0x90] sm:$0xf]
      %v367 = vld [vmem:[%s325 + $0x94] sm:$0xf]
      %v368 = vld [vmem:[%s325 + $0x98] sm:$0x1]
      %v369 = vld [vmem:[%s325 + $0x9c] sm:$0xf]
      %v370 = vld [vmem:[%s325 + $0xa0] sm:$0xf]
      %v371 = vld [vmem:[%s325 + $0xa4] sm:$0x1]
      %v372 = vld [vmem:[%s325 + $0xa8] sm:$0xf]
      %v373 = vld [vmem:[%s325 + $0xac] sm:$0xf]
      %v374 = vld [vmem:[%s325 + $0xb0] sm:$0x1]
      %v375 = vld [vmem:[%s325 + $0xb4] sm:$0xf]
      %v376 = vld [vmem:[%s325 + $0xb8] sm:$0xf]
      %v377 = vld [vmem:[%s325 + $0xbc] sm:$0x1]
      %v378 = vld [vmem:[%s325 + $0xc0] sm:$0xf]
      %v379 = vld [vmem:[%s325 + $0xc4] sm:$0xf]
      %v380 = vld [vmem:[%s325 + $0xc8] sm:$0x1]
      %v381 = vld [vmem:[%s325 + $0xcc] sm:$0xf]
      %v382 = vld [vmem:[%s325 + $0xd0] sm:$0xf]
      %v383 = vld [vmem:[%s325 + $0xd4] sm:$0x1]
      %vm384 = vsmask.f32 3328
      %vm385 = vsmask.f32 7440
      %vm386 = vmor %vm384, %vm385
      %v388 = vshrl.u32 %v330, 16
      %v390 = vrot.slane %v388, 4
      %v391 = vshll.u32 %v330, 16
      %v393 = vrot.slane %v391, 5
      %v394 = vor.u32 %v390, %v393
      %v395 = vrot.slane %v394, 4
      %v397 = vshll.u32 %v331, 16
      %v399 = vrot.slane %v397, 5
      %v400 = vsel %vm386, %v395, %v399
      %v401 = vshrl.u32 %v331, 16
      %v403 = vrot.slane %v401, 4
      %v404 = vor.u32 %v403, %v399
      %v405 = vrot.slane %v404, 4
      %v407 = vshll.u32 %v332, 16
      %v409 = vrot.slane %v407, 5
      %v410 = vsel %vm386, %v405, %v409
      %v412 = vshrl.u32 %v333, 16
      %v414 = vrot.slane %v412, 4
      %v415 = vshll.u32 %v333, 16
      %v417 = vrot.slane %v415, 5
      %v418 = vor.u32 %v414, %v417
      %v419 = vrot.slane %v418, 4
      %v421 = vshll.u32 %v334, 16
      %v423 = vrot.slane %v421, 5
      %v424 = vsel %vm386, %v419, %v423
      %v425 = vshrl.u32 %v334, 16
      %v427 = vrot.slane %v425, 4
      %v428 = vor.u32 %v427, %v423
      %v429 = vrot.slane %v428, 4
      %v431 = vshll.u32 %v335, 16
      %v433 = vrot.slane %v431, 5
      %v434 = vsel %vm386, %v429, %v433
      %v436 = vshrl.u32 %v336, 16
      %v438 = vrot.slane %v436, 4
      %v439 = vshll.u32 %v336, 16
      %v441 = vrot.slane %v439, 5
      %v442 = vor.u32 %v438, %v441
      %v443 = vrot.slane %v442, 4
      %v445 = vshll.u32 %v337, 16
      %v447 = vrot.slane %v445, 5
      %v448 = vsel %vm386, %v443, %v447
      %v449 = vshrl.u32 %v337, 16
      %v451 = vrot.slane %v449, 4
      %v452 = vor.u32 %v451, %v447
      %v453 = vrot.slane %v452, 4
      %v455 = vshll.u32 %v338, 16
      %v457 = vrot.slane %v455, 5
      %v458 = vsel %vm386, %v453, %v457
      %v460 = vshrl.u32 %v339, 16
      %v462 = vrot.slane %v460, 4
      %v463 = vshll.u32 %v339, 16
      %v465 = vrot.slane %v463, 5
      %v466 = vor.u32 %v462, %v465
      %v467 = vrot.slane %v466, 4
      %v469 = vshll.u32 %v340, 16
      %v471 = vrot.slane %v469, 5
      %v472 = vsel %vm386, %v467, %v471
      %v473 = vshrl.u32 %v340, 16
      %v475 = vrot.slane %v473, 4
      %v476 = vor.u32 %v475, %v471
      %v477 = vrot.slane %v476, 4
      %v479 = vshll.u32 %v341, 16
      %v481 = vrot.slane %v479, 5
      %v482 = vsel %vm386, %v477, %v481
      %v484 = vshrl.u32 %v342, 16
      %v486 = vrot.slane %v484, 4
      %v487 = vshll.u32 %v342, 16
      %v489 = vrot.slane %v487, 5
      %v490 = vor.u32 %v486, %v489
      %v491 = vrot.slane %v490, 4
      %v493 = vshll.u32 %v343, 16
      %v495 = vrot.slane %v493, 5
      %v496 = vsel %vm386, %v491, %v495
      %v497 = vshrl.u32 %v343, 16
      %v499 = vrot.slane %v497, 4
      %v500 = vor.u32 %v499, %v495
      %v501 = vrot.slane %v500, 4
      %v503 = vshll.u32 %v344, 16
      %v505 = vrot.slane %v503, 5
      %v506 = vsel %vm386, %v501, %v505
      %v508 = vshrl.u32 %v345, 16
      %v510 = vrot.slane %v508, 4
      %v511 = vshll.u32 %v345, 16
      %v513 = vrot.slane %v511, 5
      %v514 = vor.u32 %v510, %v513
      %v515 = vrot.slane %v514, 4
      %v517 = vshll.u32 %v346, 16
      %v519 = vrot.slane %v517, 5
      %v520 = vsel %vm386, %v515, %v519
      %v521 = vshrl.u32 %v346, 16
      %v523 = vrot.slane %v521, 4
      %v524 = vor.u32 %v523, %v519
      %v525 = vrot.slane %v524, 4
      %v527 = vshll.u32 %v347, 16
      %v529 = vrot.slane %v527, 5
      %v530 = vsel %vm386, %v525, %v529
      %v532 = vshrl.u32 %v348, 16
      %v534 = vrot.slane %v532, 4
      %v535 = vshll.u32 %v348, 16
      %v537 = vrot.slane %v535, 5
      %v538 = vor.u32 %v534, %v537
      %v539 = vrot.slane %v538, 4
      %v541 = vshll.u32 %v349, 16
      %v543 = vrot.slane %v541, 5
      %v544 = vsel %vm386, %v539, %v543
      %v545 = vshrl.u32 %v349, 16
      %v547 = vrot.slane %v545, 4
      %v548 = vor.u32 %v547, %v543
      %v549 = vrot.slane %v548, 4
      %v551 = vshll.u32 %v350, 16
      %v553 = vrot.slane %v551, 5
      %v554 = vsel %vm386, %v549, %v553
      %v556 = vshrl.u32 %v351, 16
      %v558 = vrot.slane %v556, 4
      %v559 = vshll.u32 %v351, 16
      %v561 = vrot.slane %v559, 5
      %v562 = vor.u32 %v558, %v561
      %v563 = vrot.slane %v562, 4
      %v565 = vshll.u32 %v352, 16
      %v567 = vrot.slane %v565, 5
      %v568 = vsel %vm386, %v563, %v567
      %v569 = vshrl.u32 %v352, 16
      %v571 = vrot.slane %v569, 4
      %v572 = vor.u32 %v571, %v567
      %v573 = vrot.slane %v572, 4
      %v575 = vshll.u32 %v353, 16
      %v577 = vrot.slane %v575, 5
      %v578 = vsel %vm386, %v573, %v577
      %v580 = vshrl.u32 %v354, 16
      %v582 = vrot.slane %v580, 4
      %v583 = vshll.u32 %v354, 16
      %v585 = vrot.slane %v583, 5
      %v586 = vor.u32 %v582, %v585
      %v587 = vrot.slane %v586, 4
      %v589 = vshll.u32 %v355, 16
      %v591 = vrot.slane %v589, 5
      %v592 = vsel %vm386, %v587, %v591
      %v593 = vshrl.u32 %v355, 16
      %v595 = vrot.slane %v593, 4
      %v596 = vor.u32 %v595, %v591
      %v597 = vrot.slane %v596, 4
      %v599 = vshll.u32 %v356, 16
      %v601 = vrot.slane %v599, 5
      %v602 = vsel %vm386, %v597, %v601
      %v604 = vshrl.u32 %v357, 16
      %v606 = vrot.slane %v604, 4
      %v607 = vshll.u32 %v357, 16
      %v609 = vrot.slane %v607, 5
      %v610 = vor.u32 %v606, %v609
      %v611 = vrot.slane %v610, 4
      %v613 = vshll.u32 %v358, 16
      %v615 = vrot.slane %v613, 5
      %v616 = vsel %vm386, %v611, %v615
      %v617 = vshrl.u32 %v358, 16
      %v619 = vrot.slane %v617, 4
      %v620 = vor.u32 %v619, %v615
      %v621 = vrot.slane %v620, 4
      %v623 = vshll.u32 %v359, 16
      %v625 = vrot.slane %v623, 5
      %v626 = vsel %vm386, %v621, %v625
      %v628 = vshrl.u32 %v360, 16
      %v630 = vrot.slane %v628, 4
      %v631 = vshll.u32 %v360, 16
      %v633 = vrot.slane %v631, 5
      %v634 = vor.u32 %v630, %v633
      %v635 = vrot.slane %v634, 4
      %v637 = vshll.u32 %v361, 16
      %v639 = vrot.slane %v637, 5
      %v640 = vsel %vm386, %v635, %v639
      %v641 = vshrl.u32 %v361, 16
      %v643 = vrot.slane %v641, 4
      %v644 = vor.u32 %v643, %v639
      %v645 = vrot.slane %v644, 4
      %v647 = vshll.u32 %v362, 16
      %v649 = vrot.slane %v647, 5
      %v650 = vsel %vm386, %v645, %v649
      %v652 = vshrl.u32 %v363, 16
      %v654 = vrot.slane %v652, 4
      %v655 = vshll.u32 %v363, 16
      %v657 = vrot.slane %v655, 5
      %v658 = vor.u32 %v654, %v657
      %v659 = vrot.slane %v658, 4
      %v661 = vshll.u32 %v364, 16
      %v663 = vrot.slane %v661, 5
      %v664 = vsel %vm386, %v659, %v663
      %v665 = vshrl.u32 %v364, 16
      %v667 = vrot.slane %v665, 4
      %v668 = vor.u32 %v667, %v663
      %v669 = vrot.slane %v668, 4
      %v671 = vshll.u32 %v365, 16
      %v673 = vrot.slane %v671, 5
      %v674 = vsel %vm386, %v669, %v673
      %v676 = vshrl.u32 %v366, 16
      %v678 = vrot.slane %v676, 4
      %v679 = vshll.u32 %v366, 16
      %v681 = vrot.slane %v679, 5
      %v682 = vor.u32 %v678, %v681
      %v683 = vrot.slane %v682, 4
      %v685 = vshll.u32 %v367, 16
      %v687 = vrot.slane %v685, 5
      %v688 = vsel %vm386, %v683, %v687
      %v689 = vshrl.u32 %v367, 16
      %v691 = vrot.slane %v689, 4
      %v692 = vor.u32 %v691, %v687
      %v693 = vrot.slane %v692, 4
      %v695 = vshll.u32 %v368, 16
      %v697 = vrot.slane %v695, 5
      %v698 = vsel %vm386, %v693, %v697
      %v700 = vshrl.u32 %v369, 16
      %v702 = vrot.slane %v700, 4
      %v703 = vshll.u32 %v369, 16
      %v705 = vrot.slane %v703, 5
      %v706 = vor.u32 %v702, %v705
      %v707 = vrot.slane %v706, 4
      %v709 = vshll.u32 %v370, 16
      %v711 = vrot.slane %v709, 5
      %v712 = vsel %vm386, %v707, %v711
      %v713 = vshrl.u32 %v370, 16
      %v715 = vrot.slane %v713, 4
      %v716 = vor.u32 %v715, %v711
      %v717 = vrot.slane %v716, 4
      %v719 = vshll.u32 %v371, 16
      %v721 = vrot.slane %v719, 5
      %v722 = vsel %vm386, %v717, %v721
      %v724 = vshrl.u32 %v372, 16
      %v726 = vrot.slane %v724, 4
      %v727 = vshll.u32 %v372, 16
      %v729 = vrot.slane %v727, 5
      %v730 = vor.u32 %v726, %v729
      %v731 = vrot.slane %v730, 4
      %v733 = vshll.u32 %v373, 16
      %v735 = vrot.slane %v733, 5
      %v736 = vsel %vm386, %v731, %v735
      %v737 = vshrl.u32 %v373, 16
      %v739 = vrot.slane %v737, 4
      %v740 = vor.u32 %v739, %v735
      %v741 = vrot.slane %v740, 4
      %v743 = vshll.u32 %v374, 16
      %v745 = vrot.slane %v743, 5
      %v746 = vsel %vm386, %v741, %v745
      %v748 = vshrl.u32 %v375, 16
      %v750 = vrot.slane %v748, 4
      %v751 = vshll.u32 %v375, 16
      %v753 = vrot.slane %v751, 5
      %v754 = vor.u32 %v750, %v753
      %v755 = vrot.slane %v754, 4
      %v757 = vshll.u32 %v376, 16
      %v759 = vrot.slane %v757, 5
      %v760 = vsel %vm386, %v755, %v759
      %v761 = vshrl.u32 %v376, 16
      %v763 = vrot.slane %v761, 4
      %v764 = vor.u32 %v763, %v759
      %v765 = vrot.slane %v764, 4
      %v767 = vshll.u32 %v377, 16
      %v769 = vrot.slane %v767, 5
      %v770 = vsel %vm386, %v765, %v769
      %vm819 = vcmask 1042432
      %vm820 = vcmask 1046532
      %vm821 = vmor %vm819, %vm820
      %v822 = vrot.slane %v330, 5
      %v823 = vrot.slane %v822, 4
      %v824 = vrot.slane %v331, 5
      %v825 = vsel %vm821, %v823, %v824
      %v826 = vrot.slane %v824, 4
      %v827 = vrot.slane %v332, 5
      %v828 = vsel %vm821, %v826, %v827
      %v829 = vrot.slane %v333, 5
      %v830 = vrot.slane %v829, 4
      %v831 = vrot.slane %v334, 5
      %v832 = vsel %vm821, %v830, %v831
      %v833 = vrot.slane %v831, 4
      %v834 = vrot.slane %v335, 5
      %v835 = vsel %vm821, %v833, %v834
      %v836 = vrot.slane %v336, 5
      %v837 = vrot.slane %v836, 4
      %v838 = vrot.slane %v337, 5
      %v839 = vsel %vm821, %v837, %v838
      %v840 = vrot.slane %v838, 4
      %v841 = vrot.slane %v338, 5
      %v842 = vsel %vm821, %v840, %v841
      %v843 = vrot.slane %v339, 5
      %v844 = vrot.slane %v843, 4
      %v845 = vrot.slane %v340, 5
      %v846 = vsel %vm821, %v844, %v845
      %v847 = vrot.slane %v845, 4
      %v848 = vrot.slane %v341, 5
      %v849 = vsel %vm821, %v847, %v848
      %v850 = vrot.slane %v342, 5
      %v851 = vrot.slane %v850, 4
      %v852 = vrot.slane %v343, 5
      %v853 = vsel %vm821, %v851, %v852
      %v854 = vrot.slane %v852, 4
      %v855 = vrot.slane %v344, 5
      %v856 = vsel %vm821, %v854, %v855
      %v857 = vrot.slane %v345, 5
      %v858 = vrot.slane %v857, 4
      %v859 = vrot.slane %v346, 5
      %v860 = vsel %vm821, %v858, %v859
      %v861 = vrot.slane %v859, 4
      %v862 = vrot.slane %v347, 5
      %v863 = vsel %vm821, %v861, %v862
      %v864 = vrot.slane %v348, 5
      %v865 = vrot.slane %v864, 4
      %v866 = vrot.slane %v349, 5
      %v867 = vsel %vm821, %v865, %v866
      %v868 = vrot.slane %v866, 4
      %v869 = vrot.slane %v350, 5
      %v870 = vsel %vm821, %v868, %v869
      %v871 = vrot.slane %v351, 5
      %v872 = vrot.slane %v871, 4
      %v873 = vrot.slane %v352, 5
      %v874 = vsel %vm821, %v872, %v873
      %v875 = vrot.slane %v873, 4
      %v876 = vrot.slane %v353, 5
      %v877 = vsel %vm821, %v875, %v876
      %v878 = vrot.slane %v354, 5
      %v879 = vrot.slane %v878, 4
      %v880 = vrot.slane %v355, 5
      %v881 = vsel %vm821, %v879, %v880
      %v882 = vrot.slane %v880, 4
      %v883 = vrot.slane %v356, 5
      %v884 = vsel %vm821, %v882, %v883
      %v885 = vrot.slane %v357, 5
      %v886 = vrot.slane %v885, 4
      %v887 = vrot.slane %v358, 5
      %v888 = vsel %vm821, %v886, %v887
      %v889 = vrot.slane %v887, 4
      %v890 = vrot.slane %v359, 5
      %v891 = vsel %vm821, %v889, %v890
      %v892 = vrot.slane %v360, 5
      %v893 = vrot.slane %v892, 4
      %v894 = vrot.slane %v361, 5
      %v895 = vsel %vm821, %v893, %v894
      %v896 = vrot.slane %v894, 4
      %v897 = vrot.slane %v362, 5
      %v898 = vsel %vm821, %v896, %v897
      %v899 = vrot.slane %v363, 5
      %v900 = vrot.slane %v899, 4
      %v901 = vrot.slane %v364, 5
      %v902 = vsel %vm821, %v900, %v901
      %v903 = vrot.slane %v901, 4
      %v904 = vrot.slane %v365, 5
      %v905 = vsel %vm821, %v903, %v904
      %v906 = vrot.slane %v366, 5
      %v907 = vrot.slane %v906, 4
      %v908 = vrot.slane %v367, 5
      %v909 = vsel %vm821, %v907, %v908
      %v910 = vrot.slane %v908, 4
      %v911 = vrot.slane %v368, 5
      %v912 = vsel %vm821, %v910, %v911
      %v913 = vrot.slane %v369, 5
      %v914 = vrot.slane %v913, 4
      %v915 = vrot.slane %v370, 5
      %v916 = vsel %vm821, %v914, %v915
      %v917 = vrot.slane %v915, 4
      %v918 = vrot.slane %v371, 5
      %v919 = vsel %vm821, %v917, %v918
      %v920 = vrot.slane %v372, 5
      %v921 = vrot.slane %v920, 4
      %v922 = vrot.slane %v373, 5
      %v923 = vsel %vm821, %v921, %v922
      %v924 = vrot.slane %v922, 4
      %v925 = vrot.slane %v374, 5
      %v926 = vsel %vm821, %v924, %v925
      %v927 = vrot.slane %v375, 5
      %v928 = vrot.slane %v927, 4
      %v929 = vrot.slane %v376, 5
      %v930 = vsel %vm821, %v928, %v929
      %v931 = vrot.slane %v929, 4
      %v932 = vrot.slane %v377, 5
      %v933 = vsel %vm821, %v931, %v932
      %v935 = vshrl.u32 %v378, 16
      %v937 = vrot.slane %v935, 4
      %v938 = vshll.u32 %v378, 16
      %v940 = vrot.slane %v938, 5
      %v941 = vor.u32 %v937, %v940
      %v942 = vrot.slane %v941, 4
      %v944 = vshll.u32 %v379, 16
      %v946 = vrot.slane %v944, 5
      %v947 = vsel %vm386, %v942, %v946
      %v948 = vshrl.u32 %v379, 16
      %v950 = vrot.slane %v948, 4
      %v951 = vor.u32 %v950, %v946
      %v952 = vrot.slane %v951, 4
      %v954 = vshll.u32 %v380, 16
      %v956 = vrot.slane %v954, 5
      %v957 = vsel %vm386, %v952, %v956
      %v961 = vrot.slane %v378, 5
      %v962 = vrot.slane %v961, 4
      %v963 = vrot.slane %v379, 5
      %v964 = vsel %vm821, %v962, %v963
      %v965 = vrot.slane %v963, 4
      %v966 = vrot.slane %v380, 5
      %v967 = vsel %vm821, %v965, %v966
      %v969 = vshrl.u32 %v381, 16
      %v971 = vrot.slane %v969, 4
      %v972 = vshll.u32 %v381, 16
      %v974 = vrot.slane %v972, 5
      %v975 = vor.u32 %v971, %v974
      %v976 = vrot.slane %v975, 4
      %v978 = vshll.u32 %v382, 16
      %v980 = vrot.slane %v978, 5
      %v981 = vsel %vm386, %v976, %v980
      %v982 = vshrl.u32 %v382, 16
      %v984 = vrot.slane %v982, 4
      %v985 = vor.u32 %v984, %v980
      %v986 = vrot.slane %v985, 4
      %v988 = vshll.u32 %v383, 16
      %v990 = vrot.slane %v988, 5
      %v991 = vsel %vm386, %v986, %v990
      %v995 = vrot.slane %v381, 5
      %v996 = vrot.slane %v995, 4
      %v997 = vrot.slane %v382, 5
      %v998 = vsel %vm821, %v996, %v997
      %v999 = vrot.slane %v997, 4
      %v1000 = vrot.slane %v383, 5
      %v1001 = vsel %vm821, %v999, %v1000
      %v1002 = vunpack.c.l.b16 %v330
      %v1003 = vunpack.c.l.b16 %v331
      %v1004 = vunpack.c.l.b16 %v333
      %v1005 = vunpack.c.l.b16 %v334
      %v1006 = vunpack.c.l.b16 %v336
      %v1007 = vunpack.c.l.b16 %v337
      %v1008 = vunpack.c.l.b16 %v339
      %v1009 = vunpack.c.l.b16 %v340
      %v1010 = vunpack.c.l.b16 %v342
      %v1011 = vunpack.c.l.b16 %v343
      %v1012 = vunpack.c.l.b16 %v345
      %v1013 = vunpack.c.l.b16 %v346
      %v1014 = vunpack.c.l.b16 %v348
      %v1015 = vunpack.c.l.b16 %v349
      %v1016 = vunpack.c.l.b16 %v351
      %v1017 = vunpack.c.l.b16 %v352
      %v1018 = vunpack.c.l.b16 %v354
      %v1019 = vunpack.c.l.b16 %v355
      %v1020 = vunpack.c.l.b16 %v357
      %v1021 = vunpack.c.l.b16 %v358
      %v1022 = vunpack.c.l.b16 %v360
      %v1023 = vunpack.c.l.b16 %v361
      %v1024 = vunpack.c.l.b16 %v363
      %v1025 = vunpack.c.l.b16 %v364
      %v1026 = vunpack.c.l.b16 %v366
      %v1027 = vunpack.c.l.b16 %v367
      %v1028 = vunpack.c.l.b16 %v369
      %v1029 = vunpack.c.l.b16 %v370
      %v1030 = vunpack.c.l.b16 %v372
      %v1031 = vunpack.c.l.b16 %v373
      %v1032 = vunpack.c.l.b16 %v375
      %v1033 = vunpack.c.l.b16 %v376
      %v1034 = vpack.c.b16 %v1003, %v1002
      %v1035 = vpack.c.b16 %v1005, %v1004
      %v1036 = vpack.c.b16 %v1007, %v1006
      %v1037 = vpack.c.b16 %v1009, %v1008
      %v1038 = vpack.c.b16 %v1011, %v1010
      %v1039 = vpack.c.b16 %v1013, %v1012
      %v1040 = vpack.c.b16 %v1015, %v1014
      %v1041 = vpack.c.b16 %v1017, %v1016
      %v1042 = vpack.c.b16 %v1019, %v1018
      %v1043 = vpack.c.b16 %v1021, %v1020
      %v1044 = vpack.c.b16 %v1023, %v1022
      %v1045 = vpack.c.b16 %v1025, %v1024
      %v1046 = vpack.c.b16 %v1027, %v1026
      %v1047 = vpack.c.b16 %v1029, %v1028
      %v1048 = vpack.c.b16 %v1031, %v1030
      %v1049 = vpack.c.b16 %v1033, %v1032
      %v1050 = vunpack.c.l.b16 %v400
      %v1051 = vunpack.c.l.b16 %v410
      %v1052 = vunpack.c.l.b16 %v424
      %v1053 = vunpack.c.l.b16 %v434
      %v1054 = vunpack.c.l.b16 %v448
      %v1055 = vunpack.c.l.b16 %v458
      %v1056 = vunpack.c.l.b16 %v472
      %v1057 = vunpack.c.l.b16 %v482
      %v1058 = vunpack.c.l.b16 %v496
      %v1059 = vunpack.c.l.b16 %v506
      %v1060 = vunpack.c.l.b16 %v520
      %v1061 = vunpack.c.l.b16 %v530
      %v1062 = vunpack.c.l.b16 %v544
      %v1063 = vunpack.c.l.b16 %v554
      %v1064 = vunpack.c.l.b16 %v568
      %v1065 = vunpack.c.l.b16 %v578
      %v1066 = vunpack.c.l.b16 %v592
      %v1067 = vunpack.c.l.b16 %v602
      %v1068 = vunpack.c.l.b16 %v616
      %v1069 = vunpack.c.l.b16 %v626
      %v1070 = vunpack.c.l.b16 %v640
      %v1071 = vunpack.c.l.b16 %v650
      %v1072 = vunpack.c.l.b16 %v664
      %v1073 = vunpack.c.l.b16 %v674
      %v1074 = vunpack.c.l.b16 %v688
      %v1075 = vunpack.c.l.b16 %v698
      %v1076 = vunpack.c.l.b16 %v712
      %v1077 = vunpack.c.l.b16 %v722
      %v1078 = vunpack.c.l.b16 %v736
      %v1079 = vunpack.c.l.b16 %v746
      %v1080 = vunpack.c.l.b16 %v760
      %v1081 = vunpack.c.l.b16 %v770
      %v1082 = vpack.c.b16 %v1051, %v1050
      %v1083 = vpack.c.b16 %v1053, %v1052
      %v1084 = vpack.c.b16 %v1055, %v1054
      %v1085 = vpack.c.b16 %v1057, %v1056
      %v1086 = vpack.c.b16 %v1059, %v1058
      %v1087 = vpack.c.b16 %v1061, %v1060
      %v1088 = vpack.c.b16 %v1063, %v1062
      %v1089 = vpack.c.b16 %v1065, %v1064
      %v1090 = vpack.c.b16 %v1067, %v1066
      %v1091 = vpack.c.b16 %v1069, %v1068
      %v1092 = vpack.c.b16 %v1071, %v1070
      %v1093 = vpack.c.b16 %v1073, %v1072
      %v1094 = vpack.c.b16 %v1075, %v1074
      %v1095 = vpack.c.b16 %v1077, %v1076
      %v1096 = vpack.c.b16 %v1079, %v1078
      %v1097 = vpack.c.b16 %v1081, %v1080
      %1098 = vrot.lane.b32.xlu0 %v1082, 3
      %v1099 = vpop.permute.xlu0 %1098
      %1100 = vrot.lane.b32.xlu0 %v1083, 3
      %v1101 = vpop.permute.xlu0 %1100
      %1102 = vrot.lane.b32.xlu0 %v1084, 3
      %v1103 = vpop.permute.xlu0 %1102
      %1104 = vrot.lane.b32.xlu0 %v1085, 3
      %v1105 = vpop.permute.xlu0 %1104
      %1106 = vrot.lane.b32.xlu0 %v1086, 3
      %v1107 = vpop.permute.xlu0 %1106
      %1108 = vrot.lane.b32.xlu0 %v1087, 3
      %v1109 = vpop.permute.xlu0 %1108
      %1110 = vrot.lane.b32.xlu0 %v1088, 3
      %v1111 = vpop.permute.xlu0 %1110
      %1112 = vrot.lane.b32.xlu0 %v1089, 3
      %v1113 = vpop.permute.xlu0 %1112
      %1114 = vrot.lane.b32.xlu0 %v1090, 3
      %v1115 = vpop.permute.xlu0 %1114
      %1116 = vrot.lane.b32.xlu0 %v1091, 3
      %v1117 = vpop.permute.xlu0 %1116
      %1118 = vrot.lane.b32.xlu0 %v1092, 3
      %v1119 = vpop.permute.xlu0 %1118
      %1120 = vrot.lane.b32.xlu0 %v1093, 3
      %v1121 = vpop.permute.xlu0 %1120
      %1122 = vrot.lane.b32.xlu0 %v1094, 3
      %v1123 = vpop.permute.xlu0 %1122
      %1124 = vrot.lane.b32.xlu0 %v1095, 3
      %v1125 = vpop.permute.xlu0 %1124
      %1126 = vrot.lane.b32.xlu0 %v1096, 3
      %v1127 = vpop.permute.xlu0 %1126
      %1128 = vrot.lane.b32.xlu0 %v1097, 3
      %v1129 = vpop.permute.xlu0 %1128
      %v1130 = vunpack.c.l.b16 %v825
      %v1131 = vunpack.c.l.b16 %v828
      %v1132 = vunpack.c.l.b16 %v832
      %v1133 = vunpack.c.l.b16 %v835
      %v1134 = vunpack.c.l.b16 %v839
      %v1135 = vunpack.c.l.b16 %v842
      %v1136 = vunpack.c.l.b16 %v846
      %v1137 = vunpack.c.l.b16 %v849
      %v1138 = vunpack.c.l.b16 %v853
      %v1139 = vunpack.c.l.b16 %v856
      %v1140 = vunpack.c.l.b16 %v860
      %v1141 = vunpack.c.l.b16 %v863
      %v1142 = vunpack.c.l.b16 %v867
      %v1143 = vunpack.c.l.b16 %v870
      %v1144 = vunpack.c.l.b16 %v874
      %v1145 = vunpack.c.l.b16 %v877
      %v1146 = vunpack.c.l.b16 %v881
      %v1147 = vunpack.c.l.b16 %v884
      %v1148 = vunpack.c.l.b16 %v888
      %v1149 = vunpack.c.l.b16 %v891
      %v1150 = vunpack.c.l.b16 %v895
      %v1151 = vunpack.c.l.b16 %v898
      %v1152 = vunpack.c.l.b16 %v902
      %v1153 = vunpack.c.l.b16 %v905
      %v1154 = vunpack.c.l.b16 %v909
      %v1155 = vunpack.c.l.b16 %v912
      %v1156 = vunpack.c.l.b16 %v916
      %v1157 = vunpack.c.l.b16 %v919
      %v1158 = vunpack.c.l.b16 %v923
      %v1159 = vunpack.c.l.b16 %v926
      %v1160 = vunpack.c.l.b16 %v930
      %v1161 = vunpack.c.l.b16 %v933
      %v1162 = vpack.c.b16 %v1131, %v1130
      %v1163 = vpack.c.b16 %v1133, %v1132
      %v1164 = vpack.c.b16 %v1135, %v1134
      %v1165 = vpack.c.b16 %v1137, %v1136
      %v1166 = vpack.c.b16 %v1139, %v1138
      %v1167 = vpack.c.b16 %v1141, %v1140
      %v1168 = vpack.c.b16 %v1143, %v1142
      %v1169 = vpack.c.b16 %v1145, %v1144
      %v1170 = vpack.c.b16 %v1147, %v1146
      %v1171 = vpack.c.b16 %v1149, %v1148
      %v1172 = vpack.c.b16 %v1151, %v1150
      %v1173 = vpack.c.b16 %v1153, %v1152
      %v1174 = vpack.c.b16 %v1155, %v1154
      %v1175 = vpack.c.b16 %v1157, %v1156
      %v1176 = vpack.c.b16 %v1159, %v1158
      %v1177 = vpack.c.b16 %v1161, %v1160
      %1178 = vrot.lane.b32.xlu0 %v1162, 6
      %v1179 = vpop.permute.xlu0 %1178
      %1180 = vrot.lane.b32.xlu0 %v1163, 6
      %v1181 = vpop.permute.xlu0 %1180
      %1182 = vrot.lane.b32.xlu0 %v1164, 6
      %v1183 = vpop.permute.xlu0 %1182
      %1184 = vrot.lane.b32.xlu0 %v1165, 6
      %v1185 = vpop.permute.xlu0 %1184
      %1186 = vrot.lane.b32.xlu0 %v1166, 6
      %v1187 = vpop.permute.xlu0 %1186
      %1188 = vrot.lane.b32.xlu0 %v1167, 6
      %v1189 = vpop.permute.xlu0 %1188
      %1190 = vrot.lane.b32.xlu0 %v1168, 6
      %v1191 = vpop.permute.xlu0 %1190
      %1192 = vrot.lane.b32.xlu0 %v1169, 6
      %v1193 = vpop.permute.xlu0 %1192
      %1194 = vrot.lane.b32.xlu0 %v1170, 6
      %v1195 = vpop.permute.xlu0 %1194
      %1196 = vrot.lane.b32.xlu0 %v1171, 6
      %v1197 = vpop.permute.xlu0 %1196
      %1198 = vrot.lane.b32.xlu0 %v1172, 6
      %v1199 = vpop.permute.xlu0 %1198
      %1200 = vrot.lane.b32.xlu0 %v1173, 6
      %v1201 = vpop.permute.xlu0 %1200
      %1202 = vrot.lane.b32.xlu0 %v1174, 6
      %v1203 = vpop.permute.xlu0 %1202
      %1204 = vrot.lane.b32.xlu0 %v1175, 6
      %v1205 = vpop.permute.xlu0 %1204
      %1206 = vrot.lane.b32.xlu0 %v1176, 6
      %v1207 = vpop.permute.xlu0 %1206
      %1208 = vrot.lane.b32.xlu0 %v1177, 6
      %v1209 = vpop.permute.xlu0 %1208
      %v1210 = vunpack.c.l.b16 %v378
      %v1211 = vunpack.c.l.b16 %v379
      %v1212 = vpack.c.b16 %v1211, %v1210
      %1213 = vrot.lane.b32.xlu0 %v1035, 9
      %v1214 = vpop.permute.xlu0 %1213
      %1215 = vrot.lane.b32.xlu0 %v1036, 9
      %v1216 = vpop.permute.xlu0 %1215
      %1217 = vrot.lane.b32.xlu0 %v1037, 9
      %v1218 = vpop.permute.xlu0 %1217
      %1219 = vrot.lane.b32.xlu0 %v1038, 9
      %v1220 = vpop.permute.xlu0 %1219
      %1221 = vrot.lane.b32.xlu0 %v1039, 9
      %v1222 = vpop.permute.xlu0 %1221
      %1223 = vrot.lane.b32.xlu0 %v1040, 9
      %v1224 = vpop.permute.xlu0 %1223
      %1225 = vrot.lane.b32.xlu0 %v1041, 9
      %v1226 = vpop.permute.xlu0 %1225
      %1227 = vrot.lane.b32.xlu0 %v1042, 9
      %v1228 = vpop.permute.xlu0 %1227
      %1229 = vrot.lane.b32.xlu0 %v1043, 9
      %v1230 = vpop.permute.xlu0 %1229
      %1231 = vrot.lane.b32.xlu0 %v1044, 9
      %v1232 = vpop.permute.xlu0 %1231
      %1233 = vrot.lane.b32.xlu0 %v1045, 9
      %v1234 = vpop.permute.xlu0 %1233
      %1235 = vrot.lane.b32.xlu0 %v1046, 9
      %v1236 = vpop.permute.xlu0 %1235
      %1237 = vrot.lane.b32.xlu0 %v1047, 9
      %v1238 = vpop.permute.xlu0 %1237
      %1239 = vrot.lane.b32.xlu0 %v1048, 9
      %v1240 = vpop.permute.xlu0 %1239
      %1241 = vrot.lane.b32.xlu0 %v1049, 9
      %v1242 = vpop.permute.xlu0 %1241
      %1243 = vrot.lane.b32.xlu0 %v1212, 9
      %v1244 = vpop.permute.xlu0 %1243
      %v1245 = vunpack.c.l.b16 %v947
      %v1246 = vunpack.c.l.b16 %v957
      %v1247 = vpack.c.b16 %v1246, %v1245
      %1248 = vrot.lane.b32.xlu0 %v1083, 12
      %v1249 = vpop.permute.xlu0 %1248
      %1250 = vrot.lane.b32.xlu0 %v1084, 12
      %v1251 = vpop.permute.xlu0 %1250
      %1252 = vrot.lane.b32.xlu0 %v1085, 12
      %v1253 = vpop.permute.xlu0 %1252
      %1254 = vrot.lane.b32.xlu0 %v1086, 12
      %v1255 = vpop.permute.xlu0 %1254
      %1256 = vrot.lane.b32.xlu0 %v1087, 12
      %v1257 = vpop.permute.xlu0 %1256
      %1258 = vrot.lane.b32.xlu0 %v1088, 12
      %v1259 = vpop.permute.xlu0 %1258
      %1260 = vrot.lane.b32.xlu0 %v1089, 12
      %v1261 = vpop.permute.xlu0 %1260
      %1262 = vrot.lane.b32.xlu0 %v1090, 12
      %v1263 = vpop.permute.xlu0 %1262
      %1264 = vrot.lane.b32.xlu0 %v1091, 12
      %v1265 = vpop.permute.xlu0 %1264
      %1266 = vrot.lane.b32.xlu0 %v1092, 12
      %v1267 = vpop.permute.xlu0 %1266
      %1268 = vrot.lane.b32.xlu0 %v1093, 12
      %v1269 = vpop.permute.xlu0 %1268
      %1270 = vrot.lane.b32.xlu0 %v1094, 12
      %v1271 = vpop.permute.xlu0 %1270
      %1272 = vrot.lane.b32.xlu0 %v1095, 12
      %v1273 = vpop.permute.xlu0 %1272
      %1274 = vrot.lane.b32.xlu0 %v1096, 12
      %v1275 = vpop.permute.xlu0 %1274
      %1276 = vrot.lane.b32.xlu0 %v1097, 12
      %v1277 = vpop.permute.xlu0 %1276
      %1278 = vrot.lane.b32.xlu0 %v1247, 12
      %v1279 = vpop.permute.xlu0 %1278
      %v1280 = vunpack.c.l.b16 %v964
      %v1281 = vunpack.c.l.b16 %v967
      %v1282 = vpack.c.b16 %v1281, %v1280
      %1283 = vrot.lane.b32.xlu0 %v1163, 15
      %v1284 = vpop.permute.xlu0 %1283
      %1285 = vrot.lane.b32.xlu0 %v1164, 15
      %v1286 = vpop.permute.xlu0 %1285
      %1287 = vrot.lane.b32.xlu0 %v1165, 15
      %v1288 = vpop.permute.xlu0 %1287
      %1289 = vrot.lane.b32.xlu0 %v1166, 15
      %v1290 = vpop.permute.xlu0 %1289
      %1291 = vrot.lane.b32.xlu0 %v1167, 15
      %v1292 = vpop.permute.xlu0 %1291
      %1293 = vrot.lane.b32.xlu0 %v1168, 15
      %v1294 = vpop.permute.xlu0 %1293
      %1295 = vrot.lane.b32.xlu0 %v1169, 15
      %v1296 = vpop.permute.xlu0 %1295
      %1297 = vrot.lane.b32.xlu0 %v1170, 15
      %v1298 = vpop.permute.xlu0 %1297
      %1299 = vrot.lane.b32.xlu0 %v1171, 15
      %v1300 = vpop.permute.xlu0 %1299
      %1301 = vrot.lane.b32.xlu0 %v1172, 15
      %v1302 = vpop.permute.xlu0 %1301
      %1303 = vrot.lane.b32.xlu0 %v1173, 15
      %v1304 = vpop.permute.xlu0 %1303
      %1305 = vrot.lane.b32.xlu0 %v1174, 15
      %v1306 = vpop.permute.xlu0 %1305
      %1307 = vrot.lane.b32.xlu0 %v1175, 15
      %v1308 = vpop.permute.xlu0 %1307
      %1309 = vrot.lane.b32.xlu0 %v1176, 15
      %v1310 = vpop.permute.xlu0 %1309
      %1311 = vrot.lane.b32.xlu0 %v1177, 15
      %v1312 = vpop.permute.xlu0 %1311
      %1313 = vrot.lane.b32.xlu0 %v1282, 15
      %v1314 = vpop.permute.xlu0 %1313
      %v1315 = vunpack.c.l.b16 %v381
      %v1316 = vunpack.c.l.b16 %v382
      %v1317 = vpack.c.b16 %v1316, %v1315
      %1318 = vrot.lane.b32.xlu0 %v1036, 18
      %v1319 = vpop.permute.xlu0 %1318
      %1320 = vrot.lane.b32.xlu0 %v1037, 18
      %v1321 = vpop.permute.xlu0 %1320
      %1322 = vrot.lane.b32.xlu0 %v1038, 18
      %v1323 = vpop.permute.xlu0 %1322
      %1324 = vrot.lane.b32.xlu0 %v1039, 18
      %v1325 = vpop.permute.xlu0 %1324
      %1326 = vrot.lane.b32.xlu0 %v1040, 18
      %v1327 = vpop.permute.xlu0 %1326
      %1328 = vrot.lane.b32.xlu0 %v1041, 18
      %v1329 = vpop.permute.xlu0 %1328
      %1330 = vrot.lane.b32.xlu0 %v1042, 18
      %v1331 = vpop.permute.xlu0 %1330
      %1332 = vrot.lane.b32.xlu0 %v1043, 18
      %v1333 = vpop.permute.xlu0 %1332
      %1334 = vrot.lane.b32.xlu0 %v1044, 18
      %v1335 = vpop.permute.xlu0 %1334
      %1336 = vrot.lane.b32.xlu0 %v1045, 18
      %v1337 = vpop.permute.xlu0 %1336
      %1338 = vrot.lane.b32.xlu0 %v1046, 18
      %v1339 = vpop.permute.xlu0 %1338
      %1340 = vrot.lane.b32.xlu0 %v1047, 18
      %v1341 = vpop.permute.xlu0 %1340
      %1342 = vrot.lane.b32.xlu0 %v1048, 18
      %v1343 = vpop.permute.xlu0 %1342
      %1344 = vrot.lane.b32.xlu0 %v1049, 18
      %v1345 = vpop.permute.xlu0 %1344
      %1346 = vrot.lane.b32.xlu0 %v1212, 18
      %v1347 = vpop.permute.xlu0 %1346
      %1348 = vrot.lane.b32.xlu0 %v1317, 18
      %v1349 = vpop.permute.xlu0 %1348
      %v1350 = vunpack.c.l.b16 %v981
      %v1351 = vunpack.c.l.b16 %v991
      %v1352 = vpack.c.b16 %v1351, %v1350
      %1353 = vrot.lane.b32.xlu0 %v1084, 21
      %v1354 = vpop.permute.xlu0 %1353
      %1355 = vrot.lane.b32.xlu0 %v1085, 21
      %v1356 = vpop.permute.xlu0 %1355
      %1357 = vrot.lane.b32.xlu0 %v1086, 21
      %v1358 = vpop.permute.xlu0 %1357
      %1359 = vrot.lane.b32.xlu0 %v1087, 21
      %v1360 = vpop.permute.xlu0 %1359
      %1361 = vrot.lane.b32.xlu0 %v1088, 21
      %v1362 = vpop.permute.xlu0 %1361
      %1363 = vrot.lane.b32.xlu0 %v1089, 21
      %v1364 = vpop.permute.xlu0 %1363
      %1365 = vrot.lane.b32.xlu0 %v1090, 21
      %v1366 = vpop.permute.xlu0 %1365
      %1367 = vrot.lane.b32.xlu0 %v1091, 21
      %v1368 = vpop.permute.xlu0 %1367
      %1369 = vrot.lane.b32.xlu0 %v1092, 21
      %v1370 = vpop.permute.xlu0 %1369
      %1371 = vrot.lane.b32.xlu0 %v1093, 21
      %v1372 = vpop.permute.xlu0 %1371
      %1373 = vrot.lane.b32.xlu0 %v1094, 21
      %v1374 = vpop.permute.xlu0 %1373
      %1375 = vrot.lane.b32.xlu0 %v1095, 21
      %v1376 = vpop.permute.xlu0 %1375
      %1377 = vrot.lane.b32.xlu0 %v1096, 21
      %v1378 = vpop.permute.xlu0 %1377
      %1379 = vrot.lane.b32.xlu0 %v1097, 21
      %v1380 = vpop.permute.xlu0 %1379
      %1381 = vrot.lane.b32.xlu0 %v1247, 21
      %v1382 = vpop.permute.xlu0 %1381
      %1383 = vrot.lane.b32.xlu0 %v1352, 21
      %v1384 = vpop.permute.xlu0 %1383
      %v1385 = vunpack.c.l.b16 %v998
      %v1386 = vunpack.c.l.b16 %v1001
      %v1387 = vpack.c.b16 %v1386, %v1385
      %1388 = vrot.lane.b32.xlu0 %v1164, 24
      %v1389 = vpop.permute.xlu0 %1388
      %1390 = vrot.lane.b32.xlu0 %v1165, 24
      %v1391 = vpop.permute.xlu0 %1390
      %1392 = vrot.lane.b32.xlu0 %v1166, 24
      %v1393 = vpop.permute.xlu0 %1392
      %1394 = vrot.lane.b32.xlu0 %v1167, 24
      %v1395 = vpop.permute.xlu0 %1394
      %1396 = vrot.lane.b32.xlu0 %v1168, 24
      %v1397 = vpop.permute.xlu0 %1396
      %1398 = vrot.lane.b32.xlu0 %v1169, 24
      %v1399 = vpop.permute.xlu0 %1398
      %1400 = vrot.lane.b32.xlu0 %v1170, 24
      %v1401 = vpop.permute.xlu0 %1400
      %1402 = vrot.lane.b32.xlu0 %v1171, 24
      %v1403 = vpop.permute.xlu0 %1402
      %1404 = vrot.lane.b32.xlu0 %v1172, 24
      %v1405 = vpop.permute.xlu0 %1404
      %1406 = vrot.lane.b32.xlu0 %v1173, 24
      %v1407 = vpop.permute.xlu0 %1406
      %1408 = vrot.lane.b32.xlu0 %v1174, 24
      %v1409 = vpop.permute.xlu0 %1408
      %1410 = vrot.lane.b32.xlu0 %v1175, 24
      %v1411 = vpop.permute.xlu0 %1410
      %1412 = vrot.lane.b32.xlu0 %v1176, 24
      %v1413 = vpop.permute.xlu0 %1412
      %1414 = vrot.lane.b32.xlu0 %v1177, 24
      %v1415 = vpop.permute.xlu0 %1414
      %1416 = vrot.lane.b32.xlu0 %v1282, 24
      %v1417 = vpop.permute.xlu0 %1416
      %1418 = vrot.lane.b32.xlu0 %v1387, 24
      %v1419 = vpop.permute.xlu0 %1418
      %vm1420 = vcmask 23552
      %v1423 = vsel %vm1420, %v1034, %v1099
      %v1426 = vsel %vm1420, %v1035, %v1101
      %v1429 = vsel %vm1420, %v1036, %v1103
      %v1432 = vsel %vm1420, %v1037, %v1105
      %v1435 = vsel %vm1420, %v1038, %v1107
      %v1438 = vsel %vm1420, %v1039, %v1109
      %v1441 = vsel %vm1420, %v1040, %v1111
      %v1444 = vsel %vm1420, %v1041, %v1113
      %v1447 = vsel %vm1420, %v1042, %v1115
      %v1450 = vsel %vm1420, %v1043, %v1117
      %v1453 = vsel %vm1420, %v1044, %v1119
      %v1456 = vsel %vm1420, %v1045, %v1121
      %v1459 = vsel %vm1420, %v1046, %v1123
      %v1462 = vsel %vm1420, %v1047, %v1125
      %v1465 = vsel %vm1420, %v1048, %v1127
      %v1468 = vsel %vm1420, %v1049, %v1129
      %vm1469 = vcmask 48128
      %v1471 = vsel %vm1469, %v1423, %v1179
      %v1473 = vsel %vm1469, %v1426, %v1181
      %v1475 = vsel %vm1469, %v1429, %v1183
      %v1477 = vsel %vm1469, %v1432, %v1185
      %v1479 = vsel %vm1469, %v1435, %v1187
      %v1481 = vsel %vm1469, %v1438, %v1189
      %v1483 = vsel %vm1469, %v1441, %v1191
      %v1485 = vsel %vm1469, %v1444, %v1193
      %v1487 = vsel %vm1469, %v1447, %v1195
      %v1489 = vsel %vm1469, %v1450, %v1197
      %v1491 = vsel %vm1469, %v1453, %v1199
      %v1493 = vsel %vm1469, %v1456, %v1201
      %v1495 = vsel %vm1469, %v1459, %v1203
      %v1497 = vsel %vm1469, %v1462, %v1205
      %v1499 = vsel %vm1469, %v1465, %v1207
      %v1501 = vsel %vm1469, %v1468, %v1209
      %vm1502 = vcmask 72704
      %v1504 = vsel %vm1502, %v1471, %v1214
      %v1506 = vsel %vm1502, %v1473, %v1216
      %v1508 = vsel %vm1502, %v1475, %v1218
      %v1510 = vsel %vm1502, %v1477, %v1220
      %v1512 = vsel %vm1502, %v1479, %v1222
      %v1514 = vsel %vm1502, %v1481, %v1224
      %v1516 = vsel %vm1502, %v1483, %v1226
      %v1518 = vsel %vm1502, %v1485, %v1228
      %v1520 = vsel %vm1502, %v1487, %v1230
      %v1522 = vsel %vm1502, %v1489, %v1232
      %v1524 = vsel %vm1502, %v1491, %v1234
      %v1526 = vsel %vm1502, %v1493, %v1236
      %v1528 = vsel %vm1502, %v1495, %v1238
      %v1530 = vsel %vm1502, %v1497, %v1240
      %v1532 = vsel %vm1502, %v1499, %v1242
      %v1534 = vsel %vm1502, %v1501, %v1244
      %vm1535 = vcmask 97280
      %v1537 = vsel %vm1535, %v1504, %v1249
      %v1539 = vsel %vm1535, %v1506, %v1251
      %v1541 = vsel %vm1535, %v1508, %v1253
      %v1543 = vsel %vm1535, %v1510, %v1255
      %v1545 = vsel %vm1535, %v1512, %v1257
      %v1547 = vsel %vm1535, %v1514, %v1259
      %v1549 = vsel %vm1535, %v1516, %v1261
      %v1551 = vsel %vm1535, %v1518, %v1263
      %v1553 = vsel %vm1535, %v1520, %v1265
      %v1555 = vsel %vm1535, %v1522, %v1267
      %v1557 = vsel %vm1535, %v1524, %v1269
      %v1559 = vsel %vm1535, %v1526, %v1271
      %v1561 = vsel %vm1535, %v1528, %v1273
      %v1563 = vsel %vm1535, %v1530, %v1275
      %v1565 = vsel %vm1535, %v1532, %v1277
      %v1567 = vsel %vm1535, %v1534, %v1279
      %vm1568 = vcmask 121856
      %v1570 = vsel %vm1568, %v1537, %v1284
      %v1572 = vsel %vm1568, %v1539, %v1286
      %v1574 = vsel %vm1568, %v1541, %v1288
      %v1576 = vsel %vm1568, %v1543, %v1290
      %v1578 = vsel %vm1568, %v1545, %v1292
      %v1580 = vsel %vm1568, %v1547, %v1294
      %v1582 = vsel %vm1568, %v1549, %v1296
      %v1584 = vsel %vm1568, %v1551, %v1298
      %v1586 = vsel %vm1568, %v1553, %v1300
      %v1588 = vsel %vm1568, %v1555, %v1302
      %v1590 = vsel %vm1568, %v1557, %v1304
      %v1592 = vsel %vm1568, %v1559, %v1306
      %v1594 = vsel %vm1568, %v1561, %v1308
      %v1596 = vsel %vm1568, %v1563, %v1310
      %v1598 = vsel %vm1568, %v1565, %v1312
      %v1600 = vsel %vm1568, %v1567, %v1314
      %vm1601 = vcmask 146432
      %v1603 = vsel %vm1601, %v1570, %v1319
      %v1605 = vsel %vm1601, %v1572, %v1321
      %v1607 = vsel %vm1601, %v1574, %v1323
      %v1609 = vsel %vm1601, %v1576, %v1325
      %v1611 = vsel %vm1601, %v1578, %v1327
      %v1613 = vsel %vm1601, %v1580, %v1329
      %v1615 = vsel %vm1601, %v1582, %v1331
      %v1617 = vsel %vm1601, %v1584, %v1333
      %v1619 = vsel %vm1601, %v1586, %v1335
      %v1621 = vsel %vm1601, %v1588, %v1337
      %v1623 = vsel %vm1601, %v1590, %v1339
      %v1625 = vsel %vm1601, %v1592, %v1341
      %v1627 = vsel %vm1601, %v1594, %v1343
      %v1629 = vsel %vm1601, %v1596, %v1345
      %v1631 = vsel %vm1601, %v1598, %v1347
      %v1633 = vsel %vm1601, %v1600, %v1349
      %vm1634 = vcmask 171008
      %v1636 = vsel %vm1634, %v1603, %v1354
      %v1638 = vsel %vm1634, %v1605, %v1356
      %v1640 = vsel %vm1634, %v1607, %v1358
      %v1642 = vsel %vm1634, %v1609, %v1360
      %v1644 = vsel %vm1634, %v1611, %v1362
      %v1646 = vsel %vm1634, %v1613, %v1364
      %v1648 = vsel %vm1634, %v1615, %v1366
      %v1650 = vsel %vm1634, %v1617, %v1368
      %v1652 = vsel %vm1634, %v1619, %v1370
      %v1654 = vsel %vm1634, %v1621, %v1372
      %v1656 = vsel %vm1634, %v1623, %v1374
      %v1658 = vsel %vm1634, %v1625, %v1376
      %v1660 = vsel %vm1634, %v1627, %v1378
      %v1662 = vsel %vm1634, %v1629, %v1380
      %v1664 = vsel %vm1634, %v1631, %v1382
      %v1666 = vsel %vm1634, %v1633, %v1384
      %vm1667 = vcmask 195584
      %v1669 = vsel %vm1667, %v1636, %v1389
      %v1671 = vsel %vm1667, %v1638, %v1391
      %v1673 = vsel %vm1667, %v1640, %v1393
      %v1675 = vsel %vm1667, %v1642, %v1395
      %v1677 = vsel %vm1667, %v1644, %v1397
      %v1679 = vsel %vm1667, %v1646, %v1399
      %v1681 = vsel %vm1667, %v1648, %v1401
      %v1683 = vsel %vm1667, %v1650, %v1403
      %v1685 = vsel %vm1667, %v1652, %v1405
      %v1687 = vsel %vm1667, %v1654, %v1407
      %v1689 = vsel %vm1667, %v1656, %v1409
      %v1691 = vsel %vm1667, %v1658, %v1411
      %v1693 = vsel %vm1667, %v1660, %v1413
      %v1695 = vsel %vm1667, %v1662, %v1415
      %v1697 = vsel %vm1667, %v1664, %v1417
      %v1699 = vsel %vm1667, %v1666, %v1419
      %v1700 = vld [vmem:[%s1] sm:$0xf]
      %v1701 = vld [vmem:[%s1 + $0x4] sm:$0xf]
      %v1702 = vld [vmem:[%s1 + $0x8] sm:$0xf]
      %v1703 = vld [vmem:[%s1 + $0xc] sm:$0x3]
      %v1704 = vld [vmem:[%s2] sm:$0x1]
      %v1706 = vlaneseq
      %v1707 = vshrl.u32 %v1706, 7
      %v1708 = vsub.s32 0, %v1707
      %v1709 = vrot.slane %v1704, %v1708
      %v1715 = vunpack.c.l.b16 %v1700
      %v1716 = vunpack.c.l.b16 %v1701
      %v1717 = vunpack.c.l.b16 %v1702
      %v1718 = vunpack.c.l.b16 %v1703
      %v1719 = vpack.c.b16 %v1716, %v1715
      %v1720 = vpack.c.b16 %v1718, %v1717
      %vm1722 = vcmask 220160
      %v1723 = vsel %vm1722, %v1669, 0
      %v1725 = vsel %vm1722, %v1671, 0
      %v1727 = vsel %vm1722, %v1673, 0
      %v1729 = vsel %vm1722, %v1675, 0
      %v1731 = vsel %vm1722, %v1677, 0
      %v1733 = vsel %vm1722, %v1679, 0
      %v1735 = vsel %vm1722, %v1681, 0
      %v1737 = vsel %vm1722, %v1683, 0
      %v1739 = vsel %vm1722, %v1685, 0
      %v1741 = vsel %vm1722, %v1687, 0
      %v1743 = vsel %vm1722, %v1689, 0
      %v1745 = vsel %vm1722, %v1691, 0
      %v1747 = vsel %vm1722, %v1693, 0
      %v1749 = vsel %vm1722, %v1695, 0
      %v1751 = vsel %vm1722, %v1697, 0
      %v1753 = vsel %vm1722, %v1699, 0
      %vm1755 = vcmask 1044480
      %vm1756 = vcmask 1045504
      %v1757 = vsel %vm1755, 4294967295, 65535
      %v1758 = vsel %vm1756, %v1757, 0
      %v1760 = vand.u32 %v1720, %v1758
      %1762 = vmatprep.subr.bf16.mxu0 0
      %1763 = vmatpush1.bf16.msra.mxu0 0
      %1764 = vmatprep.subr.bf16.mxu0 0
      %1765 = vmatpush1.bf16.msra.mxu0 0
      %1766 = vmatprep.subr.bf16.mxu0 0
      %1767 = vmatpush1.bf16.msra.mxu0 0
      %1768 = vmatprep.subr.bf16.mxu0 0
      %1769 = vmatpush1.bf16.msra.mxu0 0
      %1770 = vmatprep.subr.bf16.mxu0 0
      %1771 = vmatpush1.bf16.msra.mxu0 0
      %1772 = vmatprep.subr.bf16.mxu0 0
      %1773 = vmatpush1.bf16.msra.mxu0 0
      %1774 = vmatprep.subr.bf16.mxu0 0
      %1775 = vmatpush1.bf16.msra.mxu0 %v1760
      %1776 = vmatprep.subr.bf16.mxu0 0
      %1777 = vmatpush1.bf16.msra.mxu0 %v1719
      %1778 = vmatprep.subr.bf16.mxu0 0
      %1779 = vmatpush2.bf16.msra.mxu0 0
      %1780 = vmatprep.subr.bf16.mxu0 0
      %1781 = vmatpush2.bf16.msra.mxu0 0
      %1782 = vmatprep.subr.bf16.mxu0 0
      %1783 = vmatpush2.bf16.msra.mxu0 0
      %1784 = vmatprep.subr.bf16.mxu0 0
      %1785 = vmatpush2.bf16.msra.mxu0 0
      %1786 = vmatprep.subr.bf16.mxu0 0
      %1787 = vmatpush2.bf16.msra.mxu0 0
      %1788 = vmatprep.subr.bf16.mxu0 0
      %1789 = vmatpush2.bf16.msra.mxu0 0
      %1790 = vmatprep.subr.bf16.mxu0 0
      %1791 = vmatpush2.bf16.msra.mxu0 0
      %1792 = vmatprep.subr.bf16.mxu0 0
      %1793 = vmatpush2.bf16.msra.mxu0 0
      %1794 = vmatprep.mubr.bf16.mxu0 0
      %1795 = vmatmul.mubr.bf16.gmra.mxu0 %v1723
      %v1796 = vpop.f32.mrf.mxu0
      %v1797 = vadd.f32 %v1709, %v1796
      %v1798 = vpop.f32.mrf.mxu0
      %v1799 = vpop.f32.mrf.mxu0
      %v1800 = vadd.f32 %v1709, %v1799
      %v1801 = vpop.f32.mrf.mxu0
      %1802 = vmatprep.mubr.bf16.mxu0 0
      %1803 = vmatmul.mubr.bf16.gmra.mxu0 %v1725
      %v1804 = vpop.f32.mrf.mxu0
      %v1805 = vadd.f32 %v1709, %v1804
      %v1806 = vpop.f32.mrf.mxu0
      %v1807 = vpop.f32.mrf.mxu0
      %v1808 = vadd.f32 %v1709, %v1807
      %v1809 = vpop.f32.mrf.mxu0
      %1810 = vmatprep.mubr.bf16.mxu0 0
      %1811 = vmatmul.mubr.bf16.gmra.mxu0 %v1727
      %v1812 = vpop.f32.mrf.mxu0
      %v1813 = vadd.f32 %v1709, %v1812
      %v1814 = vpop.f32.mrf.mxu0
      %v1815 = vpop.f32.mrf.mxu0
      %v1816 = vadd.f32 %v1709, %v1815
      %v1817 = vpop.f32.mrf.mxu0
      %1818 = vmatprep.mubr.bf16.mxu0 0
      %1819 = vmatmul.mubr.bf16.gmra.mxu0 %v1729
      %v1820 = vpop.f32.mrf.mxu0
      %v1821 = vadd.f32 %v1709, %v1820
      %v1822 = vpop.f32.mrf.mxu0
      %v1823 = vpop.f32.mrf.mxu0
      %v1824 = vadd.f32 %v1709, %v1823
      %v1825 = vpop.f32.mrf.mxu0
      %1826 = vmatprep.mubr.bf16.mxu0 0
      %1827 = vmatmul.mubr.bf16.gmra.mxu0 %v1731
      %v1828 = vpop.f32.mrf.mxu0
      %v1829 = vadd.f32 %v1709, %v1828
      %v1830 = vpop.f32.mrf.mxu0
      %v1831 = vpop.f32.mrf.mxu0
      %v1832 = vadd.f32 %v1709, %v1831
      %v1833 = vpop.f32.mrf.mxu0
      %1834 = vmatprep.mubr.bf16.mxu0 0
      %1835 = vmatmul.mubr.bf16.gmra.mxu0 %v1733
      %v1836 = vpop.f32.mrf.mxu0
      %v1837 = vadd.f32 %v1709, %v1836
      %v1838 = vpop.f32.mrf.mxu0
      %v1839 = vpop.f32.mrf.mxu0
      %v1840 = vadd.f32 %v1709, %v1839
      %v1841 = vpop.f32.mrf.mxu0
      %1842 = vmatprep.mubr.bf16.mxu0 0
      %1843 = vmatmul.mubr.bf16.gmra.mxu0 %v1735
      %v1844 = vpop.f32.mrf.mxu0
      %v1845 = vadd.f32 %v1709, %v1844
      %v1846 = vpop.f32.mrf.mxu0
      %v1847 = vpop.f32.mrf.mxu0
      %v1848 = vadd.f32 %v1709, %v1847
      %v1849 = vpop.f32.mrf.mxu0
      %1850 = vmatprep.mubr.bf16.mxu0 0
      %1851 = vmatmul.mubr.bf16.gmra.mxu0 %v1737
      %v1852 = vpop.f32.mrf.mxu0
      %v1853 = vadd.f32 %v1709, %v1852
      %v1854 = vpop.f32.mrf.mxu0
      %v1855 = vpop.f32.mrf.mxu0
      %v1856 = vadd.f32 %v1709, %v1855
      %v1857 = vpop.f32.mrf.mxu0
      %1858 = vmatprep.mubr.bf16.mxu0 0
      %1859 = vmatmul.mubr.bf16.gmra.mxu0 %v1739
      %v1860 = vpop.f32.mrf.mxu0
      %v1861 = vadd.f32 %v1709, %v1860
      %v1862 = vpop.f32.mrf.mxu0
      %v1863 = vpop.f32.mrf.mxu0
      %v1864 = vadd.f32 %v1709, %v1863
      %v1865 = vpop.f32.mrf.mxu0
      %1866 = vmatprep.mubr.bf16.mxu0 0
      %1867 = vmatmul.mubr.bf16.gmra.mxu0 %v1741
      %v1868 = vpop.f32.mrf.mxu0
      %v1869 = vadd.f32 %v1709, %v1868
      %v1870 = vpop.f32.mrf.mxu0
      %v1871 = vpop.f32.mrf.mxu0
      %v1872 = vadd.f32 %v1709, %v1871
      %v1873 = vpop.f32.mrf.mxu0
      %1874 = vmatprep.mubr.bf16.mxu0 0
      %1875 = vmatmul.mubr.bf16.gmra.mxu0 %v1743
      %v1876 = vpop.f32.mrf.mxu0
      %v1877 = vadd.f32 %v1709, %v1876
      %v1878 = vpop.f32.mrf.mxu0
      %v1879 = vpop.f32.mrf.mxu0
      %v1880 = vadd.f32 %v1709, %v1879
      %v1881 = vpop.f32.mrf.mxu0
      %1882 = vmatprep.mubr.bf16.mxu0 0
      %1883 = vmatmul.mubr.bf16.gmra.mxu0 %v1745
      %v1884 = vpop.f32.mrf.mxu0
      %v1885 = vadd.f32 %v1709, %v1884
      %v1886 = vpop.f32.mrf.mxu0
      %v1887 = vpop.f32.mrf.mxu0
      %v1888 = vadd.f32 %v1709, %v1887
      %v1889 = vpop.f32.mrf.mxu0
      %1890 = vmatprep.mubr.bf16.mxu0 0
      %1891 = vmatmul.mubr.bf16.gmra.mxu0 %v1747
      %v1892 = vpop.f32.mrf.mxu0
      %v1893 = vadd.f32 %v1709, %v1892
      %v1894 = vpop.f32.mrf.mxu0
      %v1895 = vpop.f32.mrf.mxu0
      %v1896 = vadd.f32 %v1709, %v1895
      %v1897 = vpop.f32.mrf.mxu0
      %1898 = vmatprep.mubr.bf16.mxu0 0
      %1899 = vmatmul.mubr.bf16.gmra.mxu0 %v1749
      %v1900 = vpop.f32.mrf.mxu0
      %v1901 = vadd.f32 %v1709, %v1900
      %v1902 = vpop.f32.mrf.mxu0
      %v1903 = vpop.f32.mrf.mxu0
      %v1904 = vadd.f32 %v1709, %v1903
      %v1905 = vpop.f32.mrf.mxu0
      %1906 = vmatprep.mubr.bf16.mxu0 0
      %1907 = vmatmul.mubr.bf16.gmra.mxu0 %v1751
      %v1908 = vpop.f32.mrf.mxu0
      %v1909 = vadd.f32 %v1709, %v1908
      %v1910 = vpop.f32.mrf.mxu0
      %v1911 = vpop.f32.mrf.mxu0
      %v1912 = vadd.f32 %v1709, %v1911
      %v1913 = vpop.f32.mrf.mxu0
      %1914 = vmatprep.mubr.bf16.mxu0 0
      %1915 = vmatmul.mubr.bf16.gmra.mxu0 %v1753
      %v1916 = vpop.f32.mrf.mxu0
      %v1917 = vadd.f32 %v1709, %v1916
      %v1918 = vpop.f32.mrf.mxu0
      %v1919 = vpop.f32.mrf.mxu0
      %v1920 = vadd.f32 %v1709, %v1919
      %v1921 = vpop.f32.mrf.mxu0
      %1922 = vdwg.mxu0
      %vm1923 = vcmp.gt.f32.partialorder %v1797, 0.0
      %vm1924 = vcmp.gt.f32.partialorder %v1800, 0.0
      %vm1925 = vcmp.gt.f32.partialorder %v1805, 0.0
      %vm1926 = vcmp.gt.f32.partialorder %v1808, 0.0
      %vm1927 = vcmp.gt.f32.partialorder %v1813, 0.0
      %vm1928 = vcmp.gt.f32.partialorder %v1816, 0.0
      %vm1929 = vcmp.gt.f32.partialorder %v1821, 0.0
      %vm1930 = vcmp.gt.f32.partialorder %v1824, 0.0
      %vm1931 = vcmp.gt.f32.partialorder %v1829, 0.0
      %vm1932 = vcmp.gt.f32.partialorder %v1832, 0.0
      %vm1933 = vcmp.gt.f32.partialorder %v1837, 0.0
      %vm1934 = vcmp.gt.f32.partialorder %v1840, 0.0
      %vm1935 = vcmp.gt.f32.partialorder %v1845, 0.0
      %vm1936 = vcmp.gt.f32.partialorder %v1848, 0.0
      %vm1937 = vcmp.gt.f32.partialorder %v1853, 0.0
      %vm1938 = vcmp.gt.f32.partialorder %v1856, 0.0
      %vm1939 = vcmp.gt.f32.partialorder %v1861, 0.0
      %vm1940 = vcmp.gt.f32.partialorder %v1864, 0.0
      %vm1941 = vcmp.gt.f32.partialorder %v1869, 0.0
      %vm1942 = vcmp.gt.f32.partialorder %v1872, 0.0
      %vm1943 = vcmp.gt.f32.partialorder %v1877, 0.0
      %vm1944 = vcmp.gt.f32.partialorder %v1880, 0.0
      %vm1945 = vcmp.gt.f32.partialorder %v1885, 0.0
      %vm1946 = vcmp.gt.f32.partialorder %v1888, 0.0
      %vm1947 = vcmp.gt.f32.partialorder %v1893, 0.0
      %vm1948 = vcmp.gt.f32.partialorder %v1896, 0.0
      %vm1949 = vcmp.gt.f32.partialorder %v1901, 0.0
      %vm1950 = vcmp.gt.f32.partialorder %v1904, 0.0
      %vm1951 = vcmp.gt.f32.partialorder %v1909, 0.0
      %vm1952 = vcmp.gt.f32.partialorder %v1912, 0.0
      %vm1953 = vcmp.gt.f32.partialorder %v1917, 0.0
      %vm1954 = vcmp.gt.f32.partialorder %v1920, 0.0
      %v1955 = vmul.f32 %v1797, 0.1
      %v1956 = vmul.f32 %v1800, 0.1
      %v1957 = vmul.f32 %v1805, 0.1
      %v1958 = vmul.f32 %v1808, 0.1
      %v1959 = vmul.f32 %v1813, 0.1
      %v1960 = vmul.f32 %v1816, 0.1
      %v1961 = vmul.f32 %v1821, 0.1
      %v1962 = vmul.f32 %v1824, 0.1
      %v1963 = vmul.f32 %v1829, 0.1
      %v1964 = vmul.f32 %v1832, 0.1
      %v1965 = vmul.f32 %v1837, 0.1
      %v1966 = vmul.f32 %v1840, 0.1
      %v1967 = vmul.f32 %v1845, 0.1
      %v1968 = vmul.f32 %v1848, 0.1
      %v1969 = vmul.f32 %v1853, 0.1
      %v1970 = vmul.f32 %v1856, 0.1
      %v1971 = vmul.f32 %v1861, 0.1
      %v1972 = vmul.f32 %v1864, 0.1
      %v1973 = vmul.f32 %v1869, 0.1
      %v1974 = vmul.f32 %v1872, 0.1
      %v1975 = vmul.f32 %v1877, 0.1
      %v1976 = vmul.f32 %v1880, 0.1
      %v1977 = vmul.f32 %v1885, 0.1
      %v1978 = vmul.f32 %v1888, 0.1
      %v1979 = vmul.f32 %v1893, 0.1
      %v1980 = vmul.f32 %v1896, 0.1
      %v1981 = vmul.f32 %v1901, 0.1
      %v1982 = vmul.f32 %v1904, 0.1
      %v1983 = vmul.f32 %v1909, 0.1
      %v1984 = vmul.f32 %v1912, 0.1
      %v1985 = vmul.f32 %v1917, 0.1
      %v1986 = vmul.f32 %v1920, 0.1
      %v1987 = vsel %vm1923, %v1797, %v1955
      %v1988 = vsel %vm1924, %v1800, %v1956
      %v1989 = vsel %vm1925, %v1805, %v1957
      %v1990 = vsel %vm1926, %v1808, %v1958
      %v1991 = vsel %vm1927, %v1813, %v1959
      %v1992 = vsel %vm1928, %v1816, %v1960
      %v1993 = vsel %vm1929, %v1821, %v1961
      %v1994 = vsel %vm1930, %v1824, %v1962
      %v1995 = vsel %vm1931, %v1829, %v1963
      %v1996 = vsel %vm1932, %v1832, %v1964
      %v1997 = vsel %vm1933, %v1837, %v1965
      %v1998 = vsel %vm1934, %v1840, %v1966
      %v1999 = vsel %vm1935, %v1845, %v1967
      %v2000 = vsel %vm1936, %v1848, %v1968
      %v2001 = vsel %vm1937, %v1853, %v1969
      %v2002 = vsel %vm1938, %v1856, %v1970
      %v2003 = vsel %vm1939, %v1861, %v1971
      %v2004 = vsel %vm1940, %v1864, %v1972
      %v2005 = vsel %vm1941, %v1869, %v1973
      %v2006 = vsel %vm1942, %v1872, %v1974
      %v2007 = vsel %vm1943, %v1877, %v1975
      %v2008 = vsel %vm1944, %v1880, %v1976
      %v2009 = vsel %vm1945, %v1885, %v1977
      %v2010 = vsel %vm1946, %v1888, %v1978
      %v2011 = vsel %vm1947, %v1893, %v1979
      %v2012 = vsel %vm1948, %v1896, %v1980
      %v2013 = vsel %vm1949, %v1901, %v1981
      %v2014 = vsel %vm1950, %v1904, %v1982
      %v2015 = vsel %vm1951, %v1909, %v1983
      %v2016 = vsel %vm1952, %v1912, %v1984
      %v2017 = vsel %vm1953, %v1917, %v1985
      %v2018 = vsel %vm1954, %v1920, %v1986
      %v2019 = vpack.c.bf16 %v1988, %v1987
      %v2020 = vpack.c.bf16 %v1990, %v1989
      %v2021 = vpack.c.bf16 %v1992, %v1991
      %v2022 = vpack.c.bf16 %v1994, %v1993
      %v2023 = vpack.c.bf16 %v1996, %v1995
      %v2024 = vpack.c.bf16 %v1998, %v1997
      %v2025 = vpack.c.bf16 %v2000, %v1999
      %v2026 = vpack.c.bf16 %v2002, %v2001
      %v2027 = vpack.c.bf16 %v2004, %v2003
      %v2028 = vpack.c.bf16 %v2006, %v2005
      %v2029 = vpack.c.bf16 %v2008, %v2007
      %v2030 = vpack.c.bf16 %v2010, %v2009
      %v2031 = vpack.c.bf16 %v2012, %v2011
      %v2032 = vpack.c.bf16 %v2014, %v2013
      %v2033 = vpack.c.bf16 %v2016, %v2015
      %v2034 = vpack.c.bf16 %v2018, %v2017
      %v2035 = vld [vmem:[%s3] sm:$0xff]
      %v2036 = vld [vmem:[%s3 + $0x8] sm:$0xf]
      %v2037 = vld [vmem:[%s3 + $0xc] sm:$0xff]
      %v2038 = vld [vmem:[%s3 + $0x14] sm:$0xf]
      %v2039 = vld [vmem:[%s3 + $0x18] sm:$0xff]
      %v2040 = vld [vmem:[%s3 + $0x20] sm:$0xf]
      %v2041 = vld [vmem:[%s3 + $0x24] sm:$0xff]
      %v2042 = vld [vmem:[%s3 + $0x2c] sm:$0xf]
      %v2043 = vld [vmem:[%s4] sm:$0x7]
      %v2045 = vlaneseq
      %v2046 = vshrl.u32 %v2045, 7
      %v2047 = vsub.s32 0, %v2046
      %v2048 = vrot.slane %v2043, %v2047
      %v2049 = vlaneseq
      %v2050 = vshrl.u32 %v2049, 7
      %v2051 = vsub.s32 1, %v2050
      %v2052 = vrot.slane %v2043, %v2051
      %v2053 = vlaneseq
      %v2054 = vshrl.u32 %v2053, 7
      %v2055 = vsub.s32 2, %v2054
      %v2056 = vrot.slane %v2043, %v2055
      %v2068 = vunpack.c.l.b16 %v2035
      %v2069 = vunpack.c.h.b16 %v2035
      %v2070 = vunpack.c.l.b16 %v2036
      %v2071 = vunpack.c.l.b16 %v2037
      %v2072 = vunpack.c.h.b16 %v2037
      %v2073 = vunpack.c.l.b16 %v2038
      %v2074 = vunpack.c.l.b16 %v2039
      %v2075 = vunpack.c.h.b16 %v2039
      %v2076 = vunpack.c.l.b16 %v2040
      %v2077 = vunpack.c.l.b16 %v2041
      %v2078 = vunpack.c.h.b16 %v2041
      %v2079 = vunpack.c.l.b16 %v2042
      %v2080 = vpack.c.b16 %v2071, %v2068
      %v2081 = vpack.c.b16 %v2072, %v2069
      %v2082 = vpack.c.b16 %v2073, %v2070
      %v2083 = vpack.c.b16 %v2077, %v2074
      %v2084 = vpack.c.b16 %v2078, %v2075
      %v2085 = vpack.c.b16 %v2079, %v2076
      %vm2092 = vcmask 261120
      %v2094 = vsel %vm2092, %v2019, 0
      %v2097 = vsel %vm2092, %v2020, 0
      %v2100 = vsel %vm2092, %v2021, 0
      %v2103 = vsel %vm2092, %v2022, 0
      %v2106 = vsel %vm2092, %v2023, 0
      %v2109 = vsel %vm2092, %v2024, 0
      %v2112 = vsel %vm2092, %v2025, 0
      %v2115 = vsel %vm2092, %v2026, 0
      %v2118 = vsel %vm2092, %v2027, 0
      %v2121 = vsel %vm2092, %v2028, 0
      %v2124 = vsel %vm2092, %v2029, 0
      %v2127 = vsel %vm2092, %v2030, 0
      %v2130 = vsel %vm2092, %v2031, 0
      %v2133 = vsel %vm2092, %v2032, 0
      %v2136 = vsel %vm2092, %v2033, 0
      %v2139 = vsel %vm2092, %v2034, 0
      %2141 = vmatprep.subr.bf16.mxu0 0
      %2142 = vmatpush1.bf16.msra.mxu0 0
      %2143 = vmatprep.subr.bf16.mxu0 0
      %2144 = vmatpush1.bf16.msra.mxu0 0
      %2145 = vmatprep.subr.bf16.mxu0 0
      %2146 = vmatpush1.bf16.msra.mxu0 0
      %2147 = vmatprep.subr.bf16.mxu0 0
      %2148 = vmatpush1.bf16.msra.mxu0 0
      %2149 = vmatprep.subr.bf16.mxu0 0
      %2150 = vmatpush1.bf16.msra.mxu0 0
      %2151 = vmatprep.subr.bf16.mxu0 0
      %2152 = vmatpush1.bf16.msra.mxu0 0
      %2153 = vmatprep.subr.bf16.mxu0 %v2084
      %2154 = vmatpush1.bf16.msra.mxu0 %v2083
      %2155 = vmatprep.subr.bf16.mxu0 %v2081
      %2156 = vmatpush1.bf16.msra.mxu0 %v2080
      %2157 = vmatprep.subr.bf16.mxu0 0
      %2158 = vmatpush2.bf16.msra.mxu0 0
      %2159 = vmatprep.subr.bf16.mxu0 0
      %2160 = vmatpush2.bf16.msra.mxu0 0
      %2161 = vmatprep.subr.bf16.mxu0 0
      %2162 = vmatpush2.bf16.msra.mxu0 0
      %2163 = vmatprep.subr.bf16.mxu0 0
      %2164 = vmatpush2.bf16.msra.mxu0 0
      %2165 = vmatprep.subr.bf16.mxu0 0
      %2166 = vmatpush2.bf16.msra.mxu0 0
      %2167 = vmatprep.subr.bf16.mxu0 0
      %2168 = vmatpush2.bf16.msra.mxu0 0
      %2169 = vmatprep.subr.bf16.mxu0 0
      %2170 = vmatpush2.bf16.msra.mxu0 0
      %2171 = vmatprep.subr.bf16.mxu0 0
      %2172 = vmatpush2.bf16.msra.mxu0 0
      %2173 = vmatprep.mubr.bf16.mxu0 0
      %2174 = vmatmul.mubr.bf16.gmra.mxu0 %v2094
      %v2175 = vpop.f32.mrf.mxu0
      %v2176 = vadd.f32 %v2048, %v2175
      %v2177 = vpop.f32.mrf.mxu0
      %v2178 = vadd.f32 %v2052, %v2177
      %v2179 = vpop.f32.mrf.mxu0
      %v2180 = vadd.f32 %v2048, %v2179
      %v2181 = vpop.f32.mrf.mxu0
      %v2182 = vadd.f32 %v2052, %v2181
      %2183 = vmatprep.mubr.bf16.mxu0 0
      %2184 = vmatmul.mubr.bf16.gmra.mxu0 %v2097
      %v2185 = vpop.f32.mrf.mxu0
      %v2186 = vadd.f32 %v2048, %v2185
      %v2187 = vpop.f32.mrf.mxu0
      %v2188 = vadd.f32 %v2052, %v2187
      %v2189 = vpop.f32.mrf.mxu0
      %v2190 = vadd.f32 %v2048, %v2189
      %v2191 = vpop.f32.mrf.mxu0
      %v2192 = vadd.f32 %v2052, %v2191
      %2193 = vmatprep.mubr.bf16.mxu0 0
      %2194 = vmatmul.mubr.bf16.gmra.mxu0 %v2100
      %v2195 = vpop.f32.mrf.mxu0
      %v2196 = vadd.f32 %v2048, %v2195
      %v2197 = vpop.f32.mrf.mxu0
      %v2198 = vadd.f32 %v2052, %v2197
      %v2199 = vpop.f32.mrf.mxu0
      %v2200 = vadd.f32 %v2048, %v2199
      %v2201 = vpop.f32.mrf.mxu0
      %v2202 = vadd.f32 %v2052, %v2201
      %2203 = vmatprep.mubr.bf16.mxu0 0
      %2204 = vmatmul.mubr.bf16.gmra.mxu0 %v2103
      %v2205 = vpop.f32.mrf.mxu0
      %v2206 = vadd.f32 %v2048, %v2205
      %v2207 = vpop.f32.mrf.mxu0
      %v2208 = vadd.f32 %v2052, %v2207
      %v2209 = vpop.f32.mrf.mxu0
      %v2210 = vadd.f32 %v2048, %v2209
      %v2211 = vpop.f32.mrf.mxu0
      %v2212 = vadd.f32 %v2052, %v2211
      %2213 = vmatprep.mubr.bf16.mxu0 0
      %2214 = vmatmul.mubr.bf16.gmra.mxu0 %v2106
      %v2215 = vpop.f32.mrf.mxu0
      %v2216 = vadd.f32 %v2048, %v2215
      %v2217 = vpop.f32.mrf.mxu0
      %v2218 = vadd.f32 %v2052, %v2217
      %v2219 = vpop.f32.mrf.mxu0
      %v2220 = vadd.f32 %v2048, %v2219
      %v2221 = vpop.f32.mrf.mxu0
      %v2222 = vadd.f32 %v2052, %v2221
      %2223 = vmatprep.mubr.bf16.mxu0 0
      %2224 = vmatmul.mubr.bf16.gmra.mxu0 %v2109
      %v2225 = vpop.f32.mrf.mxu0
      %v2226 = vadd.f32 %v2048, %v2225
      %v2227 = vpop.f32.mrf.mxu0
      %v2228 = vadd.f32 %v2052, %v2227
      %v2229 = vpop.f32.mrf.mxu0
      %v2230 = vadd.f32 %v2048, %v2229
      %v2231 = vpop.f32.mrf.mxu0
      %v2232 = vadd.f32 %v2052, %v2231
      %2233 = vmatprep.mubr.bf16.mxu0 0
      %2234 = vmatmul.mubr.bf16.gmra.mxu0 %v2112
      %v2235 = vpop.f32.mrf.mxu0
      %v2236 = vadd.f32 %v2048, %v2235
      %v2237 = vpop.f32.mrf.mxu0
      %v2238 = vadd.f32 %v2052, %v2237
      %v2239 = vpop.f32.mrf.mxu0
      %v2240 = vadd.f32 %v2048, %v2239
      %v2241 = vpop.f32.mrf.mxu0
      %v2242 = vadd.f32 %v2052, %v2241
      %2243 = vmatprep.mubr.bf16.mxu0 0
      %2244 = vmatmul.mubr.bf16.gmra.mxu0 %v2115
      %v2245 = vpop.f32.mrf.mxu0
      %v2246 = vadd.f32 %v2048, %v2245
      %v2247 = vpop.f32.mrf.mxu0
      %v2248 = vadd.f32 %v2052, %v2247
      %v2249 = vpop.f32.mrf.mxu0
      %v2250 = vadd.f32 %v2048, %v2249
      %v2251 = vpop.f32.mrf.mxu0
      %v2252 = vadd.f32 %v2052, %v2251
      %2253 = vmatprep.mubr.bf16.mxu0 0
      %2254 = vmatmul.mubr.bf16.gmra.mxu0 %v2118
      %v2255 = vpop.f32.mrf.mxu0
      %v2256 = vadd.f32 %v2048, %v2255
      %v2257 = vpop.f32.mrf.mxu0
      %v2258 = vadd.f32 %v2052, %v2257
      %v2259 = vpop.f32.mrf.mxu0
      %v2260 = vadd.f32 %v2048, %v2259
      %v2261 = vpop.f32.mrf.mxu0
      %v2262 = vadd.f32 %v2052, %v2261
      %2263 = vmatprep.mubr.bf16.mxu0 0
      %2264 = vmatmul.mubr.bf16.gmra.mxu0 %v2121
      %v2265 = vpop.f32.mrf.mxu0
      %v2266 = vadd.f32 %v2048, %v2265
      %v2267 = vpop.f32.mrf.mxu0
      %v2268 = vadd.f32 %v2052, %v2267
      %v2269 = vpop.f32.mrf.mxu0
      %v2270 = vadd.f32 %v2048, %v2269
      %v2271 = vpop.f32.mrf.mxu0
      %v2272 = vadd.f32 %v2052, %v2271
      %2273 = vmatprep.mubr.bf16.mxu0 0
      %2274 = vmatmul.mubr.bf16.gmra.mxu0 %v2124
      %v2275 = vpop.f32.mrf.mxu0
      %v2276 = vadd.f32 %v2048, %v2275
      %v2277 = vpop.f32.mrf.mxu0
      %v2278 = vadd.f32 %v2052, %v2277
      %v2279 = vpop.f32.mrf.mxu0
      %v2280 = vadd.f32 %v2048, %v2279
      %v2281 = vpop.f32.mrf.mxu0
      %v2282 = vadd.f32 %v2052, %v2281
      %2283 = vmatprep.mubr.bf16.mxu0 0
      %2284 = vmatmul.mubr.bf16.gmra.mxu0 %v2127
      %v2285 = vpop.f32.mrf.mxu0
      %v2286 = vadd.f32 %v2048, %v2285
      %v2287 = vpop.f32.mrf.mxu0
      %v2288 = vadd.f32 %v2052, %v2287
      %v2289 = vpop.f32.mrf.mxu0
      %v2290 = vadd.f32 %v2048, %v2289
      %v2291 = vpop.f32.mrf.mxu0
      %v2292 = vadd.f32 %v2052, %v2291
      %2293 = vmatprep.mubr.bf16.mxu0 0
      %2294 = vmatmul.mubr.bf16.gmra.mxu0 %v2130
      %v2295 = vpop.f32.mrf.mxu0
      %v2296 = vadd.f32 %v2048, %v2295
      %v2297 = vpop.f32.mrf.mxu0
      %v2298 = vadd.f32 %v2052, %v2297
      %v2299 = vpop.f32.mrf.mxu0
      %v2300 = vadd.f32 %v2048, %v2299
      %v2301 = vpop.f32.mrf.mxu0
      %v2302 = vadd.f32 %v2052, %v2301
      %2303 = vmatprep.mubr.bf16.mxu0 0
      %2304 = vmatmul.mubr.bf16.gmra.mxu0 %v2133
      %v2305 = vpop.f32.mrf.mxu0
      %v2306 = vadd.f32 %v2048, %v2305
      %v2307 = vpop.f32.mrf.mxu0
      %v2308 = vadd.f32 %v2052, %v2307
      %v2309 = vpop.f32.mrf.mxu0
      %v2310 = vadd.f32 %v2048, %v2309
      %v2311 = vpop.f32.mrf.mxu0
      %v2312 = vadd.f32 %v2052, %v2311
      %2313 = vmatprep.mubr.bf16.mxu0 0
      %2314 = vmatmul.mubr.bf16.gmra.mxu0 %v2136
      %v2315 = vpop.f32.mrf.mxu0
      %v2316 = vadd.f32 %v2048, %v2315
      %v2317 = vpop.f32.mrf.mxu0
      %v2318 = vadd.f32 %v2052, %v2317
      %v2319 = vpop.f32.mrf.mxu0
      %v2320 = vadd.f32 %v2048, %v2319
      %v2321 = vpop.f32.mrf.mxu0
      %v2322 = vadd.f32 %v2052, %v2321
      %2323 = vmatprep.mubr.bf16.mxu0 0
      %2324 = vmatmul.mubr.bf16.gmra.mxu0 %v2139
      %v2325 = vpop.f32.mrf.mxu0
      %v2326 = vadd.f32 %v2048, %v2325
      %v2327 = vpop.f32.mrf.mxu0
      %v2328 = vadd.f32 %v2052, %v2327
      %v2329 = vpop.f32.mrf.mxu0
      %v2330 = vadd.f32 %v2048, %v2329
      %v2331 = vpop.f32.mrf.mxu0
      %v2332 = vadd.f32 %v2052, %v2331
      %2333 = vdwg.mxu0
      %2334 = vmatprep.subr.bf16.mxu0 0
      %2335 = vmatpush1.bf16.msra.mxu0 0
      %2336 = vmatprep.subr.bf16.mxu0 0
      %2337 = vmatpush1.bf16.msra.mxu0 0
      %2338 = vmatprep.subr.bf16.mxu0 0
      %2339 = vmatpush1.bf16.msra.mxu0 0
      %2340 = vmatprep.subr.bf16.mxu0 0
      %2341 = vmatpush1.bf16.msra.mxu0 0
      %2342 = vmatprep.subr.bf16.mxu0 0
      %2343 = vmatpush1.bf16.msra.mxu0 0
      %2344 = vmatprep.subr.bf16.mxu0 0
      %2345 = vmatpush1.bf16.msra.mxu0 0
      %2346 = vmatprep.subr.bf16.mxu0 0
      %2347 = vmatpush1.bf16.msra.mxu0 %v2085
      %2348 = vmatprep.subr.bf16.mxu0 0
      %2349 = vmatpush1.bf16.msra.mxu0 %v2082
      %2350 = vmatprep.subr.bf16.mxu0 0
      %2351 = vmatpush2.bf16.msra.mxu0 0
      %2352 = vmatprep.subr.bf16.mxu0 0
      %2353 = vmatpush2.bf16.msra.mxu0 0
      %2354 = vmatprep.subr.bf16.mxu0 0
      %2355 = vmatpush2.bf16.msra.mxu0 0
      %2356 = vmatprep.subr.bf16.mxu0 0
      %2357 = vmatpush2.bf16.msra.mxu0 0
      %2358 = vmatprep.subr.bf16.mxu0 0
      %2359 = vmatpush2.bf16.msra.mxu0 0
      %2360 = vmatprep.subr.bf16.mxu0 0
      %2361 = vmatpush2.bf16.msra.mxu0 0
      %2362 = vmatprep.subr.bf16.mxu0 0
      %2363 = vmatpush2.bf16.msra.mxu0 0
      %2364 = vmatprep.subr.bf16.mxu0 0
      %2365 = vmatpush2.bf16.msra.mxu0 0
      %2366 = vmatprep.mubr.bf16.mxu0 0
      %2367 = vmatmul.mubr.bf16.gmra.mxu0 %v2094
      %v2368 = vpop.f32.mrf.mxu0
      %v2369 = vadd.f32 %v2056, %v2368
      %v2370 = vpop.f32.mrf.mxu0
      %v2371 = vpop.f32.mrf.mxu0
      %v2372 = vadd.f32 %v2056, %v2371
      %v2373 = vpop.f32.mrf.mxu0
      %2374 = vmatprep.mubr.bf16.mxu0 0
      %2375 = vmatmul.mubr.bf16.gmra.mxu0 %v2097
      %v2376 = vpop.f32.mrf.mxu0
      %v2377 = vadd.f32 %v2056, %v2376
      %v2378 = vpop.f32.mrf.mxu0
      %v2379 = vpop.f32.mrf.mxu0
      %v2380 = vadd.f32 %v2056, %v2379
      %v2381 = vpop.f32.mrf.mxu0
      %2382 = vmatprep.mubr.bf16.mxu0 0
      %2383 = vmatmul.mubr.bf16.gmra.mxu0 %v2100
      %v2384 = vpop.f32.mrf.mxu0
      %v2385 = vadd.f32 %v2056, %v2384
      %v2386 = vpop.f32.mrf.mxu0
      %v2387 = vpop.f32.mrf.mxu0
      %v2388 = vadd.f32 %v2056, %v2387
      %v2389 = vpop.f32.mrf.mxu0
      %2390 = vmatprep.mubr.bf16.mxu0 0
      %2391 = vmatmul.mubr.bf16.gmra.mxu0 %v2103
      %v2392 = vpop.f32.mrf.mxu0
      %v2393 = vadd.f32 %v2056, %v2392
      %v2394 = vpop.f32.mrf.mxu0
      %v2395 = vpop.f32.mrf.mxu0
      %v2396 = vadd.f32 %v2056, %v2395
      %v2397 = vpop.f32.mrf.mxu0
      %2398 = vmatprep.mubr.bf16.mxu0 0
      %2399 = vmatmul.mubr.bf16.gmra.mxu0 %v2106
      %v2400 = vpop.f32.mrf.mxu0
      %v2401 = vadd.f32 %v2056, %v2400
      %v2402 = vpop.f32.mrf.mxu0
      %v2403 = vpop.f32.mrf.mxu0
      %v2404 = vadd.f32 %v2056, %v2403
      %v2405 = vpop.f32.mrf.mxu0
      %2406 = vmatprep.mubr.bf16.mxu0 0
      %2407 = vmatmul.mubr.bf16.gmra.mxu0 %v2109
      %v2408 = vpop.f32.mrf.mxu0
      %v2409 = vadd.f32 %v2056, %v2408
      %v2410 = vpop.f32.mrf.mxu0
      %v2411 = vpop.f32.mrf.mxu0
      %v2412 = vadd.f32 %v2056, %v2411
      %v2413 = vpop.f32.mrf.mxu0
      %2414 = vmatprep.mubr.bf16.mxu0 0
      %2415 = vmatmul.mubr.bf16.gmra.mxu0 %v2112
      %v2416 = vpop.f32.mrf.mxu0
      %v2417 = vadd.f32 %v2056, %v2416
      %v2418 = vpop.f32.mrf.mxu0
      %v2419 = vpop.f32.mrf.mxu0
      %v2420 = vadd.f32 %v2056, %v2419
      %v2421 = vpop.f32.mrf.mxu0
      %2422 = vmatprep.mubr.bf16.mxu0 0
      %2423 = vmatmul.mubr.bf16.gmra.mxu0 %v2115
      %v2424 = vpop.f32.mrf.mxu0
      %v2425 = vadd.f32 %v2056, %v2424
      %v2426 = vpop.f32.mrf.mxu0
      %v2427 = vpop.f32.mrf.mxu0
      %v2428 = vadd.f32 %v2056, %v2427
      %v2429 = vpop.f32.mrf.mxu0
      %2430 = vmatprep.mubr.bf16.mxu0 0
      %2431 = vmatmul.mubr.bf16.gmra.mxu0 %v2118
      %v2432 = vpop.f32.mrf.mxu0
      %v2433 = vadd.f32 %v2056, %v2432
      %v2434 = vpop.f32.mrf.mxu0
      %v2435 = vpop.f32.mrf.mxu0
      %v2436 = vadd.f32 %v2056, %v2435
      %v2437 = vpop.f32.mrf.mxu0
      %2438 = vmatprep.mubr.bf16.mxu0 0
      %2439 = vmatmul.mubr.bf16.gmra.mxu0 %v2121
      %v2440 = vpop.f32.mrf.mxu0
      %v2441 = vadd.f32 %v2056, %v2440
      %v2442 = vpop.f32.mrf.mxu0
      %v2443 = vpop.f32.mrf.mxu0
      %v2444 = vadd.f32 %v2056, %v2443
      %v2445 = vpop.f32.mrf.mxu0
      %2446 = vmatprep.mubr.bf16.mxu0 0
      %2447 = vmatmul.mubr.bf16.gmra.mxu0 %v2124
      %v2448 = vpop.f32.mrf.mxu0
      %v2449 = vadd.f32 %v2056, %v2448
      %v2450 = vpop.f32.mrf.mxu0
      %v2451 = vpop.f32.mrf.mxu0
      %v2452 = vadd.f32 %v2056, %v2451
      %v2453 = vpop.f32.mrf.mxu0
      %2454 = vmatprep.mubr.bf16.mxu0 0
      %2455 = vmatmul.mubr.bf16.gmra.mxu0 %v2127
      %v2456 = vpop.f32.mrf.mxu0
      %v2457 = vadd.f32 %v2056, %v2456
      %v2458 = vpop.f32.mrf.mxu0
      %v2459 = vpop.f32.mrf.mxu0
      %v2460 = vadd.f32 %v2056, %v2459
      %v2461 = vpop.f32.mrf.mxu0
      %2462 = vmatprep.mubr.bf16.mxu0 0
      %2463 = vmatmul.mubr.bf16.gmra.mxu0 %v2130
      %v2464 = vpop.f32.mrf.mxu0
      %v2465 = vadd.f32 %v2056, %v2464
      %v2466 = vpop.f32.mrf.mxu0
      %v2467 = vpop.f32.mrf.mxu0
      %v2468 = vadd.f32 %v2056, %v2467
      %v2469 = vpop.f32.mrf.mxu0
      %2470 = vmatprep.mubr.bf16.mxu0 0
      %2471 = vmatmul.mubr.bf16.gmra.mxu0 %v2133
      %v2472 = vpop.f32.mrf.mxu0
      %v2473 = vadd.f32 %v2056, %v2472
      %v2474 = vpop.f32.mrf.mxu0
      %v2475 = vpop.f32.mrf.mxu0
      %v2476 = vadd.f32 %v2056, %v2475
      %v2477 = vpop.f32.mrf.mxu0
      %2478 = vmatprep.mubr.bf16.mxu0 0
      %2479 = vmatmul.mubr.bf16.gmra.mxu0 %v2136
      %v2480 = vpop.f32.mrf.mxu0
      %v2481 = vadd.f32 %v2056, %v2480
      %v2482 = vpop.f32.mrf.mxu0
      %v2483 = vpop.f32.mrf.mxu0
      %v2484 = vadd.f32 %v2056, %v2483
      %v2485 = vpop.f32.mrf.mxu0
      %2486 = vmatprep.mubr.bf16.mxu0 0
      %2487 = vmatmul.mubr.bf16.gmra.mxu0 %v2139
      %v2488 = vpop.f32.mrf.mxu0
      %v2489 = vadd.f32 %v2056, %v2488
      %v2490 = vpop.f32.mrf.mxu0
      %v2491 = vpop.f32.mrf.mxu0
      %v2492 = vadd.f32 %v2056, %v2491
      %v2493 = vpop.f32.mrf.mxu0
      %2494 = vdwg.mxu0
      %vm2495 = vcmask 654336
      %v2496 = vsel %vm2495, %v2176, -inf
      %2497 = vmax.xlane.f32.xlu0 %v2496
      %v2498 = vpop.xlane.xlu0 %2497
      %v2499 = vsel %vm2495, %v2180, -inf
      %2500 = vmax.xlane.f32.xlu0 %v2499
      %v2501 = vpop.xlane.xlu0 %2500
      %v2502 = vsel %vm2495, %v2186, -inf
      %2503 = vmax.xlane.f32.xlu0 %v2502
      %v2504 = vpop.xlane.xlu0 %2503
      %v2505 = vsel %vm2495, %v2190, -inf
      %2506 = vmax.xlane.f32.xlu0 %v2505
      %v2507 = vpop.xlane.xlu0 %2506
      %v2508 = vsel %vm2495, %v2196, -inf
      %2509 = vmax.xlane.f32.xlu0 %v2508
      %v2510 = vpop.xlane.xlu0 %2509
      %v2511 = vsel %vm2495, %v2200, -inf
      %2512 = vmax.xlane.f32.xlu0 %v2511
      %v2513 = vpop.xlane.xlu0 %2512
      %v2514 = vsel %vm2495, %v2206, -inf
      %2515 = vmax.xlane.f32.xlu0 %v2514
      %v2516 = vpop.xlane.xlu0 %2515
      %v2517 = vsel %vm2495, %v2210, -inf
      %2518 = vmax.xlane.f32.xlu0 %v2517
      %v2519 = vpop.xlane.xlu0 %2518
      %v2520 = vsel %vm2495, %v2216, -inf
      %2521 = vmax.xlane.f32.xlu0 %v2520
      %v2522 = vpop.xlane.xlu0 %2521
      %v2523 = vsel %vm2495, %v2220, -inf
      %2524 = vmax.xlane.f32.xlu0 %v2523
      %v2525 = vpop.xlane.xlu0 %2524
      %v2526 = vsel %vm2495, %v2226, -inf
      %2527 = vmax.xlane.f32.xlu0 %v2526
      %v2528 = vpop.xlane.xlu0 %2527
      %v2529 = vsel %vm2495, %v2230, -inf
      %2530 = vmax.xlane.f32.xlu0 %v2529
      %v2531 = vpop.xlane.xlu0 %2530
      %v2532 = vsel %vm2495, %v2236, -inf
      %2533 = vmax.xlane.f32.xlu0 %v2532
      %v2534 = vpop.xlane.xlu0 %2533
      %v2535 = vsel %vm2495, %v2240, -inf
      %2536 = vmax.xlane.f32.xlu0 %v2535
      %v2537 = vpop.xlane.xlu0 %2536
      %v2538 = vsel %vm2495, %v2246, -inf
      %2539 = vmax.xlane.f32.xlu0 %v2538
      %v2540 = vpop.xlane.xlu0 %2539
      %v2541 = vsel %vm2495, %v2250, -inf
      %2542 = vmax.xlane.f32.xlu0 %v2541
      %v2543 = vpop.xlane.xlu0 %2542
      %v2544 = vsel %vm2495, %v2256, -inf
      %2545 = vmax.xlane.f32.xlu0 %v2544
      %v2546 = vpop.xlane.xlu0 %2545
      %v2547 = vsel %vm2495, %v2260, -inf
      %2548 = vmax.xlane.f32.xlu0 %v2547
      %v2549 = vpop.xlane.xlu0 %2548
      %v2550 = vsel %vm2495, %v2266, -inf
      %2551 = vmax.xlane.f32.xlu0 %v2550
      %v2552 = vpop.xlane.xlu0 %2551
      %v2553 = vsel %vm2495, %v2270, -inf
      %2554 = vmax.xlane.f32.xlu0 %v2553
      %v2555 = vpop.xlane.xlu0 %2554
      %v2556 = vsel %vm2495, %v2276, -inf
      %2557 = vmax.xlane.f32.xlu0 %v2556
      %v2558 = vpop.xlane.xlu0 %2557
      %v2559 = vsel %vm2495, %v2280, -inf
      %2560 = vmax.xlane.f32.xlu0 %v2559
      %v2561 = vpop.xlane.xlu0 %2560
      %v2562 = vsel %vm2495, %v2286, -inf
      %2563 = vmax.xlane.f32.xlu0 %v2562
      %v2564 = vpop.xlane.xlu0 %2563
      %v2565 = vsel %vm2495, %v2290, -inf
      %2566 = vmax.xlane.f32.xlu0 %v2565
      %v2567 = vpop.xlane.xlu0 %2566
      %v2568 = vsel %vm2495, %v2296, -inf
      %2569 = vmax.xlane.f32.xlu0 %v2568
      %v2570 = vpop.xlane.xlu0 %2569
      %v2571 = vsel %vm2495, %v2300, -inf
      %2572 = vmax.xlane.f32.xlu0 %v2571
      %v2573 = vpop.xlane.xlu0 %2572
      %v2574 = vsel %vm2495, %v2306, -inf
      %2575 = vmax.xlane.f32.xlu0 %v2574
      %v2576 = vpop.xlane.xlu0 %2575
      %v2577 = vsel %vm2495, %v2310, -inf
      %2578 = vmax.xlane.f32.xlu0 %v2577
      %v2579 = vpop.xlane.xlu0 %2578
      %v2580 = vsel %vm2495, %v2316, -inf
      %2581 = vmax.xlane.f32.xlu0 %v2580
      %v2582 = vpop.xlane.xlu0 %2581
      %v2583 = vsel %vm2495, %v2320, -inf
      %2584 = vmax.xlane.f32.xlu0 %v2583
      %v2585 = vpop.xlane.xlu0 %2584
      %v2586 = vsel %vm2495, %v2326, -inf
      %2587 = vmax.xlane.f32.xlu0 %v2586
      %v2588 = vpop.xlane.xlu0 %2587
      %v2589 = vsel %vm2495, %v2330, -inf
      %2590 = vmax.xlane.f32.xlu0 %v2589
      %v2591 = vpop.xlane.xlu0 %2590
      %v2592 = vsub.f32 %v2176, %v2498
      %v2593 = vsub.f32 %v2180, %v2501
      %v2594 = vsub.f32 %v2186, %v2504
      %v2595 = vsub.f32 %v2190, %v2507
      %v2596 = vsub.f32 %v2196, %v2510
      %v2597 = vsub.f32 %v2200, %v2513
      %v2598 = vsub.f32 %v2206, %v2516
      %v2599 = vsub.f32 %v2210, %v2519
      %v2600 = vsub.f32 %v2216, %v2522
      %v2601 = vsub.f32 %v2220, %v2525
      %v2602 = vsub.f32 %v2226, %v2528
      %v2603 = vsub.f32 %v2230, %v2531
      %v2604 = vsub.f32 %v2236, %v2534
      %v2605 = vsub.f32 %v2240, %v2537
      %v2606 = vsub.f32 %v2246, %v2540
      %v2607 = vsub.f32 %v2250, %v2543
      %v2608 = vsub.f32 %v2256, %v2546
      %v2609 = vsub.f32 %v2260, %v2549
      %v2610 = vsub.f32 %v2266, %v2552
      %v2611 = vsub.f32 %v2270, %v2555
      %v2612 = vsub.f32 %v2276, %v2558
      %v2613 = vsub.f32 %v2280, %v2561
      %v2614 = vsub.f32 %v2286, %v2564
      %v2615 = vsub.f32 %v2290, %v2567
      %v2616 = vsub.f32 %v2296, %v2570
      %v2617 = vsub.f32 %v2300, %v2573
      %v2618 = vsub.f32 %v2306, %v2576
      %v2619 = vsub.f32 %v2310, %v2579
      %v2620 = vsub.f32 %v2316, %v2582
      %v2621 = vsub.f32 %v2320, %v2585
      %v2622 = vsub.f32 %v2326, %v2588
      %v2623 = vsub.f32 %v2330, %v2591
      %v2624 = vmul.f32 %v2592, 1.442695
      %v2625 = vpow.pop %v2624
      %v2626 = vmul.f32 %v2593, 1.442695
      %v2627 = vpow.pop %v2626
      %v2628 = vmul.f32 %v2594, 1.442695
      %v2629 = vpow.pop %v2628
      %v2630 = vmul.f32 %v2595, 1.442695
      %v2631 = vpow.pop %v2630
      %v2632 = vmul.f32 %v2596, 1.442695
      %v2633 = vpow.pop %v2632
      %v2634 = vmul.f32 %v2597, 1.442695
      %v2635 = vpow.pop %v2634
      %v2636 = vmul.f32 %v2598, 1.442695
      %v2637 = vpow.pop %v2636
      %v2638 = vmul.f32 %v2599, 1.442695
      %v2639 = vpow.pop %v2638
      %v2640 = vmul.f32 %v2600, 1.442695
      %v2641 = vpow.pop %v2640
      %v2642 = vmul.f32 %v2601, 1.442695
      %v2643 = vpow.pop %v2642
      %v2644 = vmul.f32 %v2602, 1.442695
      %v2645 = vpow.pop %v2644
      %v2646 = vmul.f32 %v2603, 1.442695
      %v2647 = vpow.pop %v2646
      %v2648 = vmul.f32 %v2604, 1.442695
      %v2649 = vpow.pop %v2648
      %v2650 = vmul.f32 %v2605, 1.442695
      %v2651 = vpow.pop %v2650
      %v2652 = vmul.f32 %v2606, 1.442695
      %v2653 = vpow.pop %v2652
      %v2654 = vmul.f32 %v2607, 1.442695
      %v2655 = vpow.pop %v2654
      %v2656 = vmul.f32 %v2608, 1.442695
      %v2657 = vpow.pop %v2656
      %v2658 = vmul.f32 %v2609, 1.442695
      %v2659 = vpow.pop %v2658
      %v2660 = vmul.f32 %v2610, 1.442695
      %v2661 = vpow.pop %v2660
      %v2662 = vmul.f32 %v2611, 1.442695
      %v2663 = vpow.pop %v2662
      %v2664 = vmul.f32 %v2612, 1.442695
      %v2665 = vpow.pop %v2664
      %v2666 = vmul.f32 %v2613, 1.442695
      %v2667 = vpow.pop %v2666
      %v2668 = vmul.f32 %v2614, 1.442695
      %v2669 = vpow.pop %v2668
      %v2670 = vmul.f32 %v2615, 1.442695
      %v2671 = vpow.pop %v2670
      %v2672 = vmul.f32 %v2616, 1.442695
      %v2673 = vpow.pop %v2672
      %v2674 = vmul.f32 %v2617, 1.442695
      %v2675 = vpow.pop %v2674
      %v2676 = vmul.f32 %v2618, 1.442695
      %v2677 = vpow.pop %v2676
      %v2678 = vmul.f32 %v2619, 1.442695
      %v2679 = vpow.pop %v2678
      %v2680 = vmul.f32 %v2620, 1.442695
      %v2681 = vpow.pop %v2680
      %v2682 = vmul.f32 %v2621, 1.442695
      %v2683 = vpow.pop %v2682
      %v2684 = vmul.f32 %v2622, 1.442695
      %v2685 = vpow.pop %v2684
      %v2686 = vmul.f32 %v2623, 1.442695
      %v2687 = vpow.pop %v2686
      %v2688 = vsel %vm2495, %v2625, 0.0
      %2689 = vadd.xlane.f32.xlu0 %v2688
      %v2690 = vpop.xlane.xlu0 %2689
      %v2691 = vsel %vm2495, %v2627, 0.0
      %2692 = vadd.xlane.f32.xlu0 %v2691
      %v2693 = vpop.xlane.xlu0 %2692
      %v2694 = vsel %vm2495, %v2629, 0.0
      %2695 = vadd.xlane.f32.xlu0 %v2694
      %v2696 = vpop.xlane.xlu0 %2695
      %v2697 = vsel %vm2495, %v2631, 0.0
      %2698 = vadd.xlane.f32.xlu0 %v2697
      %v2699 = vpop.xlane.xlu0 %2698
      %v2700 = vsel %vm2495, %v2633, 0.0
      %2701 = vadd.xlane.f32.xlu0 %v2700
      %v2702 = vpop.xlane.xlu0 %2701
      %v2703 = vsel %vm2495, %v2635, 0.0
      %2704 = vadd.xlane.f32.xlu0 %v2703
      %v2705 = vpop.xlane.xlu0 %2704
      %v2706 = vsel %vm2495, %v2637, 0.0
      %2707 = vadd.xlane.f32.xlu0 %v2706
      %v2708 = vpop.xlane.xlu0 %2707
      %v2709 = vsel %vm2495, %v2639, 0.0
      %2710 = vadd.xlane.f32.xlu0 %v2709
      %v2711 = vpop.xlane.xlu0 %2710
      %v2712 = vsel %vm2495, %v2641, 0.0
      %2713 = vadd.xlane.f32.xlu0 %v2712
      %v2714 = vpop.xlane.xlu0 %2713
      %v2715 = vsel %vm2495, %v2643, 0.0
      %2716 = vadd.xlane.f32.xlu0 %v2715
      %v2717 = vpop.xlane.xlu0 %2716
      %v2718 = vsel %vm2495, %v2645, 0.0
      %2719 = vadd.xlane.f32.xlu0 %v2718
      %v2720 = vpop.xlane.xlu0 %2719
      %v2721 = vsel %vm2495, %v2647, 0.0
      %2722 = vadd.xlane.f32.xlu0 %v2721
      %v2723 = vpop.xlane.xlu0 %2722
      %v2724 = vsel %vm2495, %v2649, 0.0
      %2725 = vadd.xlane.f32.xlu0 %v2724
      %v2726 = vpop.xlane.xlu0 %2725
      %v2727 = vsel %vm2495, %v2651, 0.0
      %2728 = vadd.xlane.f32.xlu0 %v2727
      %v2729 = vpop.xlane.xlu0 %2728
      %v2730 = vsel %vm2495, %v2653, 0.0
      %2731 = vadd.xlane.f32.xlu0 %v2730
      %v2732 = vpop.xlane.xlu0 %2731
      %v2733 = vsel %vm2495, %v2655, 0.0
      %2734 = vadd.xlane.f32.xlu0 %v2733
      %v2735 = vpop.xlane.xlu0 %2734
      %v2736 = vsel %vm2495, %v2657, 0.0
      %2737 = vadd.xlane.f32.xlu0 %v2736
      %v2738 = vpop.xlane.xlu0 %2737
      %v2739 = vsel %vm2495, %v2659, 0.0
      %2740 = vadd.xlane.f32.xlu0 %v2739
      %v2741 = vpop.xlane.xlu0 %2740
      %v2742 = vsel %vm2495, %v2661, 0.0
      %2743 = vadd.xlane.f32.xlu0 %v2742
      %v2744 = vpop.xlane.xlu0 %2743
      %v2745 = vsel %vm2495, %v2663, 0.0
      %2746 = vadd.xlane.f32.xlu0 %v2745
      %v2747 = vpop.xlane.xlu0 %2746
      %v2748 = vsel %vm2495, %v2665, 0.0
      %2749 = vadd.xlane.f32.xlu0 %v2748
      %v2750 = vpop.xlane.xlu0 %2749
      %v2751 = vsel %vm2495, %v2667, 0.0
      %2752 = vadd.xlane.f32.xlu0 %v2751
      %v2753 = vpop.xlane.xlu0 %2752
      %v2754 = vsel %vm2495, %v2669, 0.0
      %2755 = vadd.xlane.f32.xlu0 %v2754
      %v2756 = vpop.xlane.xlu0 %2755
      %v2757 = vsel %vm2495, %v2671, 0.0
      %2758 = vadd.xlane.f32.xlu0 %v2757
      %v2759 = vpop.xlane.xlu0 %2758
      %v2760 = vsel %vm2495, %v2673, 0.0
      %2761 = vadd.xlane.f32.xlu0 %v2760
      %v2762 = vpop.xlane.xlu0 %2761
      %v2763 = vsel %vm2495, %v2675, 0.0
      %2764 = vadd.xlane.f32.xlu0 %v2763
      %v2765 = vpop.xlane.xlu0 %2764
      %v2766 = vsel %vm2495, %v2677, 0.0
      %2767 = vadd.xlane.f32.xlu0 %v2766
      %v2768 = vpop.xlane.xlu0 %2767
      %v2769 = vsel %vm2495, %v2679, 0.0
      %2770 = vadd.xlane.f32.xlu0 %v2769
      %v2771 = vpop.xlane.xlu0 %2770
      %v2772 = vsel %vm2495, %v2681, 0.0
      %2773 = vadd.xlane.f32.xlu0 %v2772
      %v2774 = vpop.xlane.xlu0 %2773
      %v2775 = vsel %vm2495, %v2683, 0.0
      %2776 = vadd.xlane.f32.xlu0 %v2775
      %v2777 = vpop.xlane.xlu0 %2776
      %v2778 = vsel %vm2495, %v2685, 0.0
      %2779 = vadd.xlane.f32.xlu0 %v2778
      %v2780 = vpop.xlane.xlu0 %2779
      %v2781 = vsel %vm2495, %v2687, 0.0
      %2782 = vadd.xlane.f32.xlu0 %v2781
      %v2783 = vpop.xlane.xlu0 %2782
      %v2784 = vrcp.pop %v2690
      %v2785 = vmul.f32 %v2625, %v2784
      %v2786 = vrcp.pop %v2693
      %v2787 = vmul.f32 %v2627, %v2786
      %v2788 = vrcp.pop %v2696
      %v2789 = vmul.f32 %v2629, %v2788
      %v2790 = vrcp.pop %v2699
      %v2791 = vmul.f32 %v2631, %v2790
      %v2792 = vrcp.pop %v2702
      %v2793 = vmul.f32 %v2633, %v2792
      %v2794 = vrcp.pop %v2705
      %v2795 = vmul.f32 %v2635, %v2794
      %v2796 = vrcp.pop %v2708
      %v2797 = vmul.f32 %v2637, %v2796
      %v2798 = vrcp.pop %v2711
      %v2799 = vmul.f32 %v2639, %v2798
      %v2800 = vrcp.pop %v2714
      %v2801 = vmul.f32 %v2641, %v2800
      %v2802 = vrcp.pop %v2717
      %v2803 = vmul.f32 %v2643, %v2802
      %v2804 = vrcp.pop %v2720
      %v2805 = vmul.f32 %v2645, %v2804
      %v2806 = vrcp.pop %v2723
      %v2807 = vmul.f32 %v2647, %v2806
      %v2808 = vrcp.pop %v2726
      %v2809 = vmul.f32 %v2649, %v2808
      %v2810 = vrcp.pop %v2729
      %v2811 = vmul.f32 %v2651, %v2810
      %v2812 = vrcp.pop %v2732
      %v2813 = vmul.f32 %v2653, %v2812
      %v2814 = vrcp.pop %v2735
      %v2815 = vmul.f32 %v2655, %v2814
      %v2816 = vrcp.pop %v2738
      %v2817 = vmul.f32 %v2657, %v2816
      %v2818 = vrcp.pop %v2741
      %v2819 = vmul.f32 %v2659, %v2818
      %v2820 = vrcp.pop %v2744
      %v2821 = vmul.f32 %v2661, %v2820
      %v2822 = vrcp.pop %v2747
      %v2823 = vmul.f32 %v2663, %v2822
      %v2824 = vrcp.pop %v2750
      %v2825 = vmul.f32 %v2665, %v2824
      %v2826 = vrcp.pop %v2753
      %v2827 = vmul.f32 %v2667, %v2826
      %v2828 = vrcp.pop %v2756
      %v2829 = vmul.f32 %v2669, %v2828
      %v2830 = vrcp.pop %v2759
      %v2831 = vmul.f32 %v2671, %v2830
      %v2832 = vrcp.pop %v2762
      %v2833 = vmul.f32 %v2673, %v2832
      %v2834 = vrcp.pop %v2765
      %v2835 = vmul.f32 %v2675, %v2834
      %v2836 = vrcp.pop %v2768
      %v2837 = vmul.f32 %v2677, %v2836
      %v2838 = vrcp.pop %v2771
      %v2839 = vmul.f32 %v2679, %v2838
      %v2840 = vrcp.pop %v2774
      %v2841 = vmul.f32 %v2681, %v2840
      %v2842 = vrcp.pop %v2777
      %v2843 = vmul.f32 %v2683, %v2842
      %v2844 = vrcp.pop %v2780
      %v2845 = vmul.f32 %v2685, %v2844
      %v2846 = vrcp.pop %v2783
      %v2847 = vmul.f32 %v2687, %v2846
      %v2848 = vsub.f32 0.0, %v2176
      %v2849 = vsub.f32 0.0, %v2180
      %v2850 = vsub.f32 0.0, %v2186
      %v2851 = vsub.f32 0.0, %v2190
      %v2852 = vsub.f32 0.0, %v2196
      %v2853 = vsub.f32 0.0, %v2200
      %v2854 = vsub.f32 0.0, %v2206
      %v2855 = vsub.f32 0.0, %v2210
      %v2856 = vsub.f32 0.0, %v2216
      %v2857 = vsub.f32 0.0, %v2220
      %v2858 = vsub.f32 0.0, %v2226
      %v2859 = vsub.f32 0.0, %v2230
      %v2860 = vsub.f32 0.0, %v2236
      %v2861 = vsub.f32 0.0, %v2240
      %v2862 = vsub.f32 0.0, %v2246
      %v2863 = vsub.f32 0.0, %v2250
      %v2864 = vsub.f32 0.0, %v2256
      %v2865 = vsub.f32 0.0, %v2260
      %v2866 = vsub.f32 0.0, %v2266
      %v2867 = vsub.f32 0.0, %v2270
      %v2868 = vsub.f32 0.0, %v2276
      %v2869 = vsub.f32 0.0, %v2280
      %v2870 = vsub.f32 0.0, %v2286
      %v2871 = vsub.f32 0.0, %v2290
      %v2872 = vsub.f32 0.0, %v2296
      %v2873 = vsub.f32 0.0, %v2300
      %v2874 = vsub.f32 0.0, %v2306
      %v2875 = vsub.f32 0.0, %v2310
      %v2876 = vsub.f32 0.0, %v2316
      %v2877 = vsub.f32 0.0, %v2320
      %v2878 = vsub.f32 0.0, %v2326
      %v2879 = vsub.f32 0.0, %v2330
      %v2880 = vmul.f32 %v2848, 1.442695
      %v2881 = vpow.pop %v2880
      %v2882 = vmul.f32 %v2849, 1.442695
      %v2883 = vpow.pop %v2882
      %v2884 = vmul.f32 %v2850, 1.442695
      %v2885 = vpow.pop %v2884
      %v2886 = vmul.f32 %v2851, 1.442695
      %v2887 = vpow.pop %v2886
      %v2888 = vmul.f32 %v2852, 1.442695
      %v2889 = vpow.pop %v2888
      %v2890 = vmul.f32 %v2853, 1.442695
      %v2891 = vpow.pop %v2890
      %v2892 = vmul.f32 %v2854, 1.442695
      %v2893 = vpow.pop %v2892
      %v2894 = vmul.f32 %v2855, 1.442695
      %v2895 = vpow.pop %v2894
      %v2896 = vmul.f32 %v2856, 1.442695
      %v2897 = vpow.pop %v2896
      %v2898 = vmul.f32 %v2857, 1.442695
      %v2899 = vpow.pop %v2898
      %v2900 = vmul.f32 %v2858, 1.442695
      %v2901 = vpow.pop %v2900
      %v2902 = vmul.f32 %v2859, 1.442695
      %v2903 = vpow.pop %v2902
      %v2904 = vmul.f32 %v2860, 1.442695
      %v2905 = vpow.pop %v2904
      %v2906 = vmul.f32 %v2861, 1.442695
      %v2907 = vpow.pop %v2906
      %v2908 = vmul.f32 %v2862, 1.442695
      %v2909 = vpow.pop %v2908
      %v2910 = vmul.f32 %v2863, 1.442695
      %v2911 = vpow.pop %v2910
      %v2912 = vmul.f32 %v2864, 1.442695
      %v2913 = vpow.pop %v2912
      %v2914 = vmul.f32 %v2865, 1.442695
      %v2915 = vpow.pop %v2914
      %v2916 = vmul.f32 %v2866, 1.442695
      %v2917 = vpow.pop %v2916
      %v2918 = vmul.f32 %v2867, 1.442695
      %v2919 = vpow.pop %v2918
      %v2920 = vmul.f32 %v2868, 1.442695
      %v2921 = vpow.pop %v2920
      %v2922 = vmul.f32 %v2869, 1.442695
      %v2923 = vpow.pop %v2922
      %v2924 = vmul.f32 %v2870, 1.442695
      %v2925 = vpow.pop %v2924
      %v2926 = vmul.f32 %v2871, 1.442695
      %v2927 = vpow.pop %v2926
      %v2928 = vmul.f32 %v2872, 1.442695
      %v2929 = vpow.pop %v2928
      %v2930 = vmul.f32 %v2873, 1.442695
      %v2931 = vpow.pop %v2930
      %v2932 = vmul.f32 %v2874, 1.442695
      %v2933 = vpow.pop %v2932
      %v2934 = vmul.f32 %v2875, 1.442695
      %v2935 = vpow.pop %v2934
      %v2936 = vmul.f32 %v2876, 1.442695
      %v2937 = vpow.pop %v2936
      %v2938 = vmul.f32 %v2877, 1.442695
      %v2939 = vpow.pop %v2938
      %v2940 = vmul.f32 %v2878, 1.442695
      %v2941 = vpow.pop %v2940
      %v2942 = vmul.f32 %v2879, 1.442695
      %v2943 = vpow.pop %v2942
      %v2944 = vadd.f32 %v2881, 1.0
      %v2945 = vadd.f32 %v2883, 1.0
      %v2946 = vadd.f32 %v2885, 1.0
      %v2947 = vadd.f32 %v2887, 1.0
      %v2948 = vadd.f32 %v2889, 1.0
      %v2949 = vadd.f32 %v2891, 1.0
      %v2950 = vadd.f32 %v2893, 1.0
      %v2951 = vadd.f32 %v2895, 1.0
      %v2952 = vadd.f32 %v2897, 1.0
      %v2953 = vadd.f32 %v2899, 1.0
      %v2954 = vadd.f32 %v2901, 1.0
      %v2955 = vadd.f32 %v2903, 1.0
      %v2956 = vadd.f32 %v2905, 1.0
      %v2957 = vadd.f32 %v2907, 1.0
      %v2958 = vadd.f32 %v2909, 1.0
      %v2959 = vadd.f32 %v2911, 1.0
      %v2960 = vadd.f32 %v2913, 1.0
      %v2961 = vadd.f32 %v2915, 1.0
      %v2962 = vadd.f32 %v2917, 1.0
      %v2963 = vadd.f32 %v2919, 1.0
      %v2964 = vadd.f32 %v2921, 1.0
      %v2965 = vadd.f32 %v2923, 1.0
      %v2966 = vadd.f32 %v2925, 1.0
      %v2967 = vadd.f32 %v2927, 1.0
      %v2968 = vadd.f32 %v2929, 1.0
      %v2969 = vadd.f32 %v2931, 1.0
      %v2970 = vadd.f32 %v2933, 1.0
      %v2971 = vadd.f32 %v2935, 1.0
      %v2972 = vadd.f32 %v2937, 1.0
      %v2973 = vadd.f32 %v2939, 1.0
      %v2974 = vadd.f32 %v2941, 1.0
      %v2975 = vadd.f32 %v2943, 1.0
      %v2976 = vrcp.pop %v2944
      %v2977 = vmul.f32 1.0, %v2976
      %v2978 = vrcp.pop %v2945
      %v2979 = vmul.f32 1.0, %v2978
      %v2980 = vrcp.pop %v2946
      %v2981 = vmul.f32 1.0, %v2980
      %v2982 = vrcp.pop %v2947
      %v2983 = vmul.f32 1.0, %v2982
      %v2984 = vrcp.pop %v2948
      %v2985 = vmul.f32 1.0, %v2984
      %v2986 = vrcp.pop %v2949
      %v2987 = vmul.f32 1.0, %v2986
      %v2988 = vrcp.pop %v2950
      %v2989 = vmul.f32 1.0, %v2988
      %v2990 = vrcp.pop %v2951
      %v2991 = vmul.f32 1.0, %v2990
      %v2992 = vrcp.pop %v2952
      %v2993 = vmul.f32 1.0, %v2992
      %v2994 = vrcp.pop %v2953
      %v2995 = vmul.f32 1.0, %v2994
      %v2996 = vrcp.pop %v2954
      %v2997 = vmul.f32 1.0, %v2996
      %v2998 = vrcp.pop %v2955
      %v2999 = vmul.f32 1.0, %v2998
      %v3000 = vrcp.pop %v2956
      %v3001 = vmul.f32 1.0, %v3000
      %v3002 = vrcp.pop %v2957
      %v3003 = vmul.f32 1.0, %v3002
      %v3004 = vrcp.pop %v2958
      %v3005 = vmul.f32 1.0, %v3004
      %v3006 = vrcp.pop %v2959
      %v3007 = vmul.f32 1.0, %v3006
      %v3008 = vrcp.pop %v2960
      %v3009 = vmul.f32 1.0, %v3008
      %v3010 = vrcp.pop %v2961
      %v3011 = vmul.f32 1.0, %v3010
      %v3012 = vrcp.pop %v2962
      %v3013 = vmul.f32 1.0, %v3012
      %v3014 = vrcp.pop %v2963
      %v3015 = vmul.f32 1.0, %v3014
      %v3016 = vrcp.pop %v2964
      %v3017 = vmul.f32 1.0, %v3016
      %v3018 = vrcp.pop %v2965
      %v3019 = vmul.f32 1.0, %v3018
      %v3020 = vrcp.pop %v2966
      %v3021 = vmul.f32 1.0, %v3020
      %v3022 = vrcp.pop %v2967
      %v3023 = vmul.f32 1.0, %v3022
      %v3024 = vrcp.pop %v2968
      %v3025 = vmul.f32 1.0, %v3024
      %v3026 = vrcp.pop %v2969
      %v3027 = vmul.f32 1.0, %v3026
      %v3028 = vrcp.pop %v2970
      %v3029 = vmul.f32 1.0, %v3028
      %v3030 = vrcp.pop %v2971
      %v3031 = vmul.f32 1.0, %v3030
      %v3032 = vrcp.pop %v2972
      %v3033 = vmul.f32 1.0, %v3032
      %v3034 = vrcp.pop %v2973
      %v3035 = vmul.f32 1.0, %v3034
      %v3036 = vrcp.pop %v2974
      %v3037 = vmul.f32 1.0, %v3036
      %v3038 = vrcp.pop %v2975
      %v3039 = vmul.f32 1.0, %v3038
      %3072 = vrot.lane.b32.xlu0 %v2785, 80
      %v3073 = vpop.permute.xlu0 %3072
      %3074 = vrot.lane.b32.xlu0 %v2787, 80
      %v3075 = vpop.permute.xlu0 %3074
      %3076 = vrot.lane.b32.xlu0 %v2789, 80
      %v3077 = vpop.permute.xlu0 %3076
      %3078 = vrot.lane.b32.xlu0 %v2791, 80
      %v3079 = vpop.permute.xlu0 %3078
      %3080 = vrot.lane.b32.xlu0 %v2793, 80
      %v3081 = vpop.permute.xlu0 %3080
      %3082 = vrot.lane.b32.xlu0 %v2795, 80
      %v3083 = vpop.permute.xlu0 %3082
      %3084 = vrot.lane.b32.xlu0 %v2797, 80
      %v3085 = vpop.permute.xlu0 %3084
      %3086 = vrot.lane.b32.xlu0 %v2799, 80
      %v3087 = vpop.permute.xlu0 %3086
      %3088 = vrot.lane.b32.xlu0 %v2801, 80
      %v3089 = vpop.permute.xlu0 %3088
      %3090 = vrot.lane.b32.xlu0 %v2803, 80
      %v3091 = vpop.permute.xlu0 %3090
      %3092 = vrot.lane.b32.xlu0 %v2805, 80
      %v3093 = vpop.permute.xlu0 %3092
      %3094 = vrot.lane.b32.xlu0 %v2807, 80
      %v3095 = vpop.permute.xlu0 %3094
      %3096 = vrot.lane.b32.xlu0 %v2809, 80
      %v3097 = vpop.permute.xlu0 %3096
      %3098 = vrot.lane.b32.xlu0 %v2811, 80
      %v3099 = vpop.permute.xlu0 %3098
      %3100 = vrot.lane.b32.xlu0 %v2813, 80
      %v3101 = vpop.permute.xlu0 %3100
      %3102 = vrot.lane.b32.xlu0 %v2815, 80
      %v3103 = vpop.permute.xlu0 %3102
      %3104 = vrot.lane.b32.xlu0 %v2817, 80
      %v3105 = vpop.permute.xlu0 %3104
      %3106 = vrot.lane.b32.xlu0 %v2819, 80
      %v3107 = vpop.permute.xlu0 %3106
      %3108 = vrot.lane.b32.xlu0 %v2821, 80
      %v3109 = vpop.permute.xlu0 %3108
      %3110 = vrot.lane.b32.xlu0 %v2823, 80
      %v3111 = vpop.permute.xlu0 %3110
      %3112 = vrot.lane.b32.xlu0 %v2825, 80
      %v3113 = vpop.permute.xlu0 %3112
      %3114 = vrot.lane.b32.xlu0 %v2827, 80
      %v3115 = vpop.permute.xlu0 %3114
      %3116 = vrot.lane.b32.xlu0 %v2829, 80
      %v3117 = vpop.permute.xlu0 %3116
      %3118 = vrot.lane.b32.xlu0 %v2831, 80
      %v3119 = vpop.permute.xlu0 %3118
      %3120 = vrot.lane.b32.xlu0 %v2833, 80
      %v3121 = vpop.permute.xlu0 %3120
      %3122 = vrot.lane.b32.xlu0 %v2835, 80
      %v3123 = vpop.permute.xlu0 %3122
      %3124 = vrot.lane.b32.xlu0 %v2837, 80
      %v3125 = vpop.permute.xlu0 %3124
      %3126 = vrot.lane.b32.xlu0 %v2839, 80
      %v3127 = vpop.permute.xlu0 %3126
      %3128 = vrot.lane.b32.xlu0 %v2841, 80
      %v3129 = vpop.permute.xlu0 %3128
      %3130 = vrot.lane.b32.xlu0 %v2843, 80
      %v3131 = vpop.permute.xlu0 %3130
      %3132 = vrot.lane.b32.xlu0 %v2845, 80
      %v3133 = vpop.permute.xlu0 %3132
      %3134 = vrot.lane.b32.xlu0 %v2847, 80
      %v3135 = vpop.permute.xlu0 %3134
      %v3168 = vmul.f32 %v2977, %v3073
      %v3169 = vmul.f32 %v2979, %v3075
      %v3170 = vmul.f32 %v2981, %v3077
      %v3171 = vmul.f32 %v2983, %v3079
      %v3172 = vmul.f32 %v2985, %v3081
      %v3173 = vmul.f32 %v2987, %v3083
      %v3174 = vmul.f32 %v2989, %v3085
      %v3175 = vmul.f32 %v2991, %v3087
      %v3176 = vmul.f32 %v2993, %v3089
      %v3177 = vmul.f32 %v2995, %v3091
      %v3178 = vmul.f32 %v2997, %v3093
      %v3179 = vmul.f32 %v2999, %v3095
      %v3180 = vmul.f32 %v3001, %v3097
      %v3181 = vmul.f32 %v3003, %v3099
      %v3182 = vmul.f32 %v3005, %v3101
      %v3183 = vmul.f32 %v3007, %v3103
      %v3184 = vmul.f32 %v3009, %v3105
      %v3185 = vmul.f32 %v3011, %v3107
      %v3186 = vmul.f32 %v3013, %v3109
      %v3187 = vmul.f32 %v3015, %v3111
      %v3188 = vmul.f32 %v3017, %v3113
      %v3189 = vmul.f32 %v3019, %v3115
      %v3190 = vmul.f32 %v3021, %v3117
      %v3191 = vmul.f32 %v3023, %v3119
      %v3192 = vmul.f32 %v3025, %v3121
      %v3193 = vmul.f32 %v3027, %v3123
      %v3194 = vmul.f32 %v3029, %v3125
      %v3195 = vmul.f32 %v3031, %v3127
      %v3196 = vmul.f32 %v3033, %v3129
      %v3197 = vmul.f32 %v3035, %v3131
      %v3198 = vmul.f32 %v3037, %v3133
      %v3199 = vmul.f32 %v3039, %v3135
      %v3200 = vmax.f32 %v3168, 0.0
      %v3201 = vmax.f32 %v3169, 0.0
      %v3202 = vmax.f32 %v3170, 0.0
      %v3203 = vmax.f32 %v3171, 0.0
      %v3204 = vmax.f32 %v3172, 0.0
      %v3205 = vmax.f32 %v3173, 0.0
      %v3206 = vmax.f32 %v3174, 0.0
      %v3207 = vmax.f32 %v3175, 0.0
      %v3208 = vmax.f32 %v3176, 0.0
      %v3209 = vmax.f32 %v3177, 0.0
      %v3210 = vmax.f32 %v3178, 0.0
      %v3211 = vmax.f32 %v3179, 0.0
      %v3212 = vmax.f32 %v3180, 0.0
      %v3213 = vmax.f32 %v3181, 0.0
      %v3214 = vmax.f32 %v3182, 0.0
      %v3215 = vmax.f32 %v3183, 0.0
      %v3216 = vmax.f32 %v3184, 0.0
      %v3217 = vmax.f32 %v3185, 0.0
      %v3218 = vmax.f32 %v3186, 0.0
      %v3219 = vmax.f32 %v3187, 0.0
      %v3220 = vmax.f32 %v3188, 0.0
      %v3221 = vmax.f32 %v3189, 0.0
      %v3222 = vmax.f32 %v3190, 0.0
      %v3223 = vmax.f32 %v3191, 0.0
      %v3224 = vmax.f32 %v3192, 0.0
      %v3225 = vmax.f32 %v3193, 0.0
      %v3226 = vmax.f32 %v3194, 0.0
      %v3227 = vmax.f32 %v3195, 0.0
      %v3228 = vmax.f32 %v3196, 0.0
      %v3229 = vmax.f32 %v3197, 0.0
      %v3230 = vmax.f32 %v3198, 0.0
      %v3231 = vmax.f32 %v3199, 0.0
      %v3232 = vsel %vm2495, %v2178, -inf
      %3233 = vmax.xlane.f32.xlu0 %v3232
      %v3234 = vpop.xlane.xlu0 %3233
      %v3235 = vsel %vm2495, %v2182, -inf
      %3236 = vmax.xlane.f32.xlu0 %v3235
      %v3237 = vpop.xlane.xlu0 %3236
      %v3238 = vsel %vm2495, %v2188, -inf
      %3239 = vmax.xlane.f32.xlu0 %v3238
      %v3240 = vpop.xlane.xlu0 %3239
      %v3241 = vsel %vm2495, %v2192, -inf
      %3242 = vmax.xlane.f32.xlu0 %v3241
      %v3243 = vpop.xlane.xlu0 %3242
      %v3244 = vsel %vm2495, %v2198, -inf
      %3245 = vmax.xlane.f32.xlu0 %v3244
      %v3246 = vpop.xlane.xlu0 %3245
      %v3247 = vsel %vm2495, %v2202, -inf
      %3248 = vmax.xlane.f32.xlu0 %v3247
      %v3249 = vpop.xlane.xlu0 %3248
      %v3250 = vsel %vm2495, %v2208, -inf
      %3251 = vmax.xlane.f32.xlu0 %v3250
      %v3252 = vpop.xlane.xlu0 %3251
      %v3253 = vsel %vm2495, %v2212, -inf
      %3254 = vmax.xlane.f32.xlu0 %v3253
      %v3255 = vpop.xlane.xlu0 %3254
      %v3256 = vsel %vm2495, %v2218, -inf
      %3257 = vmax.xlane.f32.xlu0 %v3256
      %v3258 = vpop.xlane.xlu0 %3257
      %v3259 = vsel %vm2495, %v2222, -inf
      %3260 = vmax.xlane.f32.xlu0 %v3259
      %v3261 = vpop.xlane.xlu0 %3260
      %v3262 = vsel %vm2495, %v2228, -inf
      %3263 = vmax.xlane.f32.xlu0 %v3262
      %v3264 = vpop.xlane.xlu0 %3263
      %v3265 = vsel %vm2495, %v2232, -inf
      %3266 = vmax.xlane.f32.xlu0 %v3265
      %v3267 = vpop.xlane.xlu0 %3266
      %v3268 = vsel %vm2495, %v2238, -inf
      %3269 = vmax.xlane.f32.xlu0 %v3268
      %v3270 = vpop.xlane.xlu0 %3269
      %v3271 = vsel %vm2495, %v2242, -inf
      %3272 = vmax.xlane.f32.xlu0 %v3271
      %v3273 = vpop.xlane.xlu0 %3272
      %v3274 = vsel %vm2495, %v2248, -inf
      %3275 = vmax.xlane.f32.xlu0 %v3274
      %v3276 = vpop.xlane.xlu0 %3275
      %v3277 = vsel %vm2495, %v2252, -inf
      %3278 = vmax.xlane.f32.xlu0 %v3277
      %v3279 = vpop.xlane.xlu0 %3278
      %v3280 = vsel %vm2495, %v2258, -inf
      %3281 = vmax.xlane.f32.xlu0 %v3280
      %v3282 = vpop.xlane.xlu0 %3281
      %v3283 = vsel %vm2495, %v2262, -inf
      %3284 = vmax.xlane.f32.xlu0 %v3283
      %v3285 = vpop.xlane.xlu0 %3284
      %v3286 = vsel %vm2495, %v2268, -inf
      %3287 = vmax.xlane.f32.xlu0 %v3286
      %v3288 = vpop.xlane.xlu0 %3287
      %v3289 = vsel %vm2495, %v2272, -inf
      %3290 = vmax.xlane.f32.xlu0 %v3289
      %v3291 = vpop.xlane.xlu0 %3290
      %v3292 = vsel %vm2495, %v2278, -inf
      %3293 = vmax.xlane.f32.xlu0 %v3292
      %v3294 = vpop.xlane.xlu0 %3293
      %v3295 = vsel %vm2495, %v2282, -inf
      %3296 = vmax.xlane.f32.xlu0 %v3295
      %v3297 = vpop.xlane.xlu0 %3296
      %v3298 = vsel %vm2495, %v2288, -inf
      %3299 = vmax.xlane.f32.xlu0 %v3298
      %v3300 = vpop.xlane.xlu0 %3299
      %v3301 = vsel %vm2495, %v2292, -inf
      %3302 = vmax.xlane.f32.xlu0 %v3301
      %v3303 = vpop.xlane.xlu0 %3302
      %v3304 = vsel %vm2495, %v2298, -inf
      %3305 = vmax.xlane.f32.xlu0 %v3304
      %v3306 = vpop.xlane.xlu0 %3305
      %v3307 = vsel %vm2495, %v2302, -inf
      %3308 = vmax.xlane.f32.xlu0 %v3307
      %v3309 = vpop.xlane.xlu0 %3308
      %v3310 = vsel %vm2495, %v2308, -inf
      %3311 = vmax.xlane.f32.xlu0 %v3310
      %v3312 = vpop.xlane.xlu0 %3311
      %v3313 = vsel %vm2495, %v2312, -inf
      %3314 = vmax.xlane.f32.xlu0 %v3313
      %v3315 = vpop.xlane.xlu0 %3314
      %v3316 = vsel %vm2495, %v2318, -inf
      %3317 = vmax.xlane.f32.xlu0 %v3316
      %v3318 = vpop.xlane.xlu0 %3317
      %v3319 = vsel %vm2495, %v2322, -inf
      %3320 = vmax.xlane.f32.xlu0 %v3319
      %v3321 = vpop.xlane.xlu0 %3320
      %v3322 = vsel %vm2495, %v2328, -inf
      %3323 = vmax.xlane.f32.xlu0 %v3322
      %v3324 = vpop.xlane.xlu0 %3323
      %v3325 = vsel %vm2495, %v2332, -inf
      %3326 = vmax.xlane.f32.xlu0 %v3325
      %v3327 = vpop.xlane.xlu0 %3326
      %v3328 = vsub.f32 %v2178, %v3234
      %v3329 = vsub.f32 %v2182, %v3237
      %v3330 = vsub.f32 %v2188, %v3240
      %v3331 = vsub.f32 %v2192, %v3243
      %v3332 = vsub.f32 %v2198, %v3246
      %v3333 = vsub.f32 %v2202, %v3249
      %v3334 = vsub.f32 %v2208, %v3252
      %v3335 = vsub.f32 %v2212, %v3255
      %v3336 = vsub.f32 %v2218, %v3258
      %v3337 = vsub.f32 %v2222, %v3261
      %v3338 = vsub.f32 %v2228, %v3264
      %v3339 = vsub.f32 %v2232, %v3267
      %v3340 = vsub.f32 %v2238, %v3270
      %v3341 = vsub.f32 %v2242, %v3273
      %v3342 = vsub.f32 %v2248, %v3276
      %v3343 = vsub.f32 %v2252, %v3279
      %v3344 = vsub.f32 %v2258, %v3282
      %v3345 = vsub.f32 %v2262, %v3285
      %v3346 = vsub.f32 %v2268, %v3288
      %v3347 = vsub.f32 %v2272, %v3291
      %v3348 = vsub.f32 %v2278, %v3294
      %v3349 = vsub.f32 %v2282, %v3297
      %v3350 = vsub.f32 %v2288, %v3300
      %v3351 = vsub.f32 %v2292, %v3303
      %v3352 = vsub.f32 %v2298, %v3306
      %v3353 = vsub.f32 %v2302, %v3309
      %v3354 = vsub.f32 %v2308, %v3312
      %v3355 = vsub.f32 %v2312, %v3315
      %v3356 = vsub.f32 %v2318, %v3318
      %v3357 = vsub.f32 %v2322, %v3321
      %v3358 = vsub.f32 %v2328, %v3324
      %v3359 = vsub.f32 %v2332, %v3327
      %v3360 = vmul.f32 %v3328, 1.442695
      %v3361 = vpow.pop %v3360
      %v3362 = vmul.f32 %v3329, 1.442695
      %v3363 = vpow.pop %v3362
      %v3364 = vmul.f32 %v3330, 1.442695
      %v3365 = vpow.pop %v3364
      %v3366 = vmul.f32 %v3331, 1.442695
      %v3367 = vpow.pop %v3366
      %v3368 = vmul.f32 %v3332, 1.442695
      %v3369 = vpow.pop %v3368
      %v3370 = vmul.f32 %v3333, 1.442695
      %v3371 = vpow.pop %v3370
      %v3372 = vmul.f32 %v3334, 1.442695
      %v3373 = vpow.pop %v3372
      %v3374 = vmul.f32 %v3335, 1.442695
      %v3375 = vpow.pop %v3374
      %v3376 = vmul.f32 %v3336, 1.442695
      %v3377 = vpow.pop %v3376
      %v3378 = vmul.f32 %v3337, 1.442695
      %v3379 = vpow.pop %v3378
      %v3380 = vmul.f32 %v3338, 1.442695
      %v3381 = vpow.pop %v3380
      %v3382 = vmul.f32 %v3339, 1.442695
      %v3383 = vpow.pop %v3382
      %v3384 = vmul.f32 %v3340, 1.442695
      %v3385 = vpow.pop %v3384
      %v3386 = vmul.f32 %v3341, 1.442695
      %v3387 = vpow.pop %v3386
      %v3388 = vmul.f32 %v3342, 1.442695
      %v3389 = vpow.pop %v3388
      %v3390 = vmul.f32 %v3343, 1.442695
      %v3391 = vpow.pop %v3390
      %v3392 = vmul.f32 %v3344, 1.442695
      %v3393 = vpow.pop %v3392
      %v3394 = vmul.f32 %v3345, 1.442695
      %v3395 = vpow.pop %v3394
      %v3396 = vmul.f32 %v3346, 1.442695
      %v3397 = vpow.pop %v3396
      %v3398 = vmul.f32 %v3347, 1.442695
      %v3399 = vpow.pop %v3398
      %v3400 = vmul.f32 %v3348, 1.442695
      %v3401 = vpow.pop %v3400
      %v3402 = vmul.f32 %v3349, 1.442695
      %v3403 = vpow.pop %v3402
      %v3404 = vmul.f32 %v3350, 1.442695
      %v3405 = vpow.pop %v3404
      %v3406 = vmul.f32 %v3351, 1.442695
      %v3407 = vpow.pop %v3406
      %v3408 = vmul.f32 %v3352, 1.442695
      %v3409 = vpow.pop %v3408
      %v3410 = vmul.f32 %v3353, 1.442695
      %v3411 = vpow.pop %v3410
      %v3412 = vmul.f32 %v3354, 1.442695
      %v3413 = vpow.pop %v3412
      %v3414 = vmul.f32 %v3355, 1.442695
      %v3415 = vpow.pop %v3414
      %v3416 = vmul.f32 %v3356, 1.442695
      %v3417 = vpow.pop %v3416
      %v3418 = vmul.f32 %v3357, 1.442695
      %v3419 = vpow.pop %v3418
      %v3420 = vmul.f32 %v3358, 1.442695
      %v3421 = vpow.pop %v3420
      %v3422 = vmul.f32 %v3359, 1.442695
      %v3423 = vpow.pop %v3422
      %v3424 = vsel %vm2495, %v3361, 0.0
      %3425 = vadd.xlane.f32.xlu0 %v3424
      %v3426 = vpop.xlane.xlu0 %3425
      %v3427 = vsel %vm2495, %v3363, 0.0
      %3428 = vadd.xlane.f32.xlu0 %v3427
      %v3429 = vpop.xlane.xlu0 %3428
      %v3430 = vsel %vm2495, %v3365, 0.0
      %3431 = vadd.xlane.f32.xlu0 %v3430
      %v3432 = vpop.xlane.xlu0 %3431
      %v3433 = vsel %vm2495, %v3367, 0.0
      %3434 = vadd.xlane.f32.xlu0 %v3433
      %v3435 = vpop.xlane.xlu0 %3434
      %v3436 = vsel %vm2495, %v3369, 0.0
      %3437 = vadd.xlane.f32.xlu0 %v3436
      %v3438 = vpop.xlane.xlu0 %3437
      %v3439 = vsel %vm2495, %v3371, 0.0
      %3440 = vadd.xlane.f32.xlu0 %v3439
      %v3441 = vpop.xlane.xlu0 %3440
      %v3442 = vsel %vm2495, %v3373, 0.0
      %3443 = vadd.xlane.f32.xlu0 %v3442
      %v3444 = vpop.xlane.xlu0 %3443
      %v3445 = vsel %vm2495, %v3375, 0.0
      %3446 = vadd.xlane.f32.xlu0 %v3445
      %v3447 = vpop.xlane.xlu0 %3446
      %v3448 = vsel %vm2495, %v3377, 0.0
      %3449 = vadd.xlane.f32.xlu0 %v3448
      %v3450 = vpop.xlane.xlu0 %3449
      %v3451 = vsel %vm2495, %v3379, 0.0
      %3452 = vadd.xlane.f32.xlu0 %v3451
      %v3453 = vpop.xlane.xlu0 %3452
      %v3454 = vsel %vm2495, %v3381, 0.0
      %3455 = vadd.xlane.f32.xlu0 %v3454
      %v3456 = vpop.xlane.xlu0 %3455
      %v3457 = vsel %vm2495, %v3383, 0.0
      %3458 = vadd.xlane.f32.xlu0 %v3457
      %v3459 = vpop.xlane.xlu0 %3458
      %v3460 = vsel %vm2495, %v3385, 0.0
      %3461 = vadd.xlane.f32.xlu0 %v3460
      %v3462 = vpop.xlane.xlu0 %3461
      %v3463 = vsel %vm2495, %v3387, 0.0
      %3464 = vadd.xlane.f32.xlu0 %v3463
      %v3465 = vpop.xlane.xlu0 %3464
      %v3466 = vsel %vm2495, %v3389, 0.0
      %3467 = vadd.xlane.f32.xlu0 %v3466
      %v3468 = vpop.xlane.xlu0 %3467
      %v3469 = vsel %vm2495, %v3391, 0.0
      %3470 = vadd.xlane.f32.xlu0 %v3469
      %v3471 = vpop.xlane.xlu0 %3470
      %v3472 = vsel %vm2495, %v3393, 0.0
      %3473 = vadd.xlane.f32.xlu0 %v3472
      %v3474 = vpop.xlane.xlu0 %3473
      %v3475 = vsel %vm2495, %v3395, 0.0
      %3476 = vadd.xlane.f32.xlu0 %v3475
      %v3477 = vpop.xlane.xlu0 %3476
      %v3478 = vsel %vm2495, %v3397, 0.0
      %3479 = vadd.xlane.f32.xlu0 %v3478
      %v3480 = vpop.xlane.xlu0 %3479
      %v3481 = vsel %vm2495, %v3399, 0.0
      %3482 = vadd.xlane.f32.xlu0 %v3481
      %v3483 = vpop.xlane.xlu0 %3482
      %v3484 = vsel %vm2495, %v3401, 0.0
      %3485 = vadd.xlane.f32.xlu0 %v3484
      %v3486 = vpop.xlane.xlu0 %3485
      %v3487 = vsel %vm2495, %v3403, 0.0
      %3488 = vadd.xlane.f32.xlu0 %v3487
      %v3489 = vpop.xlane.xlu0 %3488
      %v3490 = vsel %vm2495, %v3405, 0.0
      %3491 = vadd.xlane.f32.xlu0 %v3490
      %v3492 = vpop.xlane.xlu0 %3491
      %v3493 = vsel %vm2495, %v3407, 0.0
      %3494 = vadd.xlane.f32.xlu0 %v3493
      %v3495 = vpop.xlane.xlu0 %3494
      %v3496 = vsel %vm2495, %v3409, 0.0
      %3497 = vadd.xlane.f32.xlu0 %v3496
      %v3498 = vpop.xlane.xlu0 %3497
      %v3499 = vsel %vm2495, %v3411, 0.0
      %3500 = vadd.xlane.f32.xlu0 %v3499
      %v3501 = vpop.xlane.xlu0 %3500
      %v3502 = vsel %vm2495, %v3413, 0.0
      %3503 = vadd.xlane.f32.xlu0 %v3502
      %v3504 = vpop.xlane.xlu0 %3503
      %v3505 = vsel %vm2495, %v3415, 0.0
      %3506 = vadd.xlane.f32.xlu0 %v3505
      %v3507 = vpop.xlane.xlu0 %3506
      %v3508 = vsel %vm2495, %v3417, 0.0
      %3509 = vadd.xlane.f32.xlu0 %v3508
      %v3510 = vpop.xlane.xlu0 %3509
      %v3511 = vsel %vm2495, %v3419, 0.0
      %3512 = vadd.xlane.f32.xlu0 %v3511
      %v3513 = vpop.xlane.xlu0 %3512
      %v3514 = vsel %vm2495, %v3421, 0.0
      %3515 = vadd.xlane.f32.xlu0 %v3514
      %v3516 = vpop.xlane.xlu0 %3515
      %v3517 = vsel %vm2495, %v3423, 0.0
      %3518 = vadd.xlane.f32.xlu0 %v3517
      %v3519 = vpop.xlane.xlu0 %3518
      %v3520 = vrcp.pop %v3426
      %v3521 = vmul.f32 %v3361, %v3520
      %v3522 = vrcp.pop %v3429
      %v3523 = vmul.f32 %v3363, %v3522
      %v3524 = vrcp.pop %v3432
      %v3525 = vmul.f32 %v3365, %v3524
      %v3526 = vrcp.pop %v3435
      %v3527 = vmul.f32 %v3367, %v3526
      %v3528 = vrcp.pop %v3438
      %v3529 = vmul.f32 %v3369, %v3528
      %v3530 = vrcp.pop %v3441
      %v3531 = vmul.f32 %v3371, %v3530
      %v3532 = vrcp.pop %v3444
      %v3533 = vmul.f32 %v3373, %v3532
      %v3534 = vrcp.pop %v3447
      %v3535 = vmul.f32 %v3375, %v3534
      %v3536 = vrcp.pop %v3450
      %v3537 = vmul.f32 %v3377, %v3536
      %v3538 = vrcp.pop %v3453
      %v3539 = vmul.f32 %v3379, %v3538
      %v3540 = vrcp.pop %v3456
      %v3541 = vmul.f32 %v3381, %v3540
      %v3542 = vrcp.pop %v3459
      %v3543 = vmul.f32 %v3383, %v3542
      %v3544 = vrcp.pop %v3462
      %v3545 = vmul.f32 %v3385, %v3544
      %v3546 = vrcp.pop %v3465
      %v3547 = vmul.f32 %v3387, %v3546
      %v3548 = vrcp.pop %v3468
      %v3549 = vmul.f32 %v3389, %v3548
      %v3550 = vrcp.pop %v3471
      %v3551 = vmul.f32 %v3391, %v3550
      %v3552 = vrcp.pop %v3474
      %v3553 = vmul.f32 %v3393, %v3552
      %v3554 = vrcp.pop %v3477
      %v3555 = vmul.f32 %v3395, %v3554
      %v3556 = vrcp.pop %v3480
      %v3557 = vmul.f32 %v3397, %v3556
      %v3558 = vrcp.pop %v3483
      %v3559 = vmul.f32 %v3399, %v3558
      %v3560 = vrcp.pop %v3486
      %v3561 = vmul.f32 %v3401, %v3560
      %v3562 = vrcp.pop %v3489
      %v3563 = vmul.f32 %v3403, %v3562
      %v3564 = vrcp.pop %v3492
      %v3565 = vmul.f32 %v3405, %v3564
      %v3566 = vrcp.pop %v3495
      %v3567 = vmul.f32 %v3407, %v3566
      %v3568 = vrcp.pop %v3498
      %v3569 = vmul.f32 %v3409, %v3568
      %v3570 = vrcp.pop %v3501
      %v3571 = vmul.f32 %v3411, %v3570
      %v3572 = vrcp.pop %v3504
      %v3573 = vmul.f32 %v3413, %v3572
      %v3574 = vrcp.pop %v3507
      %v3575 = vmul.f32 %v3415, %v3574
      %v3576 = vrcp.pop %v3510
      %v3577 = vmul.f32 %v3417, %v3576
      %v3578 = vrcp.pop %v3513
      %v3579 = vmul.f32 %v3419, %v3578
      %v3580 = vrcp.pop %v3516
      %v3581 = vmul.f32 %v3421, %v3580
      %v3582 = vrcp.pop %v3519
      %v3583 = vmul.f32 %v3423, %v3582
      %v3584 = vsub.f32 0.0, %v2178
      %v3585 = vsub.f32 0.0, %v2182
      %v3586 = vsub.f32 0.0, %v2188
      %v3587 = vsub.f32 0.0, %v2192
      %v3588 = vsub.f32 0.0, %v2198
      %v3589 = vsub.f32 0.0, %v2202
      %v3590 = vsub.f32 0.0, %v2208
      %v3591 = vsub.f32 0.0, %v2212
      %v3592 = vsub.f32 0.0, %v2218
      %v3593 = vsub.f32 0.0, %v2222
      %v3594 = vsub.f32 0.0, %v2228
      %v3595 = vsub.f32 0.0, %v2232
      %v3596 = vsub.f32 0.0, %v2238
      %v3597 = vsub.f32 0.0, %v2242
      %v3598 = vsub.f32 0.0, %v2248
      %v3599 = vsub.f32 0.0, %v2252
      %v3600 = vsub.f32 0.0, %v2258
      %v3601 = vsub.f32 0.0, %v2262
      %v3602 = vsub.f32 0.0, %v2268
      %v3603 = vsub.f32 0.0, %v2272
      %v3604 = vsub.f32 0.0, %v2278
      %v3605 = vsub.f32 0.0, %v2282
      %v3606 = vsub.f32 0.0, %v2288
      %v3607 = vsub.f32 0.0, %v2292
      %v3608 = vsub.f32 0.0, %v2298
      %v3609 = vsub.f32 0.0, %v2302
      %v3610 = vsub.f32 0.0, %v2308
      %v3611 = vsub.f32 0.0, %v2312
      %v3612 = vsub.f32 0.0, %v2318
      %v3613 = vsub.f32 0.0, %v2322
      %v3614 = vsub.f32 0.0, %v2328
      %v3615 = vsub.f32 0.0, %v2332
      %v3616 = vmul.f32 %v3584, 1.442695
      %v3617 = vpow.pop %v3616
      %v3618 = vmul.f32 %v3585, 1.442695
      %v3619 = vpow.pop %v3618
      %v3620 = vmul.f32 %v3586, 1.442695
      %v3621 = vpow.pop %v3620
      %v3622 = vmul.f32 %v3587, 1.442695
      %v3623 = vpow.pop %v3622
      %v3624 = vmul.f32 %v3588, 1.442695
      %v3625 = vpow.pop %v3624
      %v3626 = vmul.f32 %v3589, 1.442695
      %v3627 = vpow.pop %v3626
      %v3628 = vmul.f32 %v3590, 1.442695
      %v3629 = vpow.pop %v3628
      %v3630 = vmul.f32 %v3591, 1.442695
      %v3631 = vpow.pop %v3630
      %v3632 = vmul.f32 %v3592, 1.442695
      %v3633 = vpow.pop %v3632
      %v3634 = vmul.f32 %v3593, 1.442695
      %v3635 = vpow.pop %v3634
      %v3636 = vmul.f32 %v3594, 1.442695
      %v3637 = vpow.pop %v3636
      %v3638 = vmul.f32 %v3595, 1.442695
      %v3639 = vpow.pop %v3638
      %v3640 = vmul.f32 %v3596, 1.442695
      %v3641 = vpow.pop %v3640
      %v3642 = vmul.f32 %v3597, 1.442695
      %v3643 = vpow.pop %v3642
      %v3644 = vmul.f32 %v3598, 1.442695
      %v3645 = vpow.pop %v3644
      %v3646 = vmul.f32 %v3599, 1.442695
      %v3647 = vpow.pop %v3646
      %v3648 = vmul.f32 %v3600, 1.442695
      %v3649 = vpow.pop %v3648
      %v3650 = vmul.f32 %v3601, 1.442695
      %v3651 = vpow.pop %v3650
      %v3652 = vmul.f32 %v3602, 1.442695
      %v3653 = vpow.pop %v3652
      %v3654 = vmul.f32 %v3603, 1.442695
      %v3655 = vpow.pop %v3654
      %v3656 = vmul.f32 %v3604, 1.442695
      %v3657 = vpow.pop %v3656
      %v3658 = vmul.f32 %v3605, 1.442695
      %v3659 = vpow.pop %v3658
      %v3660 = vmul.f32 %v3606, 1.442695
      %v3661 = vpow.pop %v3660
      %v3662 = vmul.f32 %v3607, 1.442695
      %v3663 = vpow.pop %v3662
      %v3664 = vmul.f32 %v3608, 1.442695
      %v3665 = vpow.pop %v3664
      %v3666 = vmul.f32 %v3609, 1.442695
      %v3667 = vpow.pop %v3666
      %v3668 = vmul.f32 %v3610, 1.442695
      %v3669 = vpow.pop %v3668
      %v3670 = vmul.f32 %v3611, 1.442695
      %v3671 = vpow.pop %v3670
      %v3672 = vmul.f32 %v3612, 1.442695
      %v3673 = vpow.pop %v3672
      %v3674 = vmul.f32 %v3613, 1.442695
      %v3675 = vpow.pop %v3674
      %v3676 = vmul.f32 %v3614, 1.442695
      %v3677 = vpow.pop %v3676
      %v3678 = vmul.f32 %v3615, 1.442695
      %v3679 = vpow.pop %v3678
      %v3680 = vadd.f32 %v3617, 1.0
      %v3681 = vadd.f32 %v3619, 1.0
      %v3682 = vadd.f32 %v3621, 1.0
      %v3683 = vadd.f32 %v3623, 1.0
      %v3684 = vadd.f32 %v3625, 1.0
      %v3685 = vadd.f32 %v3627, 1.0
      %v3686 = vadd.f32 %v3629, 1.0
      %v3687 = vadd.f32 %v3631, 1.0
      %v3688 = vadd.f32 %v3633, 1.0
      %v3689 = vadd.f32 %v3635, 1.0
      %v3690 = vadd.f32 %v3637, 1.0
      %v3691 = vadd.f32 %v3639, 1.0
      %v3692 = vadd.f32 %v3641, 1.0
      %v3693 = vadd.f32 %v3643, 1.0
      %v3694 = vadd.f32 %v3645, 1.0
      %v3695 = vadd.f32 %v3647, 1.0
      %v3696 = vadd.f32 %v3649, 1.0
      %v3697 = vadd.f32 %v3651, 1.0
      %v3698 = vadd.f32 %v3653, 1.0
      %v3699 = vadd.f32 %v3655, 1.0
      %v3700 = vadd.f32 %v3657, 1.0
      %v3701 = vadd.f32 %v3659, 1.0
      %v3702 = vadd.f32 %v3661, 1.0
      %v3703 = vadd.f32 %v3663, 1.0
      %v3704 = vadd.f32 %v3665, 1.0
      %v3705 = vadd.f32 %v3667, 1.0
      %v3706 = vadd.f32 %v3669, 1.0
      %v3707 = vadd.f32 %v3671, 1.0
      %v3708 = vadd.f32 %v3673, 1.0
      %v3709 = vadd.f32 %v3675, 1.0
      %v3710 = vadd.f32 %v3677, 1.0
      %v3711 = vadd.f32 %v3679, 1.0
      %v3712 = vrcp.pop %v3680
      %v3713 = vmul.f32 1.0, %v3712
      %v3714 = vrcp.pop %v3681
      %v3715 = vmul.f32 1.0, %v3714
      %v3716 = vrcp.pop %v3682
      %v3717 = vmul.f32 1.0, %v3716
      %v3718 = vrcp.pop %v3683
      %v3719 = vmul.f32 1.0, %v3718
      %v3720 = vrcp.pop %v3684
      %v3721 = vmul.f32 1.0, %v3720
      %v3722 = vrcp.pop %v3685
      %v3723 = vmul.f32 1.0, %v3722
      %v3724 = vrcp.pop %v3686
      %v3725 = vmul.f32 1.0, %v3724
      %v3726 = vrcp.pop %v3687
      %v3727 = vmul.f32 1.0, %v3726
      %v3728 = vrcp.pop %v3688
      %v3729 = vmul.f32 1.0, %v3728
      %v3730 = vrcp.pop %v3689
      %v3731 = vmul.f32 1.0, %v3730
      %v3732 = vrcp.pop %v3690
      %v3733 = vmul.f32 1.0, %v3732
      %v3734 = vrcp.pop %v3691
      %v3735 = vmul.f32 1.0, %v3734
      %v3736 = vrcp.pop %v3692
      %v3737 = vmul.f32 1.0, %v3736
      %v3738 = vrcp.pop %v3693
      %v3739 = vmul.f32 1.0, %v3738
      %v3740 = vrcp.pop %v3694
      %v3741 = vmul.f32 1.0, %v3740
      %v3742 = vrcp.pop %v3695
      %v3743 = vmul.f32 1.0, %v3742
      %v3744 = vrcp.pop %v3696
      %v3745 = vmul.f32 1.0, %v3744
      %v3746 = vrcp.pop %v3697
      %v3747 = vmul.f32 1.0, %v3746
      %v3748 = vrcp.pop %v3698
      %v3749 = vmul.f32 1.0, %v3748
      %v3750 = vrcp.pop %v3699
      %v3751 = vmul.f32 1.0, %v3750
      %v3752 = vrcp.pop %v3700
      %v3753 = vmul.f32 1.0, %v3752
      %v3754 = vrcp.pop %v3701
      %v3755 = vmul.f32 1.0, %v3754
      %v3756 = vrcp.pop %v3702
      %v3757 = vmul.f32 1.0, %v3756
      %v3758 = vrcp.pop %v3703
      %v3759 = vmul.f32 1.0, %v3758
      %v3760 = vrcp.pop %v3704
      %v3761 = vmul.f32 1.0, %v3760
      %v3762 = vrcp.pop %v3705
      %v3763 = vmul.f32 1.0, %v3762
      %v3764 = vrcp.pop %v3706
      %v3765 = vmul.f32 1.0, %v3764
      %v3766 = vrcp.pop %v3707
      %v3767 = vmul.f32 1.0, %v3766
      %v3768 = vrcp.pop %v3708
      %v3769 = vmul.f32 1.0, %v3768
      %v3770 = vrcp.pop %v3709
      %v3771 = vmul.f32 1.0, %v3770
      %v3772 = vrcp.pop %v3710
      %v3773 = vmul.f32 1.0, %v3772
      %v3774 = vrcp.pop %v3711
      %v3775 = vmul.f32 1.0, %v3774
      %3808 = vrot.lane.b32.xlu0 %v3521, 80
      %v3809 = vpop.permute.xlu0 %3808
      %3810 = vrot.lane.b32.xlu0 %v3523, 80
      %v3811 = vpop.permute.xlu0 %3810
      %3812 = vrot.lane.b32.xlu0 %v3525, 80
      %v3813 = vpop.permute.xlu0 %3812
      %3814 = vrot.lane.b32.xlu0 %v3527, 80
      %v3815 = vpop.permute.xlu0 %3814
      %3816 = vrot.lane.b32.xlu0 %v3529, 80
      %v3817 = vpop.permute.xlu0 %3816
      %3818 = vrot.lane.b32.xlu0 %v3531, 80
      %v3819 = vpop.permute.xlu0 %3818
      %3820 = vrot.lane.b32.xlu0 %v3533, 80
      %v3821 = vpop.permute.xlu0 %3820
      %3822 = vrot.lane.b32.xlu0 %v3535, 80
      %v3823 = vpop.permute.xlu0 %3822
      %3824 = vrot.lane.b32.xlu0 %v3537, 80
      %v3825 = vpop.permute.xlu0 %3824
      %3826 = vrot.lane.b32.xlu0 %v3539, 80
      %v3827 = vpop.permute.xlu0 %3826
      %3828 = vrot.lane.b32.xlu0 %v3541, 80
      %v3829 = vpop.permute.xlu0 %3828
      %3830 = vrot.lane.b32.xlu0 %v3543, 80
      %v3831 = vpop.permute.xlu0 %3830
      %3832 = vrot.lane.b32.xlu0 %v3545, 80
      %v3833 = vpop.permute.xlu0 %3832
      %3834 = vrot.lane.b32.xlu0 %v3547, 80
      %v3835 = vpop.permute.xlu0 %3834
      %3836 = vrot.lane.b32.xlu0 %v3549, 80
      %v3837 = vpop.permute.xlu0 %3836
      %3838 = vrot.lane.b32.xlu0 %v3551, 80
      %v3839 = vpop.permute.xlu0 %3838
      %3840 = vrot.lane.b32.xlu0 %v3553, 80
      %v3841 = vpop.permute.xlu0 %3840
      %3842 = vrot.lane.b32.xlu0 %v3555, 80
      %v3843 = vpop.permute.xlu0 %3842
      %3844 = vrot.lane.b32.xlu0 %v3557, 80
      %v3845 = vpop.permute.xlu0 %3844
      %3846 = vrot.lane.b32.xlu0 %v3559, 80
      %v3847 = vpop.permute.xlu0 %3846
      %3848 = vrot.lane.b32.xlu0 %v3561, 80
      %v3849 = vpop.permute.xlu0 %3848
      %3850 = vrot.lane.b32.xlu0 %v3563, 80
      %v3851 = vpop.permute.xlu0 %3850
      %3852 = vrot.lane.b32.xlu0 %v3565, 80
      %v3853 = vpop.permute.xlu0 %3852
      %3854 = vrot.lane.b32.xlu0 %v3567, 80
      %v3855 = vpop.permute.xlu0 %3854
      %3856 = vrot.lane.b32.xlu0 %v3569, 80
      %v3857 = vpop.permute.xlu0 %3856
      %3858 = vrot.lane.b32.xlu0 %v3571, 80
      %v3859 = vpop.permute.xlu0 %3858
      %3860 = vrot.lane.b32.xlu0 %v3573, 80
      %v3861 = vpop.permute.xlu0 %3860
      %3862 = vrot.lane.b32.xlu0 %v3575, 80
      %v3863 = vpop.permute.xlu0 %3862
      %3864 = vrot.lane.b32.xlu0 %v3577, 80
      %v3865 = vpop.permute.xlu0 %3864
      %3866 = vrot.lane.b32.xlu0 %v3579, 80
      %v3867 = vpop.permute.xlu0 %3866
      %3868 = vrot.lane.b32.xlu0 %v3581, 80
      %v3869 = vpop.permute.xlu0 %3868
      %3870 = vrot.lane.b32.xlu0 %v3583, 80
      %v3871 = vpop.permute.xlu0 %3870
      %v3904 = vmul.f32 %v3713, %v3809
      %v3905 = vmul.f32 %v3715, %v3811
      %v3906 = vmul.f32 %v3717, %v3813
      %v3907 = vmul.f32 %v3719, %v3815
      %v3908 = vmul.f32 %v3721, %v3817
      %v3909 = vmul.f32 %v3723, %v3819
      %v3910 = vmul.f32 %v3725, %v3821
      %v3911 = vmul.f32 %v3727, %v3823
      %v3912 = vmul.f32 %v3729, %v3825
      %v3913 = vmul.f32 %v3731, %v3827
      %v3914 = vmul.f32 %v3733, %v3829
      %v3915 = vmul.f32 %v3735, %v3831
      %v3916 = vmul.f32 %v3737, %v3833
      %v3917 = vmul.f32 %v3739, %v3835
      %v3918 = vmul.f32 %v3741, %v3837
      %v3919 = vmul.f32 %v3743, %v3839
      %v3920 = vmul.f32 %v3745, %v3841
      %v3921 = vmul.f32 %v3747, %v3843
      %v3922 = vmul.f32 %v3749, %v3845
      %v3923 = vmul.f32 %v3751, %v3847
      %v3924 = vmul.f32 %v3753, %v3849
      %v3925 = vmul.f32 %v3755, %v3851
      %v3926 = vmul.f32 %v3757, %v3853
      %v3927 = vmul.f32 %v3759, %v3855
      %v3928 = vmul.f32 %v3761, %v3857
      %v3929 = vmul.f32 %v3763, %v3859
      %v3930 = vmul.f32 %v3765, %v3861
      %v3931 = vmul.f32 %v3767, %v3863
      %v3932 = vmul.f32 %v3769, %v3865
      %v3933 = vmul.f32 %v3771, %v3867
      %v3934 = vmul.f32 %v3773, %v3869
      %v3935 = vmul.f32 %v3775, %v3871
      %v3936 = vmax.f32 %v3200, %v3904
      %v3937 = vmax.f32 %v3201, %v3905
      %v3938 = vmax.f32 %v3202, %v3906
      %v3939 = vmax.f32 %v3203, %v3907
      %v3940 = vmax.f32 %v3204, %v3908
      %v3941 = vmax.f32 %v3205, %v3909
      %v3942 = vmax.f32 %v3206, %v3910
      %v3943 = vmax.f32 %v3207, %v3911
      %v3944 = vmax.f32 %v3208, %v3912
      %v3945 = vmax.f32 %v3209, %v3913
      %v3946 = vmax.f32 %v3210, %v3914
      %v3947 = vmax.f32 %v3211, %v3915
      %v3948 = vmax.f32 %v3212, %v3916
      %v3949 = vmax.f32 %v3213, %v3917
      %v3950 = vmax.f32 %v3214, %v3918
      %v3951 = vmax.f32 %v3215, %v3919
      %v3952 = vmax.f32 %v3216, %v3920
      %v3953 = vmax.f32 %v3217, %v3921
      %v3954 = vmax.f32 %v3218, %v3922
      %v3955 = vmax.f32 %v3219, %v3923
      %v3956 = vmax.f32 %v3220, %v3924
      %v3957 = vmax.f32 %v3221, %v3925
      %v3958 = vmax.f32 %v3222, %v3926
      %v3959 = vmax.f32 %v3223, %v3927
      %v3960 = vmax.f32 %v3224, %v3928
      %v3961 = vmax.f32 %v3225, %v3929
      %v3962 = vmax.f32 %v3226, %v3930
      %v3963 = vmax.f32 %v3227, %v3931
      %v3964 = vmax.f32 %v3228, %v3932
      %v3965 = vmax.f32 %v3229, %v3933
      %v3966 = vmax.f32 %v3230, %v3934
      %v3967 = vmax.f32 %v3231, %v3935
      %v3968 = vsel %vm2495, %v2369, -inf
      %3969 = vmax.xlane.f32.xlu0 %v3968
      %v3970 = vpop.xlane.xlu0 %3969
      %v3971 = vsel %vm2495, %v2372, -inf
      %3972 = vmax.xlane.f32.xlu0 %v3971
      %v3973 = vpop.xlane.xlu0 %3972
      %v3974 = vsel %vm2495, %v2377, -inf
      %3975 = vmax.xlane.f32.xlu0 %v3974
      %v3976 = vpop.xlane.xlu0 %3975
      %v3977 = vsel %vm2495, %v2380, -inf
      %3978 = vmax.xlane.f32.xlu0 %v3977
      %v3979 = vpop.xlane.xlu0 %3978
      %v3980 = vsel %vm2495, %v2385, -inf
      %3981 = vmax.xlane.f32.xlu0 %v3980
      %v3982 = vpop.xlane.xlu0 %3981
      %v3983 = vsel %vm2495, %v2388, -inf
      %3984 = vmax.xlane.f32.xlu0 %v3983
      %v3985 = vpop.xlane.xlu0 %3984
      %v3986 = vsel %vm2495, %v2393, -inf
      %3987 = vmax.xlane.f32.xlu0 %v3986
      %v3988 = vpop.xlane.xlu0 %3987
      %v3989 = vsel %vm2495, %v2396, -inf
      %3990 = vmax.xlane.f32.xlu0 %v3989
      %v3991 = vpop.xlane.xlu0 %3990
      %v3992 = vsel %vm2495, %v2401, -inf
      %3993 = vmax.xlane.f32.xlu0 %v3992
      %v3994 = vpop.xlane.xlu0 %3993
      %v3995 = vsel %vm2495, %v2404, -inf
      %3996 = vmax.xlane.f32.xlu0 %v3995
      %v3997 = vpop.xlane.xlu0 %3996
      %v3998 = vsel %vm2495, %v2409, -inf
      %3999 = vmax.xlane.f32.xlu0 %v3998
      %v4000 = vpop.xlane.xlu0 %3999
      %v4001 = vsel %vm2495, %v2412, -inf
      %4002 = vmax.xlane.f32.xlu0 %v4001
      %v4003 = vpop.xlane.xlu0 %4002
      %v4004 = vsel %vm2495, %v2417, -inf
      %4005 = vmax.xlane.f32.xlu0 %v4004
      %v4006 = vpop.xlane.xlu0 %4005
      %v4007 = vsel %vm2495, %v2420, -inf
      %4008 = vmax.xlane.f32.xlu0 %v4007
      %v4009 = vpop.xlane.xlu0 %4008
      %v4010 = vsel %vm2495, %v2425, -inf
      %4011 = vmax.xlane.f32.xlu0 %v4010
      %v4012 = vpop.xlane.xlu0 %4011
      %v4013 = vsel %vm2495, %v2428, -inf
      %4014 = vmax.xlane.f32.xlu0 %v4013
      %v4015 = vpop.xlane.xlu0 %4014
      %v4016 = vsel %vm2495, %v2433, -inf
      %4017 = vmax.xlane.f32.xlu0 %v4016
      %v4018 = vpop.xlane.xlu0 %4017
      %v4019 = vsel %vm2495, %v2436, -inf
      %4020 = vmax.xlane.f32.xlu0 %v4019
      %v4021 = vpop.xlane.xlu0 %4020
      %v4022 = vsel %vm2495, %v2441, -inf
      %4023 = vmax.xlane.f32.xlu0 %v4022
      %v4024 = vpop.xlane.xlu0 %4023
      %v4025 = vsel %vm2495, %v2444, -inf
      %4026 = vmax.xlane.f32.xlu0 %v4025
      %v4027 = vpop.xlane.xlu0 %4026
      %v4028 = vsel %vm2495, %v2449, -inf
      %4029 = vmax.xlane.f32.xlu0 %v4028
      %v4030 = vpop.xlane.xlu0 %4029
      %v4031 = vsel %vm2495, %v2452, -inf
      %4032 = vmax.xlane.f32.xlu0 %v4031
      %v4033 = vpop.xlane.xlu0 %4032
      %v4034 = vsel %vm2495, %v2457, -inf
      %4035 = vmax.xlane.f32.xlu0 %v4034
      %v4036 = vpop.xlane.xlu0 %4035
      %v4037 = vsel %vm2495, %v2460, -inf
      %4038 = vmax.xlane.f32.xlu0 %v4037
      %v4039 = vpop.xlane.xlu0 %4038
      %v4040 = vsel %vm2495, %v2465, -inf
      %4041 = vmax.xlane.f32.xlu0 %v4040
      %v4042 = vpop.xlane.xlu0 %4041
      %v4043 = vsel %vm2495, %v2468, -inf
      %4044 = vmax.xlane.f32.xlu0 %v4043
      %v4045 = vpop.xlane.xlu0 %4044
      %v4046 = vsel %vm2495, %v2473, -inf
      %4047 = vmax.xlane.f32.xlu0 %v4046
      %v4048 = vpop.xlane.xlu0 %4047
      %v4049 = vsel %vm2495, %v2476, -inf
      %4050 = vmax.xlane.f32.xlu0 %v4049
      %v4051 = vpop.xlane.xlu0 %4050
      %v4052 = vsel %vm2495, %v2481, -inf
      %4053 = vmax.xlane.f32.xlu0 %v4052
      %v4054 = vpop.xlane.xlu0 %4053
      %v4055 = vsel %vm2495, %v2484, -inf
      %4056 = vmax.xlane.f32.xlu0 %v4055
      %v4057 = vpop.xlane.xlu0 %4056
      %v4058 = vsel %vm2495, %v2489, -inf
      %4059 = vmax.xlane.f32.xlu0 %v4058
      %v4060 = vpop.xlane.xlu0 %4059
      %v4061 = vsel %vm2495, %v2492, -inf
      %4062 = vmax.xlane.f32.xlu0 %v4061
      %v4063 = vpop.xlane.xlu0 %4062
      %v4064 = vsub.f32 %v2369, %v3970
      %v4065 = vsub.f32 %v2372, %v3973
      %v4066 = vsub.f32 %v2377, %v3976
      %v4067 = vsub.f32 %v2380, %v3979
      %v4068 = vsub.f32 %v2385, %v3982
      %v4069 = vsub.f32 %v2388, %v3985
      %v4070 = vsub.f32 %v2393, %v3988
      %v4071 = vsub.f32 %v2396, %v3991
      %v4072 = vsub.f32 %v2401, %v3994
      %v4073 = vsub.f32 %v2404, %v3997
      %v4074 = vsub.f32 %v2409, %v4000
      %v4075 = vsub.f32 %v2412, %v4003
      %v4076 = vsub.f32 %v2417, %v4006
      %v4077 = vsub.f32 %v2420, %v4009
      %v4078 = vsub.f32 %v2425, %v4012
      %v4079 = vsub.f32 %v2428, %v4015
      %v4080 = vsub.f32 %v2433, %v4018
      %v4081 = vsub.f32 %v2436, %v4021
      %v4082 = vsub.f32 %v2441, %v4024
      %v4083 = vsub.f32 %v2444, %v4027
      %v4084 = vsub.f32 %v2449, %v4030
      %v4085 = vsub.f32 %v2452, %v4033
      %v4086 = vsub.f32 %v2457, %v4036
      %v4087 = vsub.f32 %v2460, %v4039
      %v4088 = vsub.f32 %v2465, %v4042
      %v4089 = vsub.f32 %v2468, %v4045
      %v4090 = vsub.f32 %v2473, %v4048
      %v4091 = vsub.f32 %v2476, %v4051
      %v4092 = vsub.f32 %v2481, %v4054
      %v4093 = vsub.f32 %v2484, %v4057
      %v4094 = vsub.f32 %v2489, %v4060
      %v4095 = vsub.f32 %v2492, %v4063
      %v4096 = vmul.f32 %v4064, 1.442695
      %v4097 = vpow.pop %v4096
      %v4098 = vmul.f32 %v4065, 1.442695
      %v4099 = vpow.pop %v4098
      %v4100 = vmul.f32 %v4066, 1.442695
      %v4101 = vpow.pop %v4100
      %v4102 = vmul.f32 %v4067, 1.442695
      %v4103 = vpow.pop %v4102
      %v4104 = vmul.f32 %v4068, 1.442695
      %v4105 = vpow.pop %v4104
      %v4106 = vmul.f32 %v4069, 1.442695
      %v4107 = vpow.pop %v4106
      %v4108 = vmul.f32 %v4070, 1.442695
      %v4109 = vpow.pop %v4108
      %v4110 = vmul.f32 %v4071, 1.442695
      %v4111 = vpow.pop %v4110
      %v4112 = vmul.f32 %v4072, 1.442695
      %v4113 = vpow.pop %v4112
      %v4114 = vmul.f32 %v4073, 1.442695
      %v4115 = vpow.pop %v4114
      %v4116 = vmul.f32 %v4074, 1.442695
      %v4117 = vpow.pop %v4116
      %v4118 = vmul.f32 %v4075, 1.442695
      %v4119 = vpow.pop %v4118
      %v4120 = vmul.f32 %v4076, 1.442695
      %v4121 = vpow.pop %v4120
      %v4122 = vmul.f32 %v4077, 1.442695
      %v4123 = vpow.pop %v4122
      %v4124 = vmul.f32 %v4078, 1.442695
      %v4125 = vpow.pop %v4124
      %v4126 = vmul.f32 %v4079, 1.442695
      %v4127 = vpow.pop %v4126
      %v4128 = vmul.f32 %v4080, 1.442695
      %v4129 = vpow.pop %v4128
      %v4130 = vmul.f32 %v4081, 1.442695
      %v4131 = vpow.pop %v4130
      %v4132 = vmul.f32 %v4082, 1.442695
      %v4133 = vpow.pop %v4132
      %v4134 = vmul.f32 %v4083, 1.442695
      %v4135 = vpow.pop %v4134
      %v4136 = vmul.f32 %v4084, 1.442695
      %v4137 = vpow.pop %v4136
      %v4138 = vmul.f32 %v4085, 1.442695
      %v4139 = vpow.pop %v4138
      %v4140 = vmul.f32 %v4086, 1.442695
      %v4141 = vpow.pop %v4140
      %v4142 = vmul.f32 %v4087, 1.442695
      %v4143 = vpow.pop %v4142
      %v4144 = vmul.f32 %v4088, 1.442695
      %v4145 = vpow.pop %v4144
      %v4146 = vmul.f32 %v4089, 1.442695
      %v4147 = vpow.pop %v4146
      %v4148 = vmul.f32 %v4090, 1.442695
      %v4149 = vpow.pop %v4148
      %v4150 = vmul.f32 %v4091, 1.442695
      %v4151 = vpow.pop %v4150
      %v4152 = vmul.f32 %v4092, 1.442695
      %v4153 = vpow.pop %v4152
      %v4154 = vmul.f32 %v4093, 1.442695
      %v4155 = vpow.pop %v4154
      %v4156 = vmul.f32 %v4094, 1.442695
      %v4157 = vpow.pop %v4156
      %v4158 = vmul.f32 %v4095, 1.442695
      %v4159 = vpow.pop %v4158
      %v4160 = vsel %vm2495, %v4097, 0.0
      %4161 = vadd.xlane.f32.xlu0 %v4160
      %v4162 = vpop.xlane.xlu0 %4161
      %v4163 = vsel %vm2495, %v4099, 0.0
      %4164 = vadd.xlane.f32.xlu0 %v4163
      %v4165 = vpop.xlane.xlu0 %4164
      %v4166 = vsel %vm2495, %v4101, 0.0
      %4167 = vadd.xlane.f32.xlu0 %v4166
      %v4168 = vpop.xlane.xlu0 %4167
      %v4169 = vsel %vm2495, %v4103, 0.0
      %4170 = vadd.xlane.f32.xlu0 %v4169
      %v4171 = vpop.xlane.xlu0 %4170
      %v4172 = vsel %vm2495, %v4105, 0.0
      %4173 = vadd.xlane.f32.xlu0 %v4172
      %v4174 = vpop.xlane.xlu0 %4173
      %v4175 = vsel %vm2495, %v4107, 0.0
      %4176 = vadd.xlane.f32.xlu0 %v4175
      %v4177 = vpop.xlane.xlu0 %4176
      %v4178 = vsel %vm2495, %v4109, 0.0
      %4179 = vadd.xlane.f32.xlu0 %v4178
      %v4180 = vpop.xlane.xlu0 %4179
      %v4181 = vsel %vm2495, %v4111, 0.0
      %4182 = vadd.xlane.f32.xlu0 %v4181
      %v4183 = vpop.xlane.xlu0 %4182
      %v4184 = vsel %vm2495, %v4113, 0.0
      %4185 = vadd.xlane.f32.xlu0 %v4184
      %v4186 = vpop.xlane.xlu0 %4185
      %v4187 = vsel %vm2495, %v4115, 0.0
      %4188 = vadd.xlane.f32.xlu0 %v4187
      %v4189 = vpop.xlane.xlu0 %4188
      %v4190 = vsel %vm2495, %v4117, 0.0
      %4191 = vadd.xlane.f32.xlu0 %v4190
      %v4192 = vpop.xlane.xlu0 %4191
      %v4193 = vsel %vm2495, %v4119, 0.0
      %4194 = vadd.xlane.f32.xlu0 %v4193
      %v4195 = vpop.xlane.xlu0 %4194
      %v4196 = vsel %vm2495, %v4121, 0.0
      %4197 = vadd.xlane.f32.xlu0 %v4196
      %v4198 = vpop.xlane.xlu0 %4197
      %v4199 = vsel %vm2495, %v4123, 0.0
      %4200 = vadd.xlane.f32.xlu0 %v4199
      %v4201 = vpop.xlane.xlu0 %4200
      %v4202 = vsel %vm2495, %v4125, 0.0
      %4203 = vadd.xlane.f32.xlu0 %v4202
      %v4204 = vpop.xlane.xlu0 %4203
      %v4205 = vsel %vm2495, %v4127, 0.0
      %4206 = vadd.xlane.f32.xlu0 %v4205
      %v4207 = vpop.xlane.xlu0 %4206
      %v4208 = vsel %vm2495, %v4129, 0.0
      %4209 = vadd.xlane.f32.xlu0 %v4208
      %v4210 = vpop.xlane.xlu0 %4209
      %v4211 = vsel %vm2495, %v4131, 0.0
      %4212 = vadd.xlane.f32.xlu0 %v4211
      %v4213 = vpop.xlane.xlu0 %4212
      %v4214 = vsel %vm2495, %v4133, 0.0
      %4215 = vadd.xlane.f32.xlu0 %v4214
      %v4216 = vpop.xlane.xlu0 %4215
      %v4217 = vsel %vm2495, %v4135, 0.0
      %4218 = vadd.xlane.f32.xlu0 %v4217
      %v4219 = vpop.xlane.xlu0 %4218
      %v4220 = vsel %vm2495, %v4137, 0.0
      %4221 = vadd.xlane.f32.xlu0 %v4220
      %v4222 = vpop.xlane.xlu0 %4221
      %v4223 = vsel %vm2495, %v4139, 0.0
      %4224 = vadd.xlane.f32.xlu0 %v4223
      %v4225 = vpop.xlane.xlu0 %4224
      %v4226 = vsel %vm2495, %v4141, 0.0
      %4227 = vadd.xlane.f32.xlu0 %v4226
      %v4228 = vpop.xlane.xlu0 %4227
      %v4229 = vsel %vm2495, %v4143, 0.0
      %4230 = vadd.xlane.f32.xlu0 %v4229
      %v4231 = vpop.xlane.xlu0 %4230
      %v4232 = vsel %vm2495, %v4145, 0.0
      %4233 = vadd.xlane.f32.xlu0 %v4232
      %v4234 = vpop.xlane.xlu0 %4233
      %v4235 = vsel %vm2495, %v4147, 0.0
      %4236 = vadd.xlane.f32.xlu0 %v4235
      %v4237 = vpop.xlane.xlu0 %4236
      %v4238 = vsel %vm2495, %v4149, 0.0
      %4239 = vadd.xlane.f32.xlu0 %v4238
      %v4240 = vpop.xlane.xlu0 %4239
      %v4241 = vsel %vm2495, %v4151, 0.0
      %4242 = vadd.xlane.f32.xlu0 %v4241
      %v4243 = vpop.xlane.xlu0 %4242
      %v4244 = vsel %vm2495, %v4153, 0.0
      %4245 = vadd.xlane.f32.xlu0 %v4244
      %v4246 = vpop.xlane.xlu0 %4245
      %v4247 = vsel %vm2495, %v4155, 0.0
      %4248 = vadd.xlane.f32.xlu0 %v4247
      %v4249 = vpop.xlane.xlu0 %4248
      %v4250 = vsel %vm2495, %v4157, 0.0
      %4251 = vadd.xlane.f32.xlu0 %v4250
      %v4252 = vpop.xlane.xlu0 %4251
      %v4253 = vsel %vm2495, %v4159, 0.0
      %4254 = vadd.xlane.f32.xlu0 %v4253
      %v4255 = vpop.xlane.xlu0 %4254
      %v4256 = vrcp.pop %v4162
      %v4257 = vmul.f32 %v4097, %v4256
      %v4258 = vrcp.pop %v4165
      %v4259 = vmul.f32 %v4099, %v4258
      %v4260 = vrcp.pop %v4168
      %v4261 = vmul.f32 %v4101, %v4260
      %v4262 = vrcp.pop %v4171
      %v4263 = vmul.f32 %v4103, %v4262
      %v4264 = vrcp.pop %v4174
      %v4265 = vmul.f32 %v4105, %v4264
      %v4266 = vrcp.pop %v4177
      %v4267 = vmul.f32 %v4107, %v4266
      %v4268 = vrcp.pop %v4180
      %v4269 = vmul.f32 %v4109, %v4268
      %v4270 = vrcp.pop %v4183
      %v4271 = vmul.f32 %v4111, %v4270
      %v4272 = vrcp.pop %v4186
      %v4273 = vmul.f32 %v4113, %v4272
      %v4274 = vrcp.pop %v4189
      %v4275 = vmul.f32 %v4115, %v4274
      %v4276 = vrcp.pop %v4192
      %v4277 = vmul.f32 %v4117, %v4276
      %v4278 = vrcp.pop %v4195
      %v4279 = vmul.f32 %v4119, %v4278
      %v4280 = vrcp.pop %v4198
      %v4281 = vmul.f32 %v4121, %v4280
      %v4282 = vrcp.pop %v4201
      %v4283 = vmul.f32 %v4123, %v4282
      %v4284 = vrcp.pop %v4204
      %v4285 = vmul.f32 %v4125, %v4284
      %v4286 = vrcp.pop %v4207
      %v4287 = vmul.f32 %v4127, %v4286
      %v4288 = vrcp.pop %v4210
      %v4289 = vmul.f32 %v4129, %v4288
      %v4290 = vrcp.pop %v4213
      %v4291 = vmul.f32 %v4131, %v4290
      %v4292 = vrcp.pop %v4216
      %v4293 = vmul.f32 %v4133, %v4292
      %v4294 = vrcp.pop %v4219
      %v4295 = vmul.f32 %v4135, %v4294
      %v4296 = vrcp.pop %v4222
      %v4297 = vmul.f32 %v4137, %v4296
      %v4298 = vrcp.pop %v4225
      %v4299 = vmul.f32 %v4139, %v4298
      %v4300 = vrcp.pop %v4228
      %v4301 = vmul.f32 %v4141, %v4300
      %v4302 = vrcp.pop %v4231
      %v4303 = vmul.f32 %v4143, %v4302
      %v4304 = vrcp.pop %v4234
      %v4305 = vmul.f32 %v4145, %v4304
      %v4306 = vrcp.pop %v4237
      %v4307 = vmul.f32 %v4147, %v4306
      %v4308 = vrcp.pop %v4240
      %v4309 = vmul.f32 %v4149, %v4308
      %v4310 = vrcp.pop %v4243
      %v4311 = vmul.f32 %v4151, %v4310
      %v4312 = vrcp.pop %v4246
      %v4313 = vmul.f32 %v4153, %v4312
      %v4314 = vrcp.pop %v4249
      %v4315 = vmul.f32 %v4155, %v4314
      %v4316 = vrcp.pop %v4252
      %v4317 = vmul.f32 %v4157, %v4316
      %v4318 = vrcp.pop %v4255
      %v4319 = vmul.f32 %v4159, %v4318
      %v4320 = vsub.f32 0.0, %v2369
      %v4321 = vsub.f32 0.0, %v2372
      %v4322 = vsub.f32 0.0, %v2377
      %v4323 = vsub.f32 0.0, %v2380
      %v4324 = vsub.f32 0.0, %v2385
      %v4325 = vsub.f32 0.0, %v2388
      %v4326 = vsub.f32 0.0, %v2393
      %v4327 = vsub.f32 0.0, %v2396
      %v4328 = vsub.f32 0.0, %v2401
      %v4329 = vsub.f32 0.0, %v2404
      %v4330 = vsub.f32 0.0, %v2409
      %v4331 = vsub.f32 0.0, %v2412
      %v4332 = vsub.f32 0.0, %v2417
      %v4333 = vsub.f32 0.0, %v2420
      %v4334 = vsub.f32 0.0, %v2425
      %v4335 = vsub.f32 0.0, %v2428
      %v4336 = vsub.f32 0.0, %v2433
      %v4337 = vsub.f32 0.0, %v2436
      %v4338 = vsub.f32 0.0, %v2441
      %v4339 = vsub.f32 0.0, %v2444
      %v4340 = vsub.f32 0.0, %v2449
      %v4341 = vsub.f32 0.0, %v2452
      %v4342 = vsub.f32 0.0, %v2457
      %v4343 = vsub.f32 0.0, %v2460
      %v4344 = vsub.f32 0.0, %v2465
      %v4345 = vsub.f32 0.0, %v2468
      %v4346 = vsub.f32 0.0, %v2473
      %v4347 = vsub.f32 0.0, %v2476
      %v4348 = vsub.f32 0.0, %v2481
      %v4349 = vsub.f32 0.0, %v2484
      %v4350 = vsub.f32 0.0, %v2489
      %v4351 = vsub.f32 0.0, %v2492
      %v4352 = vmul.f32 %v4320, 1.442695
      %v4353 = vpow.pop %v4352
      %v4354 = vmul.f32 %v4321, 1.442695
      %v4355 = vpow.pop %v4354
      %v4356 = vmul.f32 %v4322, 1.442695
      %v4357 = vpow.pop %v4356
      %v4358 = vmul.f32 %v4323, 1.442695
      %v4359 = vpow.pop %v4358
      %v4360 = vmul.f32 %v4324, 1.442695
      %v4361 = vpow.pop %v4360
      %v4362 = vmul.f32 %v4325, 1.442695
      %v4363 = vpow.pop %v4362
      %v4364 = vmul.f32 %v4326, 1.442695
      %v4365 = vpow.pop %v4364
      %v4366 = vmul.f32 %v4327, 1.442695
      %v4367 = vpow.pop %v4366
      %v4368 = vmul.f32 %v4328, 1.442695
      %v4369 = vpow.pop %v4368
      %v4370 = vmul.f32 %v4329, 1.442695
      %v4371 = vpow.pop %v4370
      %v4372 = vmul.f32 %v4330, 1.442695
      %v4373 = vpow.pop %v4372
      %v4374 = vmul.f32 %v4331, 1.442695
      %v4375 = vpow.pop %v4374
      %v4376 = vmul.f32 %v4332, 1.442695
      %v4377 = vpow.pop %v4376
      %v4378 = vmul.f32 %v4333, 1.442695
      %v4379 = vpow.pop %v4378
      %v4380 = vmul.f32 %v4334, 1.442695
      %v4381 = vpow.pop %v4380
      %v4382 = vmul.f32 %v4335, 1.442695
      %v4383 = vpow.pop %v4382
      %v4384 = vmul.f32 %v4336, 1.442695
      %v4385 = vpow.pop %v4384
      %v4386 = vmul.f32 %v4337, 1.442695
      %v4387 = vpow.pop %v4386
      %v4388 = vmul.f32 %v4338, 1.442695
      %v4389 = vpow.pop %v4388
      %v4390 = vmul.f32 %v4339, 1.442695
      %v4391 = vpow.pop %v4390
      %v4392 = vmul.f32 %v4340, 1.442695
      %v4393 = vpow.pop %v4392
      %v4394 = vmul.f32 %v4341, 1.442695
      %v4395 = vpow.pop %v4394
      %v4396 = vmul.f32 %v4342, 1.442695
      %v4397 = vpow.pop %v4396
      %v4398 = vmul.f32 %v4343, 1.442695
      %v4399 = vpow.pop %v4398
      %v4400 = vmul.f32 %v4344, 1.442695
      %v4401 = vpow.pop %v4400
      %v4402 = vmul.f32 %v4345, 1.442695
      %v4403 = vpow.pop %v4402
      %v4404 = vmul.f32 %v4346, 1.442695
      %v4405 = vpow.pop %v4404
      %v4406 = vmul.f32 %v4347, 1.442695
      %v4407 = vpow.pop %v4406
      %v4408 = vmul.f32 %v4348, 1.442695
      %v4409 = vpow.pop %v4408
      %v4410 = vmul.f32 %v4349, 1.442695
      %v4411 = vpow.pop %v4410
      %v4412 = vmul.f32 %v4350, 1.442695
      %v4413 = vpow.pop %v4412
      %v4414 = vmul.f32 %v4351, 1.442695
      %v4415 = vpow.pop %v4414
      %v4416 = vadd.f32 %v4353, 1.0
      %v4417 = vadd.f32 %v4355, 1.0
      %v4418 = vadd.f32 %v4357, 1.0
      %v4419 = vadd.f32 %v4359, 1.0
      %v4420 = vadd.f32 %v4361, 1.0
      %v4421 = vadd.f32 %v4363, 1.0
      %v4422 = vadd.f32 %v4365, 1.0
      %v4423 = vadd.f32 %v4367, 1.0
      %v4424 = vadd.f32 %v4369, 1.0
      %v4425 = vadd.f32 %v4371, 1.0
      %v4426 = vadd.f32 %v4373, 1.0
      %v4427 = vadd.f32 %v4375, 1.0
      %v4428 = vadd.f32 %v4377, 1.0
      %v4429 = vadd.f32 %v4379, 1.0
      %v4430 = vadd.f32 %v4381, 1.0
      %v4431 = vadd.f32 %v4383, 1.0
      %v4432 = vadd.f32 %v4385, 1.0
      %v4433 = vadd.f32 %v4387, 1.0
      %v4434 = vadd.f32 %v4389, 1.0
      %v4435 = vadd.f32 %v4391, 1.0
      %v4436 = vadd.f32 %v4393, 1.0
      %v4437 = vadd.f32 %v4395, 1.0
      %v4438 = vadd.f32 %v4397, 1.0
      %v4439 = vadd.f32 %v4399, 1.0
      %v4440 = vadd.f32 %v4401, 1.0
      %v4441 = vadd.f32 %v4403, 1.0
      %v4442 = vadd.f32 %v4405, 1.0
      %v4443 = vadd.f32 %v4407, 1.0
      %v4444 = vadd.f32 %v4409, 1.0
      %v4445 = vadd.f32 %v4411, 1.0
      %v4446 = vadd.f32 %v4413, 1.0
      %v4447 = vadd.f32 %v4415, 1.0
      %v4448 = vrcp.pop %v4416
      %v4449 = vmul.f32 1.0, %v4448
      %v4450 = vrcp.pop %v4417
      %v4451 = vmul.f32 1.0, %v4450
      %v4452 = vrcp.pop %v4418
      %v4453 = vmul.f32 1.0, %v4452
      %v4454 = vrcp.pop %v4419
      %v4455 = vmul.f32 1.0, %v4454
      %v4456 = vrcp.pop %v4420
      %v4457 = vmul.f32 1.0, %v4456
      %v4458 = vrcp.pop %v4421
      %v4459 = vmul.f32 1.0, %v4458
      %v4460 = vrcp.pop %v4422
      %v4461 = vmul.f32 1.0, %v4460
      %v4462 = vrcp.pop %v4423
      %v4463 = vmul.f32 1.0, %v4462
      %v4464 = vrcp.pop %v4424
      %v4465 = vmul.f32 1.0, %v4464
      %v4466 = vrcp.pop %v4425
      %v4467 = vmul.f32 1.0, %v4466
      %v4468 = vrcp.pop %v4426
      %v4469 = vmul.f32 1.0, %v4468
      %v4470 = vrcp.pop %v4427
      %v4471 = vmul.f32 1.0, %v4470
      %v4472 = vrcp.pop %v4428
      %v4473 = vmul.f32 1.0, %v4472
      %v4474 = vrcp.pop %v4429
      %v4475 = vmul.f32 1.0, %v4474
      %v4476 = vrcp.pop %v4430
      %v4477 = vmul.f32 1.0, %v4476
      %v4478 = vrcp.pop %v4431
      %v4479 = vmul.f32 1.0, %v4478
      %v4480 = vrcp.pop %v4432
      %v4481 = vmul.f32 1.0, %v4480
      %v4482 = vrcp.pop %v4433
      %v4483 = vmul.f32 1.0, %v4482
      %v4484 = vrcp.pop %v4434
      %v4485 = vmul.f32 1.0, %v4484
      %v4486 = vrcp.pop %v4435
      %v4487 = vmul.f32 1.0, %v4486
      %v4488 = vrcp.pop %v4436
      %v4489 = vmul.f32 1.0, %v4488
      %v4490 = vrcp.pop %v4437
      %v4491 = vmul.f32 1.0, %v4490
      %v4492 = vrcp.pop %v4438
      %v4493 = vmul.f32 1.0, %v4492
      %v4494 = vrcp.pop %v4439
      %v4495 = vmul.f32 1.0, %v4494
      %v4496 = vrcp.pop %v4440
      %v4497 = vmul.f32 1.0, %v4496
      %v4498 = vrcp.pop %v4441
      %v4499 = vmul.f32 1.0, %v4498
      %v4500 = vrcp.pop %v4442
      %v4501 = vmul.f32 1.0, %v4500
      %v4502 = vrcp.pop %v4443
      %v4503 = vmul.f32 1.0, %v4502
      %v4504 = vrcp.pop %v4444
      %v4505 = vmul.f32 1.0, %v4504
      %v4506 = vrcp.pop %v4445
      %v4507 = vmul.f32 1.0, %v4506
      %v4508 = vrcp.pop %v4446
      %v4509 = vmul.f32 1.0, %v4508
      %v4510 = vrcp.pop %v4447
      %v4511 = vmul.f32 1.0, %v4510
      %4544 = vrot.lane.b32.xlu0 %v4257, 80
      %v4545 = vpop.permute.xlu0 %4544
      %4546 = vrot.lane.b32.xlu0 %v4259, 80
      %v4547 = vpop.permute.xlu0 %4546
      %4548 = vrot.lane.b32.xlu0 %v4261, 80
      %v4549 = vpop.permute.xlu0 %4548
      %4550 = vrot.lane.b32.xlu0 %v4263, 80
      %v4551 = vpop.permute.xlu0 %4550
      %4552 = vrot.lane.b32.xlu0 %v4265, 80
      %v4553 = vpop.permute.xlu0 %4552
      %4554 = vrot.lane.b32.xlu0 %v4267, 80
      %v4555 = vpop.permute.xlu0 %4554
      %4556 = vrot.lane.b32.xlu0 %v4269, 80
      %v4557 = vpop.permute.xlu0 %4556
      %4558 = vrot.lane.b32.xlu0 %v4271, 80
      %v4559 = vpop.permute.xlu0 %4558
      %4560 = vrot.lane.b32.xlu0 %v4273, 80
      %v4561 = vpop.permute.xlu0 %4560
      %4562 = vrot.lane.b32.xlu0 %v4275, 80
      %v4563 = vpop.permute.xlu0 %4562
      %4564 = vrot.lane.b32.xlu0 %v4277, 80
      %v4565 = vpop.permute.xlu0 %4564
      %4566 = vrot.lane.b32.xlu0 %v4279, 80
      %v4567 = vpop.permute.xlu0 %4566
      %4568 = vrot.lane.b32.xlu0 %v4281, 80
      %v4569 = vpop.permute.xlu0 %4568
      %4570 = vrot.lane.b32.xlu0 %v4283, 80
      %v4571 = vpop.permute.xlu0 %4570
      %4572 = vrot.lane.b32.xlu0 %v4285, 80
      %v4573 = vpop.permute.xlu0 %4572
      %4574 = vrot.lane.b32.xlu0 %v4287, 80
      %v4575 = vpop.permute.xlu0 %4574
      %4576 = vrot.lane.b32.xlu0 %v4289, 80
      %v4577 = vpop.permute.xlu0 %4576
      %4578 = vrot.lane.b32.xlu0 %v4291, 80
      %v4579 = vpop.permute.xlu0 %4578
      %4580 = vrot.lane.b32.xlu0 %v4293, 80
      %v4581 = vpop.permute.xlu0 %4580
      %4582 = vrot.lane.b32.xlu0 %v4295, 80
      %v4583 = vpop.permute.xlu0 %4582
      %4584 = vrot.lane.b32.xlu0 %v4297, 80
      %v4585 = vpop.permute.xlu0 %4584
      %4586 = vrot.lane.b32.xlu0 %v4299, 80
      %v4587 = vpop.permute.xlu0 %4586
      %4588 = vrot.lane.b32.xlu0 %v4301, 80
      %v4589 = vpop.permute.xlu0 %4588
      %4590 = vrot.lane.b32.xlu0 %v4303, 80
      %v4591 = vpop.permute.xlu0 %4590
      %4592 = vrot.lane.b32.xlu0 %v4305, 80
      %v4593 = vpop.permute.xlu0 %4592
      %4594 = vrot.lane.b32.xlu0 %v4307, 80
      %v4595 = vpop.permute.xlu0 %4594
      %4596 = vrot.lane.b32.xlu0 %v4309, 80
      %v4597 = vpop.permute.xlu0 %4596
      %4598 = vrot.lane.b32.xlu0 %v4311, 80
      %v4599 = vpop.permute.xlu0 %4598
      %4600 = vrot.lane.b32.xlu0 %v4313, 80
      %v4601 = vpop.permute.xlu0 %4600
      %4602 = vrot.lane.b32.xlu0 %v4315, 80
      %v4603 = vpop.permute.xlu0 %4602
      %4604 = vrot.lane.b32.xlu0 %v4317, 80
      %v4605 = vpop.permute.xlu0 %4604
      %4606 = vrot.lane.b32.xlu0 %v4319, 80
      %v4607 = vpop.permute.xlu0 %4606
      %v4640 = vmul.f32 %v4449, %v4545
      %v4641 = vmul.f32 %v4451, %v4547
      %v4642 = vmul.f32 %v4453, %v4549
      %v4643 = vmul.f32 %v4455, %v4551
      %v4644 = vmul.f32 %v4457, %v4553
      %v4645 = vmul.f32 %v4459, %v4555
      %v4646 = vmul.f32 %v4461, %v4557
      %v4647 = vmul.f32 %v4463, %v4559
      %v4648 = vmul.f32 %v4465, %v4561
      %v4649 = vmul.f32 %v4467, %v4563
      %v4650 = vmul.f32 %v4469, %v4565
      %v4651 = vmul.f32 %v4471, %v4567
      %v4652 = vmul.f32 %v4473, %v4569
      %v4653 = vmul.f32 %v4475, %v4571
      %v4654 = vmul.f32 %v4477, %v4573
      %v4655 = vmul.f32 %v4479, %v4575
      %v4656 = vmul.f32 %v4481, %v4577
      %v4657 = vmul.f32 %v4483, %v4579
      %v4658 = vmul.f32 %v4485, %v4581
      %v4659 = vmul.f32 %v4487, %v4583
      %v4660 = vmul.f32 %v4489, %v4585
      %v4661 = vmul.f32 %v4491, %v4587
      %v4662 = vmul.f32 %v4493, %v4589
      %v4663 = vmul.f32 %v4495, %v4591
      %v4664 = vmul.f32 %v4497, %v4593
      %v4665 = vmul.f32 %v4499, %v4595
      %v4666 = vmul.f32 %v4501, %v4597
      %v4667 = vmul.f32 %v4503, %v4599
      %v4668 = vmul.f32 %v4505, %v4601
      %v4669 = vmul.f32 %v4507, %v4603
      %v4670 = vmul.f32 %v4509, %v4605
      %v4671 = vmul.f32 %v4511, %v4607
      %v4672 = vmax.f32 %v3936, %v4640
      %v4673 = vmax.f32 %v3937, %v4641
      %v4674 = vmax.f32 %v3938, %v4642
      %v4675 = vmax.f32 %v3939, %v4643
      %v4676 = vmax.f32 %v3940, %v4644
      %v4677 = vmax.f32 %v3941, %v4645
      %v4678 = vmax.f32 %v3942, %v4646
      %v4679 = vmax.f32 %v3943, %v4647
      %v4680 = vmax.f32 %v3944, %v4648
      %v4681 = vmax.f32 %v3945, %v4649
      %v4682 = vmax.f32 %v3946, %v4650
      %v4683 = vmax.f32 %v3947, %v4651
      %v4684 = vmax.f32 %v3948, %v4652
      %v4685 = vmax.f32 %v3949, %v4653
      %v4686 = vmax.f32 %v3950, %v4654
      %v4687 = vmax.f32 %v3951, %v4655
      %v4688 = vmax.f32 %v3952, %v4656
      %v4689 = vmax.f32 %v3953, %v4657
      %v4690 = vmax.f32 %v3954, %v4658
      %v4691 = vmax.f32 %v3955, %v4659
      %v4692 = vmax.f32 %v3956, %v4660
      %v4693 = vmax.f32 %v3957, %v4661
      %v4694 = vmax.f32 %v3958, %v4662
      %v4695 = vmax.f32 %v3959, %v4663
      %v4696 = vmax.f32 %v3960, %v4664
      %v4697 = vmax.f32 %v3961, %v4665
      %v4698 = vmax.f32 %v3962, %v4666
      %v4699 = vmax.f32 %v3963, %v4667
      %v4700 = vmax.f32 %v3964, %v4668
      %v4701 = vmax.f32 %v3965, %v4669
      %v4702 = vmax.f32 %v3966, %v4670
      %v4703 = vmax.f32 %v3967, %v4671
      %vm4704 = vcmask 663168
      %v4705 = vsel %vm4704, %v4672, -inf
      %v4706 = vsel %vm4704, %v4673, -inf
      %v4707 = vsel %vm4704, %v4674, -inf
      %v4708 = vsel %vm4704, %v4675, -inf
      %v4709 = vsel %vm4704, %v4676, -inf
      %v4710 = vmax.f32 %v4705, %v4709
      %v4711 = vsel %vm4704, %v4677, -inf
      %v4712 = vmax.f32 %v4706, %v4711
      %v4713 = vsel %vm4704, %v4678, -inf
      %v4714 = vmax.f32 %v4707, %v4713
      %v4715 = vsel %vm4704, %v4679, -inf
      %v4716 = vmax.f32 %v4708, %v4715
      %v4717 = vsel %vm4704, %v4680, -inf
      %v4718 = vmax.f32 %v4710, %v4717
      %v4719 = vsel %vm4704, %v4681, -inf
      %v4720 = vmax.f32 %v4712, %v4719
      %v4721 = vsel %vm4704, %v4682, -inf
      %v4722 = vmax.f32 %v4714, %v4721
      %v4723 = vsel %vm4704, %v4683, -inf
      %v4724 = vmax.f32 %v4716, %v4723
      %v4725 = vsel %vm4704, %v4684, -inf
      %v4726 = vmax.f32 %v4718, %v4725
      %v4727 = vsel %vm4704, %v4685, -inf
      %v4728 = vmax.f32 %v4720, %v4727
      %v4729 = vsel %vm4704, %v4686, -inf
      %v4730 = vmax.f32 %v4722, %v4729
      %v4731 = vsel %vm4704, %v4687, -inf
      %v4732 = vmax.f32 %v4724, %v4731
      %v4733 = vsel %vm4704, %v4688, -inf
      %v4734 = vmax.f32 %v4726, %v4733
      %v4735 = vsel %vm4704, %v4689, -inf
      %v4736 = vmax.f32 %v4728, %v4735
      %v4737 = vsel %vm4704, %v4690, -inf
      %v4738 = vmax.f32 %v4730, %v4737
      %v4739 = vsel %vm4704, %v4691, -inf
      %v4740 = vmax.f32 %v4732, %v4739
      %v4741 = vsel %vm4704, %v4692, -inf
      %v4742 = vmax.f32 %v4734, %v4741
      %v4743 = vsel %vm4704, %v4693, -inf
      %v4744 = vmax.f32 %v4736, %v4743
      %v4745 = vsel %vm4704, %v4694, -inf
      %v4746 = vmax.f32 %v4738, %v4745
      %v4747 = vsel %vm4704, %v4695, -inf
      %v4748 = vmax.f32 %v4740, %v4747
      %v4749 = vsel %vm4704, %v4696, -inf
      %v4750 = vmax.f32 %v4742, %v4749
      %v4751 = vsel %vm4704, %v4697, -inf
      %v4752 = vmax.f32 %v4744, %v4751
      %v4753 = vsel %vm4704, %v4698, -inf
      %v4754 = vmax.f32 %v4746, %v4753
      %v4755 = vsel %vm4704, %v4699, -inf
      %v4756 = vmax.f32 %v4748, %v4755
      %v4757 = vsel %vm4704, %v4700, -inf
      %v4758 = vmax.f32 %v4750, %v4757
      %v4759 = vsel %vm4704, %v4701, -inf
      %v4760 = vmax.f32 %v4752, %v4759
      %v4761 = vsel %vm4704, %v4702, -inf
      %v4762 = vmax.f32 %v4754, %v4761
      %v4763 = vsel %vm4704, %v4703, -inf
      %v4764 = vmax.f32 %v4756, %v4763
      %v4765 = vmax.f32 %v4758, %v4760
      %v4766 = vmax.f32 %v4762, %v4764
      %v4767 = vmax.f32 %v4765, %v4766
      %v4768 = vrot.slane %v4767, 4
      %v4769 = vmax.f32 %v4767, %v4768
      %v4770 = vrot.slane %v4769, 2
      %v4771 = vmax.f32 %v4769, %v4770
      %v4772 = vrot.slane %v4771, 1
      %v4773 = vmax.f32 %v4771, %v4772
      %v4775 = vshrl.u32 0, 16
      %v4777 = vrot.slane %v4775, 7
      %v4778 = vshll.u32 0, 16
      %v4780 = vor.u32 %v4777, %v4778
      %v4781 = vshrl.u32 %v2019, 16
      %v4783 = vrot.slane %v4781, 7
      %v4784 = vshll.u32 %v2019, 16
      %v4786 = vor.u32 %v4783, %v4784
      %v4787 = vshrl.u32 %v2020, 16
      %v4789 = vrot.slane %v4787, 7
      %v4790 = vshll.u32 %v2020, 16
      %v4792 = vor.u32 %v4789, %v4790
      %v4793 = vshrl.u32 %v2021, 16
      %v4795 = vrot.slane %v4793, 7
      %v4796 = vshll.u32 %v2021, 16
      %v4798 = vor.u32 %v4795, %v4796
      %v4799 = vshrl.u32 %v2022, 16
      %v4801 = vrot.slane %v4799, 7
      %v4802 = vshll.u32 %v2022, 16
      %v4804 = vor.u32 %v4801, %v4802
      %v4805 = vshrl.u32 %v2023, 16
      %v4807 = vrot.slane %v4805, 7
      %v4808 = vshll.u32 %v2023, 16
      %v4810 = vor.u32 %v4807, %v4808
      %v4811 = vshrl.u32 %v2024, 16
      %v4813 = vrot.slane %v4811, 7
      %v4814 = vshll.u32 %v2024, 16
      %v4816 = vor.u32 %v4813, %v4814
      %v4817 = vshrl.u32 %v2025, 16
      %v4819 = vrot.slane %v4817, 7
      %v4820 = vshll.u32 %v2025, 16
      %v4822 = vor.u32 %v4819, %v4820
      %v4823 = vshrl.u32 %v2026, 16
      %v4825 = vrot.slane %v4823, 7
      %v4826 = vshll.u32 %v2026, 16
      %v4828 = vor.u32 %v4825, %v4826
      %v4829 = vshrl.u32 %v2027, 16
      %v4831 = vrot.slane %v4829, 7
      %v4832 = vshll.u32 %v2027, 16
      %v4834 = vor.u32 %v4831, %v4832
      %v4835 = vshrl.u32 %v2028, 16
      %v4837 = vrot.slane %v4835, 7
      %v4838 = vshll.u32 %v2028, 16
      %v4840 = vor.u32 %v4837, %v4838
      %v4841 = vshrl.u32 %v2029, 16
      %v4843 = vrot.slane %v4841, 7
      %v4844 = vshll.u32 %v2029, 16
      %v4846 = vor.u32 %v4843, %v4844
      %v4847 = vshrl.u32 %v2030, 16
      %v4849 = vrot.slane %v4847, 7
      %v4850 = vshll.u32 %v2030, 16
      %v4852 = vor.u32 %v4849, %v4850
      %v4853 = vshrl.u32 %v2031, 16
      %v4855 = vrot.slane %v4853, 7
      %v4856 = vshll.u32 %v2031, 16
      %v4858 = vor.u32 %v4855, %v4856
      %v4859 = vshrl.u32 %v2032, 16
      %v4861 = vrot.slane %v4859, 7
      %v4862 = vshll.u32 %v2032, 16
      %v4864 = vor.u32 %v4861, %v4862
      %v4865 = vshrl.u32 %v2033, 16
      %v4867 = vrot.slane %v4865, 7
      %v4868 = vshll.u32 %v2033, 16
      %v4870 = vor.u32 %v4867, %v4868
      %v4871 = vshrl.u32 %v2034, 16
      %v4873 = vrot.slane %v4871, 7
      %v4874 = vshll.u32 %v2034, 16
      %v4876 = vor.u32 %v4873, %v4874
      %vm4911 = vcmask 1040384
      %vm4912 = vsmask.f32 256
      %vm4913 = vmand %vm4911, %vm4912
      %v4914 = vsel %vm4913, 0, %v4780
      %v4915 = vsel %vm4913, 0, %v4786
      %v4916 = vsel %vm4913, 0, %v4792
      %v4917 = vsel %vm4913, 0, %v4798
      %v4918 = vsel %vm4913, 0, %v4804
      %v4919 = vsel %vm4913, 0, %v4810
      %v4920 = vsel %vm4913, 0, %v4816
      %v4921 = vsel %vm4913, 0, %v4822
      %v4922 = vsel %vm4913, 0, %v4828
      %v4923 = vsel %vm4913, 0, %v4834
      %v4924 = vsel %vm4913, 0, %v4840
      %v4925 = vsel %vm4913, 0, %v4846
      %v4926 = vsel %vm4913, 0, %v4852
      %v4927 = vsel %vm4913, 0, %v4858
      %v4928 = vsel %vm4913, 0, %v4864
      %v4929 = vsel %vm4913, 0, %v4870
      %v4930 = vsel %vm4913, 0, %v4876
      %v4931 = vsel %vm4913, %v4777, 0
      %v4932 = vsel %vm4913, %v4783, 0
      %v4933 = vsel %vm4913, %v4789, 0
      %v4934 = vsel %vm4913, %v4795, 0
      %v4935 = vsel %vm4913, %v4801, 0
      %v4936 = vsel %vm4913, %v4807, 0
      %v4937 = vsel %vm4913, %v4813, 0
      %v4938 = vsel %vm4913, %v4819, 0
      %v4939 = vsel %vm4913, %v4825, 0
      %v4940 = vsel %vm4913, %v4831, 0
      %v4941 = vsel %vm4913, %v4837, 0
      %v4942 = vsel %vm4913, %v4843, 0
      %v4943 = vsel %vm4913, %v4849, 0
      %v4944 = vsel %vm4913, %v4855, 0
      %v4945 = vsel %vm4913, %v4861, 0
      %v4946 = vsel %vm4913, %v4867, 0
      %v4947 = vsel %vm4913, %v4873, 0
      %v4966 = vcombine.high %v4914, %v4914
      %v4968 = vunpack.c.l.s4 1966171168
      %v4969 = vunpack.c.0.s8 %v4968
      %v4970 = vlaneseq
      %v4971 = vshrl.u32 %v4970, 7
      %v4972 = vsub.s32 %v4969, %v4971
      %v4973 = vrot.slane %v4914, %v4972
      %v4975 = vunpack.c.l.s4 1966171168
      %v4976 = vunpack.c.0.s8 %v4975
      %v4977 = vlaneseq
      %v4978 = vshrl.u32 %v4977, 7
      %v4979 = vsub.s32 %v4976, %v4978
      %v4980 = vrot.slane %v4966, %v4979
      %v4981 = vcombine.high %v4973, %v4973
      %v4982 = vcombine.high %v4980, %v4980
      %v4984 = vunpack.c.l.s4 1966171168
      %v4985 = vunpack.c.0.s8 %v4984
      %v4986 = vlaneseq
      %v4987 = vshrl.u32 %v4986, 7
      %v4988 = vsub.s32 %v4985, %v4987
      %v4989 = vrot.slane %v4973, %v4988
      %v4991 = vunpack.c.l.s4 1966171168
      %v4992 = vunpack.c.0.s8 %v4991
      %v4993 = vlaneseq
      %v4994 = vshrl.u32 %v4993, 7
      %v4995 = vsub.s32 %v4992, %v4994
      %v4996 = vrot.slane %v4980, %v4995
      %v4998 = vunpack.c.l.s4 1966171168
      %v4999 = vunpack.c.0.s8 %v4998
      %v5000 = vlaneseq
      %v5001 = vshrl.u32 %v5000, 7
      %v5002 = vsub.s32 %v4999, %v5001
      %v5003 = vrot.slane %v4981, %v5002
      %v5005 = vunpack.c.l.s4 1966171168
      %v5006 = vunpack.c.0.s8 %v5005
      %v5007 = vlaneseq
      %v5008 = vshrl.u32 %v5007, 7
      %v5009 = vsub.s32 %v5006, %v5008
      %v5010 = vrot.slane %v4982, %v5009
      %v5011 = vcombine.high %v4989, %v4989
      %v5012 = vcombine.high %v4996, %v4996
      %v5013 = vcombine.high %v5003, %v5003
      %v5014 = vcombine.high %v5010, %v5010
      %v5016 = vunpack.c.l.s4 1966171168
      %v5017 = vunpack.c.0.s8 %v5016
      %v5018 = vlaneseq
      %v5019 = vshrl.u32 %v5018, 7
      %v5020 = vsub.s32 %v5017, %v5019
      %v5021 = vrot.slane %v4931, %v5020
      %v5023 = vunpack.c.l.s4 1966171168
      %v5024 = vunpack.c.0.s8 %v5023
      %v5025 = vlaneseq
      %v5026 = vshrl.u32 %v5025, 7
      %v5027 = vsub.s32 %v5024, %v5026
      %v5028 = vrot.slane %v5021, %v5027
      %v5029 = vcombine.high %v4916, %v4916
      %v5031 = vunpack.c.l.s4 1966171168
      %v5032 = vunpack.c.0.s8 %v5031
      %v5033 = vlaneseq
      %v5034 = vshrl.u32 %v5033, 7
      %v5035 = vsub.s32 %v5032, %v5034
      %v5036 = vrot.slane %v4916, %v5035
      %v5038 = vunpack.c.l.s4 1966171168
      %v5039 = vunpack.c.0.s8 %v5038
      %v5040 = vlaneseq
      %v5041 = vshrl.u32 %v5040, 7
      %v5042 = vsub.s32 %v5039, %v5041
      %v5043 = vrot.slane %v5029, %v5042
      %v5044 = vcombine.high %v5036, %v5036
      %v5045 = vcombine.high %v5043, %v5043
      %v5047 = vunpack.c.l.s4 1966171168
      %v5048 = vunpack.c.0.s8 %v5047
      %v5049 = vlaneseq
      %v5050 = vshrl.u32 %v5049, 7
      %v5051 = vsub.s32 %v5048, %v5050
      %v5052 = vrot.slane %v5036, %v5051
      %v5054 = vunpack.c.l.s4 1966171168
      %v5055 = vunpack.c.0.s8 %v5054
      %v5056 = vlaneseq
      %v5057 = vshrl.u32 %v5056, 7
      %v5058 = vsub.s32 %v5055, %v5057
      %v5059 = vrot.slane %v5043, %v5058
      %v5061 = vunpack.c.l.s4 1966171168
      %v5062 = vunpack.c.0.s8 %v5061
      %v5063 = vlaneseq
      %v5064 = vshrl.u32 %v5063, 7
      %v5065 = vsub.s32 %v5062, %v5064
      %v5066 = vrot.slane %v5044, %v5065
      %v5068 = vunpack.c.l.s4 1966171168
      %v5069 = vunpack.c.0.s8 %v5068
      %v5070 = vlaneseq
      %v5071 = vshrl.u32 %v5070, 7
      %v5072 = vsub.s32 %v5069, %v5071
      %v5073 = vrot.slane %v5045, %v5072
      %v5074 = vcombine.high %v5052, %v5052
      %v5075 = vcombine.high %v5059, %v5059
      %v5076 = vcombine.high %v5066, %v5066
      %v5077 = vcombine.high %v5073, %v5073
      %v5079 = vunpack.c.l.s4 1966171168
      %v5080 = vunpack.c.0.s8 %v5079
      %v5081 = vlaneseq
      %v5082 = vshrl.u32 %v5081, 7
      %v5083 = vsub.s32 %v5080, %v5082
      %v5084 = vrot.slane %v4933, %v5083
      %v5086 = vunpack.c.l.s4 1966171168
      %v5087 = vunpack.c.0.s8 %v5086
      %v5088 = vlaneseq
      %v5089 = vshrl.u32 %v5088, 7
      %v5090 = vsub.s32 %v5087, %v5089
      %v5091 = vrot.slane %v5084, %v5090
      %v5092 = vcombine.high %v4918, %v4918
      %v5094 = vunpack.c.l.s4 1966171168
      %v5095 = vunpack.c.0.s8 %v5094
      %v5096 = vlaneseq
      %v5097 = vshrl.u32 %v5096, 7
      %v5098 = vsub.s32 %v5095, %v5097
      %v5099 = vrot.slane %v4918, %v5098
      %v5101 = vunpack.c.l.s4 1966171168
      %v5102 = vunpack.c.0.s8 %v5101
      %v5103 = vlaneseq
      %v5104 = vshrl.u32 %v5103, 7
      %v5105 = vsub.s32 %v5102, %v5104
      %v5106 = vrot.slane %v5092, %v5105
      %v5107 = vcombine.high %v5099, %v5099
      %v5108 = vcombine.high %v5106, %v5106
      %v5110 = vunpack.c.l.s4 1966171168
      %v5111 = vunpack.c.0.s8 %v5110
      %v5112 = vlaneseq
      %v5113 = vshrl.u32 %v5112, 7
      %v5114 = vsub.s32 %v5111, %v5113
      %v5115 = vrot.slane %v5099, %v5114
      %v5117 = vunpack.c.l.s4 1966171168
      %v5118 = vunpack.c.0.s8 %v5117
      %v5119 = vlaneseq
      %v5120 = vshrl.u32 %v5119, 7
      %v5121 = vsub.s32 %v5118, %v5120
      %v5122 = vrot.slane %v5106, %v5121
      %v5124 = vunpack.c.l.s4 1966171168
      %v5125 = vunpack.c.0.s8 %v5124
      %v5126 = vlaneseq
      %v5127 = vshrl.u32 %v5126, 7
      %v5128 = vsub.s32 %v5125, %v5127
      %v5129 = vrot.slane %v5107, %v5128
      %v5131 = vunpack.c.l.s4 1966171168
      %v5132 = vunpack.c.0.s8 %v5131
      %v5133 = vlaneseq
      %v5134 = vshrl.u32 %v5133, 7
      %v5135 = vsub.s32 %v5132, %v5134
      %v5136 = vrot.slane %v5108, %v5135
      %v5137 = vcombine.high %v5115, %v5115
      %v5138 = vcombine.high %v5122, %v5122
      %v5139 = vcombine.high %v5129, %v5129
      %v5140 = vcombine.high %v5136, %v5136
      %v5142 = vunpack.c.l.s4 1966171168
      %v5143 = vunpack.c.0.s8 %v5142
      %v5144 = vlaneseq
      %v5145 = vshrl.u32 %v5144, 7
      %v5146 = vsub.s32 %v5143, %v5145
      %v5147 = vrot.slane %v4935, %v5146
      %v5149 = vunpack.c.l.s4 1966171168
      %v5150 = vunpack.c.0.s8 %v5149
      %v5151 = vlaneseq
      %v5152 = vshrl.u32 %v5151, 7
      %v5153 = vsub.s32 %v5150, %v5152
      %v5154 = vrot.slane %v5147, %v5153
      %v5155 = vcombine.high %v4920, %v4920
      %v5157 = vunpack.c.l.s4 1966171168
      %v5158 = vunpack.c.0.s8 %v5157
      %v5159 = vlaneseq
      %v5160 = vshrl.u32 %v5159, 7
      %v5161 = vsub.s32 %v5158, %v5160
      %v5162 = vrot.slane %v4920, %v5161
      %v5164 = vunpack.c.l.s4 1966171168
      %v5165 = vunpack.c.0.s8 %v5164
      %v5166 = vlaneseq
      %v5167 = vshrl.u32 %v5166, 7
      %v5168 = vsub.s32 %v5165, %v5167
      %v5169 = vrot.slane %v5155, %v5168
      %v5170 = vcombine.high %v5162, %v5162
      %v5171 = vcombine.high %v5169, %v5169
      %v5173 = vunpack.c.l.s4 1966171168
      %v5174 = vunpack.c.0.s8 %v5173
      %v5175 = vlaneseq
      %v5176 = vshrl.u32 %v5175, 7
      %v5177 = vsub.s32 %v5174, %v5176
      %v5178 = vrot.slane %v5162, %v5177
      %v5180 = vunpack.c.l.s4 1966171168
      %v5181 = vunpack.c.0.s8 %v5180
      %v5182 = vlaneseq
      %v5183 = vshrl.u32 %v5182, 7
      %v5184 = vsub.s32 %v5181, %v5183
      %v5185 = vrot.slane %v5169, %v5184
      %v5187 = vunpack.c.l.s4 1966171168
      %v5188 = vunpack.c.0.s8 %v5187
      %v5189 = vlaneseq
      %v5190 = vshrl.u32 %v5189, 7
      %v5191 = vsub.s32 %v5188, %v5190
      %v5192 = vrot.slane %v5170, %v5191
      %v5194 = vunpack.c.l.s4 1966171168
      %v5195 = vunpack.c.0.s8 %v5194
      %v5196 = vlaneseq
      %v5197 = vshrl.u32 %v5196, 7
      %v5198 = vsub.s32 %v5195, %v5197
      %v5199 = vrot.slane %v5171, %v5198
      %v5200 = vcombine.high %v5178, %v5178
      %v5201 = vcombine.high %v5185, %v5185
      %v5202 = vcombine.high %v5192, %v5192
      %v5203 = vcombine.high %v5199, %v5199
      %v5205 = vunpack.c.l.s4 1966171168
      %v5206 = vunpack.c.0.s8 %v5205
      %v5207 = vlaneseq
      %v5208 = vshrl.u32 %v5207, 7
      %v5209 = vsub.s32 %v5206, %v5208
      %v5210 = vrot.slane %v4937, %v5209
      %v5212 = vunpack.c.l.s4 1966171168
      %v5213 = vunpack.c.0.s8 %v5212
      %v5214 = vlaneseq
      %v5215 = vshrl.u32 %v5214, 7
      %v5216 = vsub.s32 %v5213, %v5215
      %v5217 = vrot.slane %v5210, %v5216
      %v5218 = vcombine.high %v4922, %v4922
      %v5220 = vunpack.c.l.s4 1966171168
      %v5221 = vunpack.c.0.s8 %v5220
      %v5222 = vlaneseq
      %v5223 = vshrl.u32 %v5222, 7
      %v5224 = vsub.s32 %v5221, %v5223
      %v5225 = vrot.slane %v4922, %v5224
      %v5227 = vunpack.c.l.s4 1966171168
      %v5228 = vunpack.c.0.s8 %v5227
      %v5229 = vlaneseq
      %v5230 = vshrl.u32 %v5229, 7
      %v5231 = vsub.s32 %v5228, %v5230
      %v5232 = vrot.slane %v5218, %v5231
      %v5233 = vcombine.high %v5225, %v5225
      %v5234 = vcombine.high %v5232, %v5232
      %v5236 = vunpack.c.l.s4 1966171168
      %v5237 = vunpack.c.0.s8 %v5236
      %v5238 = vlaneseq
      %v5239 = vshrl.u32 %v5238, 7
      %v5240 = vsub.s32 %v5237, %v5239
      %v5241 = vrot.slane %v5225, %v5240
      %v5243 = vunpack.c.l.s4 1966171168
      %v5244 = vunpack.c.0.s8 %v5243
      %v5245 = vlaneseq
      %v5246 = vshrl.u32 %v5245, 7
      %v5247 = vsub.s32 %v5244, %v5246
      %v5248 = vrot.slane %v5232, %v5247
      %v5250 = vunpack.c.l.s4 1966171168
      %v5251 = vunpack.c.0.s8 %v5250
      %v5252 = vlaneseq
      %v5253 = vshrl.u32 %v5252, 7
      %v5254 = vsub.s32 %v5251, %v5253
      %v5255 = vrot.slane %v5233, %v5254
      %v5257 = vunpack.c.l.s4 1966171168
      %v5258 = vunpack.c.0.s8 %v5257
      %v5259 = vlaneseq
      %v5260 = vshrl.u32 %v5259, 7
      %v5261 = vsub.s32 %v5258, %v5260
      %v5262 = vrot.slane %v5234, %v5261
      %v5263 = vcombine.high %v5241, %v5241
      %v5264 = vcombine.high %v5248, %v5248
      %v5265 = vcombine.high %v5255, %v5255
      %v5266 = vcombine.high %v5262, %v5262
      %v5268 = vunpack.c.l.s4 1966171168
      %v5269 = vunpack.c.0.s8 %v5268
      %v5270 = vlaneseq
      %v5271 = vshrl.u32 %v5270, 7
      %v5272 = vsub.s32 %v5269, %v5271
      %v5273 = vrot.slane %v4939, %v5272
      %v5275 = vunpack.c.l.s4 1966171168
      %v5276 = vunpack.c.0.s8 %v5275
      %v5277 = vlaneseq
      %v5278 = vshrl.u32 %v5277, 7
      %v5279 = vsub.s32 %v5276, %v5278
      %v5280 = vrot.slane %v5273, %v5279
      %v5281 = vcombine.high %v4924, %v4924
      %v5283 = vunpack.c.l.s4 1966171168
      %v5284 = vunpack.c.0.s8 %v5283
      %v5285 = vlaneseq
      %v5286 = vshrl.u32 %v5285, 7
      %v5287 = vsub.s32 %v5284, %v5286
      %v5288 = vrot.slane %v4924, %v5287
      %v5290 = vunpack.c.l.s4 1966171168
      %v5291 = vunpack.c.0.s8 %v5290
      %v5292 = vlaneseq
      %v5293 = vshrl.u32 %v5292, 7
      %v5294 = vsub.s32 %v5291, %v5293
      %v5295 = vrot.slane %v5281, %v5294
      %v5296 = vcombine.high %v5288, %v5288
      %v5297 = vcombine.high %v5295, %v5295
      %v5299 = vunpack.c.l.s4 1966171168
      %v5300 = vunpack.c.0.s8 %v5299
      %v5301 = vlaneseq
      %v5302 = vshrl.u32 %v5301, 7
      %v5303 = vsub.s32 %v5300, %v5302
      %v5304 = vrot.slane %v5288, %v5303
      %v5306 = vunpack.c.l.s4 1966171168
      %v5307 = vunpack.c.0.s8 %v5306
      %v5308 = vlaneseq
      %v5309 = vshrl.u32 %v5308, 7
      %v5310 = vsub.s32 %v5307, %v5309
      %v5311 = vrot.slane %v5295, %v5310
      %v5313 = vunpack.c.l.s4 1966171168
      %v5314 = vunpack.c.0.s8 %v5313
      %v5315 = vlaneseq
      %v5316 = vshrl.u32 %v5315, 7
      %v5317 = vsub.s32 %v5314, %v5316
      %v5318 = vrot.slane %v5296, %v5317
      %v5320 = vunpack.c.l.s4 1966171168
      %v5321 = vunpack.c.0.s8 %v5320
      %v5322 = vlaneseq
      %v5323 = vshrl.u32 %v5322, 7
      %v5324 = vsub.s32 %v5321, %v5323
      %v5325 = vrot.slane %v5297, %v5324
      %v5326 = vcombine.high %v5304, %v5304
      %v5327 = vcombine.high %v5311, %v5311
      %v5328 = vcombine.high %v5318, %v5318
      %v5329 = vcombine.high %v5325, %v5325
      %v5331 = vunpack.c.l.s4 1966171168
      %v5332 = vunpack.c.0.s8 %v5331
      %v5333 = vlaneseq
      %v5334 = vshrl.u32 %v5333, 7
      %v5335 = vsub.s32 %v5332, %v5334
      %v5336 = vrot.slane %v4941, %v5335
      %v5338 = vunpack.c.l.s4 1966171168
      %v5339 = vunpack.c.0.s8 %v5338
      %v5340 = vlaneseq
      %v5341 = vshrl.u32 %v5340, 7
      %v5342 = vsub.s32 %v5339, %v5341
      %v5343 = vrot.slane %v5336, %v5342
      %v5344 = vcombine.high %v4926, %v4926
      %v5346 = vunpack.c.l.s4 1966171168
      %v5347 = vunpack.c.0.s8 %v5346
      %v5348 = vlaneseq
      %v5349 = vshrl.u32 %v5348, 7
      %v5350 = vsub.s32 %v5347, %v5349
      %v5351 = vrot.slane %v4926, %v5350
      %v5353 = vunpack.c.l.s4 1966171168
      %v5354 = vunpack.c.0.s8 %v5353
      %v5355 = vlaneseq
      %v5356 = vshrl.u32 %v5355, 7
      %v5357 = vsub.s32 %v5354, %v5356
      %v5358 = vrot.slane %v5344, %v5357
      %v5359 = vcombine.high %v5351, %v5351
      %v5360 = vcombine.high %v5358, %v5358
      %v5362 = vunpack.c.l.s4 1966171168
      %v5363 = vunpack.c.0.s8 %v5362
      %v5364 = vlaneseq
      %v5365 = vshrl.u32 %v5364, 7
      %v5366 = vsub.s32 %v5363, %v5365
      %v5367 = vrot.slane %v5351, %v5366
      %v5369 = vunpack.c.l.s4 1966171168
      %v5370 = vunpack.c.0.s8 %v5369
      %v5371 = vlaneseq
      %v5372 = vshrl.u32 %v5371, 7
      %v5373 = vsub.s32 %v5370, %v5372
      %v5374 = vrot.slane %v5358, %v5373
      %v5376 = vunpack.c.l.s4 1966171168
      %v5377 = vunpack.c.0.s8 %v5376
      %v5378 = vlaneseq
      %v5379 = vshrl.u32 %v5378, 7
      %v5380 = vsub.s32 %v5377, %v5379
      %v5381 = vrot.slane %v5359, %v5380
      %v5383 = vunpack.c.l.s4 1966171168
      %v5384 = vunpack.c.0.s8 %v5383
      %v5385 = vlaneseq
      %v5386 = vshrl.u32 %v5385, 7
      %v5387 = vsub.s32 %v5384, %v5386
      %v5388 = vrot.slane %v5360, %v5387
      %v5389 = vcombine.high %v5367, %v5367
      %v5390 = vcombine.high %v5374, %v5374
      %v5391 = vcombine.high %v5381, %v5381
      %v5392 = vcombine.high %v5388, %v5388
      %v5394 = vunpack.c.l.s4 1966171168
      %v5395 = vunpack.c.0.s8 %v5394
      %v5396 = vlaneseq
      %v5397 = vshrl.u32 %v5396, 7
      %v5398 = vsub.s32 %v5395, %v5397
      %v5399 = vrot.slane %v4943, %v5398
      %v5401 = vunpack.c.l.s4 1966171168
      %v5402 = vunpack.c.0.s8 %v5401
      %v5403 = vlaneseq
      %v5404 = vshrl.u32 %v5403, 7
      %v5405 = vsub.s32 %v5402, %v5404
      %v5406 = vrot.slane %v5399, %v5405
      %v5407 = vcombine.high %v4928, %v4928
      %v5409 = vunpack.c.l.s4 1966171168
      %v5410 = vunpack.c.0.s8 %v5409
      %v5411 = vlaneseq
      %v5412 = vshrl.u32 %v5411, 7
      %v5413 = vsub.s32 %v5410, %v5412
      %v5414 = vrot.slane %v4928, %v5413
      %v5416 = vunpack.c.l.s4 1966171168
      %v5417 = vunpack.c.0.s8 %v5416
      %v5418 = vlaneseq
      %v5419 = vshrl.u32 %v5418, 7
      %v5420 = vsub.s32 %v5417, %v5419
      %v5421 = vrot.slane %v5407, %v5420
      %v5422 = vcombine.high %v5414, %v5414
      %v5423 = vcombine.high %v5421, %v5421
      %v5425 = vunpack.c.l.s4 1966171168
      %v5426 = vunpack.c.0.s8 %v5425
      %v5427 = vlaneseq
      %v5428 = vshrl.u32 %v5427, 7
      %v5429 = vsub.s32 %v5426, %v5428
      %v5430 = vrot.slane %v5414, %v5429
      %v5432 = vunpack.c.l.s4 1966171168
      %v5433 = vunpack.c.0.s8 %v5432
      %v5434 = vlaneseq
      %v5435 = vshrl.u32 %v5434, 7
      %v5436 = vsub.s32 %v5433, %v5435
      %v5437 = vrot.slane %v5421, %v5436
      %v5439 = vunpack.c.l.s4 1966171168
      %v5440 = vunpack.c.0.s8 %v5439
      %v5441 = vlaneseq
      %v5442 = vshrl.u32 %v5441, 7
      %v5443 = vsub.s32 %v5440, %v5442
      %v5444 = vrot.slane %v5422, %v5443
      %v5446 = vunpack.c.l.s4 1966171168
      %v5447 = vunpack.c.0.s8 %v5446
      %v5448 = vlaneseq
      %v5449 = vshrl.u32 %v5448, 7
      %v5450 = vsub.s32 %v5447, %v5449
      %v5451 = vrot.slane %v5423, %v5450
      %v5452 = vcombine.high %v5430, %v5430
      %v5453 = vcombine.high %v5437, %v5437
      %v5454 = vcombine.high %v5444, %v5444
      %v5455 = vcombine.high %v5451, %v5451
      %v5457 = vunpack.c.l.s4 1966171168
      %v5458 = vunpack.c.0.s8 %v5457
      %v5459 = vlaneseq
      %v5460 = vshrl.u32 %v5459, 7
      %v5461 = vsub.s32 %v5458, %v5460
      %v5462 = vrot.slane %v4945, %v5461
      %v5464 = vunpack.c.l.s4 1966171168
      %v5465 = vunpack.c.0.s8 %v5464
      %v5466 = vlaneseq
      %v5467 = vshrl.u32 %v5466, 7
      %v5468 = vsub.s32 %v5465, %v5467
      %v5469 = vrot.slane %v5462, %v5468
      %v5470 = vcombine.high %v4930, %v4930
      %v5472 = vunpack.c.l.s4 1966171168
      %v5473 = vunpack.c.0.s8 %v5472
      %v5474 = vlaneseq
      %v5475 = vshrl.u32 %v5474, 7
      %v5476 = vsub.s32 %v5473, %v5475
      %v5477 = vrot.slane %v4930, %v5476
      %v5479 = vunpack.c.l.s4 1966171168
      %v5480 = vunpack.c.0.s8 %v5479
      %v5481 = vlaneseq
      %v5482 = vshrl.u32 %v5481, 7
      %v5483 = vsub.s32 %v5480, %v5482
      %v5484 = vrot.slane %v5470, %v5483
      %v5485 = vcombine.high %v5477, %v5477
      %v5486 = vcombine.high %v5484, %v5484
      %v5488 = vunpack.c.l.s4 1966171168
      %v5489 = vunpack.c.0.s8 %v5488
      %v5490 = vlaneseq
      %v5491 = vshrl.u32 %v5490, 7
      %v5492 = vsub.s32 %v5489, %v5491
      %v5493 = vrot.slane %v5477, %v5492
      %v5495 = vunpack.c.l.s4 1966171168
      %v5496 = vunpack.c.0.s8 %v5495
      %v5497 = vlaneseq
      %v5498 = vshrl.u32 %v5497, 7
      %v5499 = vsub.s32 %v5496, %v5498
      %v5500 = vrot.slane %v5484, %v5499
      %v5502 = vunpack.c.l.s4 1966171168
      %v5503 = vunpack.c.0.s8 %v5502
      %v5504 = vlaneseq
      %v5505 = vshrl.u32 %v5504, 7
      %v5506 = vsub.s32 %v5503, %v5505
      %v5507 = vrot.slane %v5485, %v5506
      %v5509 = vunpack.c.l.s4 1966171168
      %v5510 = vunpack.c.0.s8 %v5509
      %v5511 = vlaneseq
      %v5512 = vshrl.u32 %v5511, 7
      %v5513 = vsub.s32 %v5510, %v5512
      %v5514 = vrot.slane %v5486, %v5513
      %v5515 = vcombine.high %v5493, %v5493
      %v5516 = vcombine.high %v5500, %v5500
      %v5517 = vcombine.high %v5507, %v5507
      %v5518 = vcombine.high %v5514, %v5514
      %v5520 = vunpack.c.l.s4 1966171168
      %v5521 = vunpack.c.0.s8 %v5520
      %v5522 = vlaneseq
      %v5523 = vshrl.u32 %v5522, 7
      %v5524 = vsub.s32 %v5521, %v5523
      %v5525 = vrot.slane %v4947, %v5524
      %v5527 = vunpack.c.l.s4 1966171168
      %v5528 = vunpack.c.0.s8 %v5527
      %v5529 = vlaneseq
      %v5530 = vshrl.u32 %v5529, 7
      %v5531 = vsub.s32 %v5528, %v5530
      %v5532 = vrot.slane %v5525, %v5531
      %v5549 = vcombine.high %v4915, %v4915
      %v5551 = vunpack.c.l.s4 1966171168
      %v5552 = vunpack.c.0.s8 %v5551
      %v5553 = vlaneseq
      %v5554 = vshrl.u32 %v5553, 7
      %v5555 = vsub.s32 %v5552, %v5554
      %v5556 = vrot.slane %v4915, %v5555
      %v5558 = vunpack.c.l.s4 1966171168
      %v5559 = vunpack.c.0.s8 %v5558
      %v5560 = vlaneseq
      %v5561 = vshrl.u32 %v5560, 7
      %v5562 = vsub.s32 %v5559, %v5561
      %v5563 = vrot.slane %v5549, %v5562
      %v5564 = vcombine.high %v5556, %v5556
      %v5565 = vcombine.high %v5563, %v5563
      %v5567 = vunpack.c.l.s4 1966171168
      %v5568 = vunpack.c.0.s8 %v5567
      %v5569 = vlaneseq
      %v5570 = vshrl.u32 %v5569, 7
      %v5571 = vsub.s32 %v5568, %v5570
      %v5572 = vrot.slane %v5556, %v5571
      %v5574 = vunpack.c.l.s4 1966171168
      %v5575 = vunpack.c.0.s8 %v5574
      %v5576 = vlaneseq
      %v5577 = vshrl.u32 %v5576, 7
      %v5578 = vsub.s32 %v5575, %v5577
      %v5579 = vrot.slane %v5563, %v5578
      %v5581 = vunpack.c.l.s4 1966171168
      %v5582 = vunpack.c.0.s8 %v5581
      %v5583 = vlaneseq
      %v5584 = vshrl.u32 %v5583, 7
      %v5585 = vsub.s32 %v5582, %v5584
      %v5586 = vrot.slane %v5564, %v5585
      %v5588 = vunpack.c.l.s4 1966171168
      %v5589 = vunpack.c.0.s8 %v5588
      %v5590 = vlaneseq
      %v5591 = vshrl.u32 %v5590, 7
      %v5592 = vsub.s32 %v5589, %v5591
      %v5593 = vrot.slane %v5565, %v5592
      %v5594 = vcombine.high %v5572, %v5572
      %v5595 = vcombine.high %v5579, %v5579
      %v5596 = vcombine.high %v5586, %v5586
      %v5597 = vcombine.high %v5593, %v5593
      %v5599 = vunpack.c.l.s4 1966171168
      %v5600 = vunpack.c.0.s8 %v5599
      %v5601 = vlaneseq
      %v5602 = vshrl.u32 %v5601, 7
      %v5603 = vsub.s32 %v5600, %v5602
      %v5604 = vrot.slane %v4932, %v5603
      %v5606 = vunpack.c.l.s4 1966171168
      %v5607 = vunpack.c.0.s8 %v5606
      %v5608 = vlaneseq
      %v5609 = vshrl.u32 %v5608, 7
      %v5610 = vsub.s32 %v5607, %v5609
      %v5611 = vrot.slane %v5604, %v5610
      %v5612 = vcombine.high %v4917, %v4917
      %v5614 = vunpack.c.l.s4 1966171168
      %v5615 = vunpack.c.0.s8 %v5614
      %v5616 = vlaneseq
      %v5617 = vshrl.u32 %v5616, 7
      %v5618 = vsub.s32 %v5615, %v5617
      %v5619 = vrot.slane %v4917, %v5618
      %v5621 = vunpack.c.l.s4 1966171168
      %v5622 = vunpack.c.0.s8 %v5621
      %v5623 = vlaneseq
      %v5624 = vshrl.u32 %v5623, 7
      %v5625 = vsub.s32 %v5622, %v5624
      %v5626 = vrot.slane %v5612, %v5625
      %v5627 = vcombine.high %v5619, %v5619
      %v5628 = vcombine.high %v5626, %v5626
      %v5630 = vunpack.c.l.s4 1966171168
      %v5631 = vunpack.c.0.s8 %v5630
      %v5632 = vlaneseq
      %v5633 = vshrl.u32 %v5632, 7
      %v5634 = vsub.s32 %v5631, %v5633
      %v5635 = vrot.slane %v5619, %v5634
      %v5637 = vunpack.c.l.s4 1966171168
      %v5638 = vunpack.c.0.s8 %v5637
      %v5639 = vlaneseq
      %v5640 = vshrl.u32 %v5639, 7
      %v5641 = vsub.s32 %v5638, %v5640
      %v5642 = vrot.slane %v5626, %v5641
      %v5644 = vunpack.c.l.s4 1966171168
      %v5645 = vunpack.c.0.s8 %v5644
      %v5646 = vlaneseq
      %v5647 = vshrl.u32 %v5646, 7
      %v5648 = vsub.s32 %v5645, %v5647
      %v5649 = vrot.slane %v5627, %v5648
      %v5651 = vunpack.c.l.s4 1966171168
      %v5652 = vunpack.c.0.s8 %v5651
      %v5653 = vlaneseq
      %v5654 = vshrl.u32 %v5653, 7
      %v5655 = vsub.s32 %v5652, %v5654
      %v5656 = vrot.slane %v5628, %v5655
      %v5657 = vcombine.high %v5635, %v5635
      %v5658 = vcombine.high %v5642, %v5642
      %v5659 = vcombine.high %v5649, %v5649
      %v5660 = vcombine.high %v5656, %v5656
      %v5662 = vunpack.c.l.s4 1966171168
      %v5663 = vunpack.c.0.s8 %v5662
      %v5664 = vlaneseq
      %v5665 = vshrl.u32 %v5664, 7
      %v5666 = vsub.s32 %v5663, %v5665
      %v5667 = vrot.slane %v4934, %v5666
      %v5669 = vunpack.c.l.s4 1966171168
      %v5670 = vunpack.c.0.s8 %v5669
      %v5671 = vlaneseq
      %v5672 = vshrl.u32 %v5671, 7
      %v5673 = vsub.s32 %v5670, %v5672
      %v5674 = vrot.slane %v5667, %v5673
      %v5675 = vcombine.high %v4919, %v4919
      %v5677 = vunpack.c.l.s4 1966171168
      %v5678 = vunpack.c.0.s8 %v5677
      %v5679 = vlaneseq
      %v5680 = vshrl.u32 %v5679, 7
      %v5681 = vsub.s32 %v5678, %v5680
      %v5682 = vrot.slane %v4919, %v5681
      %v5684 = vunpack.c.l.s4 1966171168
      %v5685 = vunpack.c.0.s8 %v5684
      %v5686 = vlaneseq
      %v5687 = vshrl.u32 %v5686, 7
      %v5688 = vsub.s32 %v5685, %v5687
      %v5689 = vrot.slane %v5675, %v5688
      %v5690 = vcombine.high %v5682, %v5682
      %v5691 = vcombine.high %v5689, %v5689
      %v5693 = vunpack.c.l.s4 1966171168
      %v5694 = vunpack.c.0.s8 %v5693
      %v5695 = vlaneseq
      %v5696 = vshrl.u32 %v5695, 7
      %v5697 = vsub.s32 %v5694, %v5696
      %v5698 = vrot.slane %v5682, %v5697
      %v5700 = vunpack.c.l.s4 1966171168
      %v5701 = vunpack.c.0.s8 %v5700
      %v5702 = vlaneseq
      %v5703 = vshrl.u32 %v5702, 7
      %v5704 = vsub.s32 %v5701, %v5703
      %v5705 = vrot.slane %v5689, %v5704
      %v5707 = vunpack.c.l.s4 1966171168
      %v5708 = vunpack.c.0.s8 %v5707
      %v5709 = vlaneseq
      %v5710 = vshrl.u32 %v5709, 7
      %v5711 = vsub.s32 %v5708, %v5710
      %v5712 = vrot.slane %v5690, %v5711
      %v5714 = vunpack.c.l.s4 1966171168
      %v5715 = vunpack.c.0.s8 %v5714
      %v5716 = vlaneseq
      %v5717 = vshrl.u32 %v5716, 7
      %v5718 = vsub.s32 %v5715, %v5717
      %v5719 = vrot.slane %v5691, %v5718
      %v5720 = vcombine.high %v5698, %v5698
      %v5721 = vcombine.high %v5705, %v5705
      %v5722 = vcombine.high %v5712, %v5712
      %v5723 = vcombine.high %v5719, %v5719
      %v5725 = vunpack.c.l.s4 1966171168
      %v5726 = vunpack.c.0.s8 %v5725
      %v5727 = vlaneseq
      %v5728 = vshrl.u32 %v5727, 7
      %v5729 = vsub.s32 %v5726, %v5728
      %v5730 = vrot.slane %v4936, %v5729
      %v5732 = vunpack.c.l.s4 1966171168
      %v5733 = vunpack.c.0.s8 %v5732
      %v5734 = vlaneseq
      %v5735 = vshrl.u32 %v5734, 7
      %v5736 = vsub.s32 %v5733, %v5735
      %v5737 = vrot.slane %v5730, %v5736
      %v5738 = vcombine.high %v4921, %v4921
      %v5740 = vunpack.c.l.s4 1966171168
      %v5741 = vunpack.c.0.s8 %v5740
      %v5742 = vlaneseq
      %v5743 = vshrl.u32 %v5742, 7
      %v5744 = vsub.s32 %v5741, %v5743
      %v5745 = vrot.slane %v4921, %v5744
      %v5747 = vunpack.c.l.s4 1966171168
      %v5748 = vunpack.c.0.s8 %v5747
      %v5749 = vlaneseq
      %v5750 = vshrl.u32 %v5749, 7
      %v5751 = vsub.s32 %v5748, %v5750
      %v5752 = vrot.slane %v5738, %v5751
      %v5753 = vcombine.high %v5745, %v5745
      %v5754 = vcombine.high %v5752, %v5752
      %v5756 = vunpack.c.l.s4 1966171168
      %v5757 = vunpack.c.0.s8 %v5756
      %v5758 = vlaneseq
      %v5759 = vshrl.u32 %v5758, 7
      %v5760 = vsub.s32 %v5757, %v5759
      %v5761 = vrot.slane %v5745, %v5760
      %v5763 = vunpack.c.l.s4 1966171168
      %v5764 = vunpack.c.0.s8 %v5763
      %v5765 = vlaneseq
      %v5766 = vshrl.u32 %v5765, 7
      %v5767 = vsub.s32 %v5764, %v5766
      %v5768 = vrot.slane %v5752, %v5767
      %v5770 = vunpack.c.l.s4 1966171168
      %v5771 = vunpack.c.0.s8 %v5770
      %v5772 = vlaneseq
      %v5773 = vshrl.u32 %v5772, 7
      %v5774 = vsub.s32 %v5771, %v5773
      %v5775 = vrot.slane %v5753, %v5774
      %v5777 = vunpack.c.l.s4 1966171168
      %v5778 = vunpack.c.0.s8 %v5777
      %v5779 = vlaneseq
      %v5780 = vshrl.u32 %v5779, 7
      %v5781 = vsub.s32 %v5778, %v5780
      %v5782 = vrot.slane %v5754, %v5781
      %v5783 = vcombine.high %v5761, %v5761
      %v5784 = vcombine.high %v5768, %v5768
      %v5785 = vcombine.high %v5775, %v5775
      %v5786 = vcombine.high %v5782, %v5782
      %v5788 = vunpack.c.l.s4 1966171168
      %v5789 = vunpack.c.0.s8 %v5788
      %v5790 = vlaneseq
      %v5791 = vshrl.u32 %v5790, 7
      %v5792 = vsub.s32 %v5789, %v5791
      %v5793 = vrot.slane %v4938, %v5792
      %v5795 = vunpack.c.l.s4 1966171168
      %v5796 = vunpack.c.0.s8 %v5795
      %v5797 = vlaneseq
      %v5798 = vshrl.u32 %v5797, 7
      %v5799 = vsub.s32 %v5796, %v5798
      %v5800 = vrot.slane %v5793, %v5799
      %v5801 = vcombine.high %v4923, %v4923
      %v5803 = vunpack.c.l.s4 1966171168
      %v5804 = vunpack.c.0.s8 %v5803
      %v5805 = vlaneseq
      %v5806 = vshrl.u32 %v5805, 7
      %v5807 = vsub.s32 %v5804, %v5806
      %v5808 = vrot.slane %v4923, %v5807
      %v5810 = vunpack.c.l.s4 1966171168
      %v5811 = vunpack.c.0.s8 %v5810
      %v5812 = vlaneseq
      %v5813 = vshrl.u32 %v5812, 7
      %v5814 = vsub.s32 %v5811, %v5813
      %v5815 = vrot.slane %v5801, %v5814
      %v5816 = vcombine.high %v5808, %v5808
      %v5817 = vcombine.high %v5815, %v5815
      %v5819 = vunpack.c.l.s4 1966171168
      %v5820 = vunpack.c.0.s8 %v5819
      %v5821 = vlaneseq
      %v5822 = vshrl.u32 %v5821, 7
      %v5823 = vsub.s32 %v5820, %v5822
      %v5824 = vrot.slane %v5808, %v5823
      %v5826 = vunpack.c.l.s4 1966171168
      %v5827 = vunpack.c.0.s8 %v5826
      %v5828 = vlaneseq
      %v5829 = vshrl.u32 %v5828, 7
      %v5830 = vsub.s32 %v5827, %v5829
      %v5831 = vrot.slane %v5815, %v5830
      %v5833 = vunpack.c.l.s4 1966171168
      %v5834 = vunpack.c.0.s8 %v5833
      %v5835 = vlaneseq
      %v5836 = vshrl.u32 %v5835, 7
      %v5837 = vsub.s32 %v5834, %v5836
      %v5838 = vrot.slane %v5816, %v5837
      %v5840 = vunpack.c.l.s4 1966171168
      %v5841 = vunpack.c.0.s8 %v5840
      %v5842 = vlaneseq
      %v5843 = vshrl.u32 %v5842, 7
      %v5844 = vsub.s32 %v5841, %v5843
      %v5845 = vrot.slane %v5817, %v5844
      %v5846 = vcombine.high %v5824, %v5824
      %v5847 = vcombine.high %v5831, %v5831
      %v5848 = vcombine.high %v5838, %v5838
      %v5849 = vcombine.high %v5845, %v5845
      %v5851 = vunpack.c.l.s4 1966171168
      %v5852 = vunpack.c.0.s8 %v5851
      %v5853 = vlaneseq
      %v5854 = vshrl.u32 %v5853, 7
      %v5855 = vsub.s32 %v5852, %v5854
      %v5856 = vrot.slane %v4940, %v5855
      %v5858 = vunpack.c.l.s4 1966171168
      %v5859 = vunpack.c.0.s8 %v5858
      %v5860 = vlaneseq
      %v5861 = vshrl.u32 %v5860, 7
      %v5862 = vsub.s32 %v5859, %v5861
      %v5863 = vrot.slane %v5856, %v5862
      %v5864 = vcombine.high %v4925, %v4925
      %v5866 = vunpack.c.l.s4 1966171168
      %v5867 = vunpack.c.0.s8 %v5866
      %v5868 = vlaneseq
      %v5869 = vshrl.u32 %v5868, 7
      %v5870 = vsub.s32 %v5867, %v5869
      %v5871 = vrot.slane %v4925, %v5870
      %v5873 = vunpack.c.l.s4 1966171168
      %v5874 = vunpack.c.0.s8 %v5873
      %v5875 = vlaneseq
      %v5876 = vshrl.u32 %v5875, 7
      %v5877 = vsub.s32 %v5874, %v5876
      %v5878 = vrot.slane %v5864, %v5877
      %v5879 = vcombine.high %v5871, %v5871
      %v5880 = vcombine.high %v5878, %v5878
      %v5882 = vunpack.c.l.s4 1966171168
      %v5883 = vunpack.c.0.s8 %v5882
      %v5884 = vlaneseq
      %v5885 = vshrl.u32 %v5884, 7
      %v5886 = vsub.s32 %v5883, %v5885
      %v5887 = vrot.slane %v5871, %v5886
      %v5889 = vunpack.c.l.s4 1966171168
      %v5890 = vunpack.c.0.s8 %v5889
      %v5891 = vlaneseq
      %v5892 = vshrl.u32 %v5891, 7
      %v5893 = vsub.s32 %v5890, %v5892
      %v5894 = vrot.slane %v5878, %v5893
      %v5896 = vunpack.c.l.s4 1966171168
      %v5897 = vunpack.c.0.s8 %v5896
      %v5898 = vlaneseq
      %v5899 = vshrl.u32 %v5898, 7
      %v5900 = vsub.s32 %v5897, %v5899
      %v5901 = vrot.slane %v5879, %v5900
      %v5903 = vunpack.c.l.s4 1966171168
      %v5904 = vunpack.c.0.s8 %v5903
      %v5905 = vlaneseq
      %v5906 = vshrl.u32 %v5905, 7
      %v5907 = vsub.s32 %v5904, %v5906
      %v5908 = vrot.slane %v5880, %v5907
      %v5909 = vcombine.high %v5887, %v5887
      %v5910 = vcombine.high %v5894, %v5894
      %v5911 = vcombine.high %v5901, %v5901
      %v5912 = vcombine.high %v5908, %v5908
      %v5914 = vunpack.c.l.s4 1966171168
      %v5915 = vunpack.c.0.s8 %v5914
      %v5916 = vlaneseq
      %v5917 = vshrl.u32 %v5916, 7
      %v5918 = vsub.s32 %v5915, %v5917
      %v5919 = vrot.slane %v4942, %v5918
      %v5921 = vunpack.c.l.s4 1966171168
      %v5922 = vunpack.c.0.s8 %v5921
      %v5923 = vlaneseq
      %v5924 = vshrl.u32 %v5923, 7
      %v5925 = vsub.s32 %v5922, %v5924
      %v5926 = vrot.slane %v5919, %v5925
      %v5927 = vcombine.high %v4927, %v4927
      %v5929 = vunpack.c.l.s4 1966171168
      %v5930 = vunpack.c.0.s8 %v5929
      %v5931 = vlaneseq
      %v5932 = vshrl.u32 %v5931, 7
      %v5933 = vsub.s32 %v5930, %v5932
      %v5934 = vrot.slane %v4927, %v5933
      %v5936 = vunpack.c.l.s4 1966171168
      %v5937 = vunpack.c.0.s8 %v5936
      %v5938 = vlaneseq
      %v5939 = vshrl.u32 %v5938, 7
      %v5940 = vsub.s32 %v5937, %v5939
      %v5941 = vrot.slane %v5927, %v5940
      %v5942 = vcombine.high %v5934, %v5934
      %v5943 = vcombine.high %v5941, %v5941
      %v5945 = vunpack.c.l.s4 1966171168
      %v5946 = vunpack.c.0.s8 %v5945
      %v5947 = vlaneseq
      %v5948 = vshrl.u32 %v5947, 7
      %v5949 = vsub.s32 %v5946, %v5948
      %v5950 = vrot.slane %v5934, %v5949
      %v5952 = vunpack.c.l.s4 1966171168
      %v5953 = vunpack.c.0.s8 %v5952
      %v5954 = vlaneseq
      %v5955 = vshrl.u32 %v5954, 7
      %v5956 = vsub.s32 %v5953, %v5955
      %v5957 = vrot.slane %v5941, %v5956
      %v5959 = vunpack.c.l.s4 1966171168
      %v5960 = vunpack.c.0.s8 %v5959
      %v5961 = vlaneseq
      %v5962 = vshrl.u32 %v5961, 7
      %v5963 = vsub.s32 %v5960, %v5962
      %v5964 = vrot.slane %v5942, %v5963
      %v5966 = vunpack.c.l.s4 1966171168
      %v5967 = vunpack.c.0.s8 %v5966
      %v5968 = vlaneseq
      %v5969 = vshrl.u32 %v5968, 7
      %v5970 = vsub.s32 %v5967, %v5969
      %v5971 = vrot.slane %v5943, %v5970
      %v5972 = vcombine.high %v5950, %v5950
      %v5973 = vcombine.high %v5957, %v5957
      %v5974 = vcombine.high %v5964, %v5964
      %v5975 = vcombine.high %v5971, %v5971
      %v5977 = vunpack.c.l.s4 1966171168
      %v5978 = vunpack.c.0.s8 %v5977
      %v5979 = vlaneseq
      %v5980 = vshrl.u32 %v5979, 7
      %v5981 = vsub.s32 %v5978, %v5980
      %v5982 = vrot.slane %v4944, %v5981
      %v5984 = vunpack.c.l.s4 1966171168
      %v5985 = vunpack.c.0.s8 %v5984
      %v5986 = vlaneseq
      %v5987 = vshrl.u32 %v5986, 7
      %v5988 = vsub.s32 %v5985, %v5987
      %v5989 = vrot.slane %v5982, %v5988
      %v5990 = vcombine.high %v4929, %v4929
      %v5992 = vunpack.c.l.s4 1966171168
      %v5993 = vunpack.c.0.s8 %v5992
      %v5994 = vlaneseq
      %v5995 = vshrl.u32 %v5994, 7
      %v5996 = vsub.s32 %v5993, %v5995
      %v5997 = vrot.slane %v4929, %v5996
      %v5999 = vunpack.c.l.s4 1966171168
      %v6000 = vunpack.c.0.s8 %v5999
      %v6001 = vlaneseq
      %v6002 = vshrl.u32 %v6001, 7
      %v6003 = vsub.s32 %v6000, %v6002
      %v6004 = vrot.slane %v5990, %v6003
      %v6005 = vcombine.high %v5997, %v5997
      %v6006 = vcombine.high %v6004, %v6004
      %v6008 = vunpack.c.l.s4 1966171168
      %v6009 = vunpack.c.0.s8 %v6008
      %v6010 = vlaneseq
      %v6011 = vshrl.u32 %v6010, 7
      %v6012 = vsub.s32 %v6009, %v6011
      %v6013 = vrot.slane %v5997, %v6012
      %v6015 = vunpack.c.l.s4 1966171168
      %v6016 = vunpack.c.0.s8 %v6015
      %v6017 = vlaneseq
      %v6018 = vshrl.u32 %v6017, 7
      %v6019 = vsub.s32 %v6016, %v6018
      %v6020 = vrot.slane %v6004, %v6019
      %v6022 = vunpack.c.l.s4 1966171168
      %v6023 = vunpack.c.0.s8 %v6022
      %v6024 = vlaneseq
      %v6025 = vshrl.u32 %v6024, 7
      %v6026 = vsub.s32 %v6023, %v6025
      %v6027 = vrot.slane %v6005, %v6026
      %v6029 = vunpack.c.l.s4 1966171168
      %v6030 = vunpack.c.0.s8 %v6029
      %v6031 = vlaneseq
      %v6032 = vshrl.u32 %v6031, 7
      %v6033 = vsub.s32 %v6030, %v6032
      %v6034 = vrot.slane %v6006, %v6033
      %v6035 = vcombine.high %v6013, %v6013
      %v6036 = vcombine.high %v6020, %v6020
      %v6037 = vcombine.high %v6027, %v6027
      %v6038 = vcombine.high %v6034, %v6034
      %v6040 = vunpack.c.l.s4 1966171168
      %v6041 = vunpack.c.0.s8 %v6040
      %v6042 = vlaneseq
      %v6043 = vshrl.u32 %v6042, 7
      %v6044 = vsub.s32 %v6041, %v6043
      %v6045 = vrot.slane %v4946, %v6044
      %v6047 = vunpack.c.l.s4 1966171168
      %v6048 = vunpack.c.0.s8 %v6047
      %v6049 = vlaneseq
      %v6050 = vshrl.u32 %v6049, 7
      %v6051 = vsub.s32 %v6048, %v6050
      %v6052 = vrot.slane %v6045, %v6051
      %v6054 = vunpack.c.l.s4 1966171168
      %v6055 = vunpack.c.0.s8 %v6054
      %v6056 = vlaneseq
      %v6057 = vshrl.u32 %v6056, 7
      %v6058 = vsub.s32 %v6055, %v6057
      %v6059 = vrot.slane %v4989, %v6058
      %v6061 = vunpack.c.l.s4 1966171168
      %v6062 = vunpack.c.0.s8 %v6061
      %v6063 = vlaneseq
      %v6064 = vshrl.u32 %v6063, 7
      %v6065 = vsub.s32 %v6062, %v6064
      %v6066 = vrot.slane %v6059, %v6065
      %v6068 = vunpack.c.l.s4 1966171168
      %v6069 = vunpack.c.0.s8 %v6068
      %v6070 = vlaneseq
      %v6071 = vshrl.u32 %v6070, 7
      %v6072 = vsub.s32 %v6069, %v6071
      %v6073 = vrot.slane %v5003, %v6072
      %v6075 = vunpack.c.l.s4 1966171168
      %v6076 = vunpack.c.0.s8 %v6075
      %v6077 = vlaneseq
      %v6078 = vshrl.u32 %v6077, 7
      %v6079 = vsub.s32 %v6076, %v6078
      %v6080 = vrot.slane %v6073, %v6079
      %v6082 = vunpack.c.l.s4 1966171168
      %v6083 = vunpack.c.0.s8 %v6082
      %v6084 = vlaneseq
      %v6085 = vshrl.u32 %v6084, 7
      %v6086 = vsub.s32 %v6083, %v6085
      %v6087 = vrot.slane %v5011, %v6086
      %v6089 = vunpack.c.l.s4 1966171168
      %v6090 = vunpack.c.0.s8 %v6089
      %v6091 = vlaneseq
      %v6092 = vshrl.u32 %v6091, 7
      %v6093 = vsub.s32 %v6090, %v6092
      %v6094 = vrot.slane %v6087, %v6093
      %v6096 = vunpack.c.l.s4 1966171168
      %v6097 = vunpack.c.0.s8 %v6096
      %v6098 = vlaneseq
      %v6099 = vshrl.u32 %v6098, 7
      %v6100 = vsub.s32 %v6097, %v6099
      %v6101 = vrot.slane %v5013, %v6100
      %v6103 = vunpack.c.l.s4 1966171168
      %v6104 = vunpack.c.0.s8 %v6103
      %v6105 = vlaneseq
      %v6106 = vshrl.u32 %v6105, 7
      %v6107 = vsub.s32 %v6104, %v6106
      %v6108 = vrot.slane %v6101, %v6107
      %v6110 = vunpack.c.l.s4 1966171168
      %v6111 = vunpack.c.0.s8 %v6110
      %v6112 = vlaneseq
      %v6113 = vshrl.u32 %v6112, 7
      %v6114 = vsub.s32 %v6111, %v6113
      %v6115 = vrot.slane %v4996, %v6114
      %v6117 = vunpack.c.l.s4 1966171168
      %v6118 = vunpack.c.0.s8 %v6117
      %v6119 = vlaneseq
      %v6120 = vshrl.u32 %v6119, 7
      %v6121 = vsub.s32 %v6118, %v6120
      %v6122 = vrot.slane %v6115, %v6121
      %v6124 = vunpack.c.l.s4 1966171168
      %v6125 = vunpack.c.0.s8 %v6124
      %v6126 = vlaneseq
      %v6127 = vshrl.u32 %v6126, 7
      %v6128 = vsub.s32 %v6125, %v6127
      %v6129 = vrot.slane %v5010, %v6128
      %v6131 = vunpack.c.l.s4 1966171168
      %v6132 = vunpack.c.0.s8 %v6131
      %v6133 = vlaneseq
      %v6134 = vshrl.u32 %v6133, 7
      %v6135 = vsub.s32 %v6132, %v6134
      %v6136 = vrot.slane %v6129, %v6135
      %v6138 = vunpack.c.l.s4 1966171168
      %v6139 = vunpack.c.0.s8 %v6138
      %v6140 = vlaneseq
      %v6141 = vshrl.u32 %v6140, 7
      %v6142 = vsub.s32 %v6139, %v6141
      %v6143 = vrot.slane %v5012, %v6142
      %v6145 = vunpack.c.l.s4 1966171168
      %v6146 = vunpack.c.0.s8 %v6145
      %v6147 = vlaneseq
      %v6148 = vshrl.u32 %v6147, 7
      %v6149 = vsub.s32 %v6146, %v6148
      %v6150 = vrot.slane %v6143, %v6149
      %v6152 = vunpack.c.l.s4 1966171168
      %v6153 = vunpack.c.0.s8 %v6152
      %v6154 = vlaneseq
      %v6155 = vshrl.u32 %v6154, 7
      %v6156 = vsub.s32 %v6153, %v6155
      %v6157 = vrot.slane %v5014, %v6156
      %v6159 = vunpack.c.l.s4 1966171168
      %v6160 = vunpack.c.0.s8 %v6159
      %v6161 = vlaneseq
      %v6162 = vshrl.u32 %v6161, 7
      %v6163 = vsub.s32 %v6160, %v6162
      %v6164 = vrot.slane %v6157, %v6163
      %v6166 = vunpack.c.l.s4 1966171168
      %v6167 = vunpack.c.0.s8 %v6166
      %v6168 = vlaneseq
      %v6169 = vshrl.u32 %v6168, 7
      %v6170 = vsub.s32 %v6167, %v6169
      %v6171 = vrot.slane %v5052, %v6170
      %v6173 = vunpack.c.l.s4 1966171168
      %v6174 = vunpack.c.0.s8 %v6173
      %v6175 = vlaneseq
      %v6176 = vshrl.u32 %v6175, 7
      %v6177 = vsub.s32 %v6174, %v6176
      %v6178 = vrot.slane %v6171, %v6177
      %v6180 = vunpack.c.l.s4 1966171168
      %v6181 = vunpack.c.0.s8 %v6180
      %v6182 = vlaneseq
      %v6183 = vshrl.u32 %v6182, 7
      %v6184 = vsub.s32 %v6181, %v6183
      %v6185 = vrot.slane %v5066, %v6184
      %v6187 = vunpack.c.l.s4 1966171168
      %v6188 = vunpack.c.0.s8 %v6187
      %v6189 = vlaneseq
      %v6190 = vshrl.u32 %v6189, 7
      %v6191 = vsub.s32 %v6188, %v6190
      %v6192 = vrot.slane %v6185, %v6191
      %v6194 = vunpack.c.l.s4 1966171168
      %v6195 = vunpack.c.0.s8 %v6194
      %v6196 = vlaneseq
      %v6197 = vshrl.u32 %v6196, 7
      %v6198 = vsub.s32 %v6195, %v6197
      %v6199 = vrot.slane %v5074, %v6198
      %v6201 = vunpack.c.l.s4 1966171168
      %v6202 = vunpack.c.0.s8 %v6201
      %v6203 = vlaneseq
      %v6204 = vshrl.u32 %v6203, 7
      %v6205 = vsub.s32 %v6202, %v6204
      %v6206 = vrot.slane %v6199, %v6205
      %v6208 = vunpack.c.l.s4 1966171168
      %v6209 = vunpack.c.0.s8 %v6208
      %v6210 = vlaneseq
      %v6211 = vshrl.u32 %v6210, 7
      %v6212 = vsub.s32 %v6209, %v6211
      %v6213 = vrot.slane %v5076, %v6212
      %v6215 = vunpack.c.l.s4 1966171168
      %v6216 = vunpack.c.0.s8 %v6215
      %v6217 = vlaneseq
      %v6218 = vshrl.u32 %v6217, 7
      %v6219 = vsub.s32 %v6216, %v6218
      %v6220 = vrot.slane %v6213, %v6219
      %v6222 = vunpack.c.l.s4 1966171168
      %v6223 = vunpack.c.0.s8 %v6222
      %v6224 = vlaneseq
      %v6225 = vshrl.u32 %v6224, 7
      %v6226 = vsub.s32 %v6223, %v6225
      %v6227 = vrot.slane %v5059, %v6226
      %v6229 = vunpack.c.l.s4 1966171168
      %v6230 = vunpack.c.0.s8 %v6229
      %v6231 = vlaneseq
      %v6232 = vshrl.u32 %v6231, 7
      %v6233 = vsub.s32 %v6230, %v6232
      %v6234 = vrot.slane %v6227, %v6233
      %v6236 = vunpack.c.l.s4 1966171168
      %v6237 = vunpack.c.0.s8 %v6236
      %v6238 = vlaneseq
      %v6239 = vshrl.u32 %v6238, 7
      %v6240 = vsub.s32 %v6237, %v6239
      %v6241 = vrot.slane %v5073, %v6240
      %v6243 = vunpack.c.l.s4 1966171168
      %v6244 = vunpack.c.0.s8 %v6243
      %v6245 = vlaneseq
      %v6246 = vshrl.u32 %v6245, 7
      %v6247 = vsub.s32 %v6244, %v6246
      %v6248 = vrot.slane %v6241, %v6247
      %v6250 = vunpack.c.l.s4 1966171168
      %v6251 = vunpack.c.0.s8 %v6250
      %v6252 = vlaneseq
      %v6253 = vshrl.u32 %v6252, 7
      %v6254 = vsub.s32 %v6251, %v6253
      %v6255 = vrot.slane %v5075, %v6254
      %v6257 = vunpack.c.l.s4 1966171168
      %v6258 = vunpack.c.0.s8 %v6257
      %v6259 = vlaneseq
      %v6260 = vshrl.u32 %v6259, 7
      %v6261 = vsub.s32 %v6258, %v6260
      %v6262 = vrot.slane %v6255, %v6261
      %v6264 = vunpack.c.l.s4 1966171168
      %v6265 = vunpack.c.0.s8 %v6264
      %v6266 = vlaneseq
      %v6267 = vshrl.u32 %v6266, 7
      %v6268 = vsub.s32 %v6265, %v6267
      %v6269 = vrot.slane %v5077, %v6268
      %v6271 = vunpack.c.l.s4 1966171168
      %v6272 = vunpack.c.0.s8 %v6271
      %v6273 = vlaneseq
      %v6274 = vshrl.u32 %v6273, 7
      %v6275 = vsub.s32 %v6272, %v6274
      %v6276 = vrot.slane %v6269, %v6275
      %v6278 = vunpack.c.l.s4 1966171168
      %v6279 = vunpack.c.0.s8 %v6278
      %v6280 = vlaneseq
      %v6281 = vshrl.u32 %v6280, 7
      %v6282 = vsub.s32 %v6279, %v6281
      %v6283 = vrot.slane %v5115, %v6282
      %v6285 = vunpack.c.l.s4 1966171168
      %v6286 = vunpack.c.0.s8 %v6285
      %v6287 = vlaneseq
      %v6288 = vshrl.u32 %v6287, 7
      %v6289 = vsub.s32 %v6286, %v6288
      %v6290 = vrot.slane %v6283, %v6289
      %v6292 = vunpack.c.l.s4 1966171168
      %v6293 = vunpack.c.0.s8 %v6292
      %v6294 = vlaneseq
      %v6295 = vshrl.u32 %v6294, 7
      %v6296 = vsub.s32 %v6293, %v6295
      %v6297 = vrot.slane %v5129, %v6296
      %v6299 = vunpack.c.l.s4 1966171168
      %v6300 = vunpack.c.0.s8 %v6299
      %v6301 = vlaneseq
      %v6302 = vshrl.u32 %v6301, 7
      %v6303 = vsub.s32 %v6300, %v6302
      %v6304 = vrot.slane %v6297, %v6303
      %v6306 = vunpack.c.l.s4 1966171168
      %v6307 = vunpack.c.0.s8 %v6306
      %v6308 = vlaneseq
      %v6309 = vshrl.u32 %v6308, 7
      %v6310 = vsub.s32 %v6307, %v6309
      %v6311 = vrot.slane %v5137, %v6310
      %v6313 = vunpack.c.l.s4 1966171168
      %v6314 = vunpack.c.0.s8 %v6313
      %v6315 = vlaneseq
      %v6316 = vshrl.u32 %v6315, 7
      %v6317 = vsub.s32 %v6314, %v6316
      %v6318 = vrot.slane %v6311, %v6317
      %v6320 = vunpack.c.l.s4 1966171168
      %v6321 = vunpack.c.0.s8 %v6320
      %v6322 = vlaneseq
      %v6323 = vshrl.u32 %v6322, 7
      %v6324 = vsub.s32 %v6321, %v6323
      %v6325 = vrot.slane %v5139, %v6324
      %v6327 = vunpack.c.l.s4 1966171168
      %v6328 = vunpack.c.0.s8 %v6327
      %v6329 = vlaneseq
      %v6330 = vshrl.u32 %v6329, 7
      %v6331 = vsub.s32 %v6328, %v6330
      %v6332 = vrot.slane %v6325, %v6331
      %v6334 = vunpack.c.l.s4 1966171168
      %v6335 = vunpack.c.0.s8 %v6334
      %v6336 = vlaneseq
      %v6337 = vshrl.u32 %v6336, 7
      %v6338 = vsub.s32 %v6335, %v6337
      %v6339 = vrot.slane %v5122, %v6338
      %v6341 = vunpack.c.l.s4 1966171168
      %v6342 = vunpack.c.0.s8 %v6341
      %v6343 = vlaneseq
      %v6344 = vshrl.u32 %v6343, 7
      %v6345 = vsub.s32 %v6342, %v6344
      %v6346 = vrot.slane %v6339, %v6345
      %v6348 = vunpack.c.l.s4 1966171168
      %v6349 = vunpack.c.0.s8 %v6348
      %v6350 = vlaneseq
      %v6351 = vshrl.u32 %v6350, 7
      %v6352 = vsub.s32 %v6349, %v6351
      %v6353 = vrot.slane %v5136, %v6352
      %v6355 = vunpack.c.l.s4 1966171168
      %v6356 = vunpack.c.0.s8 %v6355
      %v6357 = vlaneseq
      %v6358 = vshrl.u32 %v6357, 7
      %v6359 = vsub.s32 %v6356, %v6358
      %v6360 = vrot.slane %v6353, %v6359
      %v6362 = vunpack.c.l.s4 1966171168
      %v6363 = vunpack.c.0.s8 %v6362
      %v6364 = vlaneseq
      %v6365 = vshrl.u32 %v6364, 7
      %v6366 = vsub.s32 %v6363, %v6365
      %v6367 = vrot.slane %v5138, %v6366
      %v6369 = vunpack.c.l.s4 1966171168
      %v6370 = vunpack.c.0.s8 %v6369
      %v6371 = vlaneseq
      %v6372 = vshrl.u32 %v6371, 7
      %v6373 = vsub.s32 %v6370, %v6372
      %v6374 = vrot.slane %v6367, %v6373
      %v6376 = vunpack.c.l.s4 1966171168
      %v6377 = vunpack.c.0.s8 %v6376
      %v6378 = vlaneseq
      %v6379 = vshrl.u32 %v6378, 7
      %v6380 = vsub.s32 %v6377, %v6379
      %v6381 = vrot.slane %v5140, %v6380
      %v6383 = vunpack.c.l.s4 1966171168
      %v6384 = vunpack.c.0.s8 %v6383
      %v6385 = vlaneseq
      %v6386 = vshrl.u32 %v6385, 7
      %v6387 = vsub.s32 %v6384, %v6386
      %v6388 = vrot.slane %v6381, %v6387
      %v6390 = vunpack.c.l.s4 1966171168
      %v6391 = vunpack.c.0.s8 %v6390
      %v6392 = vlaneseq
      %v6393 = vshrl.u32 %v6392, 7
      %v6394 = vsub.s32 %v6391, %v6393
      %v6395 = vrot.slane %v5178, %v6394
      %v6397 = vunpack.c.l.s4 1966171168
      %v6398 = vunpack.c.0.s8 %v6397
      %v6399 = vlaneseq
      %v6400 = vshrl.u32 %v6399, 7
      %v6401 = vsub.s32 %v6398, %v6400
      %v6402 = vrot.slane %v6395, %v6401
      %v6404 = vunpack.c.l.s4 1966171168
      %v6405 = vunpack.c.0.s8 %v6404
      %v6406 = vlaneseq
      %v6407 = vshrl.u32 %v6406, 7
      %v6408 = vsub.s32 %v6405, %v6407
      %v6409 = vrot.slane %v5192, %v6408
      %v6411 = vunpack.c.l.s4 1966171168
      %v6412 = vunpack.c.0.s8 %v6411
      %v6413 = vlaneseq
      %v6414 = vshrl.u32 %v6413, 7
      %v6415 = vsub.s32 %v6412, %v6414
      %v6416 = vrot.slane %v6409, %v6415
      %v6418 = vunpack.c.l.s4 1966171168
      %v6419 = vunpack.c.0.s8 %v6418
      %v6420 = vlaneseq
      %v6421 = vshrl.u32 %v6420, 7
      %v6422 = vsub.s32 %v6419, %v6421
      %v6423 = vrot.slane %v5200, %v6422
      %v6425 = vunpack.c.l.s4 1966171168
      %v6426 = vunpack.c.0.s8 %v6425
      %v6427 = vlaneseq
      %v6428 = vshrl.u32 %v6427, 7
      %v6429 = vsub.s32 %v6426, %v6428
      %v6430 = vrot.slane %v6423, %v6429
      %v6432 = vunpack.c.l.s4 1966171168
      %v6433 = vunpack.c.0.s8 %v6432
      %v6434 = vlaneseq
      %v6435 = vshrl.u32 %v6434, 7
      %v6436 = vsub.s32 %v6433, %v6435
      %v6437 = vrot.slane %v5202, %v6436
      %v6439 = vunpack.c.l.s4 1966171168
      %v6440 = vunpack.c.0.s8 %v6439
      %v6441 = vlaneseq
      %v6442 = vshrl.u32 %v6441, 7
      %v6443 = vsub.s32 %v6440, %v6442
      %v6444 = vrot.slane %v6437, %v6443
      %v6446 = vunpack.c.l.s4 1966171168
      %v6447 = vunpack.c.0.s8 %v6446
      %v6448 = vlaneseq
      %v6449 = vshrl.u32 %v6448, 7
      %v6450 = vsub.s32 %v6447, %v6449
      %v6451 = vrot.slane %v5185, %v6450
      %v6453 = vunpack.c.l.s4 1966171168
      %v6454 = vunpack.c.0.s8 %v6453
      %v6455 = vlaneseq
      %v6456 = vshrl.u32 %v6455, 7
      %v6457 = vsub.s32 %v6454, %v6456
      %v6458 = vrot.slane %v6451, %v6457
      %v6460 = vunpack.c.l.s4 1966171168
      %v6461 = vunpack.c.0.s8 %v6460
      %v6462 = vlaneseq
      %v6463 = vshrl.u32 %v6462, 7
      %v6464 = vsub.s32 %v6461, %v6463
      %v6465 = vrot.slane %v5199, %v6464
      %v6467 = vunpack.c.l.s4 1966171168
      %v6468 = vunpack.c.0.s8 %v6467
      %v6469 = vlaneseq
      %v6470 = vshrl.u32 %v6469, 7
      %v6471 = vsub.s32 %v6468, %v6470
      %v6472 = vrot.slane %v6465, %v6471
      %v6474 = vunpack.c.l.s4 1966171168
      %v6475 = vunpack.c.0.s8 %v6474
      %v6476 = vlaneseq
      %v6477 = vshrl.u32 %v6476, 7
      %v6478 = vsub.s32 %v6475, %v6477
      %v6479 = vrot.slane %v5201, %v6478
      %v6481 = vunpack.c.l.s4 1966171168
      %v6482 = vunpack.c.0.s8 %v6481
      %v6483 = vlaneseq
      %v6484 = vshrl.u32 %v6483, 7
      %v6485 = vsub.s32 %v6482, %v6484
      %v6486 = vrot.slane %v6479, %v6485
      %v6488 = vunpack.c.l.s4 1966171168
      %v6489 = vunpack.c.0.s8 %v6488
      %v6490 = vlaneseq
      %v6491 = vshrl.u32 %v6490, 7
      %v6492 = vsub.s32 %v6489, %v6491
      %v6493 = vrot.slane %v5203, %v6492
      %v6495 = vunpack.c.l.s4 1966171168
      %v6496 = vunpack.c.0.s8 %v6495
      %v6497 = vlaneseq
      %v6498 = vshrl.u32 %v6497, 7
      %v6499 = vsub.s32 %v6496, %v6498
      %v6500 = vrot.slane %v6493, %v6499
      %v6502 = vunpack.c.l.s4 1966171168
      %v6503 = vunpack.c.0.s8 %v6502
      %v6504 = vlaneseq
      %v6505 = vshrl.u32 %v6504, 7
      %v6506 = vsub.s32 %v6503, %v6505
      %v6507 = vrot.slane %v5241, %v6506
      %v6509 = vunpack.c.l.s4 1966171168
      %v6510 = vunpack.c.0.s8 %v6509
      %v6511 = vlaneseq
      %v6512 = vshrl.u32 %v6511, 7
      %v6513 = vsub.s32 %v6510, %v6512
      %v6514 = vrot.slane %v6507, %v6513
      %v6516 = vunpack.c.l.s4 1966171168
      %v6517 = vunpack.c.0.s8 %v6516
      %v6518 = vlaneseq
      %v6519 = vshrl.u32 %v6518, 7
      %v6520 = vsub.s32 %v6517, %v6519
      %v6521 = vrot.slane %v5255, %v6520
      %v6523 = vunpack.c.l.s4 1966171168
      %v6524 = vunpack.c.0.s8 %v6523
      %v6525 = vlaneseq
      %v6526 = vshrl.u32 %v6525, 7
      %v6527 = vsub.s32 %v6524, %v6526
      %v6528 = vrot.slane %v6521, %v6527
      %v6530 = vunpack.c.l.s4 1966171168
      %v6531 = vunpack.c.0.s8 %v6530
      %v6532 = vlaneseq
      %v6533 = vshrl.u32 %v6532, 7
      %v6534 = vsub.s32 %v6531, %v6533
      %v6535 = vrot.slane %v5263, %v6534
      %v6537 = vunpack.c.l.s4 1966171168
      %v6538 = vunpack.c.0.s8 %v6537
      %v6539 = vlaneseq
      %v6540 = vshrl.u32 %v6539, 7
      %v6541 = vsub.s32 %v6538, %v6540
      %v6542 = vrot.slane %v6535, %v6541
      %v6544 = vunpack.c.l.s4 1966171168
      %v6545 = vunpack.c.0.s8 %v6544
      %v6546 = vlaneseq
      %v6547 = vshrl.u32 %v6546, 7
      %v6548 = vsub.s32 %v6545, %v6547
      %v6549 = vrot.slane %v5265, %v6548
      %v6551 = vunpack.c.l.s4 1966171168
      %v6552 = vunpack.c.0.s8 %v6551
      %v6553 = vlaneseq
      %v6554 = vshrl.u32 %v6553, 7
      %v6555 = vsub.s32 %v6552, %v6554
      %v6556 = vrot.slane %v6549, %v6555
      %v6558 = vunpack.c.l.s4 1966171168
      %v6559 = vunpack.c.0.s8 %v6558
      %v6560 = vlaneseq
      %v6561 = vshrl.u32 %v6560, 7
      %v6562 = vsub.s32 %v6559, %v6561
      %v6563 = vrot.slane %v5248, %v6562
      %v6565 = vunpack.c.l.s4 1966171168
      %v6566 = vunpack.c.0.s8 %v6565
      %v6567 = vlaneseq
      %v6568 = vshrl.u32 %v6567, 7
      %v6569 = vsub.s32 %v6566, %v6568
      %v6570 = vrot.slane %v6563, %v6569
      %v6572 = vunpack.c.l.s4 1966171168
      %v6573 = vunpack.c.0.s8 %v6572
      %v6574 = vlaneseq
      %v6575 = vshrl.u32 %v6574, 7
      %v6576 = vsub.s32 %v6573, %v6575
      %v6577 = vrot.slane %v5262, %v6576
      %v6579 = vunpack.c.l.s4 1966171168
      %v6580 = vunpack.c.0.s8 %v6579
      %v6581 = vlaneseq
      %v6582 = vshrl.u32 %v6581, 7
      %v6583 = vsub.s32 %v6580, %v6582
      %v6584 = vrot.slane %v6577, %v6583
      %v6586 = vunpack.c.l.s4 1966171168
      %v6587 = vunpack.c.0.s8 %v6586
      %v6588 = vlaneseq
      %v6589 = vshrl.u32 %v6588, 7
      %v6590 = vsub.s32 %v6587, %v6589
      %v6591 = vrot.slane %v5264, %v6590
      %v6593 = vunpack.c.l.s4 1966171168
      %v6594 = vunpack.c.0.s8 %v6593
      %v6595 = vlaneseq
      %v6596 = vshrl.u32 %v6595, 7
      %v6597 = vsub.s32 %v6594, %v6596
      %v6598 = vrot.slane %v6591, %v6597
      %v6600 = vunpack.c.l.s4 1966171168
      %v6601 = vunpack.c.0.s8 %v6600
      %v6602 = vlaneseq
      %v6603 = vshrl.u32 %v6602, 7
      %v6604 = vsub.s32 %v6601, %v6603
      %v6605 = vrot.slane %v5266, %v6604
      %v6607 = vunpack.c.l.s4 1966171168
      %v6608 = vunpack.c.0.s8 %v6607
      %v6609 = vlaneseq
      %v6610 = vshrl.u32 %v6609, 7
      %v6611 = vsub.s32 %v6608, %v6610
      %v6612 = vrot.slane %v6605, %v6611
      %v6614 = vunpack.c.l.s4 1966171168
      %v6615 = vunpack.c.0.s8 %v6614
      %v6616 = vlaneseq
      %v6617 = vshrl.u32 %v6616, 7
      %v6618 = vsub.s32 %v6615, %v6617
      %v6619 = vrot.slane %v5304, %v6618
      %v6621 = vunpack.c.l.s4 1966171168
      %v6622 = vunpack.c.0.s8 %v6621
      %v6623 = vlaneseq
      %v6624 = vshrl.u32 %v6623, 7
      %v6625 = vsub.s32 %v6622, %v6624
      %v6626 = vrot.slane %v6619, %v6625
      %v6628 = vunpack.c.l.s4 1966171168
      %v6629 = vunpack.c.0.s8 %v6628
      %v6630 = vlaneseq
      %v6631 = vshrl.u32 %v6630, 7
      %v6632 = vsub.s32 %v6629, %v6631
      %v6633 = vrot.slane %v5318, %v6632
      %v6635 = vunpack.c.l.s4 1966171168
      %v6636 = vunpack.c.0.s8 %v6635
      %v6637 = vlaneseq
      %v6638 = vshrl.u32 %v6637, 7
      %v6639 = vsub.s32 %v6636, %v6638
      %v6640 = vrot.slane %v6633, %v6639
      %v6642 = vunpack.c.l.s4 1966171168
      %v6643 = vunpack.c.0.s8 %v6642
      %v6644 = vlaneseq
      %v6645 = vshrl.u32 %v6644, 7
      %v6646 = vsub.s32 %v6643, %v6645
      %v6647 = vrot.slane %v5326, %v6646
      %v6649 = vunpack.c.l.s4 1966171168
      %v6650 = vunpack.c.0.s8 %v6649
      %v6651 = vlaneseq
      %v6652 = vshrl.u32 %v6651, 7
      %v6653 = vsub.s32 %v6650, %v6652
      %v6654 = vrot.slane %v6647, %v6653
      %v6656 = vunpack.c.l.s4 1966171168
      %v6657 = vunpack.c.0.s8 %v6656
      %v6658 = vlaneseq
      %v6659 = vshrl.u32 %v6658, 7
      %v6660 = vsub.s32 %v6657, %v6659
      %v6661 = vrot.slane %v5328, %v6660
      %v6663 = vunpack.c.l.s4 1966171168
      %v6664 = vunpack.c.0.s8 %v6663
      %v6665 = vlaneseq
      %v6666 = vshrl.u32 %v6665, 7
      %v6667 = vsub.s32 %v6664, %v6666
      %v6668 = vrot.slane %v6661, %v6667
      %v6670 = vunpack.c.l.s4 1966171168
      %v6671 = vunpack.c.0.s8 %v6670
      %v6672 = vlaneseq
      %v6673 = vshrl.u32 %v6672, 7
      %v6674 = vsub.s32 %v6671, %v6673
      %v6675 = vrot.slane %v5311, %v6674
      %v6677 = vunpack.c.l.s4 1966171168
      %v6678 = vunpack.c.0.s8 %v6677
      %v6679 = vlaneseq
      %v6680 = vshrl.u32 %v6679, 7
      %v6681 = vsub.s32 %v6678, %v6680
      %v6682 = vrot.slane %v6675, %v6681
      %v6684 = vunpack.c.l.s4 1966171168
      %v6685 = vunpack.c.0.s8 %v6684
      %v6686 = vlaneseq
      %v6687 = vshrl.u32 %v6686, 7
      %v6688 = vsub.s32 %v6685, %v6687
      %v6689 = vrot.slane %v5325, %v6688
      %v6691 = vunpack.c.l.s4 1966171168
      %v6692 = vunpack.c.0.s8 %v6691
      %v6693 = vlaneseq
      %v6694 = vshrl.u32 %v6693, 7
      %v6695 = vsub.s32 %v6692, %v6694
      %v6696 = vrot.slane %v6689, %v6695
      %v6698 = vunpack.c.l.s4 1966171168
      %v6699 = vunpack.c.0.s8 %v6698
      %v6700 = vlaneseq
      %v6701 = vshrl.u32 %v6700, 7
      %v6702 = vsub.s32 %v6699, %v6701
      %v6703 = vrot.slane %v5327, %v6702
      %v6705 = vunpack.c.l.s4 1966171168
      %v6706 = vunpack.c.0.s8 %v6705
      %v6707 = vlaneseq
      %v6708 = vshrl.u32 %v6707, 7
      %v6709 = vsub.s32 %v6706, %v6708
      %v6710 = vrot.slane %v6703, %v6709
      %v6712 = vunpack.c.l.s4 1966171168
      %v6713 = vunpack.c.0.s8 %v6712
      %v6714 = vlaneseq
      %v6715 = vshrl.u32 %v6714, 7
      %v6716 = vsub.s32 %v6713, %v6715
      %v6717 = vrot.slane %v5329, %v6716
      %v6719 = vunpack.c.l.s4 1966171168
      %v6720 = vunpack.c.0.s8 %v6719
      %v6721 = vlaneseq
      %v6722 = vshrl.u32 %v6721, 7
      %v6723 = vsub.s32 %v6720, %v6722
      %v6724 = vrot.slane %v6717, %v6723
      %v6726 = vunpack.c.l.s4 1966171168
      %v6727 = vunpack.c.0.s8 %v6726
      %v6728 = vlaneseq
      %v6729 = vshrl.u32 %v6728, 7
      %v6730 = vsub.s32 %v6727, %v6729
      %v6731 = vrot.slane %v5367, %v6730
      %v6733 = vunpack.c.l.s4 1966171168
      %v6734 = vunpack.c.0.s8 %v6733
      %v6735 = vlaneseq
      %v6736 = vshrl.u32 %v6735, 7
      %v6737 = vsub.s32 %v6734, %v6736
      %v6738 = vrot.slane %v6731, %v6737
      %v6740 = vunpack.c.l.s4 1966171168
      %v6741 = vunpack.c.0.s8 %v6740
      %v6742 = vlaneseq
      %v6743 = vshrl.u32 %v6742, 7
      %v6744 = vsub.s32 %v6741, %v6743
      %v6745 = vrot.slane %v5381, %v6744
      %v6747 = vunpack.c.l.s4 1966171168
      %v6748 = vunpack.c.0.s8 %v6747
      %v6749 = vlaneseq
      %v6750 = vshrl.u32 %v6749, 7
      %v6751 = vsub.s32 %v6748, %v6750
      %v6752 = vrot.slane %v6745, %v6751
      %v6754 = vunpack.c.l.s4 1966171168
      %v6755 = vunpack.c.0.s8 %v6754
      %v6756 = vlaneseq
      %v6757 = vshrl.u32 %v6756, 7
      %v6758 = vsub.s32 %v6755, %v6757
      %v6759 = vrot.slane %v5389, %v6758
      %v6761 = vunpack.c.l.s4 1966171168
      %v6762 = vunpack.c.0.s8 %v6761
      %v6763 = vlaneseq
      %v6764 = vshrl.u32 %v6763, 7
      %v6765 = vsub.s32 %v6762, %v6764
      %v6766 = vrot.slane %v6759, %v6765
      %v6768 = vunpack.c.l.s4 1966171168
      %v6769 = vunpack.c.0.s8 %v6768
      %v6770 = vlaneseq
      %v6771 = vshrl.u32 %v6770, 7
      %v6772 = vsub.s32 %v6769, %v6771
      %v6773 = vrot.slane %v5391, %v6772
      %v6775 = vunpack.c.l.s4 1966171168
      %v6776 = vunpack.c.0.s8 %v6775
      %v6777 = vlaneseq
      %v6778 = vshrl.u32 %v6777, 7
      %v6779 = vsub.s32 %v6776, %v6778
      %v6780 = vrot.slane %v6773, %v6779
      %v6782 = vunpack.c.l.s4 1966171168
      %v6783 = vunpack.c.0.s8 %v6782
      %v6784 = vlaneseq
      %v6785 = vshrl.u32 %v6784, 7
      %v6786 = vsub.s32 %v6783, %v6785
      %v6787 = vrot.slane %v5374, %v6786
      %v6789 = vunpack.c.l.s4 1966171168
      %v6790 = vunpack.c.0.s8 %v6789
      %v6791 = vlaneseq
      %v6792 = vshrl.u32 %v6791, 7
      %v6793 = vsub.s32 %v6790, %v6792
      %v6794 = vrot.slane %v6787, %v6793
      %v6796 = vunpack.c.l.s4 1966171168
      %v6797 = vunpack.c.0.s8 %v6796
      %v6798 = vlaneseq
      %v6799 = vshrl.u32 %v6798, 7
      %v6800 = vsub.s32 %v6797, %v6799
      %v6801 = vrot.slane %v5388, %v6800
      %v6803 = vunpack.c.l.s4 1966171168
      %v6804 = vunpack.c.0.s8 %v6803
      %v6805 = vlaneseq
      %v6806 = vshrl.u32 %v6805, 7
      %v6807 = vsub.s32 %v6804, %v6806
      %v6808 = vrot.slane %v6801, %v6807
      %v6810 = vunpack.c.l.s4 1966171168
      %v6811 = vunpack.c.0.s8 %v6810
      %v6812 = vlaneseq
      %v6813 = vshrl.u32 %v6812, 7
      %v6814 = vsub.s32 %v6811, %v6813
      %v6815 = vrot.slane %v5390, %v6814
      %v6817 = vunpack.c.l.s4 1966171168
      %v6818 = vunpack.c.0.s8 %v6817
      %v6819 = vlaneseq
      %v6820 = vshrl.u32 %v6819, 7
      %v6821 = vsub.s32 %v6818, %v6820
      %v6822 = vrot.slane %v6815, %v6821
      %v6824 = vunpack.c.l.s4 1966171168
      %v6825 = vunpack.c.0.s8 %v6824
      %v6826 = vlaneseq
      %v6827 = vshrl.u32 %v6826, 7
      %v6828 = vsub.s32 %v6825, %v6827
      %v6829 = vrot.slane %v5392, %v6828
      %v6831 = vunpack.c.l.s4 1966171168
      %v6832 = vunpack.c.0.s8 %v6831
      %v6833 = vlaneseq
      %v6834 = vshrl.u32 %v6833, 7
      %v6835 = vsub.s32 %v6832, %v6834
      %v6836 = vrot.slane %v6829, %v6835
      %v6838 = vunpack.c.l.s4 1966171168
      %v6839 = vunpack.c.0.s8 %v6838
      %v6840 = vlaneseq
      %v6841 = vshrl.u32 %v6840, 7
      %v6842 = vsub.s32 %v6839, %v6841
      %v6843 = vrot.slane %v5430, %v6842
      %v6845 = vunpack.c.l.s4 1966171168
      %v6846 = vunpack.c.0.s8 %v6845
      %v6847 = vlaneseq
      %v6848 = vshrl.u32 %v6847, 7
      %v6849 = vsub.s32 %v6846, %v6848
      %v6850 = vrot.slane %v6843, %v6849
      %v6852 = vunpack.c.l.s4 1966171168
      %v6853 = vunpack.c.0.s8 %v6852
      %v6854 = vlaneseq
      %v6855 = vshrl.u32 %v6854, 7
      %v6856 = vsub.s32 %v6853, %v6855
      %v6857 = vrot.slane %v5444, %v6856
      %v6859 = vunpack.c.l.s4 1966171168
      %v6860 = vunpack.c.0.s8 %v6859
      %v6861 = vlaneseq
      %v6862 = vshrl.u32 %v6861, 7
      %v6863 = vsub.s32 %v6860, %v6862
      %v6864 = vrot.slane %v6857, %v6863
      %v6866 = vunpack.c.l.s4 1966171168
      %v6867 = vunpack.c.0.s8 %v6866
      %v6868 = vlaneseq
      %v6869 = vshrl.u32 %v6868, 7
      %v6870 = vsub.s32 %v6867, %v6869
      %v6871 = vrot.slane %v5452, %v6870
      %v6873 = vunpack.c.l.s4 1966171168
      %v6874 = vunpack.c.0.s8 %v6873
      %v6875 = vlaneseq
      %v6876 = vshrl.u32 %v6875, 7
      %v6877 = vsub.s32 %v6874, %v6876
      %v6878 = vrot.slane %v6871, %v6877
      %v6880 = vunpack.c.l.s4 1966171168
      %v6881 = vunpack.c.0.s8 %v6880
      %v6882 = vlaneseq
      %v6883 = vshrl.u32 %v6882, 7
      %v6884 = vsub.s32 %v6881, %v6883
      %v6885 = vrot.slane %v5454, %v6884
      %v6887 = vunpack.c.l.s4 1966171168
      %v6888 = vunpack.c.0.s8 %v6887
      %v6889 = vlaneseq
      %v6890 = vshrl.u32 %v6889, 7
      %v6891 = vsub.s32 %v6888, %v6890
      %v6892 = vrot.slane %v6885, %v6891
      %v6894 = vunpack.c.l.s4 1966171168
      %v6895 = vunpack.c.0.s8 %v6894
      %v6896 = vlaneseq
      %v6897 = vshrl.u32 %v6896, 7
      %v6898 = vsub.s32 %v6895, %v6897
      %v6899 = vrot.slane %v5437, %v6898
      %v6901 = vunpack.c.l.s4 1966171168
      %v6902 = vunpack.c.0.s8 %v6901
      %v6903 = vlaneseq
      %v6904 = vshrl.u32 %v6903, 7
      %v6905 = vsub.s32 %v6902, %v6904
      %v6906 = vrot.slane %v6899, %v6905
      %v6908 = vunpack.c.l.s4 1966171168
      %v6909 = vunpack.c.0.s8 %v6908
      %v6910 = vlaneseq
      %v6911 = vshrl.u32 %v6910, 7
      %v6912 = vsub.s32 %v6909, %v6911
      %v6913 = vrot.slane %v5451, %v6912
      %v6915 = vunpack.c.l.s4 1966171168
      %v6916 = vunpack.c.0.s8 %v6915
      %v6917 = vlaneseq
      %v6918 = vshrl.u32 %v6917, 7
      %v6919 = vsub.s32 %v6916, %v6918
      %v6920 = vrot.slane %v6913, %v6919
      %v6922 = vunpack.c.l.s4 1966171168
      %v6923 = vunpack.c.0.s8 %v6922
      %v6924 = vlaneseq
      %v6925 = vshrl.u32 %v6924, 7
      %v6926 = vsub.s32 %v6923, %v6925
      %v6927 = vrot.slane %v5453, %v6926
      %v6929 = vunpack.c.l.s4 1966171168
      %v6930 = vunpack.c.0.s8 %v6929
      %v6931 = vlaneseq
      %v6932 = vshrl.u32 %v6931, 7
      %v6933 = vsub.s32 %v6930, %v6932
      %v6934 = vrot.slane %v6927, %v6933
      %v6936 = vunpack.c.l.s4 1966171168
      %v6937 = vunpack.c.0.s8 %v6936
      %v6938 = vlaneseq
      %v6939 = vshrl.u32 %v6938, 7
      %v6940 = vsub.s32 %v6937, %v6939
      %v6941 = vrot.slane %v5455, %v6940
      %v6943 = vunpack.c.l.s4 1966171168
      %v6944 = vunpack.c.0.s8 %v6943
      %v6945 = vlaneseq
      %v6946 = vshrl.u32 %v6945, 7
      %v6947 = vsub.s32 %v6944, %v6946
      %v6948 = vrot.slane %v6941, %v6947
      %v6949 = vunpack.c.l.b16 %v6066
      %v6950 = vunpack.c.l.b16 %v6080
      %v6951 = vunpack.c.l.b16 %v6094
      %v6952 = vunpack.c.l.b16 %v6108
      %v6953 = vunpack.c.l.b16 %v6122
      %v6954 = vunpack.c.l.b16 %v6136
      %v6955 = vunpack.c.l.b16 %v6150
      %v6956 = vunpack.c.l.b16 %v6164
      %v6957 = vunpack.c.l.b16 %v6178
      %v6958 = vunpack.c.l.b16 %v6192
      %v6959 = vunpack.c.l.b16 %v6206
      %v6960 = vunpack.c.l.b16 %v6220
      %v6961 = vunpack.c.l.b16 %v6234
      %v6962 = vunpack.c.l.b16 %v6248
      %v6963 = vunpack.c.l.b16 %v6262
      %v6964 = vunpack.c.l.b16 %v6276
      %v6965 = vunpack.c.l.b16 %v6290
      %v6966 = vunpack.c.l.b16 %v6304
      %v6967 = vunpack.c.l.b16 %v6318
      %v6968 = vunpack.c.l.b16 %v6332
      %v6969 = vunpack.c.l.b16 %v6346
      %v6970 = vunpack.c.l.b16 %v6360
      %v6971 = vunpack.c.l.b16 %v6374
      %v6972 = vunpack.c.l.b16 %v6388
      %v6973 = vunpack.c.l.b16 %v6402
      %v6974 = vunpack.c.l.b16 %v6416
      %v6975 = vunpack.c.l.b16 %v6430
      %v6976 = vunpack.c.l.b16 %v6444
      %v6977 = vunpack.c.l.b16 %v6458
      %v6978 = vunpack.c.l.b16 %v6472
      %v6979 = vunpack.c.l.b16 %v6486
      %v6980 = vunpack.c.l.b16 %v6500
      %v6981 = vunpack.c.l.b16 %v6514
      %v6982 = vunpack.c.l.b16 %v6528
      %v6983 = vunpack.c.l.b16 %v6542
      %v6984 = vunpack.c.l.b16 %v6556
      %v6985 = vunpack.c.l.b16 %v6570
      %v6986 = vunpack.c.l.b16 %v6584
      %v6987 = vunpack.c.l.b16 %v6598
      %v6988 = vunpack.c.l.b16 %v6612
      %v6989 = vunpack.c.l.b16 %v6626
      %v6990 = vunpack.c.l.b16 %v6640
      %v6991 = vunpack.c.l.b16 %v6654
      %v6992 = vunpack.c.l.b16 %v6668
      %v6993 = vunpack.c.l.b16 %v6682
      %v6994 = vunpack.c.l.b16 %v6696
      %v6995 = vunpack.c.l.b16 %v6710
      %v6996 = vunpack.c.l.b16 %v6724
      %v6997 = vunpack.c.l.b16 %v6738
      %v6998 = vunpack.c.l.b16 %v6752
      %v6999 = vunpack.c.l.b16 %v6766
      %v7000 = vunpack.c.l.b16 %v6780
      %v7001 = vunpack.c.l.b16 %v6794
      %v7002 = vunpack.c.l.b16 %v6808
      %v7003 = vunpack.c.l.b16 %v6822
      %v7004 = vunpack.c.l.b16 %v6836
      %v7005 = vunpack.c.l.b16 %v6850
      %v7006 = vunpack.c.l.b16 %v6864
      %v7007 = vunpack.c.l.b16 %v6878
      %v7008 = vunpack.c.l.b16 %v6892
      %v7009 = vunpack.c.l.b16 %v6906
      %v7010 = vunpack.c.l.b16 %v6920
      %v7011 = vunpack.c.l.b16 %v6934
      %v7012 = vunpack.c.l.b16 %v6948
      %v7013 = vrot.slane %v6950, 7
      %vm7014 = vcmask 1041409
      %v7015 = vsel %vm7014, %v7013, %v6949
      %v7016 = vrot.slane %v6951, 6
      %vm7017 = vcmask 1042434
      %v7018 = vsel %vm7017, %v7016, %v7015
      %v7019 = vrot.slane %v6952, 5
      %vm7020 = vcmask 1043459
      %v7021 = vsel %vm7020, %v7019, %v7018
      %v7022 = vrot.slane %v6953, 4
      %vm7023 = vcmask 1044484
      %v7024 = vsel %vm7023, %v7022, %v7021
      %v7025 = vrot.slane %v6954, 3
      %vm7026 = vcmask 1045509
      %v7027 = vsel %vm7026, %v7025, %v7024
      %v7028 = vrot.slane %v6955, 2
      %vm7029 = vcmask 1046534
      %v7030 = vsel %vm7029, %v7028, %v7027
      %v7031 = vrot.slane %v6956, 1
      %vm7032 = vcmask 1047559
      %v7033 = vsel %vm7032, %v7031, %v7030
      %v7034 = vrot.slane %v6958, 7
      %v7035 = vsel %vm7014, %v7034, %v6957
      %v7036 = vrot.slane %v6959, 6
      %v7037 = vsel %vm7017, %v7036, %v7035
      %v7038 = vrot.slane %v6960, 5
      %v7039 = vsel %vm7020, %v7038, %v7037
      %v7040 = vrot.slane %v6961, 4
      %v7041 = vsel %vm7023, %v7040, %v7039
      %v7042 = vrot.slane %v6962, 3
      %v7043 = vsel %vm7026, %v7042, %v7041
      %v7044 = vrot.slane %v6963, 2
      %v7045 = vsel %vm7029, %v7044, %v7043
      %v7046 = vrot.slane %v6964, 1
      %v7047 = vsel %vm7032, %v7046, %v7045
      %v7048 = vrot.slane %v6966, 7
      %v7049 = vsel %vm7014, %v7048, %v6965
      %v7050 = vrot.slane %v6967, 6
      %v7051 = vsel %vm7017, %v7050, %v7049
      %v7052 = vrot.slane %v6968, 5
      %v7053 = vsel %vm7020, %v7052, %v7051
      %v7054 = vrot.slane %v6969, 4
      %v7055 = vsel %vm7023, %v7054, %v7053
      %v7056 = vrot.slane %v6970, 3
      %v7057 = vsel %vm7026, %v7056, %v7055
      %v7058 = vrot.slane %v6971, 2
      %v7059 = vsel %vm7029, %v7058, %v7057
      %v7060 = vrot.slane %v6972, 1
      %v7061 = vsel %vm7032, %v7060, %v7059
      %v7062 = vrot.slane %v6974, 7
      %v7063 = vsel %vm7014, %v7062, %v6973
      %v7064 = vrot.slane %v6975, 6
      %v7065 = vsel %vm7017, %v7064, %v7063
      %v7066 = vrot.slane %v6976, 5
      %v7067 = vsel %vm7020, %v7066, %v7065
      %v7068 = vrot.slane %v6977, 4
      %v7069 = vsel %vm7023, %v7068, %v7067
      %v7070 = vrot.slane %v6978, 3
      %v7071 = vsel %vm7026, %v7070, %v7069
      %v7072 = vrot.slane %v6979, 2
      %v7073 = vsel %vm7029, %v7072, %v7071
      %v7074 = vrot.slane %v6980, 1
      %v7075 = vsel %vm7032, %v7074, %v7073
      %v7076 = vrot.slane %v6982, 7
      %v7077 = vsel %vm7014, %v7076, %v6981
      %v7078 = vrot.slane %v6983, 6
      %v7079 = vsel %vm7017, %v7078, %v7077
      %v7080 = vrot.slane %v6984, 5
      %v7081 = vsel %vm7020, %v7080, %v7079
      %v7082 = vrot.slane %v6985, 4
      %v7083 = vsel %vm7023, %v7082, %v7081
      %v7084 = vrot.slane %v6986, 3
      %v7085 = vsel %vm7026, %v7084, %v7083
      %v7086 = vrot.slane %v6987, 2
      %v7087 = vsel %vm7029, %v7086, %v7085
      %v7088 = vrot.slane %v6988, 1
      %v7089 = vsel %vm7032, %v7088, %v7087
      %v7090 = vrot.slane %v6990, 7
      %v7091 = vsel %vm7014, %v7090, %v6989
      %v7092 = vrot.slane %v6991, 6
      %v7093 = vsel %vm7017, %v7092, %v7091
      %v7094 = vrot.slane %v6992, 5
      %v7095 = vsel %vm7020, %v7094, %v7093
      %v7096 = vrot.slane %v6993, 4
      %v7097 = vsel %vm7023, %v7096, %v7095
      %v7098 = vrot.slane %v6994, 3
      %v7099 = vsel %vm7026, %v7098, %v7097
      %v7100 = vrot.slane %v6995, 2
      %v7101 = vsel %vm7029, %v7100, %v7099
      %v7102 = vrot.slane %v6996, 1
      %v7103 = vsel %vm7032, %v7102, %v7101
      %v7104 = vrot.slane %v6998, 7
      %v7105 = vsel %vm7014, %v7104, %v6997
      %v7106 = vrot.slane %v6999, 6
      %v7107 = vsel %vm7017, %v7106, %v7105
      %v7108 = vrot.slane %v7000, 5
      %v7109 = vsel %vm7020, %v7108, %v7107
      %v7110 = vrot.slane %v7001, 4
      %v7111 = vsel %vm7023, %v7110, %v7109
      %v7112 = vrot.slane %v7002, 3
      %v7113 = vsel %vm7026, %v7112, %v7111
      %v7114 = vrot.slane %v7003, 2
      %v7115 = vsel %vm7029, %v7114, %v7113
      %v7116 = vrot.slane %v7004, 1
      %v7117 = vsel %vm7032, %v7116, %v7115
      %v7118 = vrot.slane %v7006, 7
      %v7119 = vsel %vm7014, %v7118, %v7005
      %v7120 = vrot.slane %v7007, 6
      %v7121 = vsel %vm7017, %v7120, %v7119
      %v7122 = vrot.slane %v7008, 5
      %v7123 = vsel %vm7020, %v7122, %v7121
      %v7124 = vrot.slane %v7009, 4
      %v7125 = vsel %vm7023, %v7124, %v7123
      %v7126 = vrot.slane %v7010, 3
      %v7127 = vsel %vm7026, %v7126, %v7125
      %v7128 = vrot.slane %v7011, 2
      %v7129 = vsel %vm7029, %v7128, %v7127
      %v7130 = vrot.slane %v7012, 1
      %v7131 = vsel %vm7032, %v7130, %v7129
      %v7132 = vpack.c.b16 %v7047, %v7033
      %v7133 = vpack.c.b16 %v7075, %v7061
      %v7134 = vpack.c.b16 %v7103, %v7089
      %v7135 = vpack.c.b16 %v7131, %v7117
      %v7136 = vrot.slane %v6949, 1
      %v7137 = vsel %vm7014, %v6950, %v7136
      %v7138 = vrot.slane %v6951, 7
      %v7139 = vsel %vm7017, %v7138, %v7137
      %v7140 = vrot.slane %v6952, 6
      %v7141 = vsel %vm7020, %v7140, %v7139
      %v7142 = vrot.slane %v6953, 5
      %v7143 = vsel %vm7023, %v7142, %v7141
      %v7144 = vrot.slane %v6954, 4
      %v7145 = vsel %vm7026, %v7144, %v7143
      %v7146 = vrot.slane %v6955, 3
      %v7147 = vsel %vm7029, %v7146, %v7145
      %v7148 = vrot.slane %v6956, 2
      %v7149 = vsel %vm7032, %v7148, %v7147
      %v7150 = vrot.slane %v6957, 1
      %v7151 = vsel %vm7014, %v6958, %v7150
      %v7152 = vrot.slane %v6959, 7
      %v7153 = vsel %vm7017, %v7152, %v7151
      %v7154 = vrot.slane %v6960, 6
      %v7155 = vsel %vm7020, %v7154, %v7153
      %v7156 = vrot.slane %v6961, 5
      %v7157 = vsel %vm7023, %v7156, %v7155
      %v7158 = vrot.slane %v6962, 4
      %v7159 = vsel %vm7026, %v7158, %v7157
      %v7160 = vrot.slane %v6963, 3
      %v7161 = vsel %vm7029, %v7160, %v7159
      %v7162 = vrot.slane %v6964, 2
      %v7163 = vsel %vm7032, %v7162, %v7161
      %v7164 = vrot.slane %v6965, 1
      %v7165 = vsel %vm7014, %v6966, %v7164
      %v7166 = vrot.slane %v6967, 7
      %v7167 = vsel %vm7017, %v7166, %v7165
      %v7168 = vrot.slane %v6968, 6
      %v7169 = vsel %vm7020, %v7168, %v7167
      %v7170 = vrot.slane %v6969, 5
      %v7171 = vsel %vm7023, %v7170, %v7169
      %v7172 = vrot.slane %v6970, 4
      %v7173 = vsel %vm7026, %v7172, %v7171
      %v7174 = vrot.slane %v6971, 3
      %v7175 = vsel %vm7029, %v7174, %v7173
      %v7176 = vrot.slane %v6972, 2
      %v7177 = vsel %vm7032, %v7176, %v7175
      %v7178 = vrot.slane %v6973, 1
      %v7179 = vsel %vm7014, %v6974, %v7178
      %v7180 = vrot.slane %v6975, 7
      %v7181 = vsel %vm7017, %v7180, %v7179
      %v7182 = vrot.slane %v6976, 6
      %v7183 = vsel %vm7020, %v7182, %v7181
      %v7184 = vrot.slane %v6977, 5
      %v7185 = vsel %vm7023, %v7184, %v7183
      %v7186 = vrot.slane %v6978, 4
      %v7187 = vsel %vm7026, %v7186, %v7185
      %v7188 = vrot.slane %v6979, 3
      %v7189 = vsel %vm7029, %v7188, %v7187
      %v7190 = vrot.slane %v6980, 2
      %v7191 = vsel %vm7032, %v7190, %v7189
      %v7192 = vrot.slane %v6981, 1
      %v7193 = vsel %vm7014, %v6982, %v7192
      %v7194 = vrot.slane %v6983, 7
      %v7195 = vsel %vm7017, %v7194, %v7193
      %v7196 = vrot.slane %v6984, 6
      %v7197 = vsel %vm7020, %v7196, %v7195
      %v7198 = vrot.slane %v6985, 5
      %v7199 = vsel %vm7023, %v7198, %v7197
      %v7200 = vrot.slane %v6986, 4
      %v7201 = vsel %vm7026, %v7200, %v7199
      %v7202 = vrot.slane %v6987, 3
      %v7203 = vsel %vm7029, %v7202, %v7201
      %v7204 = vrot.slane %v6988, 2
      %v7205 = vsel %vm7032, %v7204, %v7203
      %v7206 = vrot.slane %v6989, 1
      %v7207 = vsel %vm7014, %v6990, %v7206
      %v7208 = vrot.slane %v6991, 7
      %v7209 = vsel %vm7017, %v7208, %v7207
      %v7210 = vrot.slane %v6992, 6
      %v7211 = vsel %vm7020, %v7210, %v7209
      %v7212 = vrot.slane %v6993, 5
      %v7213 = vsel %vm7023, %v7212, %v7211
      %v7214 = vrot.slane %v6994, 4
      %v7215 = vsel %vm7026, %v7214, %v7213
      %v7216 = vrot.slane %v6995, 3
      %v7217 = vsel %vm7029, %v7216, %v7215
      %v7218 = vrot.slane %v6996, 2
      %v7219 = vsel %vm7032, %v7218, %v7217
      %v7220 = vrot.slane %v6997, 1
      %v7221 = vsel %vm7014, %v6998, %v7220
      %v7222 = vrot.slane %v6999, 7
      %v7223 = vsel %vm7017, %v7222, %v7221
      %v7224 = vrot.slane %v7000, 6
      %v7225 = vsel %vm7020, %v7224, %v7223
      %v7226 = vrot.slane %v7001, 5
      %v7227 = vsel %vm7023, %v7226, %v7225
      %v7228 = vrot.slane %v7002, 4
      %v7229 = vsel %vm7026, %v7228, %v7227
      %v7230 = vrot.slane %v7003, 3
      %v7231 = vsel %vm7029, %v7230, %v7229
      %v7232 = vrot.slane %v7004, 2
      %v7233 = vsel %vm7032, %v7232, %v7231
      %v7234 = vrot.slane %v7005, 1
      %v7235 = vsel %vm7014, %v7006, %v7234
      %v7236 = vrot.slane %v7007, 7
      %v7237 = vsel %vm7017, %v7236, %v7235
      %v7238 = vrot.slane %v7008, 6
      %v7239 = vsel %vm7020, %v7238, %v7237
      %v7240 = vrot.slane %v7009, 5
      %v7241 = vsel %vm7023, %v7240, %v7239
      %v7242 = vrot.slane %v7010, 4
      %v7243 = vsel %vm7026, %v7242, %v7241
      %v7244 = vrot.slane %v7011, 3
      %v7245 = vsel %vm7029, %v7244, %v7243
      %v7246 = vrot.slane %v7012, 2
      %v7247 = vsel %vm7032, %v7246, %v7245
      %v7248 = vpack.c.b16 %v7163, %v7149
      %v7249 = vpack.c.b16 %v7191, %v7177
      %v7250 = vpack.c.b16 %v7219, %v7205
      %v7251 = vpack.c.b16 %v7247, %v7233
      %7252 = vrot.lane.b32.xlu0 %v7248, 32
      %v7253 = vpop.permute.xlu0 %7252
      %7254 = vrot.lane.b32.xlu0 %v7249, 32
      %v7255 = vpop.permute.xlu0 %7254
      %7256 = vrot.lane.b32.xlu0 %v7250, 32
      %v7257 = vpop.permute.xlu0 %7256
      %7258 = vrot.lane.b32.xlu0 %v7251, 32
      %v7259 = vpop.permute.xlu0 %7258
      %v7261 = vunpack.c.l.s4 1966171168
      %v7262 = vunpack.c.0.s8 %v7261
      %v7263 = vlaneseq
      %v7264 = vshrl.u32 %v7263, 7
      %v7265 = vsub.s32 %v7262, %v7264
      %v7266 = vrot.slane %v5028, %v7265
      %v7268 = vunpack.c.l.s4 1966171168
      %v7269 = vunpack.c.0.s8 %v7268
      %v7270 = vlaneseq
      %v7271 = vshrl.u32 %v7270, 7
      %v7272 = vsub.s32 %v7269, %v7271
      %v7273 = vrot.slane %v7266, %v7272
      %v7275 = vunpack.c.l.s4 1966171168
      %v7276 = vunpack.c.0.s8 %v7275
      %v7277 = vlaneseq
      %v7278 = vshrl.u32 %v7277, 7
      %v7279 = vsub.s32 %v7276, %v7278
      %v7280 = vrot.slane %v5091, %v7279
      %v7282 = vunpack.c.l.s4 1966171168
      %v7283 = vunpack.c.0.s8 %v7282
      %v7284 = vlaneseq
      %v7285 = vshrl.u32 %v7284, 7
      %v7286 = vsub.s32 %v7283, %v7285
      %v7287 = vrot.slane %v7280, %v7286
      %v7289 = vunpack.c.l.s4 1966171168
      %v7290 = vunpack.c.0.s8 %v7289
      %v7291 = vlaneseq
      %v7292 = vshrl.u32 %v7291, 7
      %v7293 = vsub.s32 %v7290, %v7292
      %v7294 = vrot.slane %v5154, %v7293
      %v7296 = vunpack.c.l.s4 1966171168
      %v7297 = vunpack.c.0.s8 %v7296
      %v7298 = vlaneseq
      %v7299 = vshrl.u32 %v7298, 7
      %v7300 = vsub.s32 %v7297, %v7299
      %v7301 = vrot.slane %v7294, %v7300
      %v7303 = vunpack.c.l.s4 1966171168
      %v7304 = vunpack.c.0.s8 %v7303
      %v7305 = vlaneseq
      %v7306 = vshrl.u32 %v7305, 7
      %v7307 = vsub.s32 %v7304, %v7306
      %v7308 = vrot.slane %v5217, %v7307
      %v7310 = vunpack.c.l.s4 1966171168
      %v7311 = vunpack.c.0.s8 %v7310
      %v7312 = vlaneseq
      %v7313 = vshrl.u32 %v7312, 7
      %v7314 = vsub.s32 %v7311, %v7313
      %v7315 = vrot.slane %v7308, %v7314
      %v7317 = vunpack.c.l.s4 1966171168
      %v7318 = vunpack.c.0.s8 %v7317
      %v7319 = vlaneseq
      %v7320 = vshrl.u32 %v7319, 7
      %v7321 = vsub.s32 %v7318, %v7320
      %v7322 = vrot.slane %v5280, %v7321
      %v7324 = vunpack.c.l.s4 1966171168
      %v7325 = vunpack.c.0.s8 %v7324
      %v7326 = vlaneseq
      %v7327 = vshrl.u32 %v7326, 7
      %v7328 = vsub.s32 %v7325, %v7327
      %v7329 = vrot.slane %v7322, %v7328
      %v7331 = vunpack.c.l.s4 1966171168
      %v7332 = vunpack.c.0.s8 %v7331
      %v7333 = vlaneseq
      %v7334 = vshrl.u32 %v7333, 7
      %v7335 = vsub.s32 %v7332, %v7334
      %v7336 = vrot.slane %v5343, %v7335
      %v7338 = vunpack.c.l.s4 1966171168
      %v7339 = vunpack.c.0.s8 %v7338
      %v7340 = vlaneseq
      %v7341 = vshrl.u32 %v7340, 7
      %v7342 = vsub.s32 %v7339, %v7341
      %v7343 = vrot.slane %v7336, %v7342
      %v7345 = vunpack.c.l.s4 1966171168
      %v7346 = vunpack.c.0.s8 %v7345
      %v7347 = vlaneseq
      %v7348 = vshrl.u32 %v7347, 7
      %v7349 = vsub.s32 %v7346, %v7348
      %v7350 = vrot.slane %v5406, %v7349
      %v7352 = vunpack.c.l.s4 1966171168
      %v7353 = vunpack.c.0.s8 %v7352
      %v7354 = vlaneseq
      %v7355 = vshrl.u32 %v7354, 7
      %v7356 = vsub.s32 %v7353, %v7355
      %v7357 = vrot.slane %v7350, %v7356
      %v7359 = vunpack.c.l.s4 1966171168
      %v7360 = vunpack.c.0.s8 %v7359
      %v7361 = vlaneseq
      %v7362 = vshrl.u32 %v7361, 7
      %v7363 = vsub.s32 %v7360, %v7362
      %v7364 = vrot.slane %v5469, %v7363
      %v7366 = vunpack.c.l.s4 1966171168
      %v7367 = vunpack.c.0.s8 %v7366
      %v7368 = vlaneseq
      %v7369 = vshrl.u32 %v7368, 7
      %v7370 = vsub.s32 %v7367, %v7369
      %v7371 = vrot.slane %v7364, %v7370
      %v7372 = vunpack.c.l.b16 %v7273
      %v7373 = vunpack.c.l.b16 %v7287
      %v7374 = vunpack.c.l.b16 %v7301
      %v7375 = vunpack.c.l.b16 %v7315
      %v7376 = vunpack.c.l.b16 %v7329
      %v7377 = vunpack.c.l.b16 %v7343
      %v7378 = vunpack.c.l.b16 %v7357
      %v7379 = vunpack.c.l.b16 %v7371
      %v7380 = vsel %vm7014, %v7138, %v6950
      %v7381 = vsel %vm7017, %v7140, %v7380
      %v7382 = vsel %vm7020, %v7142, %v7381
      %v7383 = vsel %vm7023, %v7144, %v7382
      %v7384 = vsel %vm7026, %v7146, %v7383
      %v7385 = vsel %vm7029, %v7148, %v7384
      %v7386 = vrot.slane %v7372, 1
      %v7387 = vsel %vm7032, %v7386, %v7385
      %v7388 = vsel %vm7014, %v7152, %v6958
      %v7389 = vsel %vm7017, %v7154, %v7388
      %v7390 = vsel %vm7020, %v7156, %v7389
      %v7391 = vsel %vm7023, %v7158, %v7390
      %v7392 = vsel %vm7026, %v7160, %v7391
      %v7393 = vsel %vm7029, %v7162, %v7392
      %v7394 = vrot.slane %v7373, 1
      %v7395 = vsel %vm7032, %v7394, %v7393
      %v7396 = vsel %vm7014, %v7166, %v6966
      %v7397 = vsel %vm7017, %v7168, %v7396
      %v7398 = vsel %vm7020, %v7170, %v7397
      %v7399 = vsel %vm7023, %v7172, %v7398
      %v7400 = vsel %vm7026, %v7174, %v7399
      %v7401 = vsel %vm7029, %v7176, %v7400
      %v7402 = vrot.slane %v7374, 1
      %v7403 = vsel %vm7032, %v7402, %v7401
      %v7404 = vsel %vm7014, %v7180, %v6974
      %v7405 = vsel %vm7017, %v7182, %v7404
      %v7406 = vsel %vm7020, %v7184, %v7405
      %v7407 = vsel %vm7023, %v7186, %v7406
      %v7408 = vsel %vm7026, %v7188, %v7407
      %v7409 = vsel %vm7029, %v7190, %v7408
      %v7410 = vrot.slane %v7375, 1
      %v7411 = vsel %vm7032, %v7410, %v7409
      %v7412 = vsel %vm7014, %v7194, %v6982
      %v7413 = vsel %vm7017, %v7196, %v7412
      %v7414 = vsel %vm7020, %v7198, %v7413
      %v7415 = vsel %vm7023, %v7200, %v7414
      %v7416 = vsel %vm7026, %v7202, %v7415
      %v7417 = vsel %vm7029, %v7204, %v7416
      %v7418 = vrot.slane %v7376, 1
      %v7419 = vsel %vm7032, %v7418, %v7417
      %v7420 = vsel %vm7014, %v7208, %v6990
      %v7421 = vsel %vm7017, %v7210, %v7420
      %v7422 = vsel %vm7020, %v7212, %v7421
      %v7423 = vsel %vm7023, %v7214, %v7422
      %v7424 = vsel %vm7026, %v7216, %v7423
      %v7425 = vsel %vm7029, %v7218, %v7424
      %v7426 = vrot.slane %v7377, 1
      %v7427 = vsel %vm7032, %v7426, %v7425
      %v7428 = vsel %vm7014, %v7222, %v6998
      %v7429 = vsel %vm7017, %v7224, %v7428
      %v7430 = vsel %vm7020, %v7226, %v7429
      %v7431 = vsel %vm7023, %v7228, %v7430
      %v7432 = vsel %vm7026, %v7230, %v7431
      %v7433 = vsel %vm7029, %v7232, %v7432
      %v7434 = vrot.slane %v7378, 1
      %v7435 = vsel %vm7032, %v7434, %v7433
      %v7436 = vsel %vm7014, %v7236, %v7006
      %v7437 = vsel %vm7017, %v7238, %v7436
      %v7438 = vsel %vm7020, %v7240, %v7437
      %v7439 = vsel %vm7023, %v7242, %v7438
      %v7440 = vsel %vm7026, %v7244, %v7439
      %v7441 = vsel %vm7029, %v7246, %v7440
      %v7442 = vrot.slane %v7379, 1
      %v7443 = vsel %vm7032, %v7442, %v7441
      %v7444 = vpack.c.b16 %v7395, %v7387
      %v7445 = vpack.c.b16 %v7411, %v7403
      %v7446 = vpack.c.b16 %v7427, %v7419
      %v7447 = vpack.c.b16 %v7443, %v7435
      %7448 = vrot.lane.b32.xlu0 %v7444, 64
      %v7449 = vpop.permute.xlu0 %7448
      %7450 = vrot.lane.b32.xlu0 %v7445, 64
      %v7451 = vpop.permute.xlu0 %7450
      %7452 = vrot.lane.b32.xlu0 %v7446, 64
      %v7453 = vpop.permute.xlu0 %7452
      %7454 = vrot.lane.b32.xlu0 %v7447, 64
      %v7455 = vpop.permute.xlu0 %7454
      %v7457 = vunpack.c.l.s4 1966171168
      %v7458 = vunpack.c.0.s8 %v7457
      %v7459 = vlaneseq
      %v7460 = vshrl.u32 %v7459, 7
      %v7461 = vsub.s32 %v7458, %v7460
      %v7462 = vrot.slane %v5572, %v7461
      %v7464 = vunpack.c.l.s4 1966171168
      %v7465 = vunpack.c.0.s8 %v7464
      %v7466 = vlaneseq
      %v7467 = vshrl.u32 %v7466, 7
      %v7468 = vsub.s32 %v7465, %v7467
      %v7469 = vrot.slane %v7462, %v7468
      %v7471 = vunpack.c.l.s4 1966171168
      %v7472 = vunpack.c.0.s8 %v7471
      %v7473 = vlaneseq
      %v7474 = vshrl.u32 %v7473, 7
      %v7475 = vsub.s32 %v7472, %v7474
      %v7476 = vrot.slane %v5586, %v7475
      %v7478 = vunpack.c.l.s4 1966171168
      %v7479 = vunpack.c.0.s8 %v7478
      %v7480 = vlaneseq
      %v7481 = vshrl.u32 %v7480, 7
      %v7482 = vsub.s32 %v7479, %v7481
      %v7483 = vrot.slane %v7476, %v7482
      %v7485 = vunpack.c.l.s4 1966171168
      %v7486 = vunpack.c.0.s8 %v7485
      %v7487 = vlaneseq
      %v7488 = vshrl.u32 %v7487, 7
      %v7489 = vsub.s32 %v7486, %v7488
      %v7490 = vrot.slane %v5594, %v7489
      %v7492 = vunpack.c.l.s4 1966171168
      %v7493 = vunpack.c.0.s8 %v7492
      %v7494 = vlaneseq
      %v7495 = vshrl.u32 %v7494, 7
      %v7496 = vsub.s32 %v7493, %v7495
      %v7497 = vrot.slane %v7490, %v7496
      %v7499 = vunpack.c.l.s4 1966171168
      %v7500 = vunpack.c.0.s8 %v7499
      %v7501 = vlaneseq
      %v7502 = vshrl.u32 %v7501, 7
      %v7503 = vsub.s32 %v7500, %v7502
      %v7504 = vrot.slane %v5596, %v7503
      %v7506 = vunpack.c.l.s4 1966171168
      %v7507 = vunpack.c.0.s8 %v7506
      %v7508 = vlaneseq
      %v7509 = vshrl.u32 %v7508, 7
      %v7510 = vsub.s32 %v7507, %v7509
      %v7511 = vrot.slane %v7504, %v7510
      %v7513 = vunpack.c.l.s4 1966171168
      %v7514 = vunpack.c.0.s8 %v7513
      %v7515 = vlaneseq
      %v7516 = vshrl.u32 %v7515, 7
      %v7517 = vsub.s32 %v7514, %v7516
      %v7518 = vrot.slane %v5579, %v7517
      %v7520 = vunpack.c.l.s4 1966171168
      %v7521 = vunpack.c.0.s8 %v7520
      %v7522 = vlaneseq
      %v7523 = vshrl.u32 %v7522, 7
      %v7524 = vsub.s32 %v7521, %v7523
      %v7525 = vrot.slane %v7518, %v7524
      %v7527 = vunpack.c.l.s4 1966171168
      %v7528 = vunpack.c.0.s8 %v7527
      %v7529 = vlaneseq
      %v7530 = vshrl.u32 %v7529, 7
      %v7531 = vsub.s32 %v7528, %v7530
      %v7532 = vrot.slane %v5593, %v7531
      %v7534 = vunpack.c.l.s4 1966171168
      %v7535 = vunpack.c.0.s8 %v7534
      %v7536 = vlaneseq
      %v7537 = vshrl.u32 %v7536, 7
      %v7538 = vsub.s32 %v7535, %v7537
      %v7539 = vrot.slane %v7532, %v7538
      %v7541 = vunpack.c.l.s4 1966171168
      %v7542 = vunpack.c.0.s8 %v7541
      %v7543 = vlaneseq
      %v7544 = vshrl.u32 %v7543, 7
      %v7545 = vsub.s32 %v7542, %v7544
      %v7546 = vrot.slane %v5595, %v7545
      %v7548 = vunpack.c.l.s4 1966171168
      %v7549 = vunpack.c.0.s8 %v7548
      %v7550 = vlaneseq
      %v7551 = vshrl.u32 %v7550, 7
      %v7552 = vsub.s32 %v7549, %v7551
      %v7553 = vrot.slane %v7546, %v7552
      %v7555 = vunpack.c.l.s4 1966171168
      %v7556 = vunpack.c.0.s8 %v7555
      %v7557 = vlaneseq
      %v7558 = vshrl.u32 %v7557, 7
      %v7559 = vsub.s32 %v7556, %v7558
      %v7560 = vrot.slane %v5597, %v7559
      %v7562 = vunpack.c.l.s4 1966171168
      %v7563 = vunpack.c.0.s8 %v7562
      %v7564 = vlaneseq
      %v7565 = vshrl.u32 %v7564, 7
      %v7566 = vsub.s32 %v7563, %v7565
      %v7567 = vrot.slane %v7560, %v7566
      %v7569 = vunpack.c.l.s4 1966171168
      %v7570 = vunpack.c.0.s8 %v7569
      %v7571 = vlaneseq
      %v7572 = vshrl.u32 %v7571, 7
      %v7573 = vsub.s32 %v7570, %v7572
      %v7574 = vrot.slane %v5635, %v7573
      %v7576 = vunpack.c.l.s4 1966171168
      %v7577 = vunpack.c.0.s8 %v7576
      %v7578 = vlaneseq
      %v7579 = vshrl.u32 %v7578, 7
      %v7580 = vsub.s32 %v7577, %v7579
      %v7581 = vrot.slane %v7574, %v7580
      %v7583 = vunpack.c.l.s4 1966171168
      %v7584 = vunpack.c.0.s8 %v7583
      %v7585 = vlaneseq
      %v7586 = vshrl.u32 %v7585, 7
      %v7587 = vsub.s32 %v7584, %v7586
      %v7588 = vrot.slane %v5649, %v7587
      %v7590 = vunpack.c.l.s4 1966171168
      %v7591 = vunpack.c.0.s8 %v7590
      %v7592 = vlaneseq
      %v7593 = vshrl.u32 %v7592, 7
      %v7594 = vsub.s32 %v7591, %v7593
      %v7595 = vrot.slane %v7588, %v7594
      %v7597 = vunpack.c.l.s4 1966171168
      %v7598 = vunpack.c.0.s8 %v7597
      %v7599 = vlaneseq
      %v7600 = vshrl.u32 %v7599, 7
      %v7601 = vsub.s32 %v7598, %v7600
      %v7602 = vrot.slane %v5657, %v7601
      %v7604 = vunpack.c.l.s4 1966171168
      %v7605 = vunpack.c.0.s8 %v7604
      %v7606 = vlaneseq
      %v7607 = vshrl.u32 %v7606, 7
      %v7608 = vsub.s32 %v7605, %v7607
      %v7609 = vrot.slane %v7602, %v7608
      %v7611 = vunpack.c.l.s4 1966171168
      %v7612 = vunpack.c.0.s8 %v7611
      %v7613 = vlaneseq
      %v7614 = vshrl.u32 %v7613, 7
      %v7615 = vsub.s32 %v7612, %v7614
      %v7616 = vrot.slane %v5659, %v7615
      %v7618 = vunpack.c.l.s4 1966171168
      %v7619 = vunpack.c.0.s8 %v7618
      %v7620 = vlaneseq
      %v7621 = vshrl.u32 %v7620, 7
      %v7622 = vsub.s32 %v7619, %v7621
      %v7623 = vrot.slane %v7616, %v7622
      %v7625 = vunpack.c.l.s4 1966171168
      %v7626 = vunpack.c.0.s8 %v7625
      %v7627 = vlaneseq
      %v7628 = vshrl.u32 %v7627, 7
      %v7629 = vsub.s32 %v7626, %v7628
      %v7630 = vrot.slane %v5642, %v7629
      %v7632 = vunpack.c.l.s4 1966171168
      %v7633 = vunpack.c.0.s8 %v7632
      %v7634 = vlaneseq
      %v7635 = vshrl.u32 %v7634, 7
      %v7636 = vsub.s32 %v7633, %v7635
      %v7637 = vrot.slane %v7630, %v7636
      %v7639 = vunpack.c.l.s4 1966171168
      %v7640 = vunpack.c.0.s8 %v7639
      %v7641 = vlaneseq
      %v7642 = vshrl.u32 %v7641, 7
      %v7643 = vsub.s32 %v7640, %v7642
      %v7644 = vrot.slane %v5656, %v7643
      %v7646 = vunpack.c.l.s4 1966171168
      %v7647 = vunpack.c.0.s8 %v7646
      %v7648 = vlaneseq
      %v7649 = vshrl.u32 %v7648, 7
      %v7650 = vsub.s32 %v7647, %v7649
      %v7651 = vrot.slane %v7644, %v7650
      %v7653 = vunpack.c.l.s4 1966171168
      %v7654 = vunpack.c.0.s8 %v7653
      %v7655 = vlaneseq
      %v7656 = vshrl.u32 %v7655, 7
      %v7657 = vsub.s32 %v7654, %v7656
      %v7658 = vrot.slane %v5658, %v7657
      %v7660 = vunpack.c.l.s4 1966171168
      %v7661 = vunpack.c.0.s8 %v7660
      %v7662 = vlaneseq
      %v7663 = vshrl.u32 %v7662, 7
      %v7664 = vsub.s32 %v7661, %v7663
      %v7665 = vrot.slane %v7658, %v7664
      %v7667 = vunpack.c.l.s4 1966171168
      %v7668 = vunpack.c.0.s8 %v7667
      %v7669 = vlaneseq
      %v7670 = vshrl.u32 %v7669, 7
      %v7671 = vsub.s32 %v7668, %v7670
      %v7672 = vrot.slane %v5660, %v7671
      %v7674 = vunpack.c.l.s4 1966171168
      %v7675 = vunpack.c.0.s8 %v7674
      %v7676 = vlaneseq
      %v7677 = vshrl.u32 %v7676, 7
      %v7678 = vsub.s32 %v7675, %v7677
      %v7679 = vrot.slane %v7672, %v7678
      %v7681 = vunpack.c.l.s4 1966171168
      %v7682 = vunpack.c.0.s8 %v7681
      %v7683 = vlaneseq
      %v7684 = vshrl.u32 %v7683, 7
      %v7685 = vsub.s32 %v7682, %v7684
      %v7686 = vrot.slane %v5698, %v7685
      %v7688 = vunpack.c.l.s4 1966171168
      %v7689 = vunpack.c.0.s8 %v7688
      %v7690 = vlaneseq
      %v7691 = vshrl.u32 %v7690, 7
      %v7692 = vsub.s32 %v7689, %v7691
      %v7693 = vrot.slane %v7686, %v7692
      %v7695 = vunpack.c.l.s4 1966171168
      %v7696 = vunpack.c.0.s8 %v7695
      %v7697 = vlaneseq
      %v7698 = vshrl.u32 %v7697, 7
      %v7699 = vsub.s32 %v7696, %v7698
      %v7700 = vrot.slane %v5712, %v7699
      %v7702 = vunpack.c.l.s4 1966171168
      %v7703 = vunpack.c.0.s8 %v7702
      %v7704 = vlaneseq
      %v7705 = vshrl.u32 %v7704, 7
      %v7706 = vsub.s32 %v7703, %v7705
      %v7707 = vrot.slane %v7700, %v7706
      %v7709 = vunpack.c.l.s4 1966171168
      %v7710 = vunpack.c.0.s8 %v7709
      %v7711 = vlaneseq
      %v7712 = vshrl.u32 %v7711, 7
      %v7713 = vsub.s32 %v7710, %v7712
      %v7714 = vrot.slane %v5720, %v7713
      %v7716 = vunpack.c.l.s4 1966171168
      %v7717 = vunpack.c.0.s8 %v7716
      %v7718 = vlaneseq
      %v7719 = vshrl.u32 %v7718, 7
      %v7720 = vsub.s32 %v7717, %v7719
      %v7721 = vrot.slane %v7714, %v7720
      %v7723 = vunpack.c.l.s4 1966171168
      %v7724 = vunpack.c.0.s8 %v7723
      %v7725 = vlaneseq
      %v7726 = vshrl.u32 %v7725, 7
      %v7727 = vsub.s32 %v7724, %v7726
      %v7728 = vrot.slane %v5722, %v7727
      %v7730 = vunpack.c.l.s4 1966171168
      %v7731 = vunpack.c.0.s8 %v7730
      %v7732 = vlaneseq
      %v7733 = vshrl.u32 %v7732, 7
      %v7734 = vsub.s32 %v7731, %v7733
      %v7735 = vrot.slane %v7728, %v7734
      %v7737 = vunpack.c.l.s4 1966171168
      %v7738 = vunpack.c.0.s8 %v7737
      %v7739 = vlaneseq
      %v7740 = vshrl.u32 %v7739, 7
      %v7741 = vsub.s32 %v7738, %v7740
      %v7742 = vrot.slane %v5705, %v7741
      %v7744 = vunpack.c.l.s4 1966171168
      %v7745 = vunpack.c.0.s8 %v7744
      %v7746 = vlaneseq
      %v7747 = vshrl.u32 %v7746, 7
      %v7748 = vsub.s32 %v7745, %v7747
      %v7749 = vrot.slane %v7742, %v7748
      %v7751 = vunpack.c.l.s4 1966171168
      %v7752 = vunpack.c.0.s8 %v7751
      %v7753 = vlaneseq
      %v7754 = vshrl.u32 %v7753, 7
      %v7755 = vsub.s32 %v7752, %v7754
      %v7756 = vrot.slane %v5719, %v7755
      %v7758 = vunpack.c.l.s4 1966171168
      %v7759 = vunpack.c.0.s8 %v7758
      %v7760 = vlaneseq
      %v7761 = vshrl.u32 %v7760, 7
      %v7762 = vsub.s32 %v7759, %v7761
      %v7763 = vrot.slane %v7756, %v7762
      %v7765 = vunpack.c.l.s4 1966171168
      %v7766 = vunpack.c.0.s8 %v7765
      %v7767 = vlaneseq
      %v7768 = vshrl.u32 %v7767, 7
      %v7769 = vsub.s32 %v7766, %v7768
      %v7770 = vrot.slane %v5721, %v7769
      %v7772 = vunpack.c.l.s4 1966171168
      %v7773 = vunpack.c.0.s8 %v7772
      %v7774 = vlaneseq
      %v7775 = vshrl.u32 %v7774, 7
      %v7776 = vsub.s32 %v7773, %v7775
      %v7777 = vrot.slane %v7770, %v7776
      %v7779 = vunpack.c.l.s4 1966171168
      %v7780 = vunpack.c.0.s8 %v7779
      %v7781 = vlaneseq
      %v7782 = vshrl.u32 %v7781, 7
      %v7783 = vsub.s32 %v7780, %v7782
      %v7784 = vrot.slane %v5723, %v7783
      %v7786 = vunpack.c.l.s4 1966171168
      %v7787 = vunpack.c.0.s8 %v7786
      %v7788 = vlaneseq
      %v7789 = vshrl.u32 %v7788, 7
      %v7790 = vsub.s32 %v7787, %v7789
      %v7791 = vrot.slane %v7784, %v7790
      %v7793 = vunpack.c.l.s4 1966171168
      %v7794 = vunpack.c.0.s8 %v7793
      %v7795 = vlaneseq
      %v7796 = vshrl.u32 %v7795, 7
      %v7797 = vsub.s32 %v7794, %v7796
      %v7798 = vrot.slane %v5761, %v7797
      %v7800 = vunpack.c.l.s4 1966171168
      %v7801 = vunpack.c.0.s8 %v7800
      %v7802 = vlaneseq
      %v7803 = vshrl.u32 %v7802, 7
      %v7804 = vsub.s32 %v7801, %v7803
      %v7805 = vrot.slane %v7798, %v7804
      %v7807 = vunpack.c.l.s4 1966171168
      %v7808 = vunpack.c.0.s8 %v7807
      %v7809 = vlaneseq
      %v7810 = vshrl.u32 %v7809, 7
      %v7811 = vsub.s32 %v7808, %v7810
      %v7812 = vrot.slane %v5775, %v7811
      %v7814 = vunpack.c.l.s4 1966171168
      %v7815 = vunpack.c.0.s8 %v7814
      %v7816 = vlaneseq
      %v7817 = vshrl.u32 %v7816, 7
      %v7818 = vsub.s32 %v7815, %v7817
      %v7819 = vrot.slane %v7812, %v7818
      %v7821 = vunpack.c.l.s4 1966171168
      %v7822 = vunpack.c.0.s8 %v7821
      %v7823 = vlaneseq
      %v7824 = vshrl.u32 %v7823, 7
      %v7825 = vsub.s32 %v7822, %v7824
      %v7826 = vrot.slane %v5783, %v7825
      %v7828 = vunpack.c.l.s4 1966171168
      %v7829 = vunpack.c.0.s8 %v7828
      %v7830 = vlaneseq
      %v7831 = vshrl.u32 %v7830, 7
      %v7832 = vsub.s32 %v7829, %v7831
      %v7833 = vrot.slane %v7826, %v7832
      %v7835 = vunpack.c.l.s4 1966171168
      %v7836 = vunpack.c.0.s8 %v7835
      %v7837 = vlaneseq
      %v7838 = vshrl.u32 %v7837, 7
      %v7839 = vsub.s32 %v7836, %v7838
      %v7840 = vrot.slane %v5785, %v7839
      %v7842 = vunpack.c.l.s4 1966171168
      %v7843 = vunpack.c.0.s8 %v7842
      %v7844 = vlaneseq
      %v7845 = vshrl.u32 %v7844, 7
      %v7846 = vsub.s32 %v7843, %v7845
      %v7847 = vrot.slane %v7840, %v7846
      %v7849 = vunpack.c.l.s4 1966171168
      %v7850 = vunpack.c.0.s8 %v7849
      %v7851 = vlaneseq
      %v7852 = vshrl.u32 %v7851, 7
      %v7853 = vsub.s32 %v7850, %v7852
      %v7854 = vrot.slane %v5768, %v7853
      %v7856 = vunpack.c.l.s4 1966171168
      %v7857 = vunpack.c.0.s8 %v7856
      %v7858 = vlaneseq
      %v7859 = vshrl.u32 %v7858, 7
      %v7860 = vsub.s32 %v7857, %v7859
      %v7861 = vrot.slane %v7854, %v7860
      %v7863 = vunpack.c.l.s4 1966171168
      %v7864 = vunpack.c.0.s8 %v7863
      %v7865 = vlaneseq
      %v7866 = vshrl.u32 %v7865, 7
      %v7867 = vsub.s32 %v7864, %v7866
      %v7868 = vrot.slane %v5782, %v7867
      %v7870 = vunpack.c.l.s4 1966171168
      %v7871 = vunpack.c.0.s8 %v7870
      %v7872 = vlaneseq
      %v7873 = vshrl.u32 %v7872, 7
      %v7874 = vsub.s32 %v7871, %v7873
      %v7875 = vrot.slane %v7868, %v7874
      %v7877 = vunpack.c.l.s4 1966171168
      %v7878 = vunpack.c.0.s8 %v7877
      %v7879 = vlaneseq
      %v7880 = vshrl.u32 %v7879, 7
      %v7881 = vsub.s32 %v7878, %v7880
      %v7882 = vrot.slane %v5784, %v7881
      %v7884 = vunpack.c.l.s4 1966171168
      %v7885 = vunpack.c.0.s8 %v7884
      %v7886 = vlaneseq
      %v7887 = vshrl.u32 %v7886, 7
      %v7888 = vsub.s32 %v7885, %v7887
      %v7889 = vrot.slane %v7882, %v7888
      %v7891 = vunpack.c.l.s4 1966171168
      %v7892 = vunpack.c.0.s8 %v7891
      %v7893 = vlaneseq
      %v7894 = vshrl.u32 %v7893, 7
      %v7895 = vsub.s32 %v7892, %v7894
      %v7896 = vrot.slane %v5786, %v7895
      %v7898 = vunpack.c.l.s4 1966171168
      %v7899 = vunpack.c.0.s8 %v7898
      %v7900 = vlaneseq
      %v7901 = vshrl.u32 %v7900, 7
      %v7902 = vsub.s32 %v7899, %v7901
      %v7903 = vrot.slane %v7896, %v7902
      %v7905 = vunpack.c.l.s4 1966171168
      %v7906 = vunpack.c.0.s8 %v7905
      %v7907 = vlaneseq
      %v7908 = vshrl.u32 %v7907, 7
      %v7909 = vsub.s32 %v7906, %v7908
      %v7910 = vrot.slane %v5824, %v7909
      %v7912 = vunpack.c.l.s4 1966171168
      %v7913 = vunpack.c.0.s8 %v7912
      %v7914 = vlaneseq
      %v7915 = vshrl.u32 %v7914, 7
      %v7916 = vsub.s32 %v7913, %v7915
      %v7917 = vrot.slane %v7910, %v7916
      %v7919 = vunpack.c.l.s4 1966171168
      %v7920 = vunpack.c.0.s8 %v7919
      %v7921 = vlaneseq
      %v7922 = vshrl.u32 %v7921, 7
      %v7923 = vsub.s32 %v7920, %v7922
      %v7924 = vrot.slane %v5838, %v7923
      %v7926 = vunpack.c.l.s4 1966171168
      %v7927 = vunpack.c.0.s8 %v7926
      %v7928 = vlaneseq
      %v7929 = vshrl.u32 %v7928, 7
      %v7930 = vsub.s32 %v7927, %v7929
      %v7931 = vrot.slane %v7924, %v7930
      %v7933 = vunpack.c.l.s4 1966171168
      %v7934 = vunpack.c.0.s8 %v7933
      %v7935 = vlaneseq
      %v7936 = vshrl.u32 %v7935, 7
      %v7937 = vsub.s32 %v7934, %v7936
      %v7938 = vrot.slane %v5846, %v7937
      %v7940 = vunpack.c.l.s4 1966171168
      %v7941 = vunpack.c.0.s8 %v7940
      %v7942 = vlaneseq
      %v7943 = vshrl.u32 %v7942, 7
      %v7944 = vsub.s32 %v7941, %v7943
      %v7945 = vrot.slane %v7938, %v7944
      %v7947 = vunpack.c.l.s4 1966171168
      %v7948 = vunpack.c.0.s8 %v7947
      %v7949 = vlaneseq
      %v7950 = vshrl.u32 %v7949, 7
      %v7951 = vsub.s32 %v7948, %v7950
      %v7952 = vrot.slane %v5848, %v7951
      %v7954 = vunpack.c.l.s4 1966171168
      %v7955 = vunpack.c.0.s8 %v7954
      %v7956 = vlaneseq
      %v7957 = vshrl.u32 %v7956, 7
      %v7958 = vsub.s32 %v7955, %v7957
      %v7959 = vrot.slane %v7952, %v7958
      %v7961 = vunpack.c.l.s4 1966171168
      %v7962 = vunpack.c.0.s8 %v7961
      %v7963 = vlaneseq
      %v7964 = vshrl.u32 %v7963, 7
      %v7965 = vsub.s32 %v7962, %v7964
      %v7966 = vrot.slane %v5831, %v7965
      %v7968 = vunpack.c.l.s4 1966171168
      %v7969 = vunpack.c.0.s8 %v7968
      %v7970 = vlaneseq
      %v7971 = vshrl.u32 %v7970, 7
      %v7972 = vsub.s32 %v7969, %v7971
      %v7973 = vrot.slane %v7966, %v7972
      %v7975 = vunpack.c.l.s4 1966171168
      %v7976 = vunpack.c.0.s8 %v7975
      %v7977 = vlaneseq
      %v7978 = vshrl.u32 %v7977, 7
      %v7979 = vsub.s32 %v7976, %v7978
      %v7980 = vrot.slane %v5845, %v7979
      %v7982 = vunpack.c.l.s4 1966171168
      %v7983 = vunpack.c.0.s8 %v7982
      %v7984 = vlaneseq
      %v7985 = vshrl.u32 %v7984, 7
      %v7986 = vsub.s32 %v7983, %v7985
      %v7987 = vrot.slane %v7980, %v7986
      %v7989 = vunpack.c.l.s4 1966171168
      %v7990 = vunpack.c.0.s8 %v7989
      %v7991 = vlaneseq
      %v7992 = vshrl.u32 %v7991, 7
      %v7993 = vsub.s32 %v7990, %v7992
      %v7994 = vrot.slane %v5847, %v7993
      %v7996 = vunpack.c.l.s4 1966171168
      %v7997 = vunpack.c.0.s8 %v7996
      %v7998 = vlaneseq
      %v7999 = vshrl.u32 %v7998, 7
      %v8000 = vsub.s32 %v7997, %v7999
      %v8001 = vrot.slane %v7994, %v8000
      %v8003 = vunpack.c.l.s4 1966171168
      %v8004 = vunpack.c.0.s8 %v8003
      %v8005 = vlaneseq
      %v8006 = vshrl.u32 %v8005, 7
      %v8007 = vsub.s32 %v8004, %v8006
      %v8008 = vrot.slane %v5849, %v8007
      %v8010 = vunpack.c.l.s4 1966171168
      %v8011 = vunpack.c.0.s8 %v8010
      %v8012 = vlaneseq
      %v8013 = vshrl.u32 %v8012, 7
      %v8014 = vsub.s32 %v8011, %v8013
      %v8015 = vrot.slane %v8008, %v8014
      %v8017 = vunpack.c.l.s4 1966171168
      %v8018 = vunpack.c.0.s8 %v8017
      %v8019 = vlaneseq
      %v8020 = vshrl.u32 %v8019, 7
      %v8021 = vsub.s32 %v8018, %v8020
      %v8022 = vrot.slane %v5887, %v8021
      %v8024 = vunpack.c.l.s4 1966171168
      %v8025 = vunpack.c.0.s8 %v8024
      %v8026 = vlaneseq
      %v8027 = vshrl.u32 %v8026, 7
      %v8028 = vsub.s32 %v8025, %v8027
      %v8029 = vrot.slane %v8022, %v8028
      %v8031 = vunpack.c.l.s4 1966171168
      %v8032 = vunpack.c.0.s8 %v8031
      %v8033 = vlaneseq
      %v8034 = vshrl.u32 %v8033, 7
      %v8035 = vsub.s32 %v8032, %v8034
      %v8036 = vrot.slane %v5901, %v8035
      %v8038 = vunpack.c.l.s4 1966171168
      %v8039 = vunpack.c.0.s8 %v8038
      %v8040 = vlaneseq
      %v8041 = vshrl.u32 %v8040, 7
      %v8042 = vsub.s32 %v8039, %v8041
      %v8043 = vrot.slane %v8036, %v8042
      %v8045 = vunpack.c.l.s4 1966171168
      %v8046 = vunpack.c.0.s8 %v8045
      %v8047 = vlaneseq
      %v8048 = vshrl.u32 %v8047, 7
      %v8049 = vsub.s32 %v8046, %v8048
      %v8050 = vrot.slane %v5909, %v8049
      %v8052 = vunpack.c.l.s4 1966171168
      %v8053 = vunpack.c.0.s8 %v8052
      %v8054 = vlaneseq
      %v8055 = vshrl.u32 %v8054, 7
      %v8056 = vsub.s32 %v8053, %v8055
      %v8057 = vrot.slane %v8050, %v8056
      %v8059 = vunpack.c.l.s4 1966171168
      %v8060 = vunpack.c.0.s8 %v8059
      %v8061 = vlaneseq
      %v8062 = vshrl.u32 %v8061, 7
      %v8063 = vsub.s32 %v8060, %v8062
      %v8064 = vrot.slane %v5911, %v8063
      %v8066 = vunpack.c.l.s4 1966171168
      %v8067 = vunpack.c.0.s8 %v8066
      %v8068 = vlaneseq
      %v8069 = vshrl.u32 %v8068, 7
      %v8070 = vsub.s32 %v8067, %v8069
      %v8071 = vrot.slane %v8064, %v8070
      %v8073 = vunpack.c.l.s4 1966171168
      %v8074 = vunpack.c.0.s8 %v8073
      %v8075 = vlaneseq
      %v8076 = vshrl.u32 %v8075, 7
      %v8077 = vsub.s32 %v8074, %v8076
      %v8078 = vrot.slane %v5894, %v8077
      %v8080 = vunpack.c.l.s4 1966171168
      %v8081 = vunpack.c.0.s8 %v8080
      %v8082 = vlaneseq
      %v8083 = vshrl.u32 %v8082, 7
      %v8084 = vsub.s32 %v8081, %v8083
      %v8085 = vrot.slane %v8078, %v8084
      %v8087 = vunpack.c.l.s4 1966171168
      %v8088 = vunpack.c.0.s8 %v8087
      %v8089 = vlaneseq
      %v8090 = vshrl.u32 %v8089, 7
      %v8091 = vsub.s32 %v8088, %v8090
      %v8092 = vrot.slane %v5908, %v8091
      %v8094 = vunpack.c.l.s4 1966171168
      %v8095 = vunpack.c.0.s8 %v8094
      %v8096 = vlaneseq
      %v8097 = vshrl.u32 %v8096, 7
      %v8098 = vsub.s32 %v8095, %v8097
      %v8099 = vrot.slane %v8092, %v8098
      %v8101 = vunpack.c.l.s4 1966171168
      %v8102 = vunpack.c.0.s8 %v8101
      %v8103 = vlaneseq
      %v8104 = vshrl.u32 %v8103, 7
      %v8105 = vsub.s32 %v8102, %v8104
      %v8106 = vrot.slane %v5910, %v8105
      %v8108 = vunpack.c.l.s4 1966171168
      %v8109 = vunpack.c.0.s8 %v8108
      %v8110 = vlaneseq
      %v8111 = vshrl.u32 %v8110, 7
      %v8112 = vsub.s32 %v8109, %v8111
      %v8113 = vrot.slane %v8106, %v8112
      %v8115 = vunpack.c.l.s4 1966171168
      %v8116 = vunpack.c.0.s8 %v8115
      %v8117 = vlaneseq
      %v8118 = vshrl.u32 %v8117, 7
      %v8119 = vsub.s32 %v8116, %v8118
      %v8120 = vrot.slane %v5912, %v8119
      %v8122 = vunpack.c.l.s4 1966171168
      %v8123 = vunpack.c.0.s8 %v8122
      %v8124 = vlaneseq
      %v8125 = vshrl.u32 %v8124, 7
      %v8126 = vsub.s32 %v8123, %v8125
      %v8127 = vrot.slane %v8120, %v8126
      %v8129 = vunpack.c.l.s4 1966171168
      %v8130 = vunpack.c.0.s8 %v8129
      %v8131 = vlaneseq
      %v8132 = vshrl.u32 %v8131, 7
      %v8133 = vsub.s32 %v8130, %v8132
      %v8134 = vrot.slane %v5950, %v8133
      %v8136 = vunpack.c.l.s4 1966171168
      %v8137 = vunpack.c.0.s8 %v8136
      %v8138 = vlaneseq
      %v8139 = vshrl.u32 %v8138, 7
      %v8140 = vsub.s32 %v8137, %v8139
      %v8141 = vrot.slane %v8134, %v8140
      %v8143 = vunpack.c.l.s4 1966171168
      %v8144 = vunpack.c.0.s8 %v8143
      %v8145 = vlaneseq
      %v8146 = vshrl.u32 %v8145, 7
      %v8147 = vsub.s32 %v8144, %v8146
      %v8148 = vrot.slane %v5964, %v8147
      %v8150 = vunpack.c.l.s4 1966171168
      %v8151 = vunpack.c.0.s8 %v8150
      %v8152 = vlaneseq
      %v8153 = vshrl.u32 %v8152, 7
      %v8154 = vsub.s32 %v8151, %v8153
      %v8155 = vrot.slane %v8148, %v8154
      %v8157 = vunpack.c.l.s4 1966171168
      %v8158 = vunpack.c.0.s8 %v8157
      %v8159 = vlaneseq
      %v8160 = vshrl.u32 %v8159, 7
      %v8161 = vsub.s32 %v8158, %v8160
      %v8162 = vrot.slane %v5972, %v8161
      %v8164 = vunpack.c.l.s4 1966171168
      %v8165 = vunpack.c.0.s8 %v8164
      %v8166 = vlaneseq
      %v8167 = vshrl.u32 %v8166, 7
      %v8168 = vsub.s32 %v8165, %v8167
      %v8169 = vrot.slane %v8162, %v8168
      %v8171 = vunpack.c.l.s4 1966171168
      %v8172 = vunpack.c.0.s8 %v8171
      %v8173 = vlaneseq
      %v8174 = vshrl.u32 %v8173, 7
      %v8175 = vsub.s32 %v8172, %v8174
      %v8176 = vrot.slane %v5974, %v8175
      %v8178 = vunpack.c.l.s4 1966171168
      %v8179 = vunpack.c.0.s8 %v8178
      %v8180 = vlaneseq
      %v8181 = vshrl.u32 %v8180, 7
      %v8182 = vsub.s32 %v8179, %v8181
      %v8183 = vrot.slane %v8176, %v8182
      %v8185 = vunpack.c.l.s4 1966171168
      %v8186 = vunpack.c.0.s8 %v8185
      %v8187 = vlaneseq
      %v8188 = vshrl.u32 %v8187, 7
      %v8189 = vsub.s32 %v8186, %v8188
      %v8190 = vrot.slane %v5957, %v8189
      %v8192 = vunpack.c.l.s4 1966171168
      %v8193 = vunpack.c.0.s8 %v8192
      %v8194 = vlaneseq
      %v8195 = vshrl.u32 %v8194, 7
      %v8196 = vsub.s32 %v8193, %v8195
      %v8197 = vrot.slane %v8190, %v8196
      %v8199 = vunpack.c.l.s4 1966171168
      %v8200 = vunpack.c.0.s8 %v8199
      %v8201 = vlaneseq
      %v8202 = vshrl.u32 %v8201, 7
      %v8203 = vsub.s32 %v8200, %v8202
      %v8204 = vrot.slane %v5971, %v8203
      %v8206 = vunpack.c.l.s4 1966171168
      %v8207 = vunpack.c.0.s8 %v8206
      %v8208 = vlaneseq
      %v8209 = vshrl.u32 %v8208, 7
      %v8210 = vsub.s32 %v8207, %v8209
      %v8211 = vrot.slane %v8204, %v8210
      %v8213 = vunpack.c.l.s4 1966171168
      %v8214 = vunpack.c.0.s8 %v8213
      %v8215 = vlaneseq
      %v8216 = vshrl.u32 %v8215, 7
      %v8217 = vsub.s32 %v8214, %v8216
      %v8218 = vrot.slane %v5973, %v8217
      %v8220 = vunpack.c.l.s4 1966171168
      %v8221 = vunpack.c.0.s8 %v8220
      %v8222 = vlaneseq
      %v8223 = vshrl.u32 %v8222, 7
      %v8224 = vsub.s32 %v8221, %v8223
      %v8225 = vrot.slane %v8218, %v8224
      %v8227 = vunpack.c.l.s4 1966171168
      %v8228 = vunpack.c.0.s8 %v8227
      %v8229 = vlaneseq
      %v8230 = vshrl.u32 %v8229, 7
      %v8231 = vsub.s32 %v8228, %v8230
      %v8232 = vrot.slane %v5975, %v8231
      %v8234 = vunpack.c.l.s4 1966171168
      %v8235 = vunpack.c.0.s8 %v8234
      %v8236 = vlaneseq
      %v8237 = vshrl.u32 %v8236, 7
      %v8238 = vsub.s32 %v8235, %v8237
      %v8239 = vrot.slane %v8232, %v8238
      %v8241 = vunpack.c.l.s4 1966171168
      %v8242 = vunpack.c.0.s8 %v8241
      %v8243 = vlaneseq
      %v8244 = vshrl.u32 %v8243, 7
      %v8245 = vsub.s32 %v8242, %v8244
      %v8246 = vrot.slane %v6013, %v8245
      %v8248 = vunpack.c.l.s4 1966171168
      %v8249 = vunpack.c.0.s8 %v8248
      %v8250 = vlaneseq
      %v8251 = vshrl.u32 %v8250, 7
      %v8252 = vsub.s32 %v8249, %v8251
      %v8253 = vrot.slane %v8246, %v8252
      %v8255 = vunpack.c.l.s4 1966171168
      %v8256 = vunpack.c.0.s8 %v8255
      %v8257 = vlaneseq
      %v8258 = vshrl.u32 %v8257, 7
      %v8259 = vsub.s32 %v8256, %v8258
      %v8260 = vrot.slane %v6027, %v8259
      %v8262 = vunpack.c.l.s4 1966171168
      %v8263 = vunpack.c.0.s8 %v8262
      %v8264 = vlaneseq
      %v8265 = vshrl.u32 %v8264, 7
      %v8266 = vsub.s32 %v8263, %v8265
      %v8267 = vrot.slane %v8260, %v8266
      %v8269 = vunpack.c.l.s4 1966171168
      %v8270 = vunpack.c.0.s8 %v8269
      %v8271 = vlaneseq
      %v8272 = vshrl.u32 %v8271, 7
      %v8273 = vsub.s32 %v8270, %v8272
      %v8274 = vrot.slane %v6035, %v8273
      %v8276 = vunpack.c.l.s4 1966171168
      %v8277 = vunpack.c.0.s8 %v8276
      %v8278 = vlaneseq
      %v8279 = vshrl.u32 %v8278, 7
      %v8280 = vsub.s32 %v8277, %v8279
      %v8281 = vrot.slane %v8274, %v8280
      %v8283 = vunpack.c.l.s4 1966171168
      %v8284 = vunpack.c.0.s8 %v8283
      %v8285 = vlaneseq
      %v8286 = vshrl.u32 %v8285, 7
      %v8287 = vsub.s32 %v8284, %v8286
      %v8288 = vrot.slane %v6037, %v8287
      %v8290 = vunpack.c.l.s4 1966171168
      %v8291 = vunpack.c.0.s8 %v8290
      %v8292 = vlaneseq
      %v8293 = vshrl.u32 %v8292, 7
      %v8294 = vsub.s32 %v8291, %v8293
      %v8295 = vrot.slane %v8288, %v8294
      %v8297 = vunpack.c.l.s4 1966171168
      %v8298 = vunpack.c.0.s8 %v8297
      %v8299 = vlaneseq
      %v8300 = vshrl.u32 %v8299, 7
      %v8301 = vsub.s32 %v8298, %v8300
      %v8302 = vrot.slane %v6020, %v8301
      %v8304 = vunpack.c.l.s4 1966171168
      %v8305 = vunpack.c.0.s8 %v8304
      %v8306 = vlaneseq
      %v8307 = vshrl.u32 %v8306, 7
      %v8308 = vsub.s32 %v8305, %v8307
      %v8309 = vrot.slane %v8302, %v8308
      %v8311 = vunpack.c.l.s4 1966171168
      %v8312 = vunpack.c.0.s8 %v8311
      %v8313 = vlaneseq
      %v8314 = vshrl.u32 %v8313, 7
      %v8315 = vsub.s32 %v8312, %v8314
      %v8316 = vrot.slane %v6034, %v8315
      %v8318 = vunpack.c.l.s4 1966171168
      %v8319 = vunpack.c.0.s8 %v8318
      %v8320 = vlaneseq
      %v8321 = vshrl.u32 %v8320, 7
      %v8322 = vsub.s32 %v8319, %v8321
      %v8323 = vrot.slane %v8316, %v8322
      %v8325 = vunpack.c.l.s4 1966171168
      %v8326 = vunpack.c.0.s8 %v8325
      %v8327 = vlaneseq
      %v8328 = vshrl.u32 %v8327, 7
      %v8329 = vsub.s32 %v8326, %v8328
      %v8330 = vrot.slane %v6036, %v8329
      %v8332 = vunpack.c.l.s4 1966171168
      %v8333 = vunpack.c.0.s8 %v8332
      %v8334 = vlaneseq
      %v8335 = vshrl.u32 %v8334, 7
      %v8336 = vsub.s32 %v8333, %v8335
      %v8337 = vrot.slane %v8330, %v8336
      %v8339 = vunpack.c.l.s4 1966171168
      %v8340 = vunpack.c.0.s8 %v8339
      %v8341 = vlaneseq
      %v8342 = vshrl.u32 %v8341, 7
      %v8343 = vsub.s32 %v8340, %v8342
      %v8344 = vrot.slane %v6038, %v8343
      %v8346 = vunpack.c.l.s4 1966171168
      %v8347 = vunpack.c.0.s8 %v8346
      %v8348 = vlaneseq
      %v8349 = vshrl.u32 %v8348, 7
      %v8350 = vsub.s32 %v8347, %v8349
      %v8351 = vrot.slane %v8344, %v8350
      %v8352 = vunpack.c.l.b16 %v7469
      %v8353 = vunpack.c.l.b16 %v7483
      %v8354 = vunpack.c.l.b16 %v7497
      %v8355 = vunpack.c.l.b16 %v7511
      %v8356 = vunpack.c.l.b16 %v7525
      %v8357 = vunpack.c.l.b16 %v7539
      %v8358 = vunpack.c.l.b16 %v7553
      %v8359 = vunpack.c.l.b16 %v7567
      %v8360 = vunpack.c.l.b16 %v7581
      %v8361 = vunpack.c.l.b16 %v7595
      %v8362 = vunpack.c.l.b16 %v7609
      %v8363 = vunpack.c.l.b16 %v7623
      %v8364 = vunpack.c.l.b16 %v7637
      %v8365 = vunpack.c.l.b16 %v7651
      %v8366 = vunpack.c.l.b16 %v7665
      %v8367 = vunpack.c.l.b16 %v7679
      %v8368 = vunpack.c.l.b16 %v7693
      %v8369 = vunpack.c.l.b16 %v7707
      %v8370 = vunpack.c.l.b16 %v7721
      %v8371 = vunpack.c.l.b16 %v7735
      %v8372 = vunpack.c.l.b16 %v7749
      %v8373 = vunpack.c.l.b16 %v7763
      %v8374 = vunpack.c.l.b16 %v7777
      %v8375 = vunpack.c.l.b16 %v7791
      %v8376 = vunpack.c.l.b16 %v7805
      %v8377 = vunpack.c.l.b16 %v7819
      %v8378 = vunpack.c.l.b16 %v7833
      %v8379 = vunpack.c.l.b16 %v7847
      %v8380 = vunpack.c.l.b16 %v7861
      %v8381 = vunpack.c.l.b16 %v7875
      %v8382 = vunpack.c.l.b16 %v7889
      %v8383 = vunpack.c.l.b16 %v7903
      %v8384 = vunpack.c.l.b16 %v7917
      %v8385 = vunpack.c.l.b16 %v7931
      %v8386 = vunpack.c.l.b16 %v7945
      %v8387 = vunpack.c.l.b16 %v7959
      %v8388 = vunpack.c.l.b16 %v7973
      %v8389 = vunpack.c.l.b16 %v7987
      %v8390 = vunpack.c.l.b16 %v8001
      %v8391 = vunpack.c.l.b16 %v8015
      %v8392 = vunpack.c.l.b16 %v8029
      %v8393 = vunpack.c.l.b16 %v8043
      %v8394 = vunpack.c.l.b16 %v8057
      %v8395 = vunpack.c.l.b16 %v8071
      %v8396 = vunpack.c.l.b16 %v8085
      %v8397 = vunpack.c.l.b16 %v8099
      %v8398 = vunpack.c.l.b16 %v8113
      %v8399 = vunpack.c.l.b16 %v8127
      %v8400 = vunpack.c.l.b16 %v8141
      %v8401 = vunpack.c.l.b16 %v8155
      %v8402 = vunpack.c.l.b16 %v8169
      %v8403 = vunpack.c.l.b16 %v8183
      %v8404 = vunpack.c.l.b16 %v8197
      %v8405 = vunpack.c.l.b16 %v8211
      %v8406 = vunpack.c.l.b16 %v8225
      %v8407 = vunpack.c.l.b16 %v8239
      %v8408 = vunpack.c.l.b16 %v8253
      %v8409 = vunpack.c.l.b16 %v8267
      %v8410 = vunpack.c.l.b16 %v8281
      %v8411 = vunpack.c.l.b16 %v8295
      %v8412 = vunpack.c.l.b16 %v8309
      %v8413 = vunpack.c.l.b16 %v8323
      %v8414 = vunpack.c.l.b16 %v8337
      %v8415 = vunpack.c.l.b16 %v8351
      %v8416 = vrot.slane %v8353, 7
      %v8417 = vsel %vm7014, %v8416, %v8352
      %v8418 = vrot.slane %v8354, 6
      %v8419 = vsel %vm7017, %v8418, %v8417
      %v8420 = vrot.slane %v8355, 5
      %v8421 = vsel %vm7020, %v8420, %v8419
      %v8422 = vrot.slane %v8356, 4
      %v8423 = vsel %vm7023, %v8422, %v8421
      %v8424 = vrot.slane %v8357, 3
      %v8425 = vsel %vm7026, %v8424, %v8423
      %v8426 = vrot.slane %v8358, 2
      %v8427 = vsel %vm7029, %v8426, %v8425
      %v8428 = vrot.slane %v8359, 1
      %v8429 = vsel %vm7032, %v8428, %v8427
      %v8430 = vrot.slane %v8361, 7
      %v8431 = vsel %vm7014, %v8430, %v8360
      %v8432 = vrot.slane %v8362, 6
      %v8433 = vsel %vm7017, %v8432, %v8431
      %v8434 = vrot.slane %v8363, 5
      %v8435 = vsel %vm7020, %v8434, %v8433
      %v8436 = vrot.slane %v8364, 4
      %v8437 = vsel %vm7023, %v8436, %v8435
      %v8438 = vrot.slane %v8365, 3
      %v8439 = vsel %vm7026, %v8438, %v8437
      %v8440 = vrot.slane %v8366, 2
      %v8441 = vsel %vm7029, %v8440, %v8439
      %v8442 = vrot.slane %v8367, 1
      %v8443 = vsel %vm7032, %v8442, %v8441
      %v8444 = vrot.slane %v8369, 7
      %v8445 = vsel %vm7014, %v8444, %v8368
      %v8446 = vrot.slane %v8370, 6
      %v8447 = vsel %vm7017, %v8446, %v8445
      %v8448 = vrot.slane %v8371, 5
      %v8449 = vsel %vm7020, %v8448, %v8447
      %v8450 = vrot.slane %v8372, 4
      %v8451 = vsel %vm7023, %v8450, %v8449
      %v8452 = vrot.slane %v8373, 3
      %v8453 = vsel %vm7026, %v8452, %v8451
      %v8454 = vrot.slane %v8374, 2
      %v8455 = vsel %vm7029, %v8454, %v8453
      %v8456 = vrot.slane %v8375, 1
      %v8457 = vsel %vm7032, %v8456, %v8455
      %v8458 = vrot.slane %v8377, 7
      %v8459 = vsel %vm7014, %v8458, %v8376
      %v8460 = vrot.slane %v8378, 6
      %v8461 = vsel %vm7017, %v8460, %v8459
      %v8462 = vrot.slane %v8379, 5
      %v8463 = vsel %vm7020, %v8462, %v8461
      %v8464 = vrot.slane %v8380, 4
      %v8465 = vsel %vm7023, %v8464, %v8463
      %v8466 = vrot.slane %v8381, 3
      %v8467 = vsel %vm7026, %v8466, %v8465
      %v8468 = vrot.slane %v8382, 2
      %v8469 = vsel %vm7029, %v8468, %v8467
      %v8470 = vrot.slane %v8383, 1
      %v8471 = vsel %vm7032, %v8470, %v8469
      %v8472 = vrot.slane %v8385, 7
      %v8473 = vsel %vm7014, %v8472, %v8384
      %v8474 = vrot.slane %v8386, 6
      %v8475 = vsel %vm7017, %v8474, %v8473
      %v8476 = vrot.slane %v8387, 5
      %v8477 = vsel %vm7020, %v8476, %v8475
      %v8478 = vrot.slane %v8388, 4
      %v8479 = vsel %vm7023, %v8478, %v8477
      %v8480 = vrot.slane %v8389, 3
      %v8481 = vsel %vm7026, %v8480, %v8479
      %v8482 = vrot.slane %v8390, 2
      %v8483 = vsel %vm7029, %v8482, %v8481
      %v8484 = vrot.slane %v8391, 1
      %v8485 = vsel %vm7032, %v8484, %v8483
      %v8486 = vrot.slane %v8393, 7
      %v8487 = vsel %vm7014, %v8486, %v8392
      %v8488 = vrot.slane %v8394, 6
      %v8489 = vsel %vm7017, %v8488, %v8487
      %v8490 = vrot.slane %v8395, 5
      %v8491 = vsel %vm7020, %v8490, %v8489
      %v8492 = vrot.slane %v8396, 4
      %v8493 = vsel %vm7023, %v8492, %v8491
      %v8494 = vrot.slane %v8397, 3
      %v8495 = vsel %vm7026, %v8494, %v8493
      %v8496 = vrot.slane %v8398, 2
      %v8497 = vsel %vm7029, %v8496, %v8495
      %v8498 = vrot.slane %v8399, 1
      %v8499 = vsel %vm7032, %v8498, %v8497
      %v8500 = vrot.slane %v8401, 7
      %v8501 = vsel %vm7014, %v8500, %v8400
      %v8502 = vrot.slane %v8402, 6
      %v8503 = vsel %vm7017, %v8502, %v8501
      %v8504 = vrot.slane %v8403, 5
      %v8505 = vsel %vm7020, %v8504, %v8503
      %v8506 = vrot.slane %v8404, 4
      %v8507 = vsel %vm7023, %v8506, %v8505
      %v8508 = vrot.slane %v8405, 3
      %v8509 = vsel %vm7026, %v8508, %v8507
      %v8510 = vrot.slane %v8406, 2
      %v8511 = vsel %vm7029, %v8510, %v8509
      %v8512 = vrot.slane %v8407, 1
      %v8513 = vsel %vm7032, %v8512, %v8511
      %v8514 = vrot.slane %v8409, 7
      %v8515 = vsel %vm7014, %v8514, %v8408
      %v8516 = vrot.slane %v8410, 6
      %v8517 = vsel %vm7017, %v8516, %v8515
      %v8518 = vrot.slane %v8411, 5
      %v8519 = vsel %vm7020, %v8518, %v8517
      %v8520 = vrot.slane %v8412, 4
      %v8521 = vsel %vm7023, %v8520, %v8519
      %v8522 = vrot.slane %v8413, 3
      %v8523 = vsel %vm7026, %v8522, %v8521
      %v8524 = vrot.slane %v8414, 2
      %v8525 = vsel %vm7029, %v8524, %v8523
      %v8526 = vrot.slane %v8415, 1
      %v8527 = vsel %vm7032, %v8526, %v8525
      %v8528 = vpack.c.b16 %v8443, %v8429
      %v8529 = vpack.c.b16 %v8471, %v8457
      %v8530 = vpack.c.b16 %v8499, %v8485
      %v8531 = vpack.c.b16 %v8527, %v8513
      %8532 = vrot.lane.b32.xlu0 %v8528, 96
      %v8533 = vpop.permute.xlu0 %8532
      %8534 = vrot.lane.b32.xlu0 %v8529, 96
      %v8535 = vpop.permute.xlu0 %8534
      %8536 = vrot.lane.b32.xlu0 %v8530, 96
      %v8537 = vpop.permute.xlu0 %8536
      %8538 = vrot.lane.b32.xlu0 %v8531, 96
      %v8539 = vpop.permute.xlu0 %8538
      %v8540 = vrot.slane %v8352, 1
      %v8541 = vsel %vm7014, %v8353, %v8540
      %v8542 = vrot.slane %v8354, 7
      %v8543 = vsel %vm7017, %v8542, %v8541
      %v8544 = vrot.slane %v8355, 6
      %v8545 = vsel %vm7020, %v8544, %v8543
      %v8546 = vrot.slane %v8356, 5
      %v8547 = vsel %vm7023, %v8546, %v8545
      %v8548 = vrot.slane %v8357, 4
      %v8549 = vsel %vm7026, %v8548, %v8547
      %v8550 = vrot.slane %v8358, 3
      %v8551 = vsel %vm7029, %v8550, %v8549
      %v8552 = vrot.slane %v8359, 2
      %v8553 = vsel %vm7032, %v8552, %v8551
      %v8554 = vrot.slane %v8360, 1
      %v8555 = vsel %vm7014, %v8361, %v8554
      %v8556 = vrot.slane %v8362, 7
      %v8557 = vsel %vm7017, %v8556, %v8555
      %v8558 = vrot.slane %v8363, 6
      %v8559 = vsel %vm7020, %v8558, %v8557
      %v8560 = vrot.slane %v8364, 5
      %v8561 = vsel %vm7023, %v8560, %v8559
      %v8562 = vrot.slane %v8365, 4
      %v8563 = vsel %vm7026, %v8562, %v8561
      %v8564 = vrot.slane %v8366, 3
      %v8565 = vsel %vm7029, %v8564, %v8563
      %v8566 = vrot.slane %v8367, 2
      %v8567 = vsel %vm7032, %v8566, %v8565
      %v8568 = vrot.slane %v8368, 1
      %v8569 = vsel %vm7014, %v8369, %v8568
      %v8570 = vrot.slane %v8370, 7
      %v8571 = vsel %vm7017, %v8570, %v8569
      %v8572 = vrot.slane %v8371, 6
      %v8573 = vsel %vm7020, %v8572, %v8571
      %v8574 = vrot.slane %v8372, 5
      %v8575 = vsel %vm7023, %v8574, %v8573
      %v8576 = vrot.slane %v8373, 4
      %v8577 = vsel %vm7026, %v8576, %v8575
      %v8578 = vrot.slane %v8374, 3
      %v8579 = vsel %vm7029, %v8578, %v8577
      %v8580 = vrot.slane %v8375, 2
      %v8581 = vsel %vm7032, %v8580, %v8579
      %v8582 = vrot.slane %v8376, 1
      %v8583 = vsel %vm7014, %v8377, %v8582
      %v8584 = vrot.slane %v8378, 7
      %v8585 = vsel %vm7017, %v8584, %v8583
      %v8586 = vrot.slane %v8379, 6
      %v8587 = vsel %vm7020, %v8586, %v8585
      %v8588 = vrot.slane %v8380, 5
      %v8589 = vsel %vm7023, %v8588, %v8587
      %v8590 = vrot.slane %v8381, 4
      %v8591 = vsel %vm7026, %v8590, %v8589
      %v8592 = vrot.slane %v8382, 3
      %v8593 = vsel %vm7029, %v8592, %v8591
      %v8594 = vrot.slane %v8383, 2
      %v8595 = vsel %vm7032, %v8594, %v8593
      %v8596 = vrot.slane %v8384, 1
      %v8597 = vsel %vm7014, %v8385, %v8596
      %v8598 = vrot.slane %v8386, 7
      %v8599 = vsel %vm7017, %v8598, %v8597
      %v8600 = vrot.slane %v8387, 6
      %v8601 = vsel %vm7020, %v8600, %v8599
      %v8602 = vrot.slane %v8388, 5
      %v8603 = vsel %vm7023, %v8602, %v8601
      %v8604 = vrot.slane %v8389, 4
      %v8605 = vsel %vm7026, %v8604, %v8603
      %v8606 = vrot.slane %v8390, 3
      %v8607 = vsel %vm7029, %v8606, %v8605
      %v8608 = vrot.slane %v8391, 2
      %v8609 = vsel %vm7032, %v8608, %v8607
      %v8610 = vrot.slane %v8392, 1
      %v8611 = vsel %vm7014, %v8393, %v8610
      %v8612 = vrot.slane %v8394, 7
      %v8613 = vsel %vm7017, %v8612, %v8611
      %v8614 = vrot.slane %v8395, 6
      %v8615 = vsel %vm7020, %v8614, %v8613
      %v8616 = vrot.slane %v8396, 5
      %v8617 = vsel %vm7023, %v8616, %v8615
      %v8618 = vrot.slane %v8397, 4
      %v8619 = vsel %vm7026, %v8618, %v8617
      %v8620 = vrot.slane %v8398, 3
      %v8621 = vsel %vm7029, %v8620, %v8619
      %v8622 = vrot.slane %v8399, 2
      %v8623 = vsel %vm7032, %v8622, %v8621
      %v8624 = vrot.slane %v8400, 1
      %v8625 = vsel %vm7014, %v8401, %v8624
      %v8626 = vrot.slane %v8402, 7
      %v8627 = vsel %vm7017, %v8626, %v8625
      %v8628 = vrot.slane %v8403, 6
      %v8629 = vsel %vm7020, %v8628, %v8627
      %v8630 = vrot.slane %v8404, 5
      %v8631 = vsel %vm7023, %v8630, %v8629
      %v8632 = vrot.slane %v8405, 4
      %v8633 = vsel %vm7026, %v8632, %v8631
      %v8634 = vrot.slane %v8406, 3
      %v8635 = vsel %vm7029, %v8634, %v8633
      %v8636 = vrot.slane %v8407, 2
      %v8637 = vsel %vm7032, %v8636, %v8635
      %v8638 = vrot.slane %v8408, 1
      %v8639 = vsel %vm7014, %v8409, %v8638
      %v8640 = vrot.slane %v8410, 7
      %v8641 = vsel %vm7017, %v8640, %v8639
      %v8642 = vrot.slane %v8411, 6
      %v8643 = vsel %vm7020, %v8642, %v8641
      %v8644 = vrot.slane %v8412, 5
      %v8645 = vsel %vm7023, %v8644, %v8643
      %v8646 = vrot.slane %v8413, 4
      %v8647 = vsel %vm7026, %v8646, %v8645
      %v8648 = vrot.slane %v8414, 3
      %v8649 = vsel %vm7029, %v8648, %v8647
      %v8650 = vrot.slane %v8415, 2
      %v8651 = vsel %vm7032, %v8650, %v8649
      %v8652 = vpack.c.b16 %v8567, %v8553
      %v8653 = vpack.c.b16 %v8595, %v8581
      %v8654 = vpack.c.b16 %v8623, %v8609
      %v8655 = vpack.c.b16 %v8651, %v8637
      %v8657 = vunpack.c.l.s4 1966171168
      %v8658 = vunpack.c.0.s8 %v8657
      %v8659 = vlaneseq
      %v8660 = vshrl.u32 %v8659, 7
      %v8661 = vsub.s32 %v8658, %v8660
      %v8662 = vrot.slane %v5611, %v8661
      %v8664 = vunpack.c.l.s4 1966171168
      %v8665 = vunpack.c.0.s8 %v8664
      %v8666 = vlaneseq
      %v8667 = vshrl.u32 %v8666, 7
      %v8668 = vsub.s32 %v8665, %v8667
      %v8669 = vrot.slane %v8662, %v8668
      %v8671 = vunpack.c.l.s4 1966171168
      %v8672 = vunpack.c.0.s8 %v8671
      %v8673 = vlaneseq
      %v8674 = vshrl.u32 %v8673, 7
      %v8675 = vsub.s32 %v8672, %v8674
      %v8676 = vrot.slane %v5674, %v8675
      %v8678 = vunpack.c.l.s4 1966171168
      %v8679 = vunpack.c.0.s8 %v8678
      %v8680 = vlaneseq
      %v8681 = vshrl.u32 %v8680, 7
      %v8682 = vsub.s32 %v8679, %v8681
      %v8683 = vrot.slane %v8676, %v8682
      %v8685 = vunpack.c.l.s4 1966171168
      %v8686 = vunpack.c.0.s8 %v8685
      %v8687 = vlaneseq
      %v8688 = vshrl.u32 %v8687, 7
      %v8689 = vsub.s32 %v8686, %v8688
      %v8690 = vrot.slane %v5737, %v8689
      %v8692 = vunpack.c.l.s4 1966171168
      %v8693 = vunpack.c.0.s8 %v8692
      %v8694 = vlaneseq
      %v8695 = vshrl.u32 %v8694, 7
      %v8696 = vsub.s32 %v8693, %v8695
      %v8697 = vrot.slane %v8690, %v8696
      %v8699 = vunpack.c.l.s4 1966171168
      %v8700 = vunpack.c.0.s8 %v8699
      %v8701 = vlaneseq
      %v8702 = vshrl.u32 %v8701, 7
      %v8703 = vsub.s32 %v8700, %v8702
      %v8704 = vrot.slane %v5800, %v8703
      %v8706 = vunpack.c.l.s4 1966171168
      %v8707 = vunpack.c.0.s8 %v8706
      %v8708 = vlaneseq
      %v8709 = vshrl.u32 %v8708, 7
      %v8710 = vsub.s32 %v8707, %v8709
      %v8711 = vrot.slane %v8704, %v8710
      %v8713 = vunpack.c.l.s4 1966171168
      %v8714 = vunpack.c.0.s8 %v8713
      %v8715 = vlaneseq
      %v8716 = vshrl.u32 %v8715, 7
      %v8717 = vsub.s32 %v8714, %v8716
      %v8718 = vrot.slane %v5863, %v8717
      %v8720 = vunpack.c.l.s4 1966171168
      %v8721 = vunpack.c.0.s8 %v8720
      %v8722 = vlaneseq
      %v8723 = vshrl.u32 %v8722, 7
      %v8724 = vsub.s32 %v8721, %v8723
      %v8725 = vrot.slane %v8718, %v8724
      %v8727 = vunpack.c.l.s4 1966171168
      %v8728 = vunpack.c.0.s8 %v8727
      %v8729 = vlaneseq
      %v8730 = vshrl.u32 %v8729, 7
      %v8731 = vsub.s32 %v8728, %v8730
      %v8732 = vrot.slane %v5926, %v8731
      %v8734 = vunpack.c.l.s4 1966171168
      %v8735 = vunpack.c.0.s8 %v8734
      %v8736 = vlaneseq
      %v8737 = vshrl.u32 %v8736, 7
      %v8738 = vsub.s32 %v8735, %v8737
      %v8739 = vrot.slane %v8732, %v8738
      %v8741 = vunpack.c.l.s4 1966171168
      %v8742 = vunpack.c.0.s8 %v8741
      %v8743 = vlaneseq
      %v8744 = vshrl.u32 %v8743, 7
      %v8745 = vsub.s32 %v8742, %v8744
      %v8746 = vrot.slane %v5989, %v8745
      %v8748 = vunpack.c.l.s4 1966171168
      %v8749 = vunpack.c.0.s8 %v8748
      %v8750 = vlaneseq
      %v8751 = vshrl.u32 %v8750, 7
      %v8752 = vsub.s32 %v8749, %v8751
      %v8753 = vrot.slane %v8746, %v8752
      %v8755 = vunpack.c.l.s4 1966171168
      %v8756 = vunpack.c.0.s8 %v8755
      %v8757 = vlaneseq
      %v8758 = vshrl.u32 %v8757, 7
      %v8759 = vsub.s32 %v8756, %v8758
      %v8760 = vrot.slane %v6052, %v8759
      %v8762 = vunpack.c.l.s4 1966171168
      %v8763 = vunpack.c.0.s8 %v8762
      %v8764 = vlaneseq
      %v8765 = vshrl.u32 %v8764, 7
      %v8766 = vsub.s32 %v8763, %v8765
      %v8767 = vrot.slane %v8760, %v8766
      %v8768 = vunpack.c.l.b16 %v8669
      %v8769 = vunpack.c.l.b16 %v8683
      %v8770 = vunpack.c.l.b16 %v8697
      %v8771 = vunpack.c.l.b16 %v8711
      %v8772 = vunpack.c.l.b16 %v8725
      %v8773 = vunpack.c.l.b16 %v8739
      %v8774 = vunpack.c.l.b16 %v8753
      %v8775 = vunpack.c.l.b16 %v8767
      %v8776 = vsel %vm7014, %v8542, %v8353
      %v8777 = vsel %vm7017, %v8544, %v8776
      %v8778 = vsel %vm7020, %v8546, %v8777
      %v8779 = vsel %vm7023, %v8548, %v8778
      %v8780 = vsel %vm7026, %v8550, %v8779
      %v8781 = vsel %vm7029, %v8552, %v8780
      %v8782 = vrot.slane %v8768, 1
      %v8783 = vsel %vm7032, %v8782, %v8781
      %v8784 = vsel %vm7014, %v8556, %v8361
      %v8785 = vsel %vm7017, %v8558, %v8784
      %v8786 = vsel %vm7020, %v8560, %v8785
      %v8787 = vsel %vm7023, %v8562, %v8786
      %v8788 = vsel %vm7026, %v8564, %v8787
      %v8789 = vsel %vm7029, %v8566, %v8788
      %v8790 = vrot.slane %v8769, 1
      %v8791 = vsel %vm7032, %v8790, %v8789
      %v8792 = vsel %vm7014, %v8570, %v8369
      %v8793 = vsel %vm7017, %v8572, %v8792
      %v8794 = vsel %vm7020, %v8574, %v8793
      %v8795 = vsel %vm7023, %v8576, %v8794
      %v8796 = vsel %vm7026, %v8578, %v8795
      %v8797 = vsel %vm7029, %v8580, %v8796
      %v8798 = vrot.slane %v8770, 1
      %v8799 = vsel %vm7032, %v8798, %v8797
      %v8800 = vsel %vm7014, %v8584, %v8377
      %v8801 = vsel %vm7017, %v8586, %v8800
      %v8802 = vsel %vm7020, %v8588, %v8801
      %v8803 = vsel %vm7023, %v8590, %v8802
      %v8804 = vsel %vm7026, %v8592, %v8803
      %v8805 = vsel %vm7029, %v8594, %v8804
      %v8806 = vrot.slane %v8771, 1
      %v8807 = vsel %vm7032, %v8806, %v8805
      %v8808 = vsel %vm7014, %v8598, %v8385
      %v8809 = vsel %vm7017, %v8600, %v8808
      %v8810 = vsel %vm7020, %v8602, %v8809
      %v8811 = vsel %vm7023, %v8604, %v8810
      %v8812 = vsel %vm7026, %v8606, %v8811
      %v8813 = vsel %vm7029, %v8608, %v8812
      %v8814 = vrot.slane %v8772, 1
      %v8815 = vsel %vm7032, %v8814, %v8813
      %v8816 = vsel %vm7014, %v8612, %v8393
      %v8817 = vsel %vm7017, %v8614, %v8816
      %v8818 = vsel %vm7020, %v8616, %v8817
      %v8819 = vsel %vm7023, %v8618, %v8818
      %v8820 = vsel %vm7026, %v8620, %v8819
      %v8821 = vsel %vm7029, %v8622, %v8820
      %v8822 = vrot.slane %v8773, 1
      %v8823 = vsel %vm7032, %v8822, %v8821
      %v8824 = vsel %vm7014, %v8626, %v8401
      %v8825 = vsel %vm7017, %v8628, %v8824
      %v8826 = vsel %vm7020, %v8630, %v8825
      %v8827 = vsel %vm7023, %v8632, %v8826
      %v8828 = vsel %vm7026, %v8634, %v8827
      %v8829 = vsel %vm7029, %v8636, %v8828
      %v8830 = vrot.slane %v8774, 1
      %v8831 = vsel %vm7032, %v8830, %v8829
      %v8832 = vsel %vm7014, %v8640, %v8409
      %v8833 = vsel %vm7017, %v8642, %v8832
      %v8834 = vsel %vm7020, %v8644, %v8833
      %v8835 = vsel %vm7023, %v8646, %v8834
      %v8836 = vsel %vm7026, %v8648, %v8835
      %v8837 = vsel %vm7029, %v8650, %v8836
      %v8838 = vrot.slane %v8775, 1
      %v8839 = vsel %vm7032, %v8838, %v8837
      %v8840 = vpack.c.b16 %v8791, %v8783
      %v8841 = vpack.c.b16 %v8807, %v8799
      %v8842 = vpack.c.b16 %v8823, %v8815
      %v8843 = vpack.c.b16 %v8839, %v8831
      %8844 = vrot.lane.b32.xlu0 %v8840, 32
      %v8845 = vpop.permute.xlu0 %8844
      %8846 = vrot.lane.b32.xlu0 %v8841, 32
      %v8847 = vpop.permute.xlu0 %8846
      %8848 = vrot.lane.b32.xlu0 %v8842, 32
      %v8849 = vpop.permute.xlu0 %8848
      %8850 = vrot.lane.b32.xlu0 %v8843, 32
      %v8851 = vpop.permute.xlu0 %8850
      %v8853 = vunpack.c.l.s4 1966171168
      %v8854 = vunpack.c.0.s8 %v8853
      %v8855 = vlaneseq
      %v8856 = vshrl.u32 %v8855, 7
      %v8857 = vsub.s32 %v8854, %v8856
      %v8858 = vrot.slane %v5493, %v8857
      %v8860 = vunpack.c.l.s4 1966171168
      %v8861 = vunpack.c.0.s8 %v8860
      %v8862 = vlaneseq
      %v8863 = vshrl.u32 %v8862, 7
      %v8864 = vsub.s32 %v8861, %v8863
      %v8865 = vrot.slane %v8858, %v8864
      %v8867 = vunpack.c.l.s4 1966171168
      %v8868 = vunpack.c.0.s8 %v8867
      %v8869 = vlaneseq
      %v8870 = vshrl.u32 %v8869, 7
      %v8871 = vsub.s32 %v8868, %v8870
      %v8872 = vrot.slane %v5507, %v8871
      %v8874 = vunpack.c.l.s4 1966171168
      %v8875 = vunpack.c.0.s8 %v8874
      %v8876 = vlaneseq
      %v8877 = vshrl.u32 %v8876, 7
      %v8878 = vsub.s32 %v8875, %v8877
      %v8879 = vrot.slane %v8872, %v8878
      %v8881 = vunpack.c.l.s4 1966171168
      %v8882 = vunpack.c.0.s8 %v8881
      %v8883 = vlaneseq
      %v8884 = vshrl.u32 %v8883, 7
      %v8885 = vsub.s32 %v8882, %v8884
      %v8886 = vrot.slane %v5515, %v8885
      %v8888 = vunpack.c.l.s4 1966171168
      %v8889 = vunpack.c.0.s8 %v8888
      %v8890 = vlaneseq
      %v8891 = vshrl.u32 %v8890, 7
      %v8892 = vsub.s32 %v8889, %v8891
      %v8893 = vrot.slane %v8886, %v8892
      %v8895 = vunpack.c.l.s4 1966171168
      %v8896 = vunpack.c.0.s8 %v8895
      %v8897 = vlaneseq
      %v8898 = vshrl.u32 %v8897, 7
      %v8899 = vsub.s32 %v8896, %v8898
      %v8900 = vrot.slane %v5517, %v8899
      %v8902 = vunpack.c.l.s4 1966171168
      %v8903 = vunpack.c.0.s8 %v8902
      %v8904 = vlaneseq
      %v8905 = vshrl.u32 %v8904, 7
      %v8906 = vsub.s32 %v8903, %v8905
      %v8907 = vrot.slane %v8900, %v8906
      %v8909 = vunpack.c.l.s4 1966171168
      %v8910 = vunpack.c.0.s8 %v8909
      %v8911 = vlaneseq
      %v8912 = vshrl.u32 %v8911, 7
      %v8913 = vsub.s32 %v8910, %v8912
      %v8914 = vrot.slane %v5500, %v8913
      %v8916 = vunpack.c.l.s4 1966171168
      %v8917 = vunpack.c.0.s8 %v8916
      %v8918 = vlaneseq
      %v8919 = vshrl.u32 %v8918, 7
      %v8920 = vsub.s32 %v8917, %v8919
      %v8921 = vrot.slane %v8914, %v8920
      %v8923 = vunpack.c.l.s4 1966171168
      %v8924 = vunpack.c.0.s8 %v8923
      %v8925 = vlaneseq
      %v8926 = vshrl.u32 %v8925, 7
      %v8927 = vsub.s32 %v8924, %v8926
      %v8928 = vrot.slane %v5514, %v8927
      %v8930 = vunpack.c.l.s4 1966171168
      %v8931 = vunpack.c.0.s8 %v8930
      %v8932 = vlaneseq
      %v8933 = vshrl.u32 %v8932, 7
      %v8934 = vsub.s32 %v8931, %v8933
      %v8935 = vrot.slane %v8928, %v8934
      %v8937 = vunpack.c.l.s4 1966171168
      %v8938 = vunpack.c.0.s8 %v8937
      %v8939 = vlaneseq
      %v8940 = vshrl.u32 %v8939, 7
      %v8941 = vsub.s32 %v8938, %v8940
      %v8942 = vrot.slane %v5516, %v8941
      %v8944 = vunpack.c.l.s4 1966171168
      %v8945 = vunpack.c.0.s8 %v8944
      %v8946 = vlaneseq
      %v8947 = vshrl.u32 %v8946, 7
      %v8948 = vsub.s32 %v8945, %v8947
      %v8949 = vrot.slane %v8942, %v8948
      %v8951 = vunpack.c.l.s4 1966171168
      %v8952 = vunpack.c.0.s8 %v8951
      %v8953 = vlaneseq
      %v8954 = vshrl.u32 %v8953, 7
      %v8955 = vsub.s32 %v8952, %v8954
      %v8956 = vrot.slane %v5518, %v8955
      %v8958 = vunpack.c.l.s4 1966171168
      %v8959 = vunpack.c.0.s8 %v8958
      %v8960 = vlaneseq
      %v8961 = vshrl.u32 %v8960, 7
      %v8962 = vsub.s32 %v8959, %v8961
      %v8963 = vrot.slane %v8956, %v8962
      %v8964 = vunpack.c.l.b16 %v8865
      %v8965 = vunpack.c.l.b16 %v8879
      %v8966 = vunpack.c.l.b16 %v8893
      %v8967 = vunpack.c.l.b16 %v8907
      %v8968 = vunpack.c.l.b16 %v8921
      %v8969 = vunpack.c.l.b16 %v8935
      %v8970 = vunpack.c.l.b16 %v8949
      %v8971 = vunpack.c.l.b16 %v8963
      %v8972 = vrot.slane %v8965, 7
      %v8973 = vsel %vm7014, %v8972, %v8964
      %v8974 = vrot.slane %v8966, 6
      %v8975 = vsel %vm7017, %v8974, %v8973
      %v8976 = vrot.slane %v8967, 5
      %v8977 = vsel %vm7020, %v8976, %v8975
      %v8978 = vrot.slane %v8968, 4
      %v8979 = vsel %vm7023, %v8978, %v8977
      %v8980 = vrot.slane %v8969, 3
      %v8981 = vsel %vm7026, %v8980, %v8979
      %v8982 = vrot.slane %v8970, 2
      %v8983 = vsel %vm7029, %v8982, %v8981
      %v8984 = vrot.slane %v8971, 1
      %v8985 = vsel %vm7032, %v8984, %v8983
      %v8986 = vpack.c.b16 %v7061, %v7047
      %v8987 = vpack.c.b16 %v7089, %v7075
      %v8988 = vpack.c.b16 %v7117, %v7103
      %v8989 = vpack.c.b16 %v8985, %v7131
      %8990 = vrot.lane.b32.xlu0 %v8986, 64
      %v8991 = vpop.permute.xlu0 %8990
      %8992 = vrot.lane.b32.xlu0 %v8987, 64
      %v8993 = vpop.permute.xlu0 %8992
      %8994 = vrot.lane.b32.xlu0 %v8988, 64
      %v8995 = vpop.permute.xlu0 %8994
      %8996 = vrot.lane.b32.xlu0 %v8989, 64
      %v8997 = vpop.permute.xlu0 %8996
      %v8998 = vrot.slane %v8964, 1
      %v8999 = vsel %vm7014, %v8965, %v8998
      %v9000 = vrot.slane %v8966, 7
      %v9001 = vsel %vm7017, %v9000, %v8999
      %v9002 = vrot.slane %v8967, 6
      %v9003 = vsel %vm7020, %v9002, %v9001
      %v9004 = vrot.slane %v8968, 5
      %v9005 = vsel %vm7023, %v9004, %v9003
      %v9006 = vrot.slane %v8969, 4
      %v9007 = vsel %vm7026, %v9006, %v9005
      %v9008 = vrot.slane %v8970, 3
      %v9009 = vsel %vm7029, %v9008, %v9007
      %v9010 = vrot.slane %v8971, 2
      %v9011 = vsel %vm7032, %v9010, %v9009
      %v9012 = vpack.c.b16 %v7177, %v7163
      %v9013 = vpack.c.b16 %v7205, %v7191
      %v9014 = vpack.c.b16 %v7233, %v7219
      %v9015 = vpack.c.b16 %v9011, %v7247
      %9016 = vrot.lane.b32.xlu0 %v9012, 96
      %v9017 = vpop.permute.xlu0 %9016
      %9018 = vrot.lane.b32.xlu0 %v9013, 96
      %v9019 = vpop.permute.xlu0 %9018
      %9020 = vrot.lane.b32.xlu0 %v9014, 96
      %v9021 = vpop.permute.xlu0 %9020
      %9022 = vrot.lane.b32.xlu0 %v9015, 96
      %v9023 = vpop.permute.xlu0 %9022
      %v9025 = vunpack.c.l.s4 1966171168
      %v9026 = vunpack.c.0.s8 %v9025
      %v9027 = vlaneseq
      %v9028 = vshrl.u32 %v9027, 7
      %v9029 = vsub.s32 %v9026, %v9028
      %v9030 = vrot.slane %v5532, %v9029
      %v9032 = vunpack.c.l.s4 1966171168
      %v9033 = vunpack.c.0.s8 %v9032
      %v9034 = vlaneseq
      %v9035 = vshrl.u32 %v9034, 7
      %v9036 = vsub.s32 %v9033, %v9035
      %v9037 = vrot.slane %v9030, %v9036
      %v9038 = vunpack.c.l.b16 %v9037
      %v9039 = vsel %vm7014, %v9000, %v8965
      %v9040 = vsel %vm7017, %v9002, %v9039
      %v9041 = vsel %vm7020, %v9004, %v9040
      %v9042 = vsel %vm7023, %v9006, %v9041
      %v9043 = vsel %vm7026, %v9008, %v9042
      %v9044 = vsel %vm7029, %v9010, %v9043
      %v9045 = vrot.slane %v9038, 1
      %v9046 = vsel %vm7032, %v9045, %v9044
      %v9047 = vpack.c.b16 %v7403, %v7395
      %v9048 = vpack.c.b16 %v7419, %v7411
      %v9049 = vpack.c.b16 %v7435, %v7427
      %v9050 = vpack.c.b16 %v9046, %v7443
      %v9053 = vsel %vm2092, %v7132, %v7253
      %v9056 = vsel %vm2092, %v7133, %v7255
      %v9059 = vsel %vm2092, %v7134, %v7257
      %v9062 = vsel %vm2092, %v7135, %v7259
      %vm9063 = vcmask 523264
      %v9065 = vsel %vm9063, %v9053, %v7449
      %v9067 = vsel %vm9063, %v9056, %v7451
      %v9069 = vsel %vm9063, %v9059, %v7453
      %v9071 = vsel %vm9063, %v9062, %v7455
      %vm9072 = vcmask 785408
      %v9074 = vsel %vm9072, %v9065, %v8533
      %v9077 = vsel %vm9072, %v9067, %v8535
      %v9080 = vsel %vm9072, %v9069, %v8537
      %v9083 = vsel %vm9072, %v9071, %v8539
      %v9087 = vsel %vm2092, %v8652, %v8845
      %v9090 = vsel %vm2092, %v8653, %v8847
      %v9093 = vsel %vm2092, %v8654, %v8849
      %v9096 = vsel %vm2092, %v8655, %v8851
      %v9098 = vsel %vm9063, %v9087, %v8991
      %v9100 = vsel %vm9063, %v9090, %v8993
      %v9102 = vsel %vm9063, %v9093, %v8995
      %v9104 = vsel %vm9063, %v9096, %v8997
      %v9106 = vsel %vm9072, %v9098, %v9017
      %v9109 = vsel %vm9072, %v9100, %v9019
      %v9112 = vsel %vm9072, %v9102, %v9021
      %v9115 = vsel %vm9072, %v9104, %v9023
      %v9117 = vld [vmem:[%s5] sm:$0xf]
      %v9118 = vld [vmem:[%s5 + $0x4] sm:$0xf]
      %v9119 = vld [vmem:[%s5 + $0x8] sm:$0xf]
      %v9120 = vld [vmem:[%s5 + $0xc] sm:$0xf]
      %v9121 = vld [vmem:[%s5 + $0x10] sm:$0xf]
      %v9122 = vld [vmem:[%s5 + $0x14] sm:$0xf]
      %v9123 = vld [vmem:[%s5 + $0x18] sm:$0xf]
      %v9124 = vld [vmem:[%s5 + $0x1c] sm:$0xf]
      %v9125 = vld [vmem:[%s5 + $0x20] sm:$0xf]
      %v9126 = vld [vmem:[%s5 + $0x24] sm:$0xf]
      %v9127 = vld [vmem:[%s5 + $0x28] sm:$0xf]
      %v9128 = vld [vmem:[%s5 + $0x2c] sm:$0xf]
      %v9129 = vld [vmem:[%s5 + $0x30] sm:$0xf]
      %v9130 = vld [vmem:[%s5 + $0x34] sm:$0xf]
      %v9131 = vld [vmem:[%s5 + $0x38] sm:$0xf]
      %v9132 = vld [vmem:[%s5 + $0x3c] sm:$0xf]
      %v9133 = vld [vmem:[%s5 + $0x40] sm:$0xf]
      %v9134 = vld [vmem:[%s5 + $0x44] sm:$0xf]
      %v9135 = vld [vmem:[%s5 + $0x48] sm:$0xf]
      %v9136 = vld [vmem:[%s5 + $0x4c] sm:$0xf]
      %v9137 = vld [vmem:[%s5 + $0x50] sm:$0xf]
      %v9138 = vld [vmem:[%s5 + $0x54] sm:$0xf]
      %v9139 = vld [vmem:[%s5 + $0x58] sm:$0xf]
      %v9140 = vld [vmem:[%s5 + $0x5c] sm:$0xf]
      %v9141 = vld [vmem:[%s5 + $0x60] sm:$0xf]
      %v9142 = vld [vmem:[%s5 + $0x64] sm:$0xf]
      %v9143 = vld [vmem:[%s5 + $0x68] sm:$0xf]
      %v9144 = vld [vmem:[%s5 + $0x6c] sm:$0xf]
      %v9145 = vld [vmem:[%s5 + $0x70] sm:$0xf]
      %v9146 = vld [vmem:[%s5 + $0x74] sm:$0xf]
      %v9147 = vld [vmem:[%s5 + $0x78] sm:$0xf]
      %v9148 = vld [vmem:[%s5 + $0x7c] sm:$0xf]
      %v9149 = vld [vmem:[%s5 + $0x80] sm:$0xf]
      %v9150 = vld [vmem:[%s5 + $0x84] sm:$0xf]
      %v9151 = vld [vmem:[%s5 + $0x88] sm:$0xf]
      %v9152 = vld [vmem:[%s5 + $0x8c] sm:$0xf]
      %v9153 = vld [vmem:[%s6] sm:$0x1]
      %v9155 = vlaneseq
      %v9156 = vshrl.u32 %v9155, 7
      %v9157 = vsub.s32 0, %v9156
      %v9158 = vrot.slane %v9153, %v9157
      %v9196 = vunpack.c.l.b16 %v9117
      %v9197 = vunpack.c.l.b16 %v9118
      %v9198 = vunpack.c.l.b16 %v9119
      %v9199 = vunpack.c.l.b16 %v9120
      %v9200 = vunpack.c.l.b16 %v9121
      %v9201 = vunpack.c.l.b16 %v9122
      %v9202 = vunpack.c.l.b16 %v9123
      %v9203 = vunpack.c.l.b16 %v9124
      %v9204 = vunpack.c.l.b16 %v9125
      %v9205 = vunpack.c.l.b16 %v9126
      %v9206 = vunpack.c.l.b16 %v9127
      %v9207 = vunpack.c.l.b16 %v9128
      %v9208 = vunpack.c.l.b16 %v9129
      %v9209 = vunpack.c.l.b16 %v9130
      %v9210 = vunpack.c.l.b16 %v9131
      %v9211 = vunpack.c.l.b16 %v9132
      %v9212 = vunpack.c.l.b16 %v9133
      %v9213 = vunpack.c.l.b16 %v9134
      %v9214 = vunpack.c.l.b16 %v9135
      %v9215 = vunpack.c.l.b16 %v9136
      %v9216 = vunpack.c.l.b16 %v9137
      %v9217 = vunpack.c.l.b16 %v9138
      %v9218 = vunpack.c.l.b16 %v9139
      %v9219 = vunpack.c.l.b16 %v9140
      %v9220 = vunpack.c.l.b16 %v9141
      %v9221 = vunpack.c.l.b16 %v9142
      %v9222 = vunpack.c.l.b16 %v9143
      %v9223 = vunpack.c.l.b16 %v9144
      %v9224 = vunpack.c.l.b16 %v9145
      %v9225 = vunpack.c.l.b16 %v9146
      %v9226 = vunpack.c.l.b16 %v9147
      %v9227 = vunpack.c.l.b16 %v9148
      %v9228 = vunpack.c.l.b16 %v9149
      %v9229 = vunpack.c.l.b16 %v9150
      %v9230 = vunpack.c.l.b16 %v9151
      %v9231 = vunpack.c.l.b16 %v9152
      %v9232 = vpack.c.b16 %v9197, %v9196
      %v9233 = vpack.c.b16 %v9199, %v9198
      %v9234 = vpack.c.b16 %v9201, %v9200
      %v9235 = vpack.c.b16 %v9203, %v9202
      %v9236 = vpack.c.b16 %v9205, %v9204
      %v9237 = vpack.c.b16 %v9207, %v9206
      %v9238 = vpack.c.b16 %v9209, %v9208
      %v9239 = vpack.c.b16 %v9211, %v9210
      %v9240 = vpack.c.b16 %v9213, %v9212
      %v9241 = vpack.c.b16 %v9215, %v9214
      %v9242 = vpack.c.b16 %v9217, %v9216
      %v9243 = vpack.c.b16 %v9219, %v9218
      %v9244 = vpack.c.b16 %v9221, %v9220
      %v9245 = vpack.c.b16 %v9223, %v9222
      %v9246 = vpack.c.b16 %v9225, %v9224
      %v9247 = vpack.c.b16 %v9227, %v9226
      %v9248 = vpack.c.b16 %v9229, %v9228
      %v9249 = vpack.c.b16 %v9231, %v9230
      %v9269 = vsel %vm2092, %v9047, 0
      %v9272 = vsel %vm2092, %v9048, 0
      %v9275 = vsel %vm2092, %v9049, 0
      %v9278 = vsel %vm2092, %v9050, 0
      %9280 = vmatprep.subr.bf16.mxu0 0
      %9281 = vmatpush1.bf16.msra.mxu0 %v9239
      %9282 = vmatprep.subr.bf16.mxu0 0
      %9283 = vmatpush1.bf16.msra.mxu0 %v9238
      %9284 = vmatprep.subr.bf16.mxu0 0
      %9285 = vmatpush1.bf16.msra.mxu0 %v9237
      %9286 = vmatprep.subr.bf16.mxu0 0
      %9287 = vmatpush1.bf16.msra.mxu0 %v9236
      %9288 = vmatprep.subr.bf16.mxu0 0
      %9289 = vmatpush1.bf16.msra.mxu0 %v9235
      %9290 = vmatprep.subr.bf16.mxu0 0
      %9291 = vmatpush1.bf16.msra.mxu0 %v9234
      %9292 = vmatprep.subr.bf16.mxu0 0
      %9293 = vmatpush1.bf16.msra.mxu0 %v9233
      %9294 = vmatprep.subr.bf16.mxu0 0
      %9295 = vmatpush1.bf16.msra.mxu0 %v9232
      %9296 = vmatprep.subr.bf16.mxu0 0
      %9297 = vmatpush2.bf16.msra.mxu0 %v9247
      %9298 = vmatprep.subr.bf16.mxu0 0
      %9299 = vmatpush2.bf16.msra.mxu0 %v9246
      %9300 = vmatprep.subr.bf16.mxu0 0
      %9301 = vmatpush2.bf16.msra.mxu0 %v9245
      %9302 = vmatprep.subr.bf16.mxu0 0
      %9303 = vmatpush2.bf16.msra.mxu0 %v9244
      %9304 = vmatprep.subr.bf16.mxu0 0
      %9305 = vmatpush2.bf16.msra.mxu0 %v9243
      %9306 = vmatprep.subr.bf16.mxu0 0
      %9307 = vmatpush2.bf16.msra.mxu0 %v9242
      %9308 = vmatprep.subr.bf16.mxu0 0
      %9309 = vmatpush2.bf16.msra.mxu0 %v9241
      %9310 = vmatprep.subr.bf16.mxu0 0
      %9311 = vmatpush2.bf16.msra.mxu0 %v9240
      %9312 = vmatprep.mubr.bf16.mxu0 %v9106
      %9313 = vmatmul.mubr.bf16.gmra.mxu0 %v9074
      %v9314 = vpop.f32.mrf.mxu0
      %v9315 = vadd.f32 %v9158, %v9314
      %v9316 = vpop.f32.mrf.mxu0
      %v9317 = vpop.f32.mrf.mxu0
      %v9318 = vadd.f32 %v9158, %v9317
      %v9319 = vpop.f32.mrf.mxu0
      %9320 = vmatprep.mubr.bf16.mxu0 %v9109
      %9321 = vmatmul.mubr.bf16.gmra.mxu0 %v9077
      %v9322 = vpop.f32.mrf.mxu0
      %v9323 = vadd.f32 %v9158, %v9322
      %v9324 = vpop.f32.mrf.mxu0
      %v9325 = vpop.f32.mrf.mxu0
      %v9326 = vadd.f32 %v9158, %v9325
      %v9327 = vpop.f32.mrf.mxu0
      %9328 = vmatprep.mubr.bf16.mxu0 %v9112
      %9329 = vmatmul.mubr.bf16.gmra.mxu0 %v9080
      %v9330 = vpop.f32.mrf.mxu0
      %v9331 = vadd.f32 %v9158, %v9330
      %v9332 = vpop.f32.mrf.mxu0
      %v9333 = vpop.f32.mrf.mxu0
      %v9334 = vadd.f32 %v9158, %v9333
      %v9335 = vpop.f32.mrf.mxu0
      %9336 = vmatprep.mubr.bf16.mxu0 %v9115
      %9337 = vmatmul.mubr.bf16.gmra.mxu0 %v9083
      %v9338 = vpop.f32.mrf.mxu0
      %v9339 = vadd.f32 %v9158, %v9338
      %v9340 = vpop.f32.mrf.mxu0
      %v9341 = vpop.f32.mrf.mxu0
      %v9342 = vadd.f32 %v9158, %v9341
      %v9343 = vpop.f32.mrf.mxu0
      %9344 = vdwg.mxu0
      %9345 = vmatprep.subr.bf16.mxu0 0
      %9346 = vmatpush1.bf16.msra.mxu0 0
      %9347 = vmatprep.subr.bf16.mxu0 0
      %9348 = vmatpush1.bf16.msra.mxu0 0
      %9349 = vmatprep.subr.bf16.mxu0 0
      %9350 = vmatpush1.bf16.msra.mxu0 0
      %9351 = vmatprep.subr.bf16.mxu0 0
      %9352 = vmatpush1.bf16.msra.mxu0 0
      %9353 = vmatprep.subr.bf16.mxu0 0
      %9354 = vmatpush1.bf16.msra.mxu0 0
      %9355 = vmatprep.subr.bf16.mxu0 0
      %9356 = vmatpush1.bf16.msra.mxu0 0
      %9357 = vmatprep.subr.bf16.mxu0 0
      %9358 = vmatpush1.bf16.msra.mxu0 %v9249
      %9359 = vmatprep.subr.bf16.mxu0 0
      %9360 = vmatpush1.bf16.msra.mxu0 %v9248
      %9361 = vmatprep.subr.bf16.mxu0 0
      %9362 = vmatpush2.bf16.msra.mxu0 0
      %9363 = vmatprep.subr.bf16.mxu0 0
      %9364 = vmatpush2.bf16.msra.mxu0 0
      %9365 = vmatprep.subr.bf16.mxu0 0
      %9366 = vmatpush2.bf16.msra.mxu0 0
      %9367 = vmatprep.subr.bf16.mxu0 0
      %9368 = vmatpush2.bf16.msra.mxu0 0
      %9369 = vmatprep.subr.bf16.mxu0 0
      %9370 = vmatpush2.bf16.msra.mxu0 0
      %9371 = vmatprep.subr.bf16.mxu0 0
      %9372 = vmatpush2.bf16.msra.mxu0 0
      %9373 = vmatprep.subr.bf16.mxu0 0
      %9374 = vmatpush2.bf16.msra.mxu0 0
      %9375 = vmatprep.subr.bf16.mxu0 0
      %9376 = vmatpush2.bf16.msra.mxu0 0
      %9377 = vmatprep.mubr.bf16.mxu0 0
      %9378 = vmatmul.mubr.bf16.gmra.mxu0 %v9269
      %v9379 = vpop.f32.mrf.mxu0
      %v9380 = vadd.f32 %v9315, %v9379
      %v9381 = vpop.f32.mrf.mxu0
      %v9382 = vpop.f32.mrf.mxu0
      %v9383 = vadd.f32 %v9318, %v9382
      %v9384 = vpop.f32.mrf.mxu0
      %9385 = vmatprep.mubr.bf16.mxu0 0
      %9386 = vmatmul.mubr.bf16.gmra.mxu0 %v9272
      %v9387 = vpop.f32.mrf.mxu0
      %v9388 = vadd.f32 %v9323, %v9387
      %v9389 = vpop.f32.mrf.mxu0
      %v9390 = vpop.f32.mrf.mxu0
      %v9391 = vadd.f32 %v9326, %v9390
      %v9392 = vpop.f32.mrf.mxu0
      %9393 = vmatprep.mubr.bf16.mxu0 0
      %9394 = vmatmul.mubr.bf16.gmra.mxu0 %v9275
      %v9395 = vpop.f32.mrf.mxu0
      %v9396 = vadd.f32 %v9331, %v9395
      %v9397 = vpop.f32.mrf.mxu0
      %v9398 = vpop.f32.mrf.mxu0
      %v9399 = vadd.f32 %v9334, %v9398
      %v9400 = vpop.f32.mrf.mxu0
      %9401 = vmatprep.mubr.bf16.mxu0 0
      %9402 = vmatmul.mubr.bf16.gmra.mxu0 %v9278
      %v9403 = vpop.f32.mrf.mxu0
      %v9404 = vadd.f32 %v9339, %v9403
      %v9405 = vpop.f32.mrf.mxu0
      %v9406 = vpop.f32.mrf.mxu0
      %v9407 = vadd.f32 %v9342, %v9406
      %v9408 = vpop.f32.mrf.mxu0
      %9409 = vdwg.mxu0
      %vm9410 = vcmp.gt.f32.partialorder %v9380, 0.0
      %vm9411 = vcmp.gt.f32.partialorder %v9383, 0.0
      %vm9412 = vcmp.gt.f32.partialorder %v9388, 0.0
      %vm9413 = vcmp.gt.f32.partialorder %v9391, 0.0
      %vm9414 = vcmp.gt.f32.partialorder %v9396, 0.0
      %vm9415 = vcmp.gt.f32.partialorder %v9399, 0.0
      %vm9416 = vcmp.gt.f32.partialorder %v9404, 0.0
      %vm9417 = vcmp.gt.f32.partialorder %v9407, 0.0
      %v9418 = vmul.f32 %v9380, 0.1
      %v9419 = vmul.f32 %v9383, 0.1
      %v9420 = vmul.f32 %v9388, 0.1
      %v9421 = vmul.f32 %v9391, 0.1
      %v9422 = vmul.f32 %v9396, 0.1
      %v9423 = vmul.f32 %v9399, 0.1
      %v9424 = vmul.f32 %v9404, 0.1
      %v9425 = vmul.f32 %v9407, 0.1
      %v9426 = vsel %vm9410, %v9380, %v9418
      %v9427 = vsel %vm9411, %v9383, %v9419
      %v9428 = vsel %vm9412, %v9388, %v9420
      %v9429 = vsel %vm9413, %v9391, %v9421
      %v9430 = vsel %vm9414, %v9396, %v9422
      %v9431 = vsel %vm9415, %v9399, %v9423
      %v9432 = vsel %vm9416, %v9404, %v9424
      %v9433 = vsel %vm9417, %v9407, %v9425
      %v9434 = vpack.c.bf16 %v9427, %v9426
      %v9435 = vpack.c.bf16 %v9429, %v9428
      %v9436 = vpack.c.bf16 %v9431, %v9430
      %v9437 = vpack.c.bf16 %v9433, %v9432
      %v9438 = vld [vmem:[%s7] sm:$0xff]
      %v9439 = vld [vmem:[%s7 + $0x8] sm:$0xf]
      %v9440 = vld [vmem:[%s7 + $0xc] sm:$0xff]
      %v9441 = vld [vmem:[%s7 + $0x14] sm:$0xf]
      %v9442 = vld [vmem:[%s7 + $0x18] sm:$0xff]
      %v9443 = vld [vmem:[%s7 + $0x20] sm:$0xf]
      %v9444 = vld [vmem:[%s7 + $0x24] sm:$0xff]
      %v9445 = vld [vmem:[%s7 + $0x2c] sm:$0xf]
      %v9446 = vld [vmem:[%s7 + $0x30] sm:$0xff]
      %v9447 = vld [vmem:[%s7 + $0x38] sm:$0xf]
      %v9448 = vld [vmem:[%s7 + $0x3c] sm:$0xff]
      %v9449 = vld [vmem:[%s7 + $0x44] sm:$0xf]
      %v9450 = vld [vmem:[%s7 + $0x48] sm:$0xff]
      %v9451 = vld [vmem:[%s7 + $0x50] sm:$0xf]
      %v9452 = vld [vmem:[%s7 + $0x54] sm:$0xff]
      %v9453 = vld [vmem:[%s7 + $0x5c] sm:$0xf]
      %v9454 = vld [vmem:[%s8] sm:$0x7]
      %v9456 = vlaneseq
      %v9457 = vshrl.u32 %v9456, 7
      %v9458 = vsub.s32 0, %v9457
      %v9459 = vrot.slane %v9454, %v9458
      %v9460 = vlaneseq
      %v9461 = vshrl.u32 %v9460, 7
      %v9462 = vsub.s32 1, %v9461
      %v9463 = vrot.slane %v9454, %v9462
      %v9464 = vlaneseq
      %v9465 = vshrl.u32 %v9464, 7
      %v9466 = vsub.s32 2, %v9465
      %v9467 = vrot.slane %v9454, %v9466
      %v9487 = vunpack.c.l.b16 %v9438
      %v9488 = vunpack.c.h.b16 %v9438
      %v9489 = vunpack.c.l.b16 %v9439
      %v9490 = vunpack.c.l.b16 %v9440
      %v9491 = vunpack.c.h.b16 %v9440
      %v9492 = vunpack.c.l.b16 %v9441
      %v9493 = vunpack.c.l.b16 %v9442
      %v9494 = vunpack.c.h.b16 %v9442
      %v9495 = vunpack.c.l.b16 %v9443
      %v9496 = vunpack.c.l.b16 %v9444
      %v9497 = vunpack.c.h.b16 %v9444
      %v9498 = vunpack.c.l.b16 %v9445
      %v9499 = vunpack.c.l.b16 %v9446
      %v9500 = vunpack.c.h.b16 %v9446
      %v9501 = vunpack.c.l.b16 %v9447
      %v9502 = vunpack.c.l.b16 %v9448
      %v9503 = vunpack.c.h.b16 %v9448
      %v9504 = vunpack.c.l.b16 %v9449
      %v9505 = vunpack.c.l.b16 %v9450
      %v9506 = vunpack.c.h.b16 %v9450
      %v9507 = vunpack.c.l.b16 %v9451
      %v9508 = vunpack.c.l.b16 %v9452
      %v9509 = vunpack.c.h.b16 %v9452
      %v9510 = vunpack.c.l.b16 %v9453
      %v9511 = vpack.c.b16 %v9490, %v9487
      %v9512 = vpack.c.b16 %v9491, %v9488
      %v9513 = vpack.c.b16 %v9492, %v9489
      %v9514 = vpack.c.b16 %v9496, %v9493
      %v9515 = vpack.c.b16 %v9497, %v9494
      %v9516 = vpack.c.b16 %v9498, %v9495
      %v9517 = vpack.c.b16 %v9502, %v9499
      %v9518 = vpack.c.b16 %v9503, %v9500
      %v9519 = vpack.c.b16 %v9504, %v9501
      %v9520 = vpack.c.b16 %v9508, %v9505
      %v9521 = vpack.c.b16 %v9509, %v9506
      %v9522 = vpack.c.b16 %v9510, %v9507
      %v9536 = vsel %vm9063, %v9434, 0
      %v9539 = vsel %vm9063, %v9435, 0
      %v9542 = vsel %vm9063, %v9436, 0
      %v9545 = vsel %vm9063, %v9437, 0
      %9547 = vmatprep.subr.bf16.mxu0 0
      %9548 = vmatpush1.bf16.msra.mxu0 0
      %9549 = vmatprep.subr.bf16.mxu0 0
      %9550 = vmatpush1.bf16.msra.mxu0 0
      %9551 = vmatprep.subr.bf16.mxu0 0
      %9552 = vmatpush1.bf16.msra.mxu0 0
      %9553 = vmatprep.subr.bf16.mxu0 0
      %9554 = vmatpush1.bf16.msra.mxu0 0
      %9555 = vmatprep.subr.bf16.mxu0 %v9521
      %9556 = vmatpush1.bf16.msra.mxu0 %v9520
      %9557 = vmatprep.subr.bf16.mxu0 %v9518
      %9558 = vmatpush1.bf16.msra.mxu0 %v9517
      %9559 = vmatprep.subr.bf16.mxu0 %v9515
      %9560 = vmatpush1.bf16.msra.mxu0 %v9514
      %9561 = vmatprep.subr.bf16.mxu0 %v9512
      %9562 = vmatpush1.bf16.msra.mxu0 %v9511
      %9563 = vmatprep.subr.bf16.mxu0 0
      %9564 = vmatpush2.bf16.msra.mxu0 0
      %9565 = vmatprep.subr.bf16.mxu0 0
      %9566 = vmatpush2.bf16.msra.mxu0 0
      %9567 = vmatprep.subr.bf16.mxu0 0
      %9568 = vmatpush2.bf16.msra.mxu0 0
      %9569 = vmatprep.subr.bf16.mxu0 0
      %9570 = vmatpush2.bf16.msra.mxu0 0
      %9571 = vmatprep.subr.bf16.mxu0 0
      %9572 = vmatpush2.bf16.msra.mxu0 0
      %9573 = vmatprep.subr.bf16.mxu0 0
      %9574 = vmatpush2.bf16.msra.mxu0 0
      %9575 = vmatprep.subr.bf16.mxu0 0
      %9576 = vmatpush2.bf16.msra.mxu0 0
      %9577 = vmatprep.subr.bf16.mxu0 0
      %9578 = vmatpush2.bf16.msra.mxu0 0
      %9579 = vmatprep.mubr.bf16.mxu0 0
      %9580 = vmatmul.mubr.bf16.gmra.mxu0 %v9536
      %v9581 = vpop.f32.mrf.mxu0
      %v9582 = vadd.f32 %v9459, %v9581
      %v9583 = vpop.f32.mrf.mxu0
      %v9584 = vadd.f32 %v9463, %v9583
      %v9585 = vpop.f32.mrf.mxu0
      %v9586 = vadd.f32 %v9459, %v9585
      %v9587 = vpop.f32.mrf.mxu0
      %v9588 = vadd.f32 %v9463, %v9587
      %9589 = vmatprep.mubr.bf16.mxu0 0
      %9590 = vmatmul.mubr.bf16.gmra.mxu0 %v9539
      %v9591 = vpop.f32.mrf.mxu0
      %v9592 = vadd.f32 %v9459, %v9591
      %v9593 = vpop.f32.mrf.mxu0
      %v9594 = vadd.f32 %v9463, %v9593
      %v9595 = vpop.f32.mrf.mxu0
      %v9596 = vadd.f32 %v9459, %v9595
      %v9597 = vpop.f32.mrf.mxu0
      %v9598 = vadd.f32 %v9463, %v9597
      %9599 = vmatprep.mubr.bf16.mxu0 0
      %9600 = vmatmul.mubr.bf16.gmra.mxu0 %v9542
      %v9601 = vpop.f32.mrf.mxu0
      %v9602 = vadd.f32 %v9459, %v9601
      %v9603 = vpop.f32.mrf.mxu0
      %v9604 = vadd.f32 %v9463, %v9603
      %v9605 = vpop.f32.mrf.mxu0
      %v9606 = vadd.f32 %v9459, %v9605
      %v9607 = vpop.f32.mrf.mxu0
      %v9608 = vadd.f32 %v9463, %v9607
      %9609 = vmatprep.mubr.bf16.mxu0 0
      %9610 = vmatmul.mubr.bf16.gmra.mxu0 %v9545
      %v9611 = vpop.f32.mrf.mxu0
      %v9612 = vadd.f32 %v9459, %v9611
      %v9613 = vpop.f32.mrf.mxu0
      %v9614 = vadd.f32 %v9463, %v9613
      %v9615 = vpop.f32.mrf.mxu0
      %v9616 = vadd.f32 %v9459, %v9615
      %v9617 = vpop.f32.mrf.mxu0
      %v9618 = vadd.f32 %v9463, %v9617
      %9619 = vdwg.mxu0
      %9620 = vmatprep.subr.bf16.mxu0 0
      %9621 = vmatpush1.bf16.msra.mxu0 0
      %9622 = vmatprep.subr.bf16.mxu0 0
      %9623 = vmatpush1.bf16.msra.mxu0 0
      %9624 = vmatprep.subr.bf16.mxu0 0
      %9625 = vmatpush1.bf16.msra.mxu0 0
      %9626 = vmatprep.subr.bf16.mxu0 0
      %9627 = vmatpush1.bf16.msra.mxu0 0
      %9628 = vmatprep.subr.bf16.mxu0 0
      %9629 = vmatpush1.bf16.msra.mxu0 %v9522
      %9630 = vmatprep.subr.bf16.mxu0 0
      %9631 = vmatpush1.bf16.msra.mxu0 %v9519
      %9632 = vmatprep.subr.bf16.mxu0 0
      %9633 = vmatpush1.bf16.msra.mxu0 %v9516
      %9634 = vmatprep.subr.bf16.mxu0 0
      %9635 = vmatpush1.bf16.msra.mxu0 %v9513
      %9636 = vmatprep.subr.bf16.mxu0 0
      %9637 = vmatpush2.bf16.msra.mxu0 0
      %9638 = vmatprep.subr.bf16.mxu0 0
      %9639 = vmatpush2.bf16.msra.mxu0 0
      %9640 = vmatprep.subr.bf16.mxu0 0
      %9641 = vmatpush2.bf16.msra.mxu0 0
      %9642 = vmatprep.subr.bf16.mxu0 0
      %9643 = vmatpush2.bf16.msra.mxu0 0
      %9644 = vmatprep.subr.bf16.mxu0 0
      %9645 = vmatpush2.bf16.msra.mxu0 0
      %9646 = vmatprep.subr.bf16.mxu0 0
      %9647 = vmatpush2.bf16.msra.mxu0 0
      %9648 = vmatprep.subr.bf16.mxu0 0
      %9649 = vmatpush2.bf16.msra.mxu0 0
      %9650 = vmatprep.subr.bf16.mxu0 0
      %9651 = vmatpush2.bf16.msra.mxu0 0
      %9652 = vmatprep.mubr.bf16.mxu0 0
      %9653 = vmatmul.mubr.bf16.gmra.mxu0 %v9536
      %v9654 = vpop.f32.mrf.mxu0
      %v9655 = vadd.f32 %v9467, %v9654
      %v9656 = vpop.f32.mrf.mxu0
      %v9657 = vpop.f32.mrf.mxu0
      %v9658 = vadd.f32 %v9467, %v9657
      %v9659 = vpop.f32.mrf.mxu0
      %9660 = vmatprep.mubr.bf16.mxu0 0
      %9661 = vmatmul.mubr.bf16.gmra.mxu0 %v9539
      %v9662 = vpop.f32.mrf.mxu0
      %v9663 = vadd.f32 %v9467, %v9662
      %v9664 = vpop.f32.mrf.mxu0
      %v9665 = vpop.f32.mrf.mxu0
      %v9666 = vadd.f32 %v9467, %v9665
      %v9667 = vpop.f32.mrf.mxu0
      %9668 = vmatprep.mubr.bf16.mxu0 0
      %9669 = vmatmul.mubr.bf16.gmra.mxu0 %v9542
      %v9670 = vpop.f32.mrf.mxu0
      %v9671 = vadd.f32 %v9467, %v9670
      %v9672 = vpop.f32.mrf.mxu0
      %v9673 = vpop.f32.mrf.mxu0
      %v9674 = vadd.f32 %v9467, %v9673
      %v9675 = vpop.f32.mrf.mxu0
      %9676 = vmatprep.mubr.bf16.mxu0 0
      %9677 = vmatmul.mubr.bf16.gmra.mxu0 %v9545
      %v9678 = vpop.f32.mrf.mxu0
      %v9679 = vadd.f32 %v9467, %v9678
      %v9680 = vpop.f32.mrf.mxu0
      %v9681 = vpop.f32.mrf.mxu0
      %v9682 = vadd.f32 %v9467, %v9681
      %v9683 = vpop.f32.mrf.mxu0
      %9684 = vdwg.mxu0
      %v9685 = vsel %vm2495, %v9582, -inf
      %9686 = vmax.xlane.f32.xlu0 %v9685
      %v9687 = vpop.xlane.xlu0 %9686
      %v9688 = vsel %vm2495, %v9586, -inf
      %9689 = vmax.xlane.f32.xlu0 %v9688
      %v9690 = vpop.xlane.xlu0 %9689
      %v9691 = vsel %vm2495, %v9592, -inf
      %9692 = vmax.xlane.f32.xlu0 %v9691
      %v9693 = vpop.xlane.xlu0 %9692
      %v9694 = vsel %vm2495, %v9596, -inf
      %9695 = vmax.xlane.f32.xlu0 %v9694
      %v9696 = vpop.xlane.xlu0 %9695
      %v9697 = vsel %vm2495, %v9602, -inf
      %9698 = vmax.xlane.f32.xlu0 %v9697
      %v9699 = vpop.xlane.xlu0 %9698
      %v9700 = vsel %vm2495, %v9606, -inf
      %9701 = vmax.xlane.f32.xlu0 %v9700
      %v9702 = vpop.xlane.xlu0 %9701
      %v9703 = vsel %vm2495, %v9612, -inf
      %9704 = vmax.xlane.f32.xlu0 %v9703
      %v9705 = vpop.xlane.xlu0 %9704
      %v9706 = vsel %vm2495, %v9616, -inf
      %9707 = vmax.xlane.f32.xlu0 %v9706
      %v9708 = vpop.xlane.xlu0 %9707
      %v9709 = vsub.f32 %v9582, %v9687
      %v9710 = vsub.f32 %v9586, %v9690
      %v9711 = vsub.f32 %v9592, %v9693
      %v9712 = vsub.f32 %v9596, %v9696
      %v9713 = vsub.f32 %v9602, %v9699
      %v9714 = vsub.f32 %v9606, %v9702
      %v9715 = vsub.f32 %v9612, %v9705
      %v9716 = vsub.f32 %v9616, %v9708
      %v9717 = vmul.f32 %v9709, 1.442695
      %v9718 = vpow.pop %v9717
      %v9719 = vmul.f32 %v9710, 1.442695
      %v9720 = vpow.pop %v9719
      %v9721 = vmul.f32 %v9711, 1.442695
      %v9722 = vpow.pop %v9721
      %v9723 = vmul.f32 %v9712, 1.442695
      %v9724 = vpow.pop %v9723
      %v9725 = vmul.f32 %v9713, 1.442695
      %v9726 = vpow.pop %v9725
      %v9727 = vmul.f32 %v9714, 1.442695
      %v9728 = vpow.pop %v9727
      %v9729 = vmul.f32 %v9715, 1.442695
      %v9730 = vpow.pop %v9729
      %v9731 = vmul.f32 %v9716, 1.442695
      %v9732 = vpow.pop %v9731
      %v9733 = vsel %vm2495, %v9718, 0.0
      %9734 = vadd.xlane.f32.xlu0 %v9733
      %v9735 = vpop.xlane.xlu0 %9734
      %v9736 = vsel %vm2495, %v9720, 0.0
      %9737 = vadd.xlane.f32.xlu0 %v9736
      %v9738 = vpop.xlane.xlu0 %9737
      %v9739 = vsel %vm2495, %v9722, 0.0
      %9740 = vadd.xlane.f32.xlu0 %v9739
      %v9741 = vpop.xlane.xlu0 %9740
      %v9742 = vsel %vm2495, %v9724, 0.0
      %9743 = vadd.xlane.f32.xlu0 %v9742
      %v9744 = vpop.xlane.xlu0 %9743
      %v9745 = vsel %vm2495, %v9726, 0.0
      %9746 = vadd.xlane.f32.xlu0 %v9745
      %v9747 = vpop.xlane.xlu0 %9746
      %v9748 = vsel %vm2495, %v9728, 0.0
      %9749 = vadd.xlane.f32.xlu0 %v9748
      %v9750 = vpop.xlane.xlu0 %9749
      %v9751 = vsel %vm2495, %v9730, 0.0
      %9752 = vadd.xlane.f32.xlu0 %v9751
      %v9753 = vpop.xlane.xlu0 %9752
      %v9754 = vsel %vm2495, %v9732, 0.0
      %9755 = vadd.xlane.f32.xlu0 %v9754
      %v9756 = vpop.xlane.xlu0 %9755
      %v9757 = vrcp.pop %v9735
      %v9758 = vmul.f32 %v9718, %v9757
      %v9759 = vrcp.pop %v9738
      %v9760 = vmul.f32 %v9720, %v9759
      %v9761 = vrcp.pop %v9741
      %v9762 = vmul.f32 %v9722, %v9761
      %v9763 = vrcp.pop %v9744
      %v9764 = vmul.f32 %v9724, %v9763
      %v9765 = vrcp.pop %v9747
      %v9766 = vmul.f32 %v9726, %v9765
      %v9767 = vrcp.pop %v9750
      %v9768 = vmul.f32 %v9728, %v9767
      %v9769 = vrcp.pop %v9753
      %v9770 = vmul.f32 %v9730, %v9769
      %v9771 = vrcp.pop %v9756
      %v9772 = vmul.f32 %v9732, %v9771
      %v9773 = vsub.f32 0.0, %v9582
      %v9774 = vsub.f32 0.0, %v9586
      %v9775 = vsub.f32 0.0, %v9592
      %v9776 = vsub.f32 0.0, %v9596
      %v9777 = vsub.f32 0.0, %v9602
      %v9778 = vsub.f32 0.0, %v9606
      %v9779 = vsub.f32 0.0, %v9612
      %v9780 = vsub.f32 0.0, %v9616
      %v9781 = vmul.f32 %v9773, 1.442695
      %v9782 = vpow.pop %v9781
      %v9783 = vmul.f32 %v9774, 1.442695
      %v9784 = vpow.pop %v9783
      %v9785 = vmul.f32 %v9775, 1.442695
      %v9786 = vpow.pop %v9785
      %v9787 = vmul.f32 %v9776, 1.442695
      %v9788 = vpow.pop %v9787
      %v9789 = vmul.f32 %v9777, 1.442695
      %v9790 = vpow.pop %v9789
      %v9791 = vmul.f32 %v9778, 1.442695
      %v9792 = vpow.pop %v9791
      %v9793 = vmul.f32 %v9779, 1.442695
      %v9794 = vpow.pop %v9793
      %v9795 = vmul.f32 %v9780, 1.442695
      %v9796 = vpow.pop %v9795
      %v9797 = vadd.f32 %v9782, 1.0
      %v9798 = vadd.f32 %v9784, 1.0
      %v9799 = vadd.f32 %v9786, 1.0
      %v9800 = vadd.f32 %v9788, 1.0
      %v9801 = vadd.f32 %v9790, 1.0
      %v9802 = vadd.f32 %v9792, 1.0
      %v9803 = vadd.f32 %v9794, 1.0
      %v9804 = vadd.f32 %v9796, 1.0
      %v9805 = vrcp.pop %v9797
      %v9806 = vmul.f32 1.0, %v9805
      %v9807 = vrcp.pop %v9798
      %v9808 = vmul.f32 1.0, %v9807
      %v9809 = vrcp.pop %v9799
      %v9810 = vmul.f32 1.0, %v9809
      %v9811 = vrcp.pop %v9800
      %v9812 = vmul.f32 1.0, %v9811
      %v9813 = vrcp.pop %v9801
      %v9814 = vmul.f32 1.0, %v9813
      %v9815 = vrcp.pop %v9802
      %v9816 = vmul.f32 1.0, %v9815
      %v9817 = vrcp.pop %v9803
      %v9818 = vmul.f32 1.0, %v9817
      %v9819 = vrcp.pop %v9804
      %v9820 = vmul.f32 1.0, %v9819
      %9829 = vrot.lane.b32.xlu0 %v9758, 80
      %v9830 = vpop.permute.xlu0 %9829
      %9831 = vrot.lane.b32.xlu0 %v9760, 80
      %v9832 = vpop.permute.xlu0 %9831
      %9833 = vrot.lane.b32.xlu0 %v9762, 80
      %v9834 = vpop.permute.xlu0 %9833
      %9835 = vrot.lane.b32.xlu0 %v9764, 80
      %v9836 = vpop.permute.xlu0 %9835
      %9837 = vrot.lane.b32.xlu0 %v9766, 80
      %v9838 = vpop.permute.xlu0 %9837
      %9839 = vrot.lane.b32.xlu0 %v9768, 80
      %v9840 = vpop.permute.xlu0 %9839
      %9841 = vrot.lane.b32.xlu0 %v9770, 80
      %v9842 = vpop.permute.xlu0 %9841
      %9843 = vrot.lane.b32.xlu0 %v9772, 80
      %v9844 = vpop.permute.xlu0 %9843
      %v9853 = vmul.f32 %v9806, %v9830
      %v9854 = vmul.f32 %v9808, %v9832
      %v9855 = vmul.f32 %v9810, %v9834
      %v9856 = vmul.f32 %v9812, %v9836
      %v9857 = vmul.f32 %v9814, %v9838
      %v9858 = vmul.f32 %v9816, %v9840
      %v9859 = vmul.f32 %v9818, %v9842
      %v9860 = vmul.f32 %v9820, %v9844
      %v9861 = vmax.f32 %v9853, 0.0
      %v9862 = vmax.f32 %v9854, 0.0
      %v9863 = vmax.f32 %v9855, 0.0
      %v9864 = vmax.f32 %v9856, 0.0
      %v9865 = vmax.f32 %v9857, 0.0
      %v9866 = vmax.f32 %v9858, 0.0
      %v9867 = vmax.f32 %v9859, 0.0
      %v9868 = vmax.f32 %v9860, 0.0
      %v9869 = vsel %vm2495, %v9584, -inf
      %9870 = vmax.xlane.f32.xlu0 %v9869
      %v9871 = vpop.xlane.xlu0 %9870
      %v9872 = vsel %vm2495, %v9588, -inf
      %9873 = vmax.xlane.f32.xlu0 %v9872
      %v9874 = vpop.xlane.xlu0 %9873
      %v9875 = vsel %vm2495, %v9594, -inf
      %9876 = vmax.xlane.f32.xlu0 %v9875
      %v9877 = vpop.xlane.xlu0 %9876
      %v9878 = vsel %vm2495, %v9598, -inf
      %9879 = vmax.xlane.f32.xlu0 %v9878
      %v9880 = vpop.xlane.xlu0 %9879
      %v9881 = vsel %vm2495, %v9604, -inf
      %9882 = vmax.xlane.f32.xlu0 %v9881
      %v9883 = vpop.xlane.xlu0 %9882
      %v9884 = vsel %vm2495, %v9608, -inf
      %9885 = vmax.xlane.f32.xlu0 %v9884
      %v9886 = vpop.xlane.xlu0 %9885
      %v9887 = vsel %vm2495, %v9614, -inf
      %9888 = vmax.xlane.f32.xlu0 %v9887
      %v9889 = vpop.xlane.xlu0 %9888
      %v9890 = vsel %vm2495, %v9618, -inf
      %9891 = vmax.xlane.f32.xlu0 %v9890
      %v9892 = vpop.xlane.xlu0 %9891
      %v9893 = vsub.f32 %v9584, %v9871
      %v9894 = vsub.f32 %v9588, %v9874
      %v9895 = vsub.f32 %v9594, %v9877
      %v9896 = vsub.f32 %v9598, %v9880
      %v9897 = vsub.f32 %v9604, %v9883
      %v9898 = vsub.f32 %v9608, %v9886
      %v9899 = vsub.f32 %v9614, %v9889
      %v9900 = vsub.f32 %v9618, %v9892
      %v9901 = vmul.f32 %v9893, 1.442695
      %v9902 = vpow.pop %v9901
      %v9903 = vmul.f32 %v9894, 1.442695
      %v9904 = vpow.pop %v9903
      %v9905 = vmul.f32 %v9895, 1.442695
      %v9906 = vpow.pop %v9905
      %v9907 = vmul.f32 %v9896, 1.442695
      %v9908 = vpow.pop %v9907
      %v9909 = vmul.f32 %v9897, 1.442695
      %v9910 = vpow.pop %v9909
      %v9911 = vmul.f32 %v9898, 1.442695
      %v9912 = vpow.pop %v9911
      %v9913 = vmul.f32 %v9899, 1.442695
      %v9914 = vpow.pop %v9913
      %v9915 = vmul.f32 %v9900, 1.442695
      %v9916 = vpow.pop %v9915
      %v9917 = vsel %vm2495, %v9902, 0.0
      %9918 = vadd.xlane.f32.xlu0 %v9917
      %v9919 = vpop.xlane.xlu0 %9918
      %v9920 = vsel %vm2495, %v9904, 0.0
      %9921 = vadd.xlane.f32.xlu0 %v9920
      %v9922 = vpop.xlane.xlu0 %9921
      %v9923 = vsel %vm2495, %v9906, 0.0
      %9924 = vadd.xlane.f32.xlu0 %v9923
      %v9925 = vpop.xlane.xlu0 %9924
      %v9926 = vsel %vm2495, %v9908, 0.0
      %9927 = vadd.xlane.f32.xlu0 %v9926
      %v9928 = vpop.xlane.xlu0 %9927
      %v9929 = vsel %vm2495, %v9910, 0.0
      %9930 = vadd.xlane.f32.xlu0 %v9929
      %v9931 = vpop.xlane.xlu0 %9930
      %v9932 = vsel %vm2495, %v9912, 0.0
      %9933 = vadd.xlane.f32.xlu0 %v9932
      %v9934 = vpop.xlane.xlu0 %9933
      %v9935 = vsel %vm2495, %v9914, 0.0
      %9936 = vadd.xlane.f32.xlu0 %v9935
      %v9937 = vpop.xlane.xlu0 %9936
      %v9938 = vsel %vm2495, %v9916, 0.0
      %9939 = vadd.xlane.f32.xlu0 %v9938
      %v9940 = vpop.xlane.xlu0 %9939
      %v9941 = vrcp.pop %v9919
      %v9942 = vmul.f32 %v9902, %v9941
      %v9943 = vrcp.pop %v9922
      %v9944 = vmul.f32 %v9904, %v9943
      %v9945 = vrcp.pop %v9925
      %v9946 = vmul.f32 %v9906, %v9945
      %v9947 = vrcp.pop %v9928
      %v9948 = vmul.f32 %v9908, %v9947
      %v9949 = vrcp.pop %v9931
      %v9950 = vmul.f32 %v9910, %v9949
      %v9951 = vrcp.pop %v9934
      %v9952 = vmul.f32 %v9912, %v9951
      %v9953 = vrcp.pop %v9937
      %v9954 = vmul.f32 %v9914, %v9953
      %v9955 = vrcp.pop %v9940
      %v9956 = vmul.f32 %v9916, %v9955
      %v9957 = vsub.f32 0.0, %v9584
      %v9958 = vsub.f32 0.0, %v9588
      %v9959 = vsub.f32 0.0, %v9594
      %v9960 = vsub.f32 0.0, %v9598
      %v9961 = vsub.f32 0.0, %v9604
      %v9962 = vsub.f32 0.0, %v9608
      %v9963 = vsub.f32 0.0, %v9614
      %v9964 = vsub.f32 0.0, %v9618
      %v9965 = vmul.f32 %v9957, 1.442695
      %v9966 = vpow.pop %v9965
      %v9967 = vmul.f32 %v9958, 1.442695
      %v9968 = vpow.pop %v9967
      %v9969 = vmul.f32 %v9959, 1.442695
      %v9970 = vpow.pop %v9969
      %v9971 = vmul.f32 %v9960, 1.442695
      %v9972 = vpow.pop %v9971
      %v9973 = vmul.f32 %v9961, 1.442695
      %v9974 = vpow.pop %v9973
      %v9975 = vmul.f32 %v9962, 1.442695
      %v9976 = vpow.pop %v9975
      %v9977 = vmul.f32 %v9963, 1.442695
      %v9978 = vpow.pop %v9977
      %v9979 = vmul.f32 %v9964, 1.442695
      %v9980 = vpow.pop %v9979
      %v9981 = vadd.f32 %v9966, 1.0
      %v9982 = vadd.f32 %v9968, 1.0
      %v9983 = vadd.f32 %v9970, 1.0
      %v9984 = vadd.f32 %v9972, 1.0
      %v9985 = vadd.f32 %v9974, 1.0
      %v9986 = vadd.f32 %v9976, 1.0
      %v9987 = vadd.f32 %v9978, 1.0
      %v9988 = vadd.f32 %v9980, 1.0
      %v9989 = vrcp.pop %v9981
      %v9990 = vmul.f32 1.0, %v9989
      %v9991 = vrcp.pop %v9982
      %v9992 = vmul.f32 1.0, %v9991
      %v9993 = vrcp.pop %v9983
      %v9994 = vmul.f32 1.0, %v9993
      %v9995 = vrcp.pop %v9984
      %v9996 = vmul.f32 1.0, %v9995
      %v9997 = vrcp.pop %v9985
      %v9998 = vmul.f32 1.0, %v9997
      %v9999 = vrcp.pop %v9986
      %v10000 = vmul.f32 1.0, %v9999
      %v10001 = vrcp.pop %v9987
      %v10002 = vmul.f32 1.0, %v10001
      %v10003 = vrcp.pop %v9988
      %v10004 = vmul.f32 1.0, %v10003
      %10013 = vrot.lane.b32.xlu0 %v9942, 80
      %v10014 = vpop.permute.xlu0 %10013
      %10015 = vrot.lane.b32.xlu0 %v9944, 80
      %v10016 = vpop.permute.xlu0 %10015
      %10017 = vrot.lane.b32.xlu0 %v9946, 80
      %v10018 = vpop.permute.xlu0 %10017
      %10019 = vrot.lane.b32.xlu0 %v9948, 80
      %v10020 = vpop.permute.xlu0 %10019
      %10021 = vrot.lane.b32.xlu0 %v9950, 80
      %v10022 = vpop.permute.xlu0 %10021
      %10023 = vrot.lane.b32.xlu0 %v9952, 80
      %v10024 = vpop.permute.xlu0 %10023
      %10025 = vrot.lane.b32.xlu0 %v9954, 80
      %v10026 = vpop.permute.xlu0 %10025
      %10027 = vrot.lane.b32.xlu0 %v9956, 80
      %v10028 = vpop.permute.xlu0 %10027
      %v10037 = vmul.f32 %v9990, %v10014
      %v10038 = vmul.f32 %v9992, %v10016
      %v10039 = vmul.f32 %v9994, %v10018
      %v10040 = vmul.f32 %v9996, %v10020
      %v10041 = vmul.f32 %v9998, %v10022
      %v10042 = vmul.f32 %v10000, %v10024
      %v10043 = vmul.f32 %v10002, %v10026
      %v10044 = vmul.f32 %v10004, %v10028
      %v10045 = vmax.f32 %v9861, %v10037
      %v10046 = vmax.f32 %v9862, %v10038
      %v10047 = vmax.f32 %v9863, %v10039
      %v10048 = vmax.f32 %v9864, %v10040
      %v10049 = vmax.f32 %v9865, %v10041
      %v10050 = vmax.f32 %v9866, %v10042
      %v10051 = vmax.f32 %v9867, %v10043
      %v10052 = vmax.f32 %v9868, %v10044
      %v10053 = vsel %vm2495, %v9655, -inf
      %10054 = vmax.xlane.f32.xlu0 %v10053
      %v10055 = vpop.xlane.xlu0 %10054
      %v10056 = vsel %vm2495, %v9658, -inf
      %10057 = vmax.xlane.f32.xlu0 %v10056
      %v10058 = vpop.xlane.xlu0 %10057
      %v10059 = vsel %vm2495, %v9663, -inf
      %10060 = vmax.xlane.f32.xlu0 %v10059
      %v10061 = vpop.xlane.xlu0 %10060
      %v10062 = vsel %vm2495, %v9666, -inf
      %10063 = vmax.xlane.f32.xlu0 %v10062
      %v10064 = vpop.xlane.xlu0 %10063
      %v10065 = vsel %vm2495, %v9671, -inf
      %10066 = vmax.xlane.f32.xlu0 %v10065
      %v10067 = vpop.xlane.xlu0 %10066
      %v10068 = vsel %vm2495, %v9674, -inf
      %10069 = vmax.xlane.f32.xlu0 %v10068
      %v10070 = vpop.xlane.xlu0 %10069
      %v10071 = vsel %vm2495, %v9679, -inf
      %10072 = vmax.xlane.f32.xlu0 %v10071
      %v10073 = vpop.xlane.xlu0 %10072
      %v10074 = vsel %vm2495, %v9682, -inf
      %10075 = vmax.xlane.f32.xlu0 %v10074
      %v10076 = vpop.xlane.xlu0 %10075
      %v10077 = vsub.f32 %v9655, %v10055
      %v10078 = vsub.f32 %v9658, %v10058
      %v10079 = vsub.f32 %v9663, %v10061
      %v10080 = vsub.f32 %v9666, %v10064
      %v10081 = vsub.f32 %v9671, %v10067
      %v10082 = vsub.f32 %v9674, %v10070
      %v10083 = vsub.f32 %v9679, %v10073
      %v10084 = vsub.f32 %v9682, %v10076
      %v10085 = vmul.f32 %v10077, 1.442695
      %v10086 = vpow.pop %v10085
      %v10087 = vmul.f32 %v10078, 1.442695
      %v10088 = vpow.pop %v10087
      %v10089 = vmul.f32 %v10079, 1.442695
      %v10090 = vpow.pop %v10089
      %v10091 = vmul.f32 %v10080, 1.442695
      %v10092 = vpow.pop %v10091
      %v10093 = vmul.f32 %v10081, 1.442695
      %v10094 = vpow.pop %v10093
      %v10095 = vmul.f32 %v10082, 1.442695
      %v10096 = vpow.pop %v10095
      %v10097 = vmul.f32 %v10083, 1.442695
      %v10098 = vpow.pop %v10097
      %v10099 = vmul.f32 %v10084, 1.442695
      %v10100 = vpow.pop %v10099
      %v10101 = vsel %vm2495, %v10086, 0.0
      %10102 = vadd.xlane.f32.xlu0 %v10101
      %v10103 = vpop.xlane.xlu0 %10102
      %v10104 = vsel %vm2495, %v10088, 0.0
      %10105 = vadd.xlane.f32.xlu0 %v10104
      %v10106 = vpop.xlane.xlu0 %10105
      %v10107 = vsel %vm2495, %v10090, 0.0
      %10108 = vadd.xlane.f32.xlu0 %v10107
      %v10109 = vpop.xlane.xlu0 %10108
      %v10110 = vsel %vm2495, %v10092, 0.0
      %10111 = vadd.xlane.f32.xlu0 %v10110
      %v10112 = vpop.xlane.xlu0 %10111
      %v10113 = vsel %vm2495, %v10094, 0.0
      %10114 = vadd.xlane.f32.xlu0 %v10113
      %v10115 = vpop.xlane.xlu0 %10114
      %v10116 = vsel %vm2495, %v10096, 0.0
      %10117 = vadd.xlane.f32.xlu0 %v10116
      %v10118 = vpop.xlane.xlu0 %10117
      %v10119 = vsel %vm2495, %v10098, 0.0
      %10120 = vadd.xlane.f32.xlu0 %v10119
      %v10121 = vpop.xlane.xlu0 %10120
      %v10122 = vsel %vm2495, %v10100, 0.0
      %10123 = vadd.xlane.f32.xlu0 %v10122
      %v10124 = vpop.xlane.xlu0 %10123
      %v10125 = vrcp.pop %v10103
      %v10126 = vmul.f32 %v10086, %v10125
      %v10127 = vrcp.pop %v10106
      %v10128 = vmul.f32 %v10088, %v10127
      %v10129 = vrcp.pop %v10109
      %v10130 = vmul.f32 %v10090, %v10129
      %v10131 = vrcp.pop %v10112
      %v10132 = vmul.f32 %v10092, %v10131
      %v10133 = vrcp.pop %v10115
      %v10134 = vmul.f32 %v10094, %v10133
      %v10135 = vrcp.pop %v10118
      %v10136 = vmul.f32 %v10096, %v10135
      %v10137 = vrcp.pop %v10121
      %v10138 = vmul.f32 %v10098, %v10137
      %v10139 = vrcp.pop %v10124
      %v10140 = vmul.f32 %v10100, %v10139
      %v10141 = vsub.f32 0.0, %v9655
      %v10142 = vsub.f32 0.0, %v9658
      %v10143 = vsub.f32 0.0, %v9663
      %v10144 = vsub.f32 0.0, %v9666
      %v10145 = vsub.f32 0.0, %v9671
      %v10146 = vsub.f32 0.0, %v9674
      %v10147 = vsub.f32 0.0, %v9679
      %v10148 = vsub.f32 0.0, %v9682
      %v10149 = vmul.f32 %v10141, 1.442695
      %v10150 = vpow.pop %v10149
      %v10151 = vmul.f32 %v10142, 1.442695
      %v10152 = vpow.pop %v10151
      %v10153 = vmul.f32 %v10143, 1.442695
      %v10154 = vpow.pop %v10153
      %v10155 = vmul.f32 %v10144, 1.442695
      %v10156 = vpow.pop %v10155
      %v10157 = vmul.f32 %v10145, 1.442695
      %v10158 = vpow.pop %v10157
      %v10159 = vmul.f32 %v10146, 1.442695
      %v10160 = vpow.pop %v10159
      %v10161 = vmul.f32 %v10147, 1.442695
      %v10162 = vpow.pop %v10161
      %v10163 = vmul.f32 %v10148, 1.442695
      %v10164 = vpow.pop %v10163
      %v10165 = vadd.f32 %v10150, 1.0
      %v10166 = vadd.f32 %v10152, 1.0
      %v10167 = vadd.f32 %v10154, 1.0
      %v10168 = vadd.f32 %v10156, 1.0
      %v10169 = vadd.f32 %v10158, 1.0
      %v10170 = vadd.f32 %v10160, 1.0
      %v10171 = vadd.f32 %v10162, 1.0
      %v10172 = vadd.f32 %v10164, 1.0
      %v10173 = vrcp.pop %v10165
      %v10174 = vmul.f32 1.0, %v10173
      %v10175 = vrcp.pop %v10166
      %v10176 = vmul.f32 1.0, %v10175
      %v10177 = vrcp.pop %v10167
      %v10178 = vmul.f32 1.0, %v10177
      %v10179 = vrcp.pop %v10168
      %v10180 = vmul.f32 1.0, %v10179
      %v10181 = vrcp.pop %v10169
      %v10182 = vmul.f32 1.0, %v10181
      %v10183 = vrcp.pop %v10170
      %v10184 = vmul.f32 1.0, %v10183
      %v10185 = vrcp.pop %v10171
      %v10186 = vmul.f32 1.0, %v10185
      %v10187 = vrcp.pop %v10172
      %v10188 = vmul.f32 1.0, %v10187
      %10197 = vrot.lane.b32.xlu0 %v10126, 80
      %v10198 = vpop.permute.xlu0 %10197
      %10199 = vrot.lane.b32.xlu0 %v10128, 80
      %v10200 = vpop.permute.xlu0 %10199
      %10201 = vrot.lane.b32.xlu0 %v10130, 80
      %v10202 = vpop.permute.xlu0 %10201
      %10203 = vrot.lane.b32.xlu0 %v10132, 80
      %v10204 = vpop.permute.xlu0 %10203
      %10205 = vrot.lane.b32.xlu0 %v10134, 80
      %v10206 = vpop.permute.xlu0 %10205
      %10207 = vrot.lane.b32.xlu0 %v10136, 80
      %v10208 = vpop.permute.xlu0 %10207
      %10209 = vrot.lane.b32.xlu0 %v10138, 80
      %v10210 = vpop.permute.xlu0 %10209
      %10211 = vrot.lane.b32.xlu0 %v10140, 80
      %v10212 = vpop.permute.xlu0 %10211
      %v10221 = vmul.f32 %v10174, %v10198
      %v10222 = vmul.f32 %v10176, %v10200
      %v10223 = vmul.f32 %v10178, %v10202
      %v10224 = vmul.f32 %v10180, %v10204
      %v10225 = vmul.f32 %v10182, %v10206
      %v10226 = vmul.f32 %v10184, %v10208
      %v10227 = vmul.f32 %v10186, %v10210
      %v10228 = vmul.f32 %v10188, %v10212
      %v10229 = vmax.f32 %v10045, %v10221
      %v10230 = vmax.f32 %v10046, %v10222
      %v10231 = vmax.f32 %v10047, %v10223
      %v10232 = vmax.f32 %v10048, %v10224
      %v10233 = vmax.f32 %v10049, %v10225
      %v10234 = vmax.f32 %v10050, %v10226
      %v10235 = vmax.f32 %v10051, %v10227
      %v10236 = vmax.f32 %v10052, %v10228
      %v10237 = vsel %vm4704, %v10229, -inf
      %v10238 = vsel %vm4704, %v10230, -inf
      %v10239 = vsel %vm4704, %v10231, -inf
      %v10240 = vsel %vm4704, %v10232, -inf
      %v10241 = vsel %vm4704, %v10233, -inf
      %v10242 = vmax.f32 %v10237, %v10241
      %v10243 = vsel %vm4704, %v10234, -inf
      %v10244 = vmax.f32 %v10238, %v10243
      %v10245 = vsel %vm4704, %v10235, -inf
      %v10246 = vmax.f32 %v10239, %v10245
      %v10247 = vsel %vm4704, %v10236, -inf
      %v10248 = vmax.f32 %v10240, %v10247
      %v10249 = vmax.f32 %v10242, %v10244
      %v10250 = vmax.f32 %v10246, %v10248
      %v10251 = vmax.f32 %v10249, %v10250
      %v10252 = vrot.slane %v10251, 4
      %v10253 = vmax.f32 %v10251, %v10252
      %v10254 = vrot.slane %v10253, 2
      %v10255 = vmax.f32 %v10253, %v10254
      %v10256 = vrot.slane %v10255, 1
      %v10257 = vmax.f32 %v10255, %v10256
      %v10258 = vmax.f32 %v4773, %v10257
      %10260 = vrot.lane.b32.xlu0 %v10258, 48
      %v10261 = vpop.permute.xlu0 %10260
      %vm10263 = vcmask 0
      %10264 = vst.msk [vmem:[%s328] sm:$0x1] %vm10263, %v10261
      %p10265 = scmp.lt.s32.totalorder %s20, 1
      %s10266 = scalar_select %p10265, %s20, 1
      %s10267 = scalar_lea.vmem %s9, %s10266
      // Predicated region
      $region57: #{yolo_forward.1} parent=55 // pred_check
        %p10268 = pneg %p232
      $region58: #{yolo_forward.1} parent=55 // pred_check_branch
        %10270 = sbr.rel (%p10268) target = $region60
      $region59: #{yolo_forward.1} parent=55 // pred_region
        _
      $region60: #{yolo_forward.1} parent=55 // pred_fallthru
        _
    $region56: #{yolo_forward.1} parent=5 // pred_fallthru
      _
    %p10271 = scmp.le.s32.totalorder 2, %s15
    // Predicated region
    $region61: #{yolo_forward.1} parent=5 // pred_check
      %p10272 = pneg %p10271
    $region62: #{yolo_forward.1} parent=5 // pred_check_branch
      %10274 = sbr.rel (%p10272) target = $region64
    $region63: #{yolo_forward.1} parent=5 // pred_region
      %s10275 = ssub.s32 %s15, 2
      // Predicated region
      $region65: #{yolo_forward.1} parent=63 // pred_check
        %p10276 = pneg %p238
      $region66: #{yolo_forward.1} parent=63 // pred_check_branch
        %10278 = sbr.rel (%p10276) target = $region68
      $region67: #{yolo_forward.1} parent=63 // pred_region
        %p10279 = scmp.lt.s32.totalorder %s21, 1
        %s10280 = scalar_select %p10279, %s21, 1
        %s10281 = scalar_lea.vmem %s9, %s10280
      $region68: #{yolo_forward.1} parent=63 // pred_fallthru
        _
    $region64: #{yolo_forward.1} parent=5 // pred_fallthru
      _
  $region6: #{yolo_forward.1} parent=0 // loop_footer
    %s19 = sadd.s32 1, %s15
  $region7: #{yolo_forward.1} parent=0 // loop_footer_branch
    %14 = sbr.rel target = $region3
  $region8: #{yolo_forward.1} parent=0 // loop_exit
    _

</llo_original>
